<compile_context>
chip_gen: v7x
topology: tpu7x:2x2x1
jax: 0.10.0
libtpu: 0.0.40
codegen_flags: <defaults>
</compile_context>

<pallas_src>
import functools

import jax
import jax.numpy as jnp
from jax.experimental import pallas as pl
from jax.experimental.pallas import tpu as pltpu

LANE = 128          # TPU lane width; all channel dims are padded to this
BN_EPS = 1e-5
LEAKY_SLOPE = 0.1


# ----------------------------------------------------------------------------
# Fused per-head Pallas kernel: CBL(1x1) -> CBL(3x3) -> CBL(1x1) -> CBL(3x3)
#                               -> 1x1 conv + bias
# ----------------------------------------------------------------------------
def _head_kernel(x_ref,
                 w0_ref, s0_ref, b0_ref,
                 w1_ref, s1_ref, b1_ref,
                 w2_ref, s2_ref, b2_ref,
                 w3_ref, s3_ref, b3_ref,
                 w4_ref, b4_ref,
                 o_ref, pad_ref,
                 *, H, W, slope):
    C = x_ref.shape[-1]      # lane-padded channel width (128)
    M = H * W

    # Zero the halo buffer once per grid step; both 3x3 layers overwrite only
    # the interior, so the 1-pixel border stays zero.
    pad_ref[...] = jnp.zeros_like(pad_ref)

    def bn_leaky(y, s_ref, b_ref):
        y = y * s_ref[...] + b_ref[...]
        return jnp.where(y > 0, y, slope * y)

    def cbl_1x1(a, w_ref, s_ref, b_ref):
        y = jnp.dot(a.astype(jnp.bfloat16), w_ref[...],
                    preferred_element_type=jnp.float32)
        return bn_leaky(y, s_ref, b_ref)

    def cbl_3x3(a, w_ref, s_ref, b_ref):
        # write the activation into the zero-padded VMEM scratch (halo = 0)
        pad_ref[:, 1:H + 1, 1:W + 1, :] = a.reshape(1, H, W, C)
        acc = jnp.zeros((M, C), jnp.float32)
        for dy in range(3):
            for dx in range(3):
                patch = pad_ref[:, dy:dy + H, dx:dx + W, :]
                patch = patch.reshape(M, C).astype(jnp.bfloat16)
                acc = acc + jnp.dot(patch, w_ref[dy * 3 + dx],
                                    preferred_element_type=jnp.float32)
        return bn_leaky(acc, s_ref, b_ref)

    a = x_ref[0]                                   # (M, C) bf16, lane-dense
    a = cbl_1x1(a, w0_ref, s0_ref, b0_ref)
    a = cbl_3x3(a, w1_ref, s1_ref, b1_ref)
    a = cbl_1x1(a, w2_ref, s2_ref, b2_ref)
    a = cbl_3x3(a, w3_ref, s3_ref, b3_ref)
    # final 1x1 conv WITH bias, no BN, no activation
    y = jnp.dot(a.astype(jnp.bfloat16), w4_ref[...],
                preferred_element_type=jnp.float32) + b4_ref[...]
    o_ref[...] = y.reshape(1, M, C)


# ----------------------------------------------------------------------------
# Wrapper: one pallas_call per head (whole 5-layer stack fused)
# ----------------------------------------------------------------------------
def _head_forward(x_nchw, head, num_classes):
    N, cin, H, W = x_nchw.shape
    assert cin <= LANE
    nco = 3 * (num_classes + 5)

    # glue: NCHW -> NHWC, zero-pad channels to the 128-lane width, cast bf16,
    # flatten spatial so the kernel sees lane-dense (H*W, 128) matmul operands.
    x = jnp.transpose(x_nchw, (0, 2, 3, 1))
    x = jnp.pad(x, ((0, 0), (0, 0), (0, 0), (0, LANE - cin)))
    x = x.astype(jnp.bfloat16).reshape(N, H * W, LANE)

    kernel = functools.partial(_head_kernel, H=H, W=W, slope=LEAKY_SLOPE)

    mat_spec = pl.BlockSpec((LANE, LANE), lambda n: (0, 0))
    tap_spec = pl.BlockSpec((9, LANE, LANE), lambda n: (0, 0, 0))
    vec_spec = pl.BlockSpec((1, LANE), lambda n: (0, 0))
    act_spec = pl.BlockSpec((1, H * W, LANE), lambda n: (n, 0, 0))

    out = pl.pallas_call(
        kernel,
        out_shape=jax.ShapeDtypeStruct((N, H * W, LANE), jnp.float32),
        grid=(N,),
        in_specs=[
            act_spec,
            mat_spec, vec_spec, vec_spec,     # CBL0: 1x1
            tap_spec, vec_spec, vec_spec,     # CBL1: 3x3
            mat_spec, vec_spec, vec_spec,     # CBL2: 1x1
            tap_spec, vec_spec, vec_spec,     # CBL3: 3x3
            mat_spec, vec_spec,               # final 1x1 conv + bias
        ],
        out_specs=act_spec,
        scratch_shapes=[
            pltpu.VMEM((1, H + 2, W + 2, LANE), jnp.float32),
        ],
        compiler_params=pltpu.CompilerParams(
            dimension_semantics=("parallel",)),
    )(x,
      head["cbl0"]["w"], head["cbl0"]["scale"], head["cbl0"]["bias"],
      head["cbl1"]["w"], head["cbl1"]["scale"], head["cbl1"]["bias"],
      head["cbl2"]["w"], head["cbl2"]["scale"], head["cbl2"]["bias"],
      head["cbl3"]["w"], head["cbl3"]["scale"], head["cbl3"]["bias"],
      head["final"]["w"], head["final"]["bias"])

    # glue: drop lane padding, reshape+permute to the PyTorch
    # (N, 3, H, W, num_classes+5) output layout.
    y = out[..., :nco].reshape(N, H, W, 3, num_classes + 5)
    return jnp.transpose(y, (0, 3, 1, 2, 4))


def detection_head(c3_nchw, c4_nchw, c5_nchw, params, num_classes):
    o3 = _head_forward(c3_nchw, params["c3head"], num_classes)
    o4 = _head_forward(c4_nchw, params["c4head"], num_classes)
    o5 = _head_forward(c5_nchw, params["c5head"], num_classes)
    return o3, o4, o5


# ----------------------------------------------------------------------------
# Parameter construction (deterministic synthetic weights, lane-padded + bf16)
# ----------------------------------------------------------------------------
def _make_cbl(key, cin, cout, ksize):
    assert cin <= LANE and cout <= LANE
    kw, kg, kb, km, kv = jax.random.split(key, 5)
    if ksize == 1:
        w = jax.random.normal(kw, (cin, cout), jnp.float32) * 0.05
        wp = jnp.zeros((LANE, LANE), jnp.float32).at[:cin, :cout].set(w)
    else:
        w = jax.random.normal(kw, (9, cin, cout), jnp.float32) * 0.05
        wp = jnp.zeros((9, LANE, LANE), jnp.float32).at[:, :cin, :cout].set(w)
    gamma = 1.0 + 0.1 * jax.random.normal(kg, (cout,), jnp.float32)
    beta = 0.1 * jax.random.normal(kb, (cout,), jnp.float32)
    running_mean = 0.1 * jax.random.normal(km, (cout,), jnp.float32)
    running_var = jnp.abs(jax.random.normal(kv, (cout,), jnp.float32)) + 0.5
    # fold eval-mode BatchNorm into a per-channel affine
    scale = gamma / jnp.sqrt(running_var + BN_EPS)
    bias = beta - running_mean * scale
    # padded channels: scale=1, bias=0 -> stay exactly zero through LeakyReLU
    scale_p = jnp.ones((LANE,), jnp.float32).at[:cout].set(scale)
    bias_p = jnp.zeros((LANE,), jnp.float32).at[:cout].set(bias)
    return {"ksize": ksize, "w": wp.astype(jnp.bfloat16),
            "scale": scale_p.reshape(1, LANE), "bias": bias_p.reshape(1, LANE)}


def _make_head(key, c, num_classes):
    keys = jax.random.split(key, 6)
    out_c = 3 * (num_classes + 5)
    head = {
        "cbl0": _make_cbl(keys[0], c, c // 2, 1),
        "cbl1": _make_cbl(keys[1], c // 2, c, 3),
        "cbl2": _make_cbl(keys[2], c, c // 2, 1),
        "cbl3": _make_cbl(keys[3], c // 2, c, 3),
    }
    # final 1x1 conv WITH bias, no BN, no activation
    w = jax.random.normal(keys[4], (c, out_c), jnp.float32) * 0.05
    b = 0.1 * jax.random.normal(keys[5], (out_c,), jnp.float32)
    wp = jnp.zeros((LANE, LANE), jnp.float32).at[:c, :out_c].set(w)
    bp = jnp.zeros((LANE,), jnp.float32).at[:out_c].set(b)
    head["final"] = {"w": wp.astype(jnp.bfloat16), "bias": bp.reshape(1, LANE)}
    return head


# ----------------------------------------------------------------------------
# Pure-JAX f32 reference (same folded params) for a sanity check
# ----------------------------------------------------------------------------
def _head_reference(x_nchw, head, num_classes):
    N, cin, H, W = x_nchw.shape
    a = jnp.transpose(x_nchw, (0, 2, 3, 1))
    a = jnp.pad(a, ((0, 0), (0, 0), (0, 0), (0, LANE - cin)))

    def cbl(a, layer):
        w = layer["w"].astype(jnp.float32)
        if layer["ksize"] == 1:
            y = jnp.einsum("nhwc,cd->nhwd", a, w, precision="highest")
        else:
            ap = jnp.pad(a, ((0, 0), (1, 1), (1, 1), (0, 0)))
            y = 0.0
            for dy in range(3):
                for dx in range(3):
                    y = y + jnp.einsum("nhwc,cd->nhwd",
                                       ap[:, dy:dy + H, dx:dx + W, :],
                                       w[dy * 3 + dx], precision="highest")
        y = y * layer["scale"][0] + layer["bias"][0]
        return jnp.where(y > 0, y, LEAKY_SLOPE * y)

    for name in ("cbl0", "cbl1", "cbl2", "cbl3"):
        a = cbl(a, head[name])
    y = jnp.einsum("nhwc,cd->nhwd", a,
                   head["final"]["w"].astype(jnp.float32),
                   precision="highest") + head["final"]["bias"][0]
    nco = 3 * (num_classes + 5)
    y = y[..., :nco].reshape(N, H, W, 3, num_classes + 5)
    return jnp.transpose(y, (0, 3, 1, 2, 4))


# ----------------------------------------------------------------------------
if __name__ == "__main__":
    NUM_CLASSES = 3
    C3_C, C4_C, C5_C = 32, 48, 64
    N = 2

    key = jax.random.PRNGKey(0)
    k_in3, k_in4, k_in5, k_p3, k_p4, k_p5 = jax.random.split(key, 6)

    # NCHW inputs, mirroring the PyTorch interface
    c3_in = jax.random.normal(k_in3, (N, C3_C, 16, 16), jnp.float32)
    c4_in = jax.random.normal(k_in4, (N, C4_C, 8, 8), jnp.float32)
    c5_in = jax.random.normal(k_in5, (N, C5_C, 4, 4), jnp.float32)

    params = {
        "c3head": _make_head(k_p3, C3_C, NUM_CLASSES),
        "c4head": _make_head(k_p4, C4_C, NUM_CLASSES),
        "c5head": _make_head(k_p5, C5_C, NUM_CLASSES),
    }

    o3, o4, o5 = detection_head(c3_in, c4_in, c5_in, params, NUM_CLASSES)
    jax.block_until_ready((o3, o4, o5))

    assert o3.shape == (N, 3, 16, 16, NUM_CLASSES + 5), o3.shape
    assert o4.shape == (N, 3, 8, 8, NUM_CLASSES + 5), o4.shape
    assert o5.shape == (N, 3, 4, 4, NUM_CLASSES + 5), o5.shape
    assert jnp.all(jnp.isfinite(o3)) and jnp.all(jnp.isfinite(o4)) \
        and jnp.all(jnp.isfinite(o5))

    # numeric sanity vs f32 reference (kernel matmuls run in bf16 on the MXU)
    r3 = _head_reference(c3_in, params["c3head"], NUM_CLASSES)
    r4 = _head_reference(c4_in, params["c4head"], NUM_CLASSES)
    r5 = _head_reference(c5_in, params["c5head"], NUM_CLASSES)
    for got, ref in ((o3, r3), (o4, r4), (o5, r5)):
        err = float(jnp.max(jnp.abs(got - ref)))
        assert err < 0.15, f"max abs error vs reference too large: {err}"

    print("KERNEL_OK")
</pallas_src>

<mosaic_0001>
module attributes {stable_mosaic.version = 11 : i64} {
  func.func @_head_kernel(%arg0: i32, %arg1: memref<1x256x128xbf16, #tpu.memory_space<vmem>>, %arg2: memref<128x128xbf16, #tpu.memory_space<vmem>>, %arg3: memref<1x128xf32, #tpu.memory_space<vmem>>, %arg4: memref<1x128xf32, #tpu.memory_space<vmem>>, %arg5: memref<9x128x128xbf16, #tpu.memory_space<vmem>>, %arg6: memref<1x128xf32, #tpu.memory_space<vmem>>, %arg7: memref<1x128xf32, #tpu.memory_space<vmem>>, %arg8: memref<128x128xbf16, #tpu.memory_space<vmem>>, %arg9: memref<1x128xf32, #tpu.memory_space<vmem>>, %arg10: memref<1x128xf32, #tpu.memory_space<vmem>>, %arg11: memref<9x128x128xbf16, #tpu.memory_space<vmem>>, %arg12: memref<1x128xf32, #tpu.memory_space<vmem>>, %arg13: memref<1x128xf32, #tpu.memory_space<vmem>>, %arg14: memref<128x128xbf16, #tpu.memory_space<vmem>>, %arg15: memref<1x128xf32, #tpu.memory_space<vmem>>, %arg16: memref<1x256x128xf32, #tpu.memory_space<vmem>>, %arg17: memref<1x18x18x128xf32, #tpu.memory_space<vmem>>) attributes {dimension_semantics = [#tpu.dimension_semantics<parallel>], iteration_bounds = array<i64: 2>, scalar_prefetch = 0 : i64, scratch_operands = 1 : i64, tpu.core_type = #tpu.core_type<tc>, window_params = [{transform_indices = @transform_0, window_bounds = array<i64: 1, 256, 128>}, {pipeline_mode = #tpu.pipeline_mode<synchronous>, transform_indices = @transform_1, window_bounds = array<i64: 128, 128>}, {pipeline_mode = #tpu.pipeline_mode<synchronous>, transform_indices = @transform_2, window_bounds = array<i64: 1, 128>}, {pipeline_mode = #tpu.pipeline_mode<synchronous>, transform_indices = @transform_3, window_bounds = array<i64: 1, 128>}, {pipeline_mode = #tpu.pipeline_mode<synchronous>, transform_indices = @transform_4, window_bounds = array<i64: 9, 128, 128>}, {pipeline_mode = #tpu.pipeline_mode<synchronous>, transform_indices = @transform_5, window_bounds = array<i64: 1, 128>}, {pipeline_mode = #tpu.pipeline_mode<synchronous>, transform_indices = @transform_6, window_bounds = array<i64: 1, 128>}, {pipeline_mode = #tpu.pipeline_mode<synchronous>, transform_indices = @transform_7, window_bounds = array<i64: 128, 128>}, {pipeline_mode = #tpu.pipeline_mode<synchronous>, transform_indices = @transform_8, window_bounds = array<i64: 1, 128>}, {pipeline_mode = #tpu.pipeline_mode<synchronous>, transform_indices = @transform_9, window_bounds = array<i64: 1, 128>}, {pipeline_mode = #tpu.pipeline_mode<synchronous>, transform_indices = @transform_10, window_bounds = array<i64: 9, 128, 128>}, {pipeline_mode = #tpu.pipeline_mode<synchronous>, transform_indices = @transform_11, window_bounds = array<i64: 1, 128>}, {pipeline_mode = #tpu.pipeline_mode<synchronous>, transform_indices = @transform_12, window_bounds = array<i64: 1, 128>}, {pipeline_mode = #tpu.pipeline_mode<synchronous>, transform_indices = @transform_13, window_bounds = array<i64: 128, 128>}, {pipeline_mode = #tpu.pipeline_mode<synchronous>, transform_indices = @transform_14, window_bounds = array<i64: 1, 128>}, {transform_indices = @transform_15, window_bounds = array<i64: 1, 256, 128>}]} {
    %cst = arith.constant 0.000000e+00 : f32
    %0 = vector.broadcast %cst : f32 to vector<1x18x18x128xf32>
    %c0 = arith.constant 0 : index
    %c0_0 = arith.constant 0 : index
    %c0_1 = arith.constant 0 : index
    %c0_2 = arith.constant 0 : index
    %1 = vector.load %arg17[%c0, %c0_0, %c0_1, %c0_2] : memref<1x18x18x128xf32, #tpu.memory_space<vmem>>, vector<1x18x18x128xf32>
    tpu.vector_store %arg17[%c0, %c0_0, %c0_1, %c0_2], %0 {strides = array<i32>} : memref<1x18x18x128xf32, #tpu.memory_space<vmem>>, vector<1x18x18x128xf32>,
    %c0_3 = arith.constant 0 : index
    %c0_4 = arith.constant 0 : index
    %c0_5 = arith.constant 0 : index
    %2 = vector.load %arg1[%c0_3, %c0_4, %c0_5] : memref<1x256x128xbf16, #tpu.memory_space<vmem>>, vector<1x256x128xbf16>
    %3 = vector.shape_cast %2 : vector<1x256x128xbf16> to vector<256x128xbf16>
    %c0_6 = arith.constant 0 : index
    %c0_7 = arith.constant 0 : index
    %4 = vector.load %arg2[%c0_6, %c0_7] : memref<128x128xbf16, #tpu.memory_space<vmem>>, vector<128x128xbf16>
    %cst_8 = arith.constant dense<0.000000e+00> : vector<256x128xf32>
    %5 = tpu.matmul %3, %4, %cst_8 {dimension_numbers = #tpu.dot_dimension_numbers<[1], [0], [0], [1], [0, 0, 1, 1], [], []>} : vector<256x128xbf16>, vector<128x128xbf16>, vector<256x128xf32> -> vector<256x128xf32>
    %c0_9 = arith.constant 0 : index
    %c0_10 = arith.constant 0 : index
    %6 = vector.load %arg3[%c0_9, %c0_10] : memref<1x128xf32, #tpu.memory_space<vmem>>, vector<1x128xf32>
    %7 = vector.broadcast %6 : vector<1x128xf32> to vector<256x128xf32>
    %8 = arith.mulf %5, %7 : vector<256x128xf32>
    %c0_11 = arith.constant 0 : index
    %c0_12 = arith.constant 0 : index
    %9 = vector.load %arg4[%c0_11, %c0_12] : memref<1x128xf32, #tpu.memory_space<vmem>>, vector<1x128xf32>
    %10 = vector.broadcast %9 : vector<1x128xf32> to vector<256x128xf32>
    %11 = arith.addf %8, %10 : vector<256x128xf32>
    %cst_13 = arith.constant 0.000000e+00 : f32
    %12 = vector.broadcast %cst_13 : f32 to vector<256x128xf32>
    %13 = arith.cmpf ogt, %11, %12 : vector<256x128xf32>
    %cst_14 = arith.constant 1.000000e-01 : f32
    %14 = vector.broadcast %cst_14 : f32 to vector<256x128xf32>
    %15 = arith.mulf %14, %11 : vector<256x128xf32>
    %16 = arith.select %13, %11, %15 : vector<256x128xi1>, vector<256x128xf32>
    %17 = vector.shape_cast %16 : vector<256x128xf32> to vector<1x16x16x128xf32>
    %c0_15 = arith.constant 0 : index
    %c1 = arith.constant 1 : index
    %c1_16 = arith.constant 1 : index
    %c0_17 = arith.constant 0 : index
    %18 = vector.load %arg17[%c0_15, %c1, %c1_16, %c0_17] : memref<1x18x18x128xf32, #tpu.memory_space<vmem>>, vector<1x16x16x128xf32>
    tpu.vector_store %arg17[%c0_15, %c1, %c1_16, %c0_17], %17 {strides = array<i32>} : memref<1x18x18x128xf32, #tpu.memory_space<vmem>>, vector<1x16x16x128xf32>,
    %cst_18 = arith.constant 0.000000e+00 : f32
    %19 = vector.broadcast %cst_18 : f32 to vector<256x128xf32>
    %c0_19 = arith.constant 0 : index
    %c0_20 = arith.constant 0 : index
    %c0_21 = arith.constant 0 : index
    %c0_22 = arith.constant 0 : index
    %20 = vector.load %arg17[%c0_19, %c0_20, %c0_21, %c0_22] : memref<1x18x18x128xf32, #tpu.memory_space<vmem>>, vector<1x16x16x128xf32>
    %21 = vector.shape_cast %20 : vector<1x16x16x128xf32> to vector<256x128xf32>
    %22 = arith.truncf %21 : vector<256x128xf32> to vector<256x128xbf16>
    %c0_23 = arith.constant 0 : index
    %c0_24 = arith.constant 0 : index
    %c0_25 = arith.constant 0 : index
    %23 = vector.load %arg5[%c0_23, %c0_24, %c0_25] : memref<9x128x128xbf16, #tpu.memory_space<vmem>>, vector<1x128x128xbf16>
    %24 = vector.shape_cast %23 : vector<1x128x128xbf16> to vector<128x128xbf16>
    %cst_26 = arith.constant dense<0.000000e+00> : vector<256x128xf32>
    %25 = tpu.matmul %22, %24, %cst_26 {dimension_numbers = #tpu.dot_dimension_numbers<[1], [0], [0], [1], [0, 0, 1, 1], [], []>} : vector<256x128xbf16>, vector<128x128xbf16>, vector<256x128xf32> -> vector<256x128xf32>
    %26 = arith.addf %19, %25 : vector<256x128xf32>
    %c0_27 = arith.constant 0 : index
    %c0_28 = arith.constant 0 : index
    %c1_29 = arith.constant 1 : index
    %c0_30 = arith.constant 0 : index
    %27 = vector.load %arg17[%c0_27, %c0_28, %c1_29, %c0_30] : memref<1x18x18x128xf32, #tpu.memory_space<vmem>>, vector<1x16x16x128xf32>
    %28 = vector.shape_cast %27 : vector<1x16x16x128xf32> to vector<256x128xf32>
    %29 = arith.truncf %28 : vector<256x128xf32> to vector<256x128xbf16>
    %c1_31 = arith.constant 1 : index
    %c0_32 = arith.constant 0 : index
    %c0_33 = arith.constant 0 : index
    %30 = vector.load %arg5[%c1_31, %c0_32, %c0_33] : memref<9x128x128xbf16, #tpu.memory_space<vmem>>, vector<1x128x128xbf16>
    %31 = vector.shape_cast %30 : vector<1x128x128xbf16> to vector<128x128xbf16>
    %cst_34 = arith.constant dense<0.000000e+00> : vector<256x128xf32>
    %32 = tpu.matmul %29, %31, %cst_34 {dimension_numbers = #tpu.dot_dimension_numbers<[1], [0], [0], [1], [0, 0, 1, 1], [], []>} : vector<256x128xbf16>, vector<128x128xbf16>, vector<256x128xf32> -> vector<256x128xf32>
    %33 = arith.addf %26, %32 : vector<256x128xf32>
    %c0_35 = arith.constant 0 : index
    %c0_36 = arith.constant 0 : index
    %c2 = arith.constant 2 : index
    %c0_37 = arith.constant 0 : index
    %34 = vector.load %arg17[%c0_35, %c0_36, %c2, %c0_37] : memref<1x18x18x128xf32, #tpu.memory_space<vmem>>, vector<1x16x16x128xf32>
    %35 = vector.shape_cast %34 : vector<1x16x16x128xf32> to vector<256x128xf32>
    %36 = arith.truncf %35 : vector<256x128xf32> to vector<256x128xbf16>
    %c2_38 = arith.constant 2 : index
    %c0_39 = arith.constant 0 : index
    %c0_40 = arith.constant 0 : index
    %37 = vector.load %arg5[%c2_38, %c0_39, %c0_40] : memref<9x128x128xbf16, #tpu.memory_space<vmem>>, vector<1x128x128xbf16>
    %38 = vector.shape_cast %37 : vector<1x128x128xbf16> to vector<128x128xbf16>
    %cst_41 = arith.constant dense<0.000000e+00> : vector<256x128xf32>
    %39 = tpu.matmul %36, %38, %cst_41 {dimension_numbers = #tpu.dot_dimension_numbers<[1], [0], [0], [1], [0, 0, 1, 1], [], []>} : vector<256x128xbf16>, vector<128x128xbf16>, vector<256x128xf32> -> vector<256x128xf32>
    %40 = arith.addf %33, %39 : vector<256x128xf32>
    %c0_42 = arith.constant 0 : index
    %c1_43 = arith.constant 1 : index
    %c0_44 = arith.constant 0 : index
    %c0_45 = arith.constant 0 : index
    %41 = vector.load %arg17[%c0_42, %c1_43, %c0_44, %c0_45] : memref<1x18x18x128xf32, #tpu.memory_space<vmem>>, vector<1x16x16x128xf32>
    %42 = vector.shape_cast %41 : vector<1x16x16x128xf32> to vector<256x128xf32>
    %43 = arith.truncf %42 : vector<256x128xf32> to vector<256x128xbf16>
    %c3 = arith.constant 3 : index
    %c0_46 = arith.constant 0 : index
    %c0_47 = arith.constant 0 : index
    %44 = vector.load %arg5[%c3, %c0_46, %c0_47] : memref<9x128x128xbf16, #tpu.memory_space<vmem>>, vector<1x128x128xbf16>
    %45 = vector.shape_cast %44 : vector<1x128x128xbf16> to vector<128x128xbf16>
    %cst_48 = arith.constant dense<0.000000e+00> : vector<256x128xf32>
    %46 = tpu.matmul %43, %45, %cst_48 {dimension_numbers = #tpu.dot_dimension_numbers<[1], [0], [0], [1], [0, 0, 1, 1], [], []>} : vector<256x128xbf16>, vector<128x128xbf16>, vector<256x128xf32> -> vector<256x128xf32>
    %47 = arith.addf %40, %46 : vector<256x128xf32>
    %c0_49 = arith.constant 0 : index
    %c1_50 = arith.constant 1 : index
    %c1_51 = arith.constant 1 : index
    %c0_52 = arith.constant 0 : index
    %48 = vector.load %arg17[%c0_49, %c1_50, %c1_51, %c0_52] : memref<1x18x18x128xf32, #tpu.memory_space<vmem>>, vector<1x16x16x128xf32>
    %49 = vector.shape_cast %48 : vector<1x16x16x128xf32> to vector<256x128xf32>
    %50 = arith.truncf %49 : vector<256x128xf32> to vector<256x128xbf16>
    %c4 = arith.constant 4 : index
    %c0_53 = arith.constant 0 : index
    %c0_54 = arith.constant 0 : index
    %51 = vector.load %arg5[%c4, %c0_53, %c0_54] : memref<9x128x128xbf16, #tpu.memory_space<vmem>>, vector<1x128x128xbf16>
    %52 = vector.shape_cast %51 : vector<1x128x128xbf16> to vector<128x128xbf16>
    %cst_55 = arith.constant dense<0.000000e+00> : vector<256x128xf32>
    %53 = tpu.matmul %50, %52, %cst_55 {dimension_numbers = #tpu.dot_dimension_numbers<[1], [0], [0], [1], [0, 0, 1, 1], [], []>} : vector<256x128xbf16>, vector<128x128xbf16>, vector<256x128xf32> -> vector<256x128xf32>
    %54 = arith.addf %47, %53 : vector<256x128xf32>
    %c0_56 = arith.constant 0 : index
    %c1_57 = arith.constant 1 : index
    %c2_58 = arith.constant 2 : index
    %c0_59 = arith.constant 0 : index
    %55 = vector.load %arg17[%c0_56, %c1_57, %c2_58, %c0_59] : memref<1x18x18x128xf32, #tpu.memory_space<vmem>>, vector<1x16x16x128xf32>
    %56 = vector.shape_cast %55 : vector<1x16x16x128xf32> to vector<256x128xf32>
    %57 = arith.truncf %56 : vector<256x128xf32> to vector<256x128xbf16>
    %c5 = arith.constant 5 : index
    %c0_60 = arith.constant 0 : index
    %c0_61 = arith.constant 0 : index
    %58 = vector.load %arg5[%c5, %c0_60, %c0_61] : memref<9x128x128xbf16, #tpu.memory_space<vmem>>, vector<1x128x128xbf16>
    %59 = vector.shape_cast %58 : vector<1x128x128xbf16> to vector<128x128xbf16>
    %cst_62 = arith.constant dense<0.000000e+00> : vector<256x128xf32>
    %60 = tpu.matmul %57, %59, %cst_62 {dimension_numbers = #tpu.dot_dimension_numbers<[1], [0], [0], [1], [0, 0, 1, 1], [], []>} : vector<256x128xbf16>, vector<128x128xbf16>, vector<256x128xf32> -> vector<256x128xf32>
    %61 = arith.addf %54, %60 : vector<256x128xf32>
    %c0_63 = arith.constant 0 : index
    %c2_64 = arith.constant 2 : index
    %c0_65 = arith.constant 0 : index
    %c0_66 = arith.constant 0 : index
    %62 = vector.load %arg17[%c0_63, %c2_64, %c0_65, %c0_66] : memref<1x18x18x128xf32, #tpu.memory_space<vmem>>, vector<1x16x16x128xf32>
    %63 = vector.shape_cast %62 : vector<1x16x16x128xf32> to vector<256x128xf32>
    %64 = arith.truncf %63 : vector<256x128xf32> to vector<256x128xbf16>
    %c6 = arith.constant 6 : index
    %c0_67 = arith.constant 0 : index
    %c0_68 = arith.constant 0 : index
    %65 = vector.load %arg5[%c6, %c0_67, %c0_68] : memref<9x128x128xbf16, #tpu.memory_space<vmem>>, vector<1x128x128xbf16>
    %66 = vector.shape_cast %65 : vector<1x128x128xbf16> to vector<128x128xbf16>
    %cst_69 = arith.constant dense<0.000000e+00> : vector<256x128xf32>
    %67 = tpu.matmul %64, %66, %cst_69 {dimension_numbers = #tpu.dot_dimension_numbers<[1], [0], [0], [1], [0, 0, 1, 1], [], []>} : vector<256x128xbf16>, vector<128x128xbf16>, vector<256x128xf32> -> vector<256x128xf32>
    %68 = arith.addf %61, %67 : vector<256x128xf32>
    %c0_70 = arith.constant 0 : index
    %c2_71 = arith.constant 2 : index
    %c1_72 = arith.constant 1 : index
    %c0_73 = arith.constant 0 : index
    %69 = vector.load %arg17[%c0_70, %c2_71, %c1_72, %c0_73] : memref<1x18x18x128xf32, #tpu.memory_space<vmem>>, vector<1x16x16x128xf32>
    %70 = vector.shape_cast %69 : vector<1x16x16x128xf32> to vector<256x128xf32>
    %71 = arith.truncf %70 : vector<256x128xf32> to vector<256x128xbf16>
    %c7 = arith.constant 7 : index
    %c0_74 = arith.constant 0 : index
    %c0_75 = arith.constant 0 : index
    %72 = vector.load %arg5[%c7, %c0_74, %c0_75] : memref<9x128x128xbf16, #tpu.memory_space<vmem>>, vector<1x128x128xbf16>
    %73 = vector.shape_cast %72 : vector<1x128x128xbf16> to vector<128x128xbf16>
    %cst_76 = arith.constant dense<0.000000e+00> : vector<256x128xf32>
    %74 = tpu.matmul %71, %73, %cst_76 {dimension_numbers = #tpu.dot_dimension_numbers<[1], [0], [0], [1], [0, 0, 1, 1], [], []>} : vector<256x128xbf16>, vector<128x128xbf16>, vector<256x128xf32> -> vector<256x128xf32>
    %75 = arith.addf %68, %74 : vector<256x128xf32>
    %c0_77 = arith.constant 0 : index
    %c2_78 = arith.constant 2 : index
    %c2_79 = arith.constant 2 : index
    %c0_80 = arith.constant 0 : index
    %76 = vector.load %arg17[%c0_77, %c2_78, %c2_79, %c0_80] : memref<1x18x18x128xf32, #tpu.memory_space<vmem>>, vector<1x16x16x128xf32>
    %77 = vector.shape_cast %76 : vector<1x16x16x128xf32> to vector<256x128xf32>
    %78 = arith.truncf %77 : vector<256x128xf32> to vector<256x128xbf16>
    %c8 = arith.constant 8 : index
    %c0_81 = arith.constant 0 : index
    %c0_82 = arith.constant 0 : index
    %79 = vector.load %arg5[%c8, %c0_81, %c0_82] : memref<9x128x128xbf16, #tpu.memory_space<vmem>>, vector<1x128x128xbf16>
    %80 = vector.shape_cast %79 : vector<1x128x128xbf16> to vector<128x128xbf16>
    %cst_83 = arith.constant dense<0.000000e+00> : vector<256x128xf32>
    %81 = tpu.matmul %78, %80, %cst_83 {dimension_numbers = #tpu.dot_dimension_numbers<[1], [0], [0], [1], [0, 0, 1, 1], [], []>} : vector<256x128xbf16>, vector<128x128xbf16>, vector<256x128xf32> -> vector<256x128xf32>
    %82 = arith.addf %75, %81 : vector<256x128xf32>
    %c0_84 = arith.constant 0 : index
    %c0_85 = arith.constant 0 : index
    %83 = vector.load %arg6[%c0_84, %c0_85] : memref<1x128xf32, #tpu.memory_space<vmem>>, vector<1x128xf32>
    %84 = vector.broadcast %83 : vector<1x128xf32> to vector<256x128xf32>
    %85 = arith.mulf %82, %84 : vector<256x128xf32>
    %c0_86 = arith.constant 0 : index
    %c0_87 = arith.constant 0 : index
    %86 = vector.load %arg7[%c0_86, %c0_87] : memref<1x128xf32, #tpu.memory_space<vmem>>, vector<1x128xf32>
    %87 = vector.broadcast %86 : vector<1x128xf32> to vector<256x128xf32>
    %88 = arith.addf %85, %87 : vector<256x128xf32>
    %cst_88 = arith.constant 0.000000e+00 : f32
    %89 = vector.broadcast %cst_88 : f32 to vector<256x128xf32>
    %90 = arith.cmpf ogt, %88, %89 : vector<256x128xf32>
    %cst_89 = arith.constant 1.000000e-01 : f32
    %91 = vector.broadcast %cst_89 : f32 to vector<256x128xf32>
    %92 = arith.mulf %91, %88 : vector<256x128xf32>
    %93 = arith.select %90, %88, %92 : vector<256x128xi1>, vector<256x128xf32>
    %94 = arith.truncf %93 : vector<256x128xf32> to vector<256x128xbf16>
    %c0_90 = arith.constant 0 : index
    %c0_91 = arith.constant 0 : index
    %95 = vector.load %arg8[%c0_90, %c0_91] : memref<128x128xbf16, #tpu.memory_space<vmem>>, vector<128x128xbf16>
    %cst_92 = arith.constant dense<0.000000e+00> : vector<256x128xf32>
    %96 = tpu.matmul %94, %95, %cst_92 {dimension_numbers = #tpu.dot_dimension_numbers<[1], [0], [0], [1], [0, 0, 1, 1], [], []>} : vector<256x128xbf16>, vector<128x128xbf16>, vector<256x128xf32> -> vector<256x128xf32>
    %c0_93 = arith.constant 0 : index
    %c0_94 = arith.constant 0 : index
    %97 = vector.load %arg9[%c0_93, %c0_94] : memref<1x128xf32, #tpu.memory_space<vmem>>, vector<1x128xf32>
    %98 = vector.broadcast %97 : vector<1x128xf32> to vector<256x128xf32>
    %99 = arith.mulf %96, %98 : vector<256x128xf32>
    %c0_95 = arith.constant 0 : index
    %c0_96 = arith.constant 0 : index
    %100 = vector.load %arg10[%c0_95, %c0_96] : memref<1x128xf32, #tpu.memory_space<vmem>>, vector<1x128xf32>
    %101 = vector.broadcast %100 : vector<1x128xf32> to vector<256x128xf32>
    %102 = arith.addf %99, %101 : vector<256x128xf32>
    %cst_97 = arith.constant 0.000000e+00 : f32
    %103 = vector.broadcast %cst_97 : f32 to vector<256x128xf32>
    %104 = arith.cmpf ogt, %102, %103 : vector<256x128xf32>
    %cst_98 = arith.constant 1.000000e-01 : f32
    %105 = vector.broadcast %cst_98 : f32 to vector<256x128xf32>
    %106 = arith.mulf %105, %102 : vector<256x128xf32>
    %107 = arith.select %104, %102, %106 : vector<256x128xi1>, vector<256x128xf32>
    %108 = vector.shape_cast %107 : vector<256x128xf32> to vector<1x16x16x128xf32>
    %c0_99 = arith.constant 0 : index
    %c1_100 = arith.constant 1 : index
    %c1_101 = arith.constant 1 : index
    %c0_102 = arith.constant 0 : index
    %109 = vector.load %arg17[%c0_99, %c1_100, %c1_101, %c0_102] : memref<1x18x18x128xf32, #tpu.memory_space<vmem>>, vector<1x16x16x128xf32>
    tpu.vector_store %arg17[%c0_99, %c1_100, %c1_101, %c0_102], %108 {strides = array<i32>} : memref<1x18x18x128xf32, #tpu.memory_space<vmem>>, vector<1x16x16x128xf32>,
    %cst_103 = arith.constant 0.000000e+00 : f32
    %110 = vector.broadcast %cst_103 : f32 to vector<256x128xf32>
    %c0_104 = arith.constant 0 : index
    %c0_105 = arith.constant 0 : index
    %c0_106 = arith.constant 0 : index
    %c0_107 = arith.constant 0 : index
    %111 = vector.load %arg17[%c0_104, %c0_105, %c0_106, %c0_107] : memref<1x18x18x128xf32, #tpu.memory_space<vmem>>, vector<1x16x16x128xf32>
    %112 = vector.shape_cast %111 : vector<1x16x16x128xf32> to vector<256x128xf32>
    %113 = arith.truncf %112 : vector<256x128xf32> to vector<256x128xbf16>
    %c0_108 = arith.constant 0 : index
    %c0_109 = arith.constant 0 : index
    %c0_110 = arith.constant 0 : index
    %114 = vector.load %arg11[%c0_108, %c0_109, %c0_110] : memref<9x128x128xbf16, #tpu.memory_space<vmem>>, vector<1x128x128xbf16>
    %115 = vector.shape_cast %114 : vector<1x128x128xbf16> to vector<128x128xbf16>
    %cst_111 = arith.constant dense<0.000000e+00> : vector<256x128xf32>
    %116 = tpu.matmul %113, %115, %cst_111 {dimension_numbers = #tpu.dot_dimension_numbers<[1], [0], [0], [1], [0, 0, 1, 1], [], []>} : vector<256x128xbf16>, vector<128x128xbf16>, vector<256x128xf32> -> vector<256x128xf32>
    %117 = arith.addf %110, %116 : vector<256x128xf32>
    %c0_112 = arith.constant 0 : index
    %c0_113 = arith.constant 0 : index
    %c1_114 = arith.constant 1 : index
    %c0_115 = arith.constant 0 : index
    %118 = vector.load %arg17[%c0_112, %c0_113, %c1_114, %c0_115] : memref<1x18x18x128xf32, #tpu.memory_space<vmem>>, vector<1x16x16x128xf32>
    %119 = vector.shape_cast %118 : vector<1x16x16x128xf32> to vector<256x128xf32>
    %120 = arith.truncf %119 : vector<256x128xf32> to vector<256x128xbf16>
    %c1_116 = arith.constant 1 : index
    %c0_117 = arith.constant 0 : index
    %c0_118 = arith.constant 0 : index
    %121 = vector.load %arg11[%c1_116, %c0_117, %c0_118] : memref<9x128x128xbf16, #tpu.memory_space<vmem>>, vector<1x128x128xbf16>
    %122 = vector.shape_cast %121 : vector<1x128x128xbf16> to vector<128x128xbf16>
    %cst_119 = arith.constant dense<0.000000e+00> : vector<256x128xf32>
    %123 = tpu.matmul %120, %122, %cst_119 {dimension_numbers = #tpu.dot_dimension_numbers<[1], [0], [0], [1], [0, 0, 1, 1], [], []>} : vector<256x128xbf16>, vector<128x128xbf16>, vector<256x128xf32> -> vector<256x128xf32>
    %124 = arith.addf %117, %123 : vector<256x128xf32>
    %c0_120 = arith.constant 0 : index
    %c0_121 = arith.constant 0 : index
    %c2_122 = arith.constant 2 : index
    %c0_123 = arith.constant 0 : index
    %125 = vector.load %arg17[%c0_120, %c0_121, %c2_122, %c0_123] : memref<1x18x18x128xf32, #tpu.memory_space<vmem>>, vector<1x16x16x128xf32>
    %126 = vector.shape_cast %125 : vector<1x16x16x128xf32> to vector<256x128xf32>
    %127 = arith.truncf %126 : vector<256x128xf32> to vector<256x128xbf16>
    %c2_124 = arith.constant 2 : index
    %c0_125 = arith.constant 0 : index
    %c0_126 = arith.constant 0 : index
    %128 = vector.load %arg11[%c2_124, %c0_125, %c0_126] : memref<9x128x128xbf16, #tpu.memory_space<vmem>>, vector<1x128x128xbf16>
    %129 = vector.shape_cast %128 : vector<1x128x128xbf16> to vector<128x128xbf16>
    %cst_127 = arith.constant dense<0.000000e+00> : vector<256x128xf32>
    %130 = tpu.matmul %127, %129, %cst_127 {dimension_numbers = #tpu.dot_dimension_numbers<[1], [0], [0], [1], [0, 0, 1, 1], [], []>} : vector<256x128xbf16>, vector<128x128xbf16>, vector<256x128xf32> -> vector<256x128xf32>
    %131 = arith.addf %124, %130 : vector<256x128xf32>
    %c0_128 = arith.constant 0 : index
    %c1_129 = arith.constant 1 : index
    %c0_130 = arith.constant 0 : index
    %c0_131 = arith.constant 0 : index
    %132 = vector.load %arg17[%c0_128, %c1_129, %c0_130, %c0_131] : memref<1x18x18x128xf32, #tpu.memory_space<vmem>>, vector<1x16x16x128xf32>
    %133 = vector.shape_cast %132 : vector<1x16x16x128xf32> to vector<256x128xf32>
    %134 = arith.truncf %133 : vector<256x128xf32> to vector<256x128xbf16>
    %c3_132 = arith.constant 3 : index
    %c0_133 = arith.constant 0 : index
    %c0_134 = arith.constant 0 : index
    %135 = vector.load %arg11[%c3_132, %c0_133, %c0_134] : memref<9x128x128xbf16, #tpu.memory_space<vmem>>, vector<1x128x128xbf16>
    %136 = vector.shape_cast %135 : vector<1x128x128xbf16> to vector<128x128xbf16>
    %cst_135 = arith.constant dense<0.000000e+00> : vector<256x128xf32>
    %137 = tpu.matmul %134, %136, %cst_135 {dimension_numbers = #tpu.dot_dimension_numbers<[1], [0], [0], [1], [0, 0, 1, 1], [], []>} : vector<256x128xbf16>, vector<128x128xbf16>, vector<256x128xf32> -> vector<256x128xf32>
    %138 = arith.addf %131, %137 : vector<256x128xf32>
    %c0_136 = arith.constant 0 : index
    %c1_137 = arith.constant 1 : index
    %c1_138 = arith.constant 1 : index
    %c0_139 = arith.constant 0 : index
    %139 = vector.load %arg17[%c0_136, %c1_137, %c1_138, %c0_139] : memref<1x18x18x128xf32, #tpu.memory_space<vmem>>, vector<1x16x16x128xf32>
    %140 = vector.shape_cast %139 : vector<1x16x16x128xf32> to vector<256x128xf32>
    %141 = arith.truncf %140 : vector<256x128xf32> to vector<256x128xbf16>
    %c4_140 = arith.constant 4 : index
    %c0_141 = arith.constant 0 : index
    %c0_142 = arith.constant 0 : index
    %142 = vector.load %arg11[%c4_140, %c0_141, %c0_142] : memref<9x128x128xbf16, #tpu.memory_space<vmem>>, vector<1x128x128xbf16>
    %143 = vector.shape_cast %142 : vector<1x128x128xbf16> to vector<128x128xbf16>
    %cst_143 = arith.constant dense<0.000000e+00> : vector<256x128xf32>
    %144 = tpu.matmul %141, %143, %cst_143 {dimension_numbers = #tpu.dot_dimension_numbers<[1], [0], [0], [1], [0, 0, 1, 1], [], []>} : vector<256x128xbf16>, vector<128x128xbf16>, vector<256x128xf32> -> vector<256x128xf32>
    %145 = arith.addf %138, %144 : vector<256x128xf32>
    %c0_144 = arith.constant 0 : index
    %c1_145 = arith.constant 1 : index
    %c2_146 = arith.constant 2 : index
    %c0_147 = arith.constant 0 : index
    %146 = vector.load %arg17[%c0_144, %c1_145, %c2_146, %c0_147] : memref<1x18x18x128xf32, #tpu.memory_space<vmem>>, vector<1x16x16x128xf32>
    %147 = vector.shape_cast %146 : vector<1x16x16x128xf32> to vector<256x128xf32>
    %148 = arith.truncf %147 : vector<256x128xf32> to vector<256x128xbf16>
    %c5_148 = arith.constant 5 : index
    %c0_149 = arith.constant 0 : index
    %c0_150 = arith.constant 0 : index
    %149 = vector.load %arg11[%c5_148, %c0_149, %c0_150] : memref<9x128x128xbf16, #tpu.memory_space<vmem>>, vector<1x128x128xbf16>
    %150 = vector.shape_cast %149 : vector<1x128x128xbf16> to vector<128x128xbf16>
    %cst_151 = arith.constant dense<0.000000e+00> : vector<256x128xf32>
    %151 = tpu.matmul %148, %150, %cst_151 {dimension_numbers = #tpu.dot_dimension_numbers<[1], [0], [0], [1], [0, 0, 1, 1], [], []>} : vector<256x128xbf16>, vector<128x128xbf16>, vector<256x128xf32> -> vector<256x128xf32>
    %152 = arith.addf %145, %151 : vector<256x128xf32>
    %c0_152 = arith.constant 0 : index
    %c2_153 = arith.constant 2 : index
    %c0_154 = arith.constant 0 : index
    %c0_155 = arith.constant 0 : index
    %153 = vector.load %arg17[%c0_152, %c2_153, %c0_154, %c0_155] : memref<1x18x18x128xf32, #tpu.memory_space<vmem>>, vector<1x16x16x128xf32>
    %154 = vector.shape_cast %153 : vector<1x16x16x128xf32> to vector<256x128xf32>
    %155 = arith.truncf %154 : vector<256x128xf32> to vector<256x128xbf16>
    %c6_156 = arith.constant 6 : index
    %c0_157 = arith.constant 0 : index
    %c0_158 = arith.constant 0 : index
    %156 = vector.load %arg11[%c6_156, %c0_157, %c0_158] : memref<9x128x128xbf16, #tpu.memory_space<vmem>>, vector<1x128x128xbf16>
    %157 = vector.shape_cast %156 : vector<1x128x128xbf16> to vector<128x128xbf16>
    %cst_159 = arith.constant dense<0.000000e+00> : vector<256x128xf32>
    %158 = tpu.matmul %155, %157, %cst_159 {dimension_numbers = #tpu.dot_dimension_numbers<[1], [0], [0], [1], [0, 0, 1, 1], [], []>} : vector<256x128xbf16>, vector<128x128xbf16>, vector<256x128xf32> -> vector<256x128xf32>
    %159 = arith.addf %152, %158 : vector<256x128xf32>
    %c0_160 = arith.constant 0 : index
    %c2_161 = arith.constant 2 : index
    %c1_162 = arith.constant 1 : index
    %c0_163 = arith.constant 0 : index
    %160 = vector.load %arg17[%c0_160, %c2_161, %c1_162, %c0_163] : memref<1x18x18x128xf32, #tpu.memory_space<vmem>>, vector<1x16x16x128xf32>
    %161 = vector.shape_cast %160 : vector<1x16x16x128xf32> to vector<256x128xf32>
    %162 = arith.truncf %161 : vector<256x128xf32> to vector<256x128xbf16>
    %c7_164 = arith.constant 7 : index
    %c0_165 = arith.constant 0 : index
    %c0_166 = arith.constant 0 : index
    %163 = vector.load %arg11[%c7_164, %c0_165, %c0_166] : memref<9x128x128xbf16, #tpu.memory_space<vmem>>, vector<1x128x128xbf16>
    %164 = vector.shape_cast %163 : vector<1x128x128xbf16> to vector<128x128xbf16>
    %cst_167 = arith.constant dense<0.000000e+00> : vector<256x128xf32>
    %165 = tpu.matmul %162, %164, %cst_167 {dimension_numbers = #tpu.dot_dimension_numbers<[1], [0], [0], [1], [0, 0, 1, 1], [], []>} : vector<256x128xbf16>, vector<128x128xbf16>, vector<256x128xf32> -> vector<256x128xf32>
    %166 = arith.addf %159, %165 : vector<256x128xf32>
    %c0_168 = arith.constant 0 : index
    %c2_169 = arith.constant 2 : index
    %c2_170 = arith.constant 2 : index
    %c0_171 = arith.constant 0 : index
    %167 = vector.load %arg17[%c0_168, %c2_169, %c2_170, %c0_171] : memref<1x18x18x128xf32, #tpu.memory_space<vmem>>, vector<1x16x16x128xf32>
    %168 = vector.shape_cast %167 : vector<1x16x16x128xf32> to vector<256x128xf32>
    %169 = arith.truncf %168 : vector<256x128xf32> to vector<256x128xbf16>
    %c8_172 = arith.constant 8 : index
    %c0_173 = arith.constant 0 : index
    %c0_174 = arith.constant 0 : index
    %170 = vector.load %arg11[%c8_172, %c0_173, %c0_174] : memref<9x128x128xbf16, #tpu.memory_space<vmem>>, vector<1x128x128xbf16>
    %171 = vector.shape_cast %170 : vector<1x128x128xbf16> to vector<128x128xbf16>
    %cst_175 = arith.constant dense<0.000000e+00> : vector<256x128xf32>
    %172 = tpu.matmul %169, %171, %cst_175 {dimension_numbers = #tpu.dot_dimension_numbers<[1], [0], [0], [1], [0, 0, 1, 1], [], []>} : vector<256x128xbf16>, vector<128x128xbf16>, vector<256x128xf32> -> vector<256x128xf32>
    %173 = arith.addf %166, %172 : vector<256x128xf32>
    %c0_176 = arith.constant 0 : index
    %c0_177 = arith.constant 0 : index
    %174 = vector.load %arg12[%c0_176, %c0_177] : memref<1x128xf32, #tpu.memory_space<vmem>>, vector<1x128xf32>
    %175 = vector.broadcast %174 : vector<1x128xf32> to vector<256x128xf32>
    %176 = arith.mulf %173, %175 : vector<256x128xf32>
    %c0_178 = arith.constant 0 : index
    %c0_179 = arith.constant 0 : index
    %177 = vector.load %arg13[%c0_178, %c0_179] : memref<1x128xf32, #tpu.memory_space<vmem>>, vector<1x128xf32>
    %178 = vector.broadcast %177 : vector<1x128xf32> to vector<256x128xf32>
    %179 = arith.addf %176, %178 : vector<256x128xf32>
    %cst_180 = arith.constant 0.000000e+00 : f32
    %180 = vector.broadcast %cst_180 : f32 to vector<256x128xf32>
    %181 = arith.cmpf ogt, %179, %180 : vector<256x128xf32>
    %cst_181 = arith.constant 1.000000e-01 : f32
    %182 = vector.broadcast %cst_181 : f32 to vector<256x128xf32>
    %183 = arith.mulf %182, %179 : vector<256x128xf32>
    %184 = arith.select %181, %179, %183 : vector<256x128xi1>, vector<256x128xf32>
    %185 = arith.truncf %184 : vector<256x128xf32> to vector<256x128xbf16>
    %c0_182 = arith.constant 0 : index
    %c0_183 = arith.constant 0 : index
    %186 = vector.load %arg14[%c0_182, %c0_183] : memref<128x128xbf16, #tpu.memory_space<vmem>>, vector<128x128xbf16>
    %cst_184 = arith.constant dense<0.000000e+00> : vector<256x128xf32>
    %187 = tpu.matmul %185, %186, %cst_184 {dimension_numbers = #tpu.dot_dimension_numbers<[1], [0], [0], [1], [0, 0, 1, 1], [], []>} : vector<256x128xbf16>, vector<128x128xbf16>, vector<256x128xf32> -> vector<256x128xf32>
    %c0_185 = arith.constant 0 : index
    %c0_186 = arith.constant 0 : index
    %188 = vector.load %arg15[%c0_185, %c0_186] : memref<1x128xf32, #tpu.memory_space<vmem>>, vector<1x128xf32>
    %189 = vector.broadcast %188 : vector<1x128xf32> to vector<256x128xf32>
    %190 = arith.addf %187, %189 : vector<256x128xf32>
    %191 = vector.shape_cast %190 : vector<256x128xf32> to vector<1x256x128xf32>
    %c0_187 = arith.constant 0 : index
    %c0_188 = arith.constant 0 : index
    %c0_189 = arith.constant 0 : index
    %192 = vector.load %arg16[%c0_187, %c0_188, %c0_189] : memref<1x256x128xf32, #tpu.memory_space<vmem>>, vector<1x256x128xf32>
    tpu.vector_store %arg16[%c0_187, %c0_188, %c0_189], %191 {strides = array<i32>} : memref<1x256x128xf32, #tpu.memory_space<vmem>>, vector<1x256x128xf32>,
    return
  }
  func.func @transform_0(%arg0: i32) -> (i32, i32, i32) {
    %c0_i32 = arith.constant 0 : i32
    %c0_i32_0 = arith.constant 0 : i32
    %c0_i32_1 = arith.constant 0 : i32
    return %arg0, %c0_i32, %c0_i32_0 : i32, i32, i32
  }
  func.func @transform_1(%arg0: i32) -> (i32, i32) {
    %c0_i32 = arith.constant 0 : i32
    %c0_i32_0 = arith.constant 0 : i32
    %c0_i32_1 = arith.constant 0 : i32
    return %c0_i32, %c0_i32_0 : i32, i32
  }
  func.func @transform_2(%arg0: i32) -> (i32, i32) {
    %c0_i32 = arith.constant 0 : i32
    %c0_i32_0 = arith.constant 0 : i32
    %c0_i32_1 = arith.constant 0 : i32
    return %c0_i32, %c0_i32_0 : i32, i32
  }
  func.func @transform_3(%arg0: i32) -> (i32, i32) {
    %c0_i32 = arith.constant 0 : i32
    %c0_i32_0 = arith.constant 0 : i32
    %c0_i32_1 = arith.constant 0 : i32
    return %c0_i32, %c0_i32_0 : i32, i32
  }
  func.func @transform_4(%arg0: i32) -> (i32, i32, i32) {
    %c0_i32 = arith.constant 0 : i32
    %c0_i32_0 = arith.constant 0 : i32
    %c0_i32_1 = arith.constant 0 : i32
    %c0_i32_2 = arith.constant 0 : i32
    return %c0_i32, %c0_i32_0, %c0_i32_1 : i32, i32, i32
  }
  func.func @transform_5(%arg0: i32) -> (i32, i32) {
    %c0_i32 = arith.constant 0 : i32
    %c0_i32_0 = arith.constant 0 : i32
    %c0_i32_1 = arith.constant 0 : i32
    return %c0_i32, %c0_i32_0 : i32, i32
  }
  func.func @transform_6(%arg0: i32) -> (i32, i32) {
    %c0_i32 = arith.constant 0 : i32
    %c0_i32_0 = arith.constant 0 : i32
    %c0_i32_1 = arith.constant 0 : i32
    return %c0_i32, %c0_i32_0 : i32, i32
  }
  func.func @transform_7(%arg0: i32) -> (i32, i32) {
    %c0_i32 = arith.constant 0 : i32
    %c0_i32_0 = arith.constant 0 : i32
    %c0_i32_1 = arith.constant 0 : i32
    return %c0_i32, %c0_i32_0 : i32, i32
  }
  func.func @transform_8(%arg0: i32) -> (i32, i32) {
    %c0_i32 = arith.constant 0 : i32
    %c0_i32_0 = arith.constant 0 : i32
    %c0_i32_1 = arith.constant 0 : i32
    return %c0_i32, %c0_i32_0 : i32, i32
  }
  func.func @transform_9(%arg0: i32) -> (i32, i32) {
    %c0_i32 = arith.constant 0 : i32
    %c0_i32_0 = arith.constant 0 : i32
    %c0_i32_1 = arith.constant 0 : i32
    return %c0_i32, %c0_i32_0 : i32, i32
  }
  func.func @transform_10(%arg0: i32) -> (i32, i32, i32) {
    %c0_i32 = arith.constant 0 : i32
    %c0_i32_0 = arith.constant 0 : i32
    %c0_i32_1 = arith.constant 0 : i32
    %c0_i32_2 = arith.constant 0 : i32
    return %c0_i32, %c0_i32_0, %c0_i32_1 : i32, i32, i32
  }
  func.func @transform_11(%arg0: i32) -> (i32, i32) {
    %c0_i32 = arith.constant 0 : i32
    %c0_i32_0 = arith.constant 0 : i32
    %c0_i32_1 = arith.constant 0 : i32
    return %c0_i32, %c0_i32_0 : i32, i32
  }
  func.func @transform_12(%arg0: i32) -> (i32, i32) {
    %c0_i32 = arith.constant 0 : i32
    %c0_i32_0 = arith.constant 0 : i32
    %c0_i32_1 = arith.constant 0 : i32
    return %c0_i32, %c0_i32_0 : i32, i32
  }
  func.func @transform_13(%arg0: i32) -> (i32, i32) {
    %c0_i32 = arith.constant 0 : i32
    %c0_i32_0 = arith.constant 0 : i32
    %c0_i32_1 = arith.constant 0 : i32
    return %c0_i32, %c0_i32_0 : i32, i32
  }
  func.func @transform_14(%arg0: i32) -> (i32, i32) {
    %c0_i32 = arith.constant 0 : i32
    %c0_i32_0 = arith.constant 0 : i32
    %c0_i32_1 = arith.constant 0 : i32
    return %c0_i32, %c0_i32_0 : i32, i32
  }
  func.func @transform_15(%arg0: i32) -> (i32, i32, i32) {
    %c0_i32 = arith.constant 0 : i32
    %c0_i32_0 = arith.constant 0 : i32
    %c0_i32_1 = arith.constant 0 : i32
    return %arg0, %c0_i32, %c0_i32_0 : i32, i32, i32
  }
}

</mosaic_0001>

<llo_original>
// kernel: tpu_custom_call.1
$region0: #{tpu_custom_call.1}
  #allocation0 [shape = 'u32[]', space=smem, size = 0x4, offset = 0x4, fixed_abs, tag = 'smem constant byte address 0x4 - core index']
  #allocation1 [shape = 'u32[144,128]{1,0:T(1,128)}', space=vmem, size = 0x12000, scoped, tag = 'internal scratch']
  #allocation2 [shape = 'f32[1,18,18,128]{3,2,1,0:T(8,128)}', space=vmem, size = 0x36000, scoped, tag = 'scratch operand']
  %s0 = inlined_call_operand.hbm [shape: bf16[2,256,128], index: 0, kind: input, shape index: {}]
  %s1 = inlined_call_operand.hbm [shape: bf16[128,128], index: 1, kind: input, shape index: {}]
  %s2 = inlined_call_operand.vmem [shape: f32[1,128], index: 2, kind: input, shape index: {}]
  %s3 = inlined_call_operand.vmem [shape: f32[1,128], index: 3, kind: input, shape index: {}]
  %s4 = inlined_call_operand.hbm [shape: bf16[9,128,128], index: 4, kind: input, shape index: {}]
  %s5 = inlined_call_operand.vmem [shape: f32[1,128], index: 5, kind: input, shape index: {}]
  %s6 = inlined_call_operand.vmem [shape: f32[1,128], index: 6, kind: input, shape index: {}]
  %s7 = inlined_call_operand.hbm [shape: bf16[128,128], index: 7, kind: input, shape index: {}]
  %s8 = inlined_call_operand.vmem [shape: f32[1,128], index: 8, kind: input, shape index: {}]
  %s9 = inlined_call_operand.vmem [shape: f32[1,128], index: 9, kind: input, shape index: {}]
  %s10 = inlined_call_operand.hbm [shape: bf16[9,128,128], index: 10, kind: input, shape index: {}]
  %s11 = inlined_call_operand.vmem [shape: f32[1,128], index: 11, kind: input, shape index: {}]
  %s12 = inlined_call_operand.vmem [shape: f32[1,128], index: 12, kind: input, shape index: {}]
  %s13 = inlined_call_operand.hbm [shape: bf16[128,128], index: 13, kind: input, shape index: {}]
  %s14 = inlined_call_operand.vmem [shape: f32[1,128], index: 14, kind: input, shape index: {}]
  %s15 = inlined_call_operand.hbm [shape: f32[2,256,128], index: 15, kind: output, shape index: {}]
  %s16 = sld [smem:[#allocation0]]
  $region117: #{tpu_custom_call.1} parent=0
    _
  %s18 = ssub.s32 1, %s16
  %s19 = scalar_select 0, %s18, %s16
  $region1: #{tpu_custom_call.1} parent=0
    #allocation3 [shape = 'u8[131072]{0}', space=vmem, size = 0x20000, scoped, tag = 'input window, operand 0']
    #allocation4 [shape = 's32[2]{0}', space=sflag, size = 0x8, scoped, tag = 'scoped memory for tpu_custom_call.1']
    #allocation5 [shape = 's32[2]{0}', space=sflag, size = 0x8, scoped, tag = 'scoped memory for tpu_custom_call.1']
    #allocation6 [shape = 'u8[32768]{0}', space=vmem, size = 0x8000, scoped, tag = 'input window, operand 1, single buffered']
    #allocation7 [shape = 's32[1]{0}', space=sflag, size = 0x4, scoped, tag = 'scoped memory for tpu_custom_call.1']
    #allocation8 [shape = 'u8[294912]{0}', space=vmem, size = 0x48000, scoped, tag = 'input window, operand 4, single buffered']
    #allocation9 [shape = 'u8[32768]{0}', space=vmem, size = 0x8000, scoped, tag = 'input window, operand 7, single buffered']
    #allocation10 [shape = 's32[1]{0}', space=sflag, size = 0x4, scoped, tag = 'scoped memory for tpu_custom_call.1']
    #allocation11 [shape = 'u8[294912]{0}', space=vmem, size = 0x48000, scoped, tag = 'input window, operand 10, single buffered']
    #allocation12 [shape = 'u8[32768]{0}', space=vmem, size = 0x8000, scoped, tag = 'input window, operand 13, single buffered']
    #allocation13 [shape = 's32[1]{0}', space=sflag, size = 0x4, scoped, tag = 'scoped memory for tpu_custom_call.1']
    #allocation14 [shape = 'u8[262144]{0}', space=vmem, size = 0x40000, scoped, tag = 'output window, operand 0']
    %20 = vsyncpa [#allocation4], 0
    %s21 = scalar_lea.sflag [#allocation4], 1
    %22 = vsyncpa %s21, 0
    %23 = vsyncpa [#allocation7], 0
    %24 = vsyncpa [#allocation10], 0
    %25 = vsyncpa [#allocation13], 0
    %26 = vsyncpa [#allocation5], 0
    %s27 = scalar_lea.sflag [#allocation5], 1
    %28 = vsyncpa %s27, 0
    loop: start=0, step=1, limit=4
    $region2: #{tpu_custom_call.1} parent=1 // loop_pre_header
      _
    $region3: #{tpu_custom_call.1} parent=1 // loop_header
      %s30 = sphi 0, %s34
      %p31 = scmp.ge.s32.totalorder %s30, 4
      %s40 = sphi 0, %s42
      %s43 = sphi 0, %s40
      %s44 = sphi 0, %s43
      %s60 = sphi 0, %s44
      %s64 = sphi 0, %s64
      %s66 = sphi 0, %s64
      %s67 = sphi 0, %s66
      %s81 = sphi 0, %s67
      %s85 = sphi 0, %s85
      %s87 = sphi 0, %s85
      %s88 = sphi 0, %s87
      %s102 = sphi 0, %s88
      %s106 = sphi 0, %s106
      %s108 = sphi 0, %s106
      %s109 = sphi 0, %s108
      %s123 = sphi 0, %s109
      %s127 = sphi 0, %s127
      %s129 = sphi 0, %s127
      %s130 = sphi 0, %s129
      %s144 = sphi 0, %s130
      %s148 = sphi 0, %s148
      %s150 = sphi 0, %s148
      %s151 = sphi 0, %s150
      %s165 = sphi 0, %s151
      %s169 = sphi 0, %s169
      %s171 = sphi 0, %s169
      %s172 = sphi 0, %s171
      %s186 = sphi 0, %s172
      %s190 = sphi 0, %s190
      %s192 = sphi 0, %s190
      %s193 = sphi 0, %s192
      %s207 = sphi 0, %s193
      %s211 = sphi 0, %s211
      %s213 = sphi 0, %s211
      %s214 = sphi 0, %s213
      %s228 = sphi 0, %s214
      %s232 = sphi 0, %s232
      %s234 = sphi 0, %s232
      %s235 = sphi 0, %s234
      %s249 = sphi 0, %s235
      %s253 = sphi 0, %s253
      %s255 = sphi 0, %s253
      %s256 = sphi 0, %s255
      %s270 = sphi 0, %s256
      %s274 = sphi 0, %s274
      %s276 = sphi 0, %s274
      %s277 = sphi 0, %s276
      %s291 = sphi 0, %s277
      %s295 = sphi 0, %s295
      %s297 = sphi 0, %s295
      %s298 = sphi 0, %s297
      %s312 = sphi 0, %s298
      %s316 = sphi 0, %s316
      %s318 = sphi 0, %s316
      %s319 = sphi 0, %s318
      %s333 = sphi 0, %s319
      %s337 = sphi 0, %s337
      %s339 = sphi 0, %s337
      %s340 = sphi 0, %s339
      %s354 = sphi 0, %s340
      %s360 = sphi 0, %s362
      %s363 = sphi 0, %s360
      %s364 = sphi 0, %s363
      %s380 = sphi 0, %s364
    $region4: #{tpu_custom_call.1} parent=1 // loop_header_branch
      %33 = sbr.rel (%p31) target = $region8
    $region5: #{tpu_custom_call.1} parent=1 // loop_body
      %s35 = ssub.s32 %s30, 1
      %s36 = ssub.s32 %s30, 2
      %s37 = sadd.s32 %s30, 1
      %s38 = ssub.s32 %s30, %s37
      %p39 = scmp.eq.s32.totalorder %s38, 0
      %s41 = sadd.s32 %s40, 1
      %s42 = scalar_select %p39, %s40, %s41
      %p45 = pneg %p39
      %p46 = scmp.eq.s32.totalorder %s30, 1
      %p47 = por %p45, %p46
      %p48 = scmp.ne.s32.totalorder %s40, %s43
      %p49 = scmp.eq.s32.totalorder %s30, 0
      %p50 = por %p48, %p49
      %p51 = scmp.ne.s32.totalorder %s40, %s43
      %p52 = scmp.eq.s32.totalorder %s35, 1
      %p53 = por %p51, %p52
      %p54 = scmp.ne.s32.totalorder %s43, %s44
      %p55 = scmp.eq.s32.totalorder %s35, 0
      %p56 = por %p54, %p55
      %p57 = scmp.ne.s32.totalorder %s43, %s44
      %p58 = scmp.eq.s32.totalorder %s36, 1
      %p59 = por %p57, %p58
      %p61 = scmp.ne.s32.totalorder %s44, %s60
      %p62 = scmp.eq.s32.totalorder %s36, 0
      %p63 = por %p61, %p62
      %s65 = sadd.s32 %s64, 1
      %p68 = scmp.eq.s32.totalorder %s30, 1
      %p69 = scmp.ne.s32.totalorder %s64, %s66
      %p70 = scmp.eq.s32.totalorder %s30, 0
      %p71 = por %p69, %p70
      %p72 = scmp.ne.s32.totalorder %s64, %s66
      %p73 = scmp.eq.s32.totalorder %s35, 1
      %p74 = por %p72, %p73
      %p75 = scmp.ne.s32.totalorder %s66, %s67
      %p76 = scmp.eq.s32.totalorder %s35, 0
      %p77 = por %p75, %p76
      %p78 = scmp.ne.s32.totalorder %s66, %s67
      %p79 = scmp.eq.s32.totalorder %s36, 1
      %p80 = por %p78, %p79
      %p82 = scmp.ne.s32.totalorder %s67, %s81
      %p83 = scmp.eq.s32.totalorder %s36, 0
      %p84 = por %p82, %p83
      %s86 = sadd.s32 %s85, 1
      %p89 = scmp.eq.s32.totalorder %s30, 1
      %p90 = scmp.ne.s32.totalorder %s85, %s87
      %p91 = scmp.eq.s32.totalorder %s30, 0
      %p92 = por %p90, %p91
      %p93 = scmp.ne.s32.totalorder %s85, %s87
      %p94 = scmp.eq.s32.totalorder %s35, 1
      %p95 = por %p93, %p94
      %p96 = scmp.ne.s32.totalorder %s87, %s88
      %p97 = scmp.eq.s32.totalorder %s35, 0
      %p98 = por %p96, %p97
      %p99 = scmp.ne.s32.totalorder %s87, %s88
      %p100 = scmp.eq.s32.totalorder %s36, 1
      %p101 = por %p99, %p100
      %p103 = scmp.ne.s32.totalorder %s88, %s102
      %p104 = scmp.eq.s32.totalorder %s36, 0
      %p105 = por %p103, %p104
      %s107 = sadd.s32 %s106, 1
      %p110 = scmp.eq.s32.totalorder %s30, 1
      %p111 = scmp.ne.s32.totalorder %s106, %s108
      %p112 = scmp.eq.s32.totalorder %s30, 0
      %p113 = por %p111, %p112
      %p114 = scmp.ne.s32.totalorder %s106, %s108
      %p115 = scmp.eq.s32.totalorder %s35, 1
      %p116 = por %p114, %p115
      %p117 = scmp.ne.s32.totalorder %s108, %s109
      %p118 = scmp.eq.s32.totalorder %s35, 0
      %p119 = por %p117, %p118
      %p120 = scmp.ne.s32.totalorder %s108, %s109
      %p121 = scmp.eq.s32.totalorder %s36, 1
      %p122 = por %p120, %p121
      %p124 = scmp.ne.s32.totalorder %s109, %s123
      %p125 = scmp.eq.s32.totalorder %s36, 0
      %p126 = por %p124, %p125
      %s128 = sadd.s32 %s127, 1
      %p131 = scmp.eq.s32.totalorder %s30, 1
      %p132 = scmp.ne.s32.totalorder %s127, %s129
      %p133 = scmp.eq.s32.totalorder %s30, 0
      %p134 = por %p132, %p133
      %p135 = scmp.ne.s32.totalorder %s127, %s129
      %p136 = scmp.eq.s32.totalorder %s35, 1
      %p137 = por %p135, %p136
      %p138 = scmp.ne.s32.totalorder %s129, %s130
      %p139 = scmp.eq.s32.totalorder %s35, 0
      %p140 = por %p138, %p139
      %p141 = scmp.ne.s32.totalorder %s129, %s130
      %p142 = scmp.eq.s32.totalorder %s36, 1
      %p143 = por %p141, %p142
      %p145 = scmp.ne.s32.totalorder %s130, %s144
      %p146 = scmp.eq.s32.totalorder %s36, 0
      %p147 = por %p145, %p146
      %s149 = sadd.s32 %s148, 1
      %p152 = scmp.eq.s32.totalorder %s30, 1
      %p153 = scmp.ne.s32.totalorder %s148, %s150
      %p154 = scmp.eq.s32.totalorder %s30, 0
      %p155 = por %p153, %p154
      %p156 = scmp.ne.s32.totalorder %s148, %s150
      %p157 = scmp.eq.s32.totalorder %s35, 1
      %p158 = por %p156, %p157
      %p159 = scmp.ne.s32.totalorder %s150, %s151
      %p160 = scmp.eq.s32.totalorder %s35, 0
      %p161 = por %p159, %p160
      %p162 = scmp.ne.s32.totalorder %s150, %s151
      %p163 = scmp.eq.s32.totalorder %s36, 1
      %p164 = por %p162, %p163
      %p166 = scmp.ne.s32.totalorder %s151, %s165
      %p167 = scmp.eq.s32.totalorder %s36, 0
      %p168 = por %p166, %p167
      %s170 = sadd.s32 %s169, 1
      %p173 = scmp.eq.s32.totalorder %s30, 1
      %p174 = scmp.ne.s32.totalorder %s169, %s171
      %p175 = scmp.eq.s32.totalorder %s30, 0
      %p176 = por %p174, %p175
      %p177 = scmp.ne.s32.totalorder %s169, %s171
      %p178 = scmp.eq.s32.totalorder %s35, 1
      %p179 = por %p177, %p178
      %p180 = scmp.ne.s32.totalorder %s171, %s172
      %p181 = scmp.eq.s32.totalorder %s35, 0
      %p182 = por %p180, %p181
      %p183 = scmp.ne.s32.totalorder %s171, %s172
      %p184 = scmp.eq.s32.totalorder %s36, 1
      %p185 = por %p183, %p184
      %p187 = scmp.ne.s32.totalorder %s172, %s186
      %p188 = scmp.eq.s32.totalorder %s36, 0
      %p189 = por %p187, %p188
      %s191 = sadd.s32 %s190, 1
      %p194 = scmp.eq.s32.totalorder %s30, 1
      %p195 = scmp.ne.s32.totalorder %s190, %s192
      %p196 = scmp.eq.s32.totalorder %s30, 0
      %p197 = por %p195, %p196
      %p198 = scmp.ne.s32.totalorder %s190, %s192
      %p199 = scmp.eq.s32.totalorder %s35, 1
      %p200 = por %p198, %p199
      %p201 = scmp.ne.s32.totalorder %s192, %s193
      %p202 = scmp.eq.s32.totalorder %s35, 0
      %p203 = por %p201, %p202
      %p204 = scmp.ne.s32.totalorder %s192, %s193
      %p205 = scmp.eq.s32.totalorder %s36, 1
      %p206 = por %p204, %p205
      %p208 = scmp.ne.s32.totalorder %s193, %s207
      %p209 = scmp.eq.s32.totalorder %s36, 0
      %p210 = por %p208, %p209
      %s212 = sadd.s32 %s211, 1
      %p215 = scmp.eq.s32.totalorder %s30, 1
      %p216 = scmp.ne.s32.totalorder %s211, %s213
      %p217 = scmp.eq.s32.totalorder %s30, 0
      %p218 = por %p216, %p217
      %p219 = scmp.ne.s32.totalorder %s211, %s213
      %p220 = scmp.eq.s32.totalorder %s35, 1
      %p221 = por %p219, %p220
      %p222 = scmp.ne.s32.totalorder %s213, %s214
      %p223 = scmp.eq.s32.totalorder %s35, 0
      %p224 = por %p222, %p223
      %p225 = scmp.ne.s32.totalorder %s213, %s214
      %p226 = scmp.eq.s32.totalorder %s36, 1
      %p227 = por %p225, %p226
      %p229 = scmp.ne.s32.totalorder %s214, %s228
      %p230 = scmp.eq.s32.totalorder %s36, 0
      %p231 = por %p229, %p230
      %s233 = sadd.s32 %s232, 1
      %p236 = scmp.eq.s32.totalorder %s30, 1
      %p237 = scmp.ne.s32.totalorder %s232, %s234
      %p238 = scmp.eq.s32.totalorder %s30, 0
      %p239 = por %p237, %p238
      %p240 = scmp.ne.s32.totalorder %s232, %s234
      %p241 = scmp.eq.s32.totalorder %s35, 1
      %p242 = por %p240, %p241
      %p243 = scmp.ne.s32.totalorder %s234, %s235
      %p244 = scmp.eq.s32.totalorder %s35, 0
      %p245 = por %p243, %p244
      %p246 = scmp.ne.s32.totalorder %s234, %s235
      %p247 = scmp.eq.s32.totalorder %s36, 1
      %p248 = por %p246, %p247
      %p250 = scmp.ne.s32.totalorder %s235, %s249
      %p251 = scmp.eq.s32.totalorder %s36, 0
      %p252 = por %p250, %p251
      %s254 = sadd.s32 %s253, 1
      %p257 = scmp.eq.s32.totalorder %s30, 1
      %p258 = scmp.ne.s32.totalorder %s253, %s255
      %p259 = scmp.eq.s32.totalorder %s30, 0
      %p260 = por %p258, %p259
      %p261 = scmp.ne.s32.totalorder %s253, %s255
      %p262 = scmp.eq.s32.totalorder %s35, 1
      %p263 = por %p261, %p262
      %p264 = scmp.ne.s32.totalorder %s255, %s256
      %p265 = scmp.eq.s32.totalorder %s35, 0
      %p266 = por %p264, %p265
      %p267 = scmp.ne.s32.totalorder %s255, %s256
      %p268 = scmp.eq.s32.totalorder %s36, 1
      %p269 = por %p267, %p268
      %p271 = scmp.ne.s32.totalorder %s256, %s270
      %p272 = scmp.eq.s32.totalorder %s36, 0
      %p273 = por %p271, %p272
      %s275 = sadd.s32 %s274, 1
      %p278 = scmp.eq.s32.totalorder %s30, 1
      %p279 = scmp.ne.s32.totalorder %s274, %s276
      %p280 = scmp.eq.s32.totalorder %s30, 0
      %p281 = por %p279, %p280
      %p282 = scmp.ne.s32.totalorder %s274, %s276
      %p283 = scmp.eq.s32.totalorder %s35, 1
      %p284 = por %p282, %p283
      %p285 = scmp.ne.s32.totalorder %s276, %s277
      %p286 = scmp.eq.s32.totalorder %s35, 0
      %p287 = por %p285, %p286
      %p288 = scmp.ne.s32.totalorder %s276, %s277
      %p289 = scmp.eq.s32.totalorder %s36, 1
      %p290 = por %p288, %p289
      %p292 = scmp.ne.s32.totalorder %s277, %s291
      %p293 = scmp.eq.s32.totalorder %s36, 0
      %p294 = por %p292, %p293
      %s296 = sadd.s32 %s295, 1
      %p299 = scmp.eq.s32.totalorder %s30, 1
      %p300 = scmp.ne.s32.totalorder %s295, %s297
      %p301 = scmp.eq.s32.totalorder %s30, 0
      %p302 = por %p300, %p301
      %p303 = scmp.ne.s32.totalorder %s295, %s297
      %p304 = scmp.eq.s32.totalorder %s35, 1
      %p305 = por %p303, %p304
      %p306 = scmp.ne.s32.totalorder %s297, %s298
      %p307 = scmp.eq.s32.totalorder %s35, 0
      %p308 = por %p306, %p307
      %p309 = scmp.ne.s32.totalorder %s297, %s298
      %p310 = scmp.eq.s32.totalorder %s36, 1
      %p311 = por %p309, %p310
      %p313 = scmp.ne.s32.totalorder %s298, %s312
      %p314 = scmp.eq.s32.totalorder %s36, 0
      %p315 = por %p313, %p314
      %s317 = sadd.s32 %s316, 1
      %p320 = scmp.eq.s32.totalorder %s30, 1
      %p321 = scmp.ne.s32.totalorder %s316, %s318
      %p322 = scmp.eq.s32.totalorder %s30, 0
      %p323 = por %p321, %p322
      %p324 = scmp.ne.s32.totalorder %s316, %s318
      %p325 = scmp.eq.s32.totalorder %s35, 1
      %p326 = por %p324, %p325
      %p327 = scmp.ne.s32.totalorder %s318, %s319
      %p328 = scmp.eq.s32.totalorder %s35, 0
      %p329 = por %p327, %p328
      %p330 = scmp.ne.s32.totalorder %s318, %s319
      %p331 = scmp.eq.s32.totalorder %s36, 1
      %p332 = por %p330, %p331
      %p334 = scmp.ne.s32.totalorder %s319, %s333
      %p335 = scmp.eq.s32.totalorder %s36, 0
      %p336 = por %p334, %p335
      %s338 = sadd.s32 %s337, 1
      %p341 = scmp.eq.s32.totalorder %s30, 1
      %p342 = scmp.ne.s32.totalorder %s337, %s339
      %p343 = scmp.eq.s32.totalorder %s30, 0
      %p344 = por %p342, %p343
      %p345 = scmp.ne.s32.totalorder %s337, %s339
      %p346 = scmp.eq.s32.totalorder %s35, 1
      %p347 = por %p345, %p346
      %p348 = scmp.ne.s32.totalorder %s339, %s340
      %p349 = scmp.eq.s32.totalorder %s35, 0
      %p350 = por %p348, %p349
      %p351 = scmp.ne.s32.totalorder %s339, %s340
      %p352 = scmp.eq.s32.totalorder %s36, 1
      %p353 = por %p351, %p352
      %p355 = scmp.ne.s32.totalorder %s340, %s354
      %p356 = scmp.eq.s32.totalorder %s36, 0
      %p357 = por %p355, %p356
      %s358 = ssub.s32 %s30, %s37
      %p359 = scmp.eq.s32.totalorder %s358, 0
      %s361 = sadd.s32 %s360, 1
      %s362 = scalar_select %p359, %s360, %s361
      %p365 = pneg %p359
      %p366 = scmp.eq.s32.totalorder %s30, 1
      %p367 = por %p365, %p366
      %p368 = scmp.ne.s32.totalorder %s360, %s363
      %p369 = scmp.eq.s32.totalorder %s30, 0
      %p370 = por %p368, %p369
      %p371 = scmp.ne.s32.totalorder %s360, %s363
      %p372 = scmp.eq.s32.totalorder %s35, 1
      %p373 = por %p371, %p372
      %p374 = scmp.ne.s32.totalorder %s363, %s364
      %p375 = scmp.eq.s32.totalorder %s35, 0
      %p376 = por %p374, %p375
      %p377 = scmp.ne.s32.totalorder %s363, %s364
      %p378 = scmp.eq.s32.totalorder %s36, 1
      %p379 = por %p377, %p378
      %p381 = scmp.ne.s32.totalorder %s364, %s380
      %p382 = scmp.eq.s32.totalorder %s36, 0
      %p383 = por %p381, %p382
      %p384 = scmp.le.s32.totalorder 1, %s30
      %p385 = scmp.lt.s32.totalorder %s30, 3
      %p386 = pnand %p384, %p385
      %p387 = pneg %p386
      // Predicated region
      $region9: #{tpu_custom_call.1} parent=5 // pred_check
        _
      $region10: #{tpu_custom_call.1} parent=5 // pred_check_branch
        %389 = sbr.rel (%p386) target = $region12
      $region11: #{tpu_custom_call.1} parent=5 // pred_region
        %s390 = ssub.s32 %s30, 1
        // Predicated region
        $region13: #{tpu_custom_call.1} parent=11 // pred_check
          %p391 = pneg %p77
        $region14: #{tpu_custom_call.1} parent=11 // pred_check_branch
          %393 = sbr.rel (%p391) target = $region16
        $region15: #{tpu_custom_call.1} parent=11 // pred_region
          %s395 = ssub.s32 1024, 1024
          %396 = vsyncadd [#allocation7], %s395
          %s397 = sshll.u32 [#allocation6], 4
          %s398 = int_to_ptr.vmem [resolvable:$true] %s397
          %403 = dma.hbm_to_vmem [thread:$0]  %s1, 1024, %s398, [#allocation7], 64, 64, 4
        $region16: #{tpu_custom_call.1} parent=11 // pred_fallthru
          _
        // Predicated region
        $region17: #{tpu_custom_call.1} parent=11 // pred_check
          %p404 = pneg %p98
        $region18: #{tpu_custom_call.1} parent=11 // pred_check_branch
          %406 = sbr.rel (%p404) target = $region20
        $region19: #{tpu_custom_call.1} parent=11 // pred_region
          _
        $region20: #{tpu_custom_call.1} parent=11 // pred_fallthru
          _
        // Predicated region
        $region21: #{tpu_custom_call.1} parent=11 // pred_check
          %p407 = pneg %p119
        $region22: #{tpu_custom_call.1} parent=11 // pred_check_branch
          %409 = sbr.rel (%p407) target = $region24
        $region23: #{tpu_custom_call.1} parent=11 // pred_region
          _
        $region24: #{tpu_custom_call.1} parent=11 // pred_fallthru
          _
        // Predicated region
        $region25: #{tpu_custom_call.1} parent=11 // pred_check
          %p410 = pneg %p140
        $region26: #{tpu_custom_call.1} parent=11 // pred_check_branch
          %412 = sbr.rel (%p410) target = $region28
        $region27: #{tpu_custom_call.1} parent=11 // pred_region
          %s414 = ssub.s32 9216, 9216
          %415 = vsyncadd [#allocation7], %s414
          %s416 = sshll.u32 [#allocation8], 4
          %s417 = int_to_ptr.vmem [resolvable:$true] %s416
          %422 = dma.hbm_to_vmem [thread:$0]  %s4, 9216, %s417, [#allocation7], 64, 64, 4
        $region28: #{tpu_custom_call.1} parent=11 // pred_fallthru
          _
        // Predicated region
        $region29: #{tpu_custom_call.1} parent=11 // pred_check
          %p423 = pneg %p161
        $region30: #{tpu_custom_call.1} parent=11 // pred_check_branch
          %425 = sbr.rel (%p423) target = $region32
        $region31: #{tpu_custom_call.1} parent=11 // pred_region
          _
        $region32: #{tpu_custom_call.1} parent=11 // pred_fallthru
          _
        // Predicated region
        $region33: #{tpu_custom_call.1} parent=11 // pred_check
          %p426 = pneg %p182
        $region34: #{tpu_custom_call.1} parent=11 // pred_check_branch
          %428 = sbr.rel (%p426) target = $region36
        $region35: #{tpu_custom_call.1} parent=11 // pred_region
          _
        $region36: #{tpu_custom_call.1} parent=11 // pred_fallthru
          _
        // Predicated region
        $region37: #{tpu_custom_call.1} parent=11 // pred_check
          %p429 = pneg %p203
        $region38: #{tpu_custom_call.1} parent=11 // pred_check_branch
          %431 = sbr.rel (%p429) target = $region40
        $region39: #{tpu_custom_call.1} parent=11 // pred_region
          %s433 = ssub.s32 1024, 1024
          %434 = vsyncadd [#allocation10], %s433
          %s435 = sshll.u32 [#allocation9], 4
          %s436 = int_to_ptr.vmem [resolvable:$true] %s435
          %441 = dma.hbm_to_vmem [thread:$0]  %s7, 1024, %s436, [#allocation10], 64, 64, 4
        $region40: #{tpu_custom_call.1} parent=11 // pred_fallthru
          _
        // Predicated region
        $region41: #{tpu_custom_call.1} parent=11 // pred_check
          %p442 = pneg %p224
        $region42: #{tpu_custom_call.1} parent=11 // pred_check_branch
          %444 = sbr.rel (%p442) target = $region44
        $region43: #{tpu_custom_call.1} parent=11 // pred_region
          _
        $region44: #{tpu_custom_call.1} parent=11 // pred_fallthru
          _
        // Predicated region
        $region45: #{tpu_custom_call.1} parent=11 // pred_check
          %p445 = pneg %p245
        $region46: #{tpu_custom_call.1} parent=11 // pred_check_branch
          %447 = sbr.rel (%p445) target = $region48
        $region47: #{tpu_custom_call.1} parent=11 // pred_region
          _
        $region48: #{tpu_custom_call.1} parent=11 // pred_fallthru
          _
        // Predicated region
        $region49: #{tpu_custom_call.1} parent=11 // pred_check
          %p448 = pneg %p266
        $region50: #{tpu_custom_call.1} parent=11 // pred_check_branch
          %450 = sbr.rel (%p448) target = $region52
        $region51: #{tpu_custom_call.1} parent=11 // pred_region
          %s452 = ssub.s32 9216, 9216
          %453 = vsyncadd [#allocation10], %s452
          %s454 = sshll.u32 [#allocation11], 4
          %s455 = int_to_ptr.vmem [resolvable:$true] %s454
          %460 = dma.hbm_to_vmem [thread:$0]  %s10, 9216, %s455, [#allocation10], 64, 64, 4
        $region52: #{tpu_custom_call.1} parent=11 // pred_fallthru
          _
        // Predicated region
        $region53: #{tpu_custom_call.1} parent=11 // pred_check
          %p461 = pneg %p287
        $region54: #{tpu_custom_call.1} parent=11 // pred_check_branch
          %463 = sbr.rel (%p461) target = $region56
        $region55: #{tpu_custom_call.1} parent=11 // pred_region
          _
        $region56: #{tpu_custom_call.1} parent=11 // pred_fallthru
          _
        // Predicated region
        $region57: #{tpu_custom_call.1} parent=11 // pred_check
          %p464 = pneg %p308
        $region58: #{tpu_custom_call.1} parent=11 // pred_check_branch
          %466 = sbr.rel (%p464) target = $region60
        $region59: #{tpu_custom_call.1} parent=11 // pred_region
          _
        $region60: #{tpu_custom_call.1} parent=11 // pred_fallthru
          _
        // Predicated region
        $region61: #{tpu_custom_call.1} parent=11 // pred_check
          %p467 = pneg %p329
        $region62: #{tpu_custom_call.1} parent=11 // pred_check_branch
          %469 = sbr.rel (%p467) target = $region64
        $region63: #{tpu_custom_call.1} parent=11 // pred_region
          %s471 = ssub.s32 1024, 1024
          %472 = vsyncadd [#allocation13], %s471
          %s473 = sshll.u32 [#allocation12], 4
          %s474 = int_to_ptr.vmem [resolvable:$true] %s473
          %479 = dma.hbm_to_vmem [thread:$0]  %s13, 1024, %s474, [#allocation13], 64, 64, 4
        $region64: #{tpu_custom_call.1} parent=11 // pred_fallthru
          _
        // Predicated region
        $region65: #{tpu_custom_call.1} parent=11 // pred_check
          %p480 = pneg %p350
        $region66: #{tpu_custom_call.1} parent=11 // pred_check_branch
          %482 = sbr.rel (%p480) target = $region68
        $region67: #{tpu_custom_call.1} parent=11 // pred_region
          _
        $region68: #{tpu_custom_call.1} parent=11 // pred_fallthru
          _
      $region12: #{tpu_custom_call.1} parent=5 // pred_fallthru
        _
      %p483 = scmp.lt.s32.totalorder %s30, 2
      // Predicated region
      $region69: #{tpu_custom_call.1} parent=5 // pred_check
        %p484 = pneg %p483
      $region70: #{tpu_custom_call.1} parent=5 // pred_check_branch
        %486 = sbr.rel (%p484) target = $region72
      $region71: #{tpu_custom_call.1} parent=5 // pred_region
        // Predicated region
        $region73: #{tpu_custom_call.1} parent=71 // pred_check
          %p487 = pneg %p50
        $region74: #{tpu_custom_call.1} parent=71 // pred_check_branch
          %489 = sbr.rel (%p487) target = $region76
        $region75: #{tpu_custom_call.1} parent=71 // pred_region
          %s490 = sand.u32 %s40, 1
          %s491 = scalar_lea.sflag [#allocation4], %s490
          %s492 = sand.u32 %s40, 1
          %s493 = smul.addr %s492, 128
          %s494 = scalar_lea.vmem [#allocation3], %s493
          %s496 = ssub.s32 2048, 2048
          %497 = vsyncadd %s491, %s496
          %s498 = smul.addr %s30, 32
          %s499 = smul.addr %s498, 64
          %s500 = scalar_lea.hbm %s0, %s499
          %s501 = sshll.u32 %s494, 4
          %s502 = int_to_ptr.vmem [resolvable:$true] %s501
          %507 = dma.hbm_to_vmem [thread:$0]  %s500, 2048, %s502, %s491, 64, 64, 4
        $region76: #{tpu_custom_call.1} parent=71 // pred_fallthru
          _
      $region72: #{tpu_custom_call.1} parent=5 // pred_fallthru
        _
      %p508 = scmp.le.s32.totalorder 1, %s30
      %p509 = scmp.lt.s32.totalorder %s30, 3
      %p510 = pnand %p508, %p509
      %p511 = pneg %p510
      // Predicated region
      $region77: #{tpu_custom_call.1} parent=5 // pred_check
        _
      $region78: #{tpu_custom_call.1} parent=5 // pred_check_branch
        %513 = sbr.rel (%p510) target = $region80
      $region79: #{tpu_custom_call.1} parent=5 // pred_region
        %s514 = ssub.s32 %s30, 1
        %s515 = sand.u32 %s43, 1
        %s516 = scalar_lea.sflag [#allocation4], %s515
        %s517 = sand.u32 %s43, 1
        %s518 = smul.addr %s517, 128
        %s519 = scalar_lea.vmem [#allocation3], %s518
        // Predicated region
        $region81: #{tpu_custom_call.1} parent=79 // pred_check
          %p520 = pneg %p56
        $region82: #{tpu_custom_call.1} parent=79 // pred_check_branch
          %522 = sbr.rel (%p520) target = $region84
        $region83: #{tpu_custom_call.1} parent=79 // pred_region
          %523 = dma.done %s516, 2048
        $region84: #{tpu_custom_call.1} parent=79 // pred_fallthru
          _
        // Predicated region
        $region85: #{tpu_custom_call.1} parent=79 // pred_check
          %p524 = pneg %p77
        $region86: #{tpu_custom_call.1} parent=79 // pred_check_branch
          %526 = sbr.rel (%p524) target = $region88
        $region87: #{tpu_custom_call.1} parent=79 // pred_region
          %527 = dma.done [#allocation7], 1024
        $region88: #{tpu_custom_call.1} parent=79 // pred_fallthru
          _
        // Predicated region
        $region89: #{tpu_custom_call.1} parent=79 // pred_check
          %p528 = pneg %p140
        $region90: #{tpu_custom_call.1} parent=79 // pred_check_branch
          %530 = sbr.rel (%p528) target = $region92
        $region91: #{tpu_custom_call.1} parent=79 // pred_region
          %531 = dma.done [#allocation7], 9216
        $region92: #{tpu_custom_call.1} parent=79 // pred_fallthru
          _
        // Predicated region
        $region93: #{tpu_custom_call.1} parent=79 // pred_check
          %p532 = pneg %p203
        $region94: #{tpu_custom_call.1} parent=79 // pred_check_branch
          %534 = sbr.rel (%p532) target = $region96
        $region95: #{tpu_custom_call.1} parent=79 // pred_region
          %535 = dma.done [#allocation10], 1024
        $region96: #{tpu_custom_call.1} parent=79 // pred_fallthru
          _
        // Predicated region
        $region97: #{tpu_custom_call.1} parent=79 // pred_check
          %p536 = pneg %p266
        $region98: #{tpu_custom_call.1} parent=79 // pred_check_branch
          %538 = sbr.rel (%p536) target = $region100
        $region99: #{tpu_custom_call.1} parent=79 // pred_region
          %539 = dma.done [#allocation10], 9216
        $region100: #{tpu_custom_call.1} parent=79 // pred_fallthru
          _
        // Predicated region
        $region101: #{tpu_custom_call.1} parent=79 // pred_check
          %p540 = pneg %p329
        $region102: #{tpu_custom_call.1} parent=79 // pred_check_branch
          %542 = sbr.rel (%p540) target = $region104
        $region103: #{tpu_custom_call.1} parent=79 // pred_region
          %543 = dma.done [#allocation13], 1024
        $region104: #{tpu_custom_call.1} parent=79 // pred_fallthru
          _
        %s544 = sand.u32 %s43, 1
        %s545 = scalar_lea.sflag [#allocation4], %s544
        %s546 = sand.u32 %s43, 1
        %s547 = smul.addr %s546, 128
        %s548 = scalar_lea.vmem [#allocation3], %s547
        %p549 = pneg %p56
        %p550 = pneg %p53
        %p551 = pneg %p77
        %p552 = pneg %p74
        %p553 = pneg %p98
        %p554 = pneg %p95
        %p555 = pneg %p119
        %p556 = pneg %p116
        %p557 = pneg %p140
        %p558 = pneg %p137
        %p559 = pneg %p161
        %p560 = pneg %p158
        %p561 = pneg %p182
        %p562 = pneg %p179
        %p563 = pneg %p203
        %p564 = pneg %p200
        %p565 = pneg %p224
        %p566 = pneg %p221
        %p567 = pneg %p245
        %p568 = pneg %p242
        %p569 = pneg %p266
        %p570 = pneg %p263
        %p571 = pneg %p287
        %p572 = pneg %p284
        %p573 = pneg %p308
        %p574 = pneg %p305
        %p575 = pneg %p329
        %p576 = pneg %p326
        %p577 = pneg %p350
        %p578 = pneg %p347
        %p579 = pneg %p376
        %p580 = pneg %p373
        %s581 = sand.u32 %s363, 1
        %s582 = scalar_lea.sflag [#allocation5], %s581
        %s583 = sand.u32 %s363, 1
        %s584 = smul.addr %s583, 256
        %s585 = scalar_lea.vmem [#allocation14], %s584
        %587 = vst [vmem:[#allocation2] sm:$0xff] 0.0
        %588 = vst [vmem:[#allocation2 + $0x8] sm:$0xff] 0.0
        %589 = vst [vmem:[#allocation2 + $0x10] sm:$0x3] 0.0
        %590 = vst [vmem:[#allocation2 + $0x18] sm:$0xff] 0.0
        %591 = vst [vmem:[#allocation2 + $0x20] sm:$0xff] 0.0
        %592 = vst [vmem:[#allocation2 + $0x28] sm:$0x3] 0.0
        %593 = vst [vmem:[#allocation2 + $0x30] sm:$0xff] 0.0
        %594 = vst [vmem:[#allocation2 + $0x38] sm:$0xff] 0.0
        %595 = vst [vmem:[#allocation2 + $0x40] sm:$0x3] 0.0
        %596 = vst [vmem:[#allocation2 + $0x48] sm:$0xff] 0.0
        %597 = vst [vmem:[#allocation2 + $0x50] sm:$0xff] 0.0
        %598 = vst [vmem:[#allocation2 + $0x58] sm:$0x3] 0.0
        %599 = vst [vmem:[#allocation2 + $0x60] sm:$0xff] 0.0
        %600 = vst [vmem:[#allocation2 + $0x68] sm:$0xff] 0.0
        %601 = vst [vmem:[#allocation2 + $0x70] sm:$0x3] 0.0
        %602 = vst [vmem:[#allocation2 + $0x78] sm:$0xff] 0.0
        %603 = vst [vmem:[#allocation2 + $0x80] sm:$0xff] 0.0
        %604 = vst [vmem:[#allocation2 + $0x88] sm:$0x3] 0.0
        %605 = vst [vmem:[#allocation2 + $0x90] sm:$0xff] 0.0
        %606 = vst [vmem:[#allocation2 + $0x98] sm:$0xff] 0.0
        %607 = vst [vmem:[#allocation2 + $0xa0] sm:$0x3] 0.0
        %608 = vst [vmem:[#allocation2 + $0xa8] sm:$0xff] 0.0
        %609 = vst [vmem:[#allocation2 + $0xb0] sm:$0xff] 0.0
        %610 = vst [vmem:[#allocation2 + $0xb8] sm:$0x3] 0.0
        %611 = vst [vmem:[#allocation2 + $0xc0] sm:$0xff] 0.0
        %612 = vst [vmem:[#allocation2 + $0xc8] sm:$0xff] 0.0
        %613 = vst [vmem:[#allocation2 + $0xd0] sm:$0x3] 0.0
        %614 = vst [vmem:[#allocation2 + $0xd8] sm:$0xff] 0.0
        %615 = vst [vmem:[#allocation2 + $0xe0] sm:$0xff] 0.0
        %616 = vst [vmem:[#allocation2 + $0xe8] sm:$0x3] 0.0
        %617 = vst [vmem:[#allocation2 + $0xf0] sm:$0xff] 0.0
        %618 = vst [vmem:[#allocation2 + $0xf8] sm:$0xff] 0.0
        %619 = vst [vmem:[#allocation2 + $0x100] sm:$0x3] 0.0
        %620 = vst [vmem:[#allocation2 + $0x108] sm:$0xff] 0.0
        %621 = vst [vmem:[#allocation2 + $0x110] sm:$0xff] 0.0
        %622 = vst [vmem:[#allocation2 + $0x118] sm:$0x3] 0.0
        %623 = vst [vmem:[#allocation2 + $0x120] sm:$0xff] 0.0
        %624 = vst [vmem:[#allocation2 + $0x128] sm:$0xff] 0.0
        %625 = vst [vmem:[#allocation2 + $0x130] sm:$0x3] 0.0
        %626 = vst [vmem:[#allocation2 + $0x138] sm:$0xff] 0.0
        %627 = vst [vmem:[#allocation2 + $0x140] sm:$0xff] 0.0
        %628 = vst [vmem:[#allocation2 + $0x148] sm:$0x3] 0.0
        %629 = vst [vmem:[#allocation2 + $0x150] sm:$0xff] 0.0
        %630 = vst [vmem:[#allocation2 + $0x158] sm:$0xff] 0.0
        %631 = vst [vmem:[#allocation2 + $0x160] sm:$0x3] 0.0
        %632 = vst [vmem:[#allocation2 + $0x168] sm:$0xff] 0.0
        %633 = vst [vmem:[#allocation2 + $0x170] sm:$0xff] 0.0
        %634 = vst [vmem:[#allocation2 + $0x178] sm:$0x3] 0.0
        %635 = vst [vmem:[#allocation2 + $0x180] sm:$0xff] 0.0
        %636 = vst [vmem:[#allocation2 + $0x188] sm:$0xff] 0.0
        %637 = vst [vmem:[#allocation2 + $0x190] sm:$0x3] 0.0
        %638 = vst [vmem:[#allocation2 + $0x198] sm:$0xff] 0.0
        %639 = vst [vmem:[#allocation2 + $0x1a0] sm:$0xff] 0.0
        %640 = vst [vmem:[#allocation2 + $0x1a8] sm:$0x3] 0.0
        %v641 = vld [vmem:[%s519] sm:$0xf]
        %v642 = vld [vmem:[%s519 + $0x4] sm:$0xf]
        %v643 = vld [vmem:[%s519 + $0x8] sm:$0xf]
        %v644 = vld [vmem:[%s519 + $0xc] sm:$0xf]
        %v645 = vld [vmem:[%s519 + $0x10] sm:$0xf]
        %v646 = vld [vmem:[%s519 + $0x14] sm:$0xf]
        %v647 = vld [vmem:[%s519 + $0x18] sm:$0xf]
        %v648 = vld [vmem:[%s519 + $0x1c] sm:$0xf]
        %v649 = vld [vmem:[%s519 + $0x20] sm:$0xf]
        %v650 = vld [vmem:[%s519 + $0x24] sm:$0xf]
        %v651 = vld [vmem:[%s519 + $0x28] sm:$0xf]
        %v652 = vld [vmem:[%s519 + $0x2c] sm:$0xf]
        %v653 = vld [vmem:[%s519 + $0x30] sm:$0xf]
        %v654 = vld [vmem:[%s519 + $0x34] sm:$0xf]
        %v655 = vld [vmem:[%s519 + $0x38] sm:$0xf]
        %v656 = vld [vmem:[%s519 + $0x3c] sm:$0xf]
        %v657 = vld [vmem:[%s519 + $0x40] sm:$0xf]
        %v658 = vld [vmem:[%s519 + $0x44] sm:$0xf]
        %v659 = vld [vmem:[%s519 + $0x48] sm:$0xf]
        %v660 = vld [vmem:[%s519 + $0x4c] sm:$0xf]
        %v661 = vld [vmem:[%s519 + $0x50] sm:$0xf]
        %v662 = vld [vmem:[%s519 + $0x54] sm:$0xf]
        %v663 = vld [vmem:[%s519 + $0x58] sm:$0xf]
        %v664 = vld [vmem:[%s519 + $0x5c] sm:$0xf]
        %v665 = vld [vmem:[%s519 + $0x60] sm:$0xf]
        %v666 = vld [vmem:[%s519 + $0x64] sm:$0xf]
        %v667 = vld [vmem:[%s519 + $0x68] sm:$0xf]
        %v668 = vld [vmem:[%s519 + $0x6c] sm:$0xf]
        %v669 = vld [vmem:[%s519 + $0x70] sm:$0xf]
        %v670 = vld [vmem:[%s519 + $0x74] sm:$0xf]
        %v671 = vld [vmem:[%s519 + $0x78] sm:$0xf]
        %v672 = vld [vmem:[%s519 + $0x7c] sm:$0xf]
        %v673 = vld [vmem:[#allocation6] sm:$0xf]
        %v674 = vld [vmem:[#allocation6 + $0x4] sm:$0xf]
        %v675 = vld [vmem:[#allocation6 + $0x8] sm:$0xf]
        %v676 = vld [vmem:[#allocation6 + $0xc] sm:$0xf]
        %v677 = vld [vmem:[#allocation6 + $0x10] sm:$0xf]
        %v678 = vld [vmem:[#allocation6 + $0x14] sm:$0xf]
        %v679 = vld [vmem:[#allocation6 + $0x18] sm:$0xf]
        %v680 = vld [vmem:[#allocation6 + $0x1c] sm:$0xf]
        %v681 = vld [vmem:[#allocation6 + $0x20] sm:$0xf]
        %v682 = vld [vmem:[#allocation6 + $0x24] sm:$0xf]
        %v683 = vld [vmem:[#allocation6 + $0x28] sm:$0xf]
        %v684 = vld [vmem:[#allocation6 + $0x2c] sm:$0xf]
        %v685 = vld [vmem:[#allocation6 + $0x30] sm:$0xf]
        %v686 = vld [vmem:[#allocation6 + $0x34] sm:$0xf]
        %v687 = vld [vmem:[#allocation6 + $0x38] sm:$0xf]
        %v688 = vld [vmem:[#allocation6 + $0x3c] sm:$0xf]
        %v721 = vunpack.c.l.b16 %v641
        %v722 = vunpack.c.l.b16 %v642
        %v723 = vunpack.c.l.b16 %v643
        %v724 = vunpack.c.l.b16 %v644
        %v725 = vunpack.c.l.b16 %v645
        %v726 = vunpack.c.l.b16 %v646
        %v727 = vunpack.c.l.b16 %v647
        %v728 = vunpack.c.l.b16 %v648
        %v729 = vunpack.c.l.b16 %v649
        %v730 = vunpack.c.l.b16 %v650
        %v731 = vunpack.c.l.b16 %v651
        %v732 = vunpack.c.l.b16 %v652
        %v733 = vunpack.c.l.b16 %v653
        %v734 = vunpack.c.l.b16 %v654
        %v735 = vunpack.c.l.b16 %v655
        %v736 = vunpack.c.l.b16 %v656
        %v737 = vunpack.c.l.b16 %v657
        %v738 = vunpack.c.l.b16 %v658
        %v739 = vunpack.c.l.b16 %v659
        %v740 = vunpack.c.l.b16 %v660
        %v741 = vunpack.c.l.b16 %v661
        %v742 = vunpack.c.l.b16 %v662
        %v743 = vunpack.c.l.b16 %v663
        %v744 = vunpack.c.l.b16 %v664
        %v745 = vunpack.c.l.b16 %v665
        %v746 = vunpack.c.l.b16 %v666
        %v747 = vunpack.c.l.b16 %v667
        %v748 = vunpack.c.l.b16 %v668
        %v749 = vunpack.c.l.b16 %v669
        %v750 = vunpack.c.l.b16 %v670
        %v751 = vunpack.c.l.b16 %v671
        %v752 = vunpack.c.l.b16 %v672
        %v753 = vpack.c.b16 %v722, %v721
        %v754 = vpack.c.b16 %v724, %v723
        %v755 = vpack.c.b16 %v726, %v725
        %v756 = vpack.c.b16 %v728, %v727
        %v757 = vpack.c.b16 %v730, %v729
        %v758 = vpack.c.b16 %v732, %v731
        %v759 = vpack.c.b16 %v734, %v733
        %v760 = vpack.c.b16 %v736, %v735
        %v761 = vpack.c.b16 %v738, %v737
        %v762 = vpack.c.b16 %v740, %v739
        %v763 = vpack.c.b16 %v742, %v741
        %v764 = vpack.c.b16 %v744, %v743
        %v765 = vpack.c.b16 %v746, %v745
        %v766 = vpack.c.b16 %v748, %v747
        %v767 = vpack.c.b16 %v750, %v749
        %v768 = vpack.c.b16 %v752, %v751
        %v801 = vunpack.c.l.b16 %v673
        %v802 = vunpack.c.l.b16 %v674
        %v803 = vunpack.c.l.b16 %v675
        %v804 = vunpack.c.l.b16 %v676
        %v805 = vunpack.c.l.b16 %v677
        %v806 = vunpack.c.l.b16 %v678
        %v807 = vunpack.c.l.b16 %v679
        %v808 = vunpack.c.l.b16 %v680
        %v809 = vunpack.c.l.b16 %v681
        %v810 = vunpack.c.l.b16 %v682
        %v811 = vunpack.c.l.b16 %v683
        %v812 = vunpack.c.l.b16 %v684
        %v813 = vunpack.c.l.b16 %v685
        %v814 = vunpack.c.l.b16 %v686
        %v815 = vunpack.c.l.b16 %v687
        %v816 = vunpack.c.l.b16 %v688
        %v817 = vpack.c.b16 %v802, %v801
        %v818 = vpack.c.b16 %v804, %v803
        %v819 = vpack.c.b16 %v806, %v805
        %v820 = vpack.c.b16 %v808, %v807
        %v821 = vpack.c.b16 %v810, %v809
        %v822 = vpack.c.b16 %v812, %v811
        %v823 = vpack.c.b16 %v814, %v813
        %v824 = vpack.c.b16 %v816, %v815
        %833 = vmatprep.subr.bf16.mxu0 0
        %834 = vmatpush1.bf16.msra.mxu0 %v817
        %835 = vmatprep.subr.bf16.mxu0 0
        %836 = vmatpush1.bf16.msra.mxu0 %v818
        %837 = vmatprep.subr.bf16.mxu0 0
        %838 = vmatpush1.bf16.msra.mxu0 %v819
        %839 = vmatprep.subr.bf16.mxu0 0
        %840 = vmatpush1.bf16.msra.mxu0 %v820
        %841 = vmatprep.subr.bf16.mxu0 0
        %842 = vmatpush1.bf16.msra.mxu0 %v821
        %843 = vmatprep.subr.bf16.mxu0 0
        %844 = vmatpush1.bf16.msra.mxu0 %v822
        %845 = vmatprep.subr.bf16.mxu0 0
        %846 = vmatpush1.bf16.msra.mxu0 %v823
        %847 = vmatprep.subr.bf16.mxu0 0
        %848 = vmatpush1.bf16.msra.mxu0 %v824
        %849 = vmatprep.subr.bf16.mxu0 0
        %850 = vmatpush1.bf16.msra.mxu0 0
        %851 = vmatprep.subr.bf16.mxu0 0
        %852 = vmatpush1.bf16.msra.mxu0 0
        %853 = vmatprep.subr.bf16.mxu0 0
        %854 = vmatpush1.bf16.msra.mxu0 0
        %855 = vmatprep.subr.bf16.mxu0 0
        %856 = vmatpush1.bf16.msra.mxu0 0
        %857 = vmatprep.subr.bf16.mxu0 0
        %858 = vmatpush1.bf16.msra.mxu0 0
        %859 = vmatprep.subr.bf16.mxu0 0
        %860 = vmatpush1.bf16.msra.mxu0 0
        %861 = vmatprep.subr.bf16.mxu0 0
        %862 = vmatpush1.bf16.msra.mxu0 0
        %863 = vmatprep.subr.bf16.mxu0 0
        %864 = vmatpush1.bf16.msra.mxu0 0
        %865 = vmatprep.mubr.bf16.mxu0 0
        %866 = vmatmul.mubr.bf16.gmra.mrb[0].mxu0 %v753
        %v867 = vpop.f32.mrb[0].mxu0
        %v868 = vadd.f32 0.0, %v867
        %v869 = vpop.f32.mrb[0].mxu0
        %v870 = vpop.f32.mrb[0].mxu0
        %v871 = vadd.f32 0.0, %v870
        %v872 = vpop.f32.mrb[0].mxu0
        %873 = vmatprep.mubr.bf16.mxu0 0
        %874 = vmatmul.mubr.bf16.gmra.mrb[0].mxu0 %v754
        %v875 = vpop.f32.mrb[0].mxu0
        %v876 = vadd.f32 0.0, %v875
        %v877 = vpop.f32.mrb[0].mxu0
        %v878 = vpop.f32.mrb[0].mxu0
        %v879 = vadd.f32 0.0, %v878
        %v880 = vpop.f32.mrb[0].mxu0
        %881 = vmatprep.mubr.bf16.mxu0 0
        %882 = vmatmul.mubr.bf16.gmra.mrb[0].mxu0 %v755
        %v883 = vpop.f32.mrb[0].mxu0
        %v884 = vadd.f32 0.0, %v883
        %v885 = vpop.f32.mrb[0].mxu0
        %v886 = vpop.f32.mrb[0].mxu0
        %v887 = vadd.f32 0.0, %v886
        %v888 = vpop.f32.mrb[0].mxu0
        %889 = vmatprep.mubr.bf16.mxu0 0
        %890 = vmatmul.mubr.bf16.gmra.mrb[0].mxu0 %v756
        %v891 = vpop.f32.mrb[0].mxu0
        %v892 = vadd.f32 0.0, %v891
        %v893 = vpop.f32.mrb[0].mxu0
        %v894 = vpop.f32.mrb[0].mxu0
        %v895 = vadd.f32 0.0, %v894
        %v896 = vpop.f32.mrb[0].mxu0
        %897 = vmatprep.mubr.bf16.mxu0 0
        %898 = vmatmul.mubr.bf16.gmra.mrb[0].mxu0 %v757
        %v899 = vpop.f32.mrb[0].mxu0
        %v900 = vadd.f32 0.0, %v899
        %v901 = vpop.f32.mrb[0].mxu0
        %v902 = vpop.f32.mrb[0].mxu0
        %v903 = vadd.f32 0.0, %v902
        %v904 = vpop.f32.mrb[0].mxu0
        %905 = vmatprep.mubr.bf16.mxu0 0
        %906 = vmatmul.mubr.bf16.gmra.mrb[0].mxu0 %v758
        %v907 = vpop.f32.mrb[0].mxu0
        %v908 = vadd.f32 0.0, %v907
        %v909 = vpop.f32.mrb[0].mxu0
        %v910 = vpop.f32.mrb[0].mxu0
        %v911 = vadd.f32 0.0, %v910
        %v912 = vpop.f32.mrb[0].mxu0
        %913 = vmatprep.mubr.bf16.mxu0 0
        %914 = vmatmul.mubr.bf16.gmra.mrb[0].mxu0 %v759
        %v915 = vpop.f32.mrb[0].mxu0
        %v916 = vadd.f32 0.0, %v915
        %v917 = vpop.f32.mrb[0].mxu0
        %v918 = vpop.f32.mrb[0].mxu0
        %v919 = vadd.f32 0.0, %v918
        %v920 = vpop.f32.mrb[0].mxu0
        %921 = vmatprep.mubr.bf16.mxu0 0
        %922 = vmatmul.mubr.bf16.gmra.mrb[0].mxu0 %v760
        %v923 = vpop.f32.mrb[0].mxu0
        %v924 = vadd.f32 0.0, %v923
        %v925 = vpop.f32.mrb[0].mxu0
        %v926 = vpop.f32.mrb[0].mxu0
        %v927 = vadd.f32 0.0, %v926
        %v928 = vpop.f32.mrb[0].mxu0
        %929 = vmatprep.mubr.bf16.mxu0 0
        %930 = vmatmul.mubr.bf16.gmra.mrb[0].mxu0 %v761
        %v931 = vpop.f32.mrb[0].mxu0
        %v932 = vadd.f32 0.0, %v931
        %v933 = vpop.f32.mrb[0].mxu0
        %v934 = vpop.f32.mrb[0].mxu0
        %v935 = vadd.f32 0.0, %v934
        %v936 = vpop.f32.mrb[0].mxu0
        %937 = vmatprep.mubr.bf16.mxu0 0
        %938 = vmatmul.mubr.bf16.gmra.mrb[0].mxu0 %v762
        %v939 = vpop.f32.mrb[0].mxu0
        %v940 = vadd.f32 0.0, %v939
        %v941 = vpop.f32.mrb[0].mxu0
        %v942 = vpop.f32.mrb[0].mxu0
        %v943 = vadd.f32 0.0, %v942
        %v944 = vpop.f32.mrb[0].mxu0
        %945 = vmatprep.mubr.bf16.mxu0 0
        %946 = vmatmul.mubr.bf16.gmra.mrb[0].mxu0 %v763
        %v947 = vpop.f32.mrb[0].mxu0
        %v948 = vadd.f32 0.0, %v947
        %v949 = vpop.f32.mrb[0].mxu0
        %v950 = vpop.f32.mrb[0].mxu0
        %v951 = vadd.f32 0.0, %v950
        %v952 = vpop.f32.mrb[0].mxu0
        %953 = vmatprep.mubr.bf16.mxu0 0
        %954 = vmatmul.mubr.bf16.gmra.mrb[0].mxu0 %v764
        %v955 = vpop.f32.mrb[0].mxu0
        %v956 = vadd.f32 0.0, %v955
        %v957 = vpop.f32.mrb[0].mxu0
        %v958 = vpop.f32.mrb[0].mxu0
        %v959 = vadd.f32 0.0, %v958
        %v960 = vpop.f32.mrb[0].mxu0
        %961 = vmatprep.mubr.bf16.mxu0 0
        %962 = vmatmul.mubr.bf16.gmra.mrb[0].mxu0 %v765
        %v963 = vpop.f32.mrb[0].mxu0
        %v964 = vadd.f32 0.0, %v963
        %v965 = vpop.f32.mrb[0].mxu0
        %v966 = vpop.f32.mrb[0].mxu0
        %v967 = vadd.f32 0.0, %v966
        %v968 = vpop.f32.mrb[0].mxu0
        %969 = vmatprep.mubr.bf16.mxu0 0
        %970 = vmatmul.mubr.bf16.gmra.mrb[0].mxu0 %v766
        %v971 = vpop.f32.mrb[0].mxu0
        %v972 = vadd.f32 0.0, %v971
        %v973 = vpop.f32.mrb[0].mxu0
        %v974 = vpop.f32.mrb[0].mxu0
        %v975 = vadd.f32 0.0, %v974
        %v976 = vpop.f32.mrb[0].mxu0
        %977 = vmatprep.mubr.bf16.mxu0 0
        %978 = vmatmul.mubr.bf16.gmra.mrb[0].mxu0 %v767
        %v979 = vpop.f32.mrb[0].mxu0
        %v980 = vadd.f32 0.0, %v979
        %v981 = vpop.f32.mrb[0].mxu0
        %v982 = vpop.f32.mrb[0].mxu0
        %v983 = vadd.f32 0.0, %v982
        %v984 = vpop.f32.mrb[0].mxu0
        %985 = vmatprep.mubr.bf16.mxu0 0
        %986 = vmatmul.mubr.bf16.gmra.mrb[0].mxu0 %v768
        %v987 = vpop.f32.mrb[0].mxu0
        %v988 = vadd.f32 0.0, %v987
        %v989 = vpop.f32.mrb[0].mxu0
        %v990 = vpop.f32.mrb[0].mxu0
        %v991 = vadd.f32 0.0, %v990
        %v992 = vpop.f32.mrb[0].mxu0
        %993 = vdwg.mxu0
        %v994 = vld [vmem:[%s2] sm:$0x1]
        %v996 = vlaneseq
        %v997 = vshrl.u32 %v996, 7
        %v998 = vsub.s32 0, %v997
        %v999 = vrot.slane %v994, %v998
        %v1001 = vmul.f32 %v868, %v999
        %v1002 = vmul.f32 %v871, %v999
        %v1003 = vmul.f32 %v876, %v999
        %v1004 = vmul.f32 %v879, %v999
        %v1005 = vmul.f32 %v884, %v999
        %v1006 = vmul.f32 %v887, %v999
        %v1007 = vmul.f32 %v892, %v999
        %v1008 = vmul.f32 %v895, %v999
        %v1009 = vmul.f32 %v900, %v999
        %v1010 = vmul.f32 %v903, %v999
        %v1011 = vmul.f32 %v908, %v999
        %v1012 = vmul.f32 %v911, %v999
        %v1013 = vmul.f32 %v916, %v999
        %v1014 = vmul.f32 %v919, %v999
        %v1015 = vmul.f32 %v924, %v999
        %v1016 = vmul.f32 %v927, %v999
        %v1017 = vmul.f32 %v932, %v999
        %v1018 = vmul.f32 %v935, %v999
        %v1019 = vmul.f32 %v940, %v999
        %v1020 = vmul.f32 %v943, %v999
        %v1021 = vmul.f32 %v948, %v999
        %v1022 = vmul.f32 %v951, %v999
        %v1023 = vmul.f32 %v956, %v999
        %v1024 = vmul.f32 %v959, %v999
        %v1025 = vmul.f32 %v964, %v999
        %v1026 = vmul.f32 %v967, %v999
        %v1027 = vmul.f32 %v972, %v999
        %v1028 = vmul.f32 %v975, %v999
        %v1029 = vmul.f32 %v980, %v999
        %v1030 = vmul.f32 %v983, %v999
        %v1031 = vmul.f32 %v988, %v999
        %v1032 = vmul.f32 %v991, %v999
        %v1033 = vld [vmem:[%s3] sm:$0x1]
        %v1035 = vlaneseq
        %v1036 = vshrl.u32 %v1035, 7
        %v1037 = vsub.s32 0, %v1036
        %v1038 = vrot.slane %v1033, %v1037
        %v1040 = vadd.f32 %v1001, %v1038
        %v1041 = vadd.f32 %v1002, %v1038
        %v1042 = vadd.f32 %v1003, %v1038
        %v1043 = vadd.f32 %v1004, %v1038
        %v1044 = vadd.f32 %v1005, %v1038
        %v1045 = vadd.f32 %v1006, %v1038
        %v1046 = vadd.f32 %v1007, %v1038
        %v1047 = vadd.f32 %v1008, %v1038
        %v1048 = vadd.f32 %v1009, %v1038
        %v1049 = vadd.f32 %v1010, %v1038
        %v1050 = vadd.f32 %v1011, %v1038
        %v1051 = vadd.f32 %v1012, %v1038
        %v1052 = vadd.f32 %v1013, %v1038
        %v1053 = vadd.f32 %v1014, %v1038
        %v1054 = vadd.f32 %v1015, %v1038
        %v1055 = vadd.f32 %v1016, %v1038
        %v1056 = vadd.f32 %v1017, %v1038
        %v1057 = vadd.f32 %v1018, %v1038
        %v1058 = vadd.f32 %v1019, %v1038
        %v1059 = vadd.f32 %v1020, %v1038
        %v1060 = vadd.f32 %v1021, %v1038
        %v1061 = vadd.f32 %v1022, %v1038
        %v1062 = vadd.f32 %v1023, %v1038
        %v1063 = vadd.f32 %v1024, %v1038
        %v1064 = vadd.f32 %v1025, %v1038
        %v1065 = vadd.f32 %v1026, %v1038
        %v1066 = vadd.f32 %v1027, %v1038
        %v1067 = vadd.f32 %v1028, %v1038
        %v1068 = vadd.f32 %v1029, %v1038
        %v1069 = vadd.f32 %v1030, %v1038
        %v1070 = vadd.f32 %v1031, %v1038
        %v1071 = vadd.f32 %v1032, %v1038
        %vm1072 = vcmp.gt.f32.partialorder %v1040, 0.0
        %vm1073 = vcmp.gt.f32.partialorder %v1041, 0.0
        %vm1074 = vcmp.gt.f32.partialorder %v1042, 0.0
        %vm1075 = vcmp.gt.f32.partialorder %v1043, 0.0
        %vm1076 = vcmp.gt.f32.partialorder %v1044, 0.0
        %vm1077 = vcmp.gt.f32.partialorder %v1045, 0.0
        %vm1078 = vcmp.gt.f32.partialorder %v1046, 0.0
        %vm1079 = vcmp.gt.f32.partialorder %v1047, 0.0
        %vm1080 = vcmp.gt.f32.partialorder %v1048, 0.0
        %vm1081 = vcmp.gt.f32.partialorder %v1049, 0.0
        %vm1082 = vcmp.gt.f32.partialorder %v1050, 0.0
        %vm1083 = vcmp.gt.f32.partialorder %v1051, 0.0
        %vm1084 = vcmp.gt.f32.partialorder %v1052, 0.0
        %vm1085 = vcmp.gt.f32.partialorder %v1053, 0.0
        %vm1086 = vcmp.gt.f32.partialorder %v1054, 0.0
        %vm1087 = vcmp.gt.f32.partialorder %v1055, 0.0
        %vm1088 = vcmp.gt.f32.partialorder %v1056, 0.0
        %vm1089 = vcmp.gt.f32.partialorder %v1057, 0.0
        %vm1090 = vcmp.gt.f32.partialorder %v1058, 0.0
        %vm1091 = vcmp.gt.f32.partialorder %v1059, 0.0
        %vm1092 = vcmp.gt.f32.partialorder %v1060, 0.0
        %vm1093 = vcmp.gt.f32.partialorder %v1061, 0.0
        %vm1094 = vcmp.gt.f32.partialorder %v1062, 0.0
        %vm1095 = vcmp.gt.f32.partialorder %v1063, 0.0
        %vm1096 = vcmp.gt.f32.partialorder %v1064, 0.0
        %vm1097 = vcmp.gt.f32.partialorder %v1065, 0.0
        %vm1098 = vcmp.gt.f32.partialorder %v1066, 0.0
        %vm1099 = vcmp.gt.f32.partialorder %v1067, 0.0
        %vm1100 = vcmp.gt.f32.partialorder %v1068, 0.0
        %vm1101 = vcmp.gt.f32.partialorder %v1069, 0.0
        %vm1102 = vcmp.gt.f32.partialorder %v1070, 0.0
        %vm1103 = vcmp.gt.f32.partialorder %v1071, 0.0
        %v1104 = vmul.f32 %v1040, 0.1
        %v1105 = vmul.f32 %v1041, 0.1
        %v1106 = vmul.f32 %v1042, 0.1
        %v1107 = vmul.f32 %v1043, 0.1
        %v1108 = vmul.f32 %v1044, 0.1
        %v1109 = vmul.f32 %v1045, 0.1
        %v1110 = vmul.f32 %v1046, 0.1
        %v1111 = vmul.f32 %v1047, 0.1
        %v1112 = vmul.f32 %v1048, 0.1
        %v1113 = vmul.f32 %v1049, 0.1
        %v1114 = vmul.f32 %v1050, 0.1
        %v1115 = vmul.f32 %v1051, 0.1
        %v1116 = vmul.f32 %v1052, 0.1
        %v1117 = vmul.f32 %v1053, 0.1
        %v1118 = vmul.f32 %v1054, 0.1
        %v1119 = vmul.f32 %v1055, 0.1
        %v1120 = vmul.f32 %v1056, 0.1
        %v1121 = vmul.f32 %v1057, 0.1
        %v1122 = vmul.f32 %v1058, 0.1
        %v1123 = vmul.f32 %v1059, 0.1
        %v1124 = vmul.f32 %v1060, 0.1
        %v1125 = vmul.f32 %v1061, 0.1
        %v1126 = vmul.f32 %v1062, 0.1
        %v1127 = vmul.f32 %v1063, 0.1
        %v1128 = vmul.f32 %v1064, 0.1
        %v1129 = vmul.f32 %v1065, 0.1
        %v1130 = vmul.f32 %v1066, 0.1
        %v1131 = vmul.f32 %v1067, 0.1
        %v1132 = vmul.f32 %v1068, 0.1
        %v1133 = vmul.f32 %v1069, 0.1
        %v1134 = vmul.f32 %v1070, 0.1
        %v1135 = vmul.f32 %v1071, 0.1
        %v1136 = vsel %vm1072, %v1040, %v1104
        %v1137 = vsel %vm1073, %v1041, %v1105
        %v1138 = vsel %vm1074, %v1042, %v1106
        %v1139 = vsel %vm1075, %v1043, %v1107
        %v1140 = vsel %vm1076, %v1044, %v1108
        %v1141 = vsel %vm1077, %v1045, %v1109
        %v1142 = vsel %vm1078, %v1046, %v1110
        %v1143 = vsel %vm1079, %v1047, %v1111
        %v1144 = vsel %vm1080, %v1048, %v1112
        %v1145 = vsel %vm1081, %v1049, %v1113
        %v1146 = vsel %vm1082, %v1050, %v1114
        %v1147 = vsel %vm1083, %v1051, %v1115
        %v1148 = vsel %vm1084, %v1052, %v1116
        %v1149 = vsel %vm1085, %v1053, %v1117
        %v1150 = vsel %vm1086, %v1054, %v1118
        %v1151 = vsel %vm1087, %v1055, %v1119
        %v1152 = vsel %vm1088, %v1056, %v1120
        %v1153 = vsel %vm1089, %v1057, %v1121
        %v1154 = vsel %vm1090, %v1058, %v1122
        %v1155 = vsel %vm1091, %v1059, %v1123
        %v1156 = vsel %vm1092, %v1060, %v1124
        %v1157 = vsel %vm1093, %v1061, %v1125
        %v1158 = vsel %vm1094, %v1062, %v1126
        %v1159 = vsel %vm1095, %v1063, %v1127
        %v1160 = vsel %vm1096, %v1064, %v1128
        %v1161 = vsel %vm1097, %v1065, %v1129
        %v1162 = vsel %vm1098, %v1066, %v1130
        %v1163 = vsel %vm1099, %v1067, %v1131
        %v1164 = vsel %vm1100, %v1068, %v1132
        %v1165 = vsel %vm1101, %v1069, %v1133
        %v1166 = vsel %vm1102, %v1070, %v1134
        %v1167 = vsel %vm1103, %v1071, %v1135
        %s1168 = scalar_lea.vmem [#allocation2], 24
        %1169 = vst [vmem:[%s1168 + $0x1] sm:$0xff] %v1136
        %1170 = vst [vmem:[%s1168 + $0x9] sm:$0xff] %v1137
        %1171 = vst [vmem:[%s1168 + $0x19] sm:$0xff] %v1138
        %1172 = vst [vmem:[%s1168 + $0x21] sm:$0xff] %v1139
        %1173 = vst [vmem:[%s1168 + $0x31] sm:$0xff] %v1140
        %1174 = vst [vmem:[%s1168 + $0x39] sm:$0xff] %v1141
        %1175 = vst [vmem:[%s1168 + $0x49] sm:$0xff] %v1142
        %1176 = vst [vmem:[%s1168 + $0x51] sm:$0xff] %v1143
        %1177 = vst [vmem:[%s1168 + $0x61] sm:$0xff] %v1144
        %1178 = vst [vmem:[%s1168 + $0x69] sm:$0xff] %v1145
        %1179 = vst [vmem:[%s1168 + $0x79] sm:$0xff] %v1146
        %1180 = vst [vmem:[%s1168 + $0x81] sm:$0xff] %v1147
        %1181 = vst [vmem:[%s1168 + $0x91] sm:$0xff] %v1148
        %1182 = vst [vmem:[%s1168 + $0x99] sm:$0xff] %v1149
        %1183 = vst [vmem:[%s1168 + $0xa9] sm:$0xff] %v1150
        %1184 = vst [vmem:[%s1168 + $0xb1] sm:$0xff] %v1151
        %1185 = vst [vmem:[%s1168 + $0xc1] sm:$0xff] %v1152
        %1186 = vst [vmem:[%s1168 + $0xc9] sm:$0xff] %v1153
        %1187 = vst [vmem:[%s1168 + $0xd9] sm:$0xff] %v1154
        %1188 = vst [vmem:[%s1168 + $0xe1] sm:$0xff] %v1155
        %1189 = vst [vmem:[%s1168 + $0xf1] sm:$0xff] %v1156
        %1190 = vst [vmem:[%s1168 + $0xf9] sm:$0xff] %v1157
        %1191 = vst [vmem:[%s1168 + $0x109] sm:$0xff] %v1158
        %1192 = vst [vmem:[%s1168 + $0x111] sm:$0xff] %v1159
        %1193 = vst [vmem:[%s1168 + $0x121] sm:$0xff] %v1160
        %1194 = vst [vmem:[%s1168 + $0x129] sm:$0xff] %v1161
        %1195 = vst [vmem:[%s1168 + $0x139] sm:$0xff] %v1162
        %1196 = vst [vmem:[%s1168 + $0x141] sm:$0xff] %v1163
        %1197 = vst [vmem:[%s1168 + $0x151] sm:$0xff] %v1164
        %1198 = vst [vmem:[%s1168 + $0x159] sm:$0xff] %v1165
        %1199 = vst [vmem:[%s1168 + $0x169] sm:$0xff] %v1166
        %1200 = vst [vmem:[%s1168 + $0x171] sm:$0xff] %v1167
        %v1201 = vld [vmem:[#allocation2] sm:$0xff]
        %v1202 = vld [vmem:[#allocation2 + $0x8] sm:$0xff]
        %v1203 = vld [vmem:[#allocation2 + $0x18] sm:$0xff]
        %v1204 = vld [vmem:[#allocation2 + $0x20] sm:$0xff]
        %v1205 = vld [vmem:[#allocation2 + $0x30] sm:$0xff]
        %v1206 = vld [vmem:[#allocation2 + $0x38] sm:$0xff]
        %v1207 = vld [vmem:[#allocation2 + $0x48] sm:$0xff]
        %v1208 = vld [vmem:[#allocation2 + $0x50] sm:$0xff]
        %v1209 = vld [vmem:[#allocation2 + $0x60] sm:$0xff]
        %v1210 = vld [vmem:[#allocation2 + $0x68] sm:$0xff]
        %v1211 = vld [vmem:[#allocation2 + $0x78] sm:$0xff]
        %v1212 = vld [vmem:[#allocation2 + $0x80] sm:$0xff]
        %v1213 = vld [vmem:[#allocation2 + $0x90] sm:$0xff]
        %v1214 = vld [vmem:[#allocation2 + $0x98] sm:$0xff]
        %v1215 = vld [vmem:[#allocation2 + $0xa8] sm:$0xff]
        %v1216 = vld [vmem:[#allocation2 + $0xb0] sm:$0xff]
        %v1217 = vld [vmem:[#allocation2 + $0xc0] sm:$0xff]
        %v1218 = vld [vmem:[#allocation2 + $0xc8] sm:$0xff]
        %v1219 = vld [vmem:[#allocation2 + $0xd8] sm:$0xff]
        %v1220 = vld [vmem:[#allocation2 + $0xe0] sm:$0xff]
        %v1221 = vld [vmem:[#allocation2 + $0xf0] sm:$0xff]
        %v1222 = vld [vmem:[#allocation2 + $0xf8] sm:$0xff]
        %v1223 = vld [vmem:[#allocation2 + $0x108] sm:$0xff]
        %v1224 = vld [vmem:[#allocation2 + $0x110] sm:$0xff]
        %v1225 = vld [vmem:[#allocation2 + $0x120] sm:$0xff]
        %v1226 = vld [vmem:[#allocation2 + $0x128] sm:$0xff]
        %v1227 = vld [vmem:[#allocation2 + $0x138] sm:$0xff]
        %v1228 = vld [vmem:[#allocation2 + $0x140] sm:$0xff]
        %v1229 = vld [vmem:[#allocation2 + $0x150] sm:$0xff]
        %v1230 = vld [vmem:[#allocation2 + $0x158] sm:$0xff]
        %v1231 = vld [vmem:[#allocation2 + $0x168] sm:$0xff]
        %v1232 = vld [vmem:[#allocation2 + $0x170] sm:$0xff]
        %v1233 = vpack.c.bf16 %v1202, %v1201
        %v1234 = vpack.c.bf16 %v1204, %v1203
        %v1235 = vpack.c.bf16 %v1206, %v1205
        %v1236 = vpack.c.bf16 %v1208, %v1207
        %v1237 = vpack.c.bf16 %v1210, %v1209
        %v1238 = vpack.c.bf16 %v1212, %v1211
        %v1239 = vpack.c.bf16 %v1214, %v1213
        %v1240 = vpack.c.bf16 %v1216, %v1215
        %v1241 = vpack.c.bf16 %v1218, %v1217
        %v1242 = vpack.c.bf16 %v1220, %v1219
        %v1243 = vpack.c.bf16 %v1222, %v1221
        %v1244 = vpack.c.bf16 %v1224, %v1223
        %v1245 = vpack.c.bf16 %v1226, %v1225
        %v1246 = vpack.c.bf16 %v1228, %v1227
        %v1247 = vpack.c.bf16 %v1230, %v1229
        %v1248 = vpack.c.bf16 %v1232, %v1231
        %v1249 = vld [vmem:[#allocation8] sm:$0xf]
        %v1250 = vld [vmem:[#allocation8 + $0x4] sm:$0xf]
        %v1251 = vld [vmem:[#allocation8 + $0x8] sm:$0xf]
        %v1252 = vld [vmem:[#allocation8 + $0xc] sm:$0xf]
        %v1253 = vld [vmem:[#allocation8 + $0x10] sm:$0xf]
        %v1254 = vld [vmem:[#allocation8 + $0x14] sm:$0xf]
        %v1255 = vld [vmem:[#allocation8 + $0x18] sm:$0xf]
        %v1256 = vld [vmem:[#allocation8 + $0x1c] sm:$0xf]
        %v1257 = vld [vmem:[#allocation8 + $0x20] sm:$0xf]
        %v1258 = vld [vmem:[#allocation8 + $0x24] sm:$0xf]
        %v1259 = vld [vmem:[#allocation8 + $0x28] sm:$0xf]
        %v1260 = vld [vmem:[#allocation8 + $0x2c] sm:$0xf]
        %v1261 = vld [vmem:[#allocation8 + $0x30] sm:$0xf]
        %v1262 = vld [vmem:[#allocation8 + $0x34] sm:$0xf]
        %v1263 = vld [vmem:[#allocation8 + $0x38] sm:$0xf]
        %v1264 = vld [vmem:[#allocation8 + $0x3c] sm:$0xf]
        %v1265 = vld [vmem:[#allocation2 + $0x1] sm:$0xff]
        %v1266 = vld [vmem:[#allocation2 + $0x9] sm:$0xff]
        %v1267 = vld [vmem:[#allocation2 + $0x19] sm:$0xff]
        %v1268 = vld [vmem:[#allocation2 + $0x21] sm:$0xff]
        %v1269 = vld [vmem:[#allocation2 + $0x31] sm:$0xff]
        %v1270 = vld [vmem:[#allocation2 + $0x39] sm:$0xff]
        %v1271 = vld [vmem:[#allocation2 + $0x49] sm:$0xff]
        %v1272 = vld [vmem:[#allocation2 + $0x51] sm:$0xff]
        %v1273 = vld [vmem:[#allocation2 + $0x61] sm:$0xff]
        %v1274 = vld [vmem:[#allocation2 + $0x69] sm:$0xff]
        %v1275 = vld [vmem:[#allocation2 + $0x79] sm:$0xff]
        %v1276 = vld [vmem:[#allocation2 + $0x81] sm:$0xff]
        %v1277 = vld [vmem:[#allocation2 + $0x91] sm:$0xff]
        %v1278 = vld [vmem:[#allocation2 + $0x99] sm:$0xff]
        %v1279 = vld [vmem:[#allocation2 + $0xa9] sm:$0xff]
        %v1280 = vld [vmem:[#allocation2 + $0xb1] sm:$0xff]
        %v1281 = vld [vmem:[#allocation2 + $0xc1] sm:$0xff]
        %v1282 = vld [vmem:[#allocation2 + $0xc9] sm:$0xff]
        %v1283 = vld [vmem:[#allocation2 + $0xd9] sm:$0xff]
        %v1284 = vld [vmem:[#allocation2 + $0xe1] sm:$0xff]
        %v1285 = vld [vmem:[#allocation2 + $0xf1] sm:$0xff]
        %v1286 = vld [vmem:[#allocation2 + $0xf9] sm:$0xff]
        %v1287 = vld [vmem:[#allocation2 + $0x109] sm:$0xff]
        %v1288 = vld [vmem:[#allocation2 + $0x111] sm:$0xff]
        %v1289 = vld [vmem:[#allocation2 + $0x121] sm:$0xff]
        %v1290 = vld [vmem:[#allocation2 + $0x129] sm:$0xff]
        %v1291 = vld [vmem:[#allocation2 + $0x139] sm:$0xff]
        %v1292 = vld [vmem:[#allocation2 + $0x141] sm:$0xff]
        %v1293 = vld [vmem:[#allocation2 + $0x151] sm:$0xff]
        %v1294 = vld [vmem:[#allocation2 + $0x159] sm:$0xff]
        %v1295 = vld [vmem:[#allocation2 + $0x169] sm:$0xff]
        %v1296 = vld [vmem:[#allocation2 + $0x171] sm:$0xff]
        %v1297 = vpack.c.bf16 %v1266, %v1265
        %v1298 = vpack.c.bf16 %v1268, %v1267
        %v1299 = vpack.c.bf16 %v1270, %v1269
        %v1300 = vpack.c.bf16 %v1272, %v1271
        %v1301 = vpack.c.bf16 %v1274, %v1273
        %v1302 = vpack.c.bf16 %v1276, %v1275
        %v1303 = vpack.c.bf16 %v1278, %v1277
        %v1304 = vpack.c.bf16 %v1280, %v1279
        %v1305 = vpack.c.bf16 %v1282, %v1281
        %v1306 = vpack.c.bf16 %v1284, %v1283
        %v1307 = vpack.c.bf16 %v1286, %v1285
        %v1308 = vpack.c.bf16 %v1288, %v1287
        %v1309 = vpack.c.bf16 %v1290, %v1289
        %v1310 = vpack.c.bf16 %v1292, %v1291
        %v1311 = vpack.c.bf16 %v1294, %v1293
        %v1312 = vpack.c.bf16 %v1296, %v1295
        %s1313 = scalar_lea.vmem [#allocation8], 64
        %v1314 = vld [vmem:[%s1313] sm:$0xf]
        %v1315 = vld [vmem:[%s1313 + $0x4] sm:$0xf]
        %v1316 = vld [vmem:[%s1313 + $0x8] sm:$0xf]
        %v1317 = vld [vmem:[%s1313 + $0xc] sm:$0xf]
        %v1318 = vld [vmem:[%s1313 + $0x10] sm:$0xf]
        %v1319 = vld [vmem:[%s1313 + $0x14] sm:$0xf]
        %v1320 = vld [vmem:[%s1313 + $0x18] sm:$0xf]
        %v1321 = vld [vmem:[%s1313 + $0x1c] sm:$0xf]
        %v1322 = vld [vmem:[%s1313 + $0x20] sm:$0xf]
        %v1323 = vld [vmem:[%s1313 + $0x24] sm:$0xf]
        %v1324 = vld [vmem:[%s1313 + $0x28] sm:$0xf]
        %v1325 = vld [vmem:[%s1313 + $0x2c] sm:$0xf]
        %v1326 = vld [vmem:[%s1313 + $0x30] sm:$0xf]
        %v1327 = vld [vmem:[%s1313 + $0x34] sm:$0xf]
        %v1328 = vld [vmem:[%s1313 + $0x38] sm:$0xf]
        %v1329 = vld [vmem:[%s1313 + $0x3c] sm:$0xf]
        %v1346 = vunpack.c.l.b16 %v1314
        %v1347 = vunpack.c.l.b16 %v1315
        %v1348 = vunpack.c.l.b16 %v1316
        %v1349 = vunpack.c.l.b16 %v1317
        %v1350 = vunpack.c.l.b16 %v1318
        %v1351 = vunpack.c.l.b16 %v1319
        %v1352 = vunpack.c.l.b16 %v1320
        %v1353 = vunpack.c.l.b16 %v1321
        %v1354 = vunpack.c.l.b16 %v1322
        %v1355 = vunpack.c.l.b16 %v1323
        %v1356 = vunpack.c.l.b16 %v1324
        %v1357 = vunpack.c.l.b16 %v1325
        %v1358 = vunpack.c.l.b16 %v1326
        %v1359 = vunpack.c.l.b16 %v1327
        %v1360 = vunpack.c.l.b16 %v1328
        %v1361 = vunpack.c.l.b16 %v1329
        %v1362 = vpack.c.b16 %v1347, %v1346
        %v1363 = vpack.c.b16 %v1349, %v1348
        %v1364 = vpack.c.b16 %v1351, %v1350
        %v1365 = vpack.c.b16 %v1353, %v1352
        %v1366 = vpack.c.b16 %v1355, %v1354
        %v1367 = vpack.c.b16 %v1357, %v1356
        %v1368 = vpack.c.b16 %v1359, %v1358
        %v1369 = vpack.c.b16 %v1361, %v1360
        %1378 = vmatprep.subr.bf16.mxu0 0
        %1379 = vmatpush1.bf16.msra.mxu0 %v1362
        %1380 = vmatprep.subr.bf16.mxu0 0
        %1381 = vmatpush1.bf16.msra.mxu0 %v1363
        %1382 = vmatprep.subr.bf16.mxu0 0
        %1383 = vmatpush1.bf16.msra.mxu0 %v1364
        %1384 = vmatprep.subr.bf16.mxu0 0
        %1385 = vmatpush1.bf16.msra.mxu0 %v1365
        %1386 = vmatprep.subr.bf16.mxu0 0
        %1387 = vmatpush1.bf16.msra.mxu0 %v1366
        %1388 = vmatprep.subr.bf16.mxu0 0
        %1389 = vmatpush1.bf16.msra.mxu0 %v1367
        %1390 = vmatprep.subr.bf16.mxu0 0
        %1391 = vmatpush1.bf16.msra.mxu0 %v1368
        %1392 = vmatprep.subr.bf16.mxu0 0
        %1393 = vmatpush1.bf16.msra.mxu0 %v1369
        %1394 = vmatprep.subr.bf16.mxu0 0
        %1395 = vmatpush1.bf16.msra.mxu0 0
        %1396 = vmatprep.subr.bf16.mxu0 0
        %1397 = vmatpush1.bf16.msra.mxu0 0
        %1398 = vmatprep.subr.bf16.mxu0 0
        %1399 = vmatpush1.bf16.msra.mxu0 0
        %1400 = vmatprep.subr.bf16.mxu0 0
        %1401 = vmatpush1.bf16.msra.mxu0 0
        %1402 = vmatprep.subr.bf16.mxu0 0
        %1403 = vmatpush1.bf16.msra.mxu0 0
        %1404 = vmatprep.subr.bf16.mxu0 0
        %1405 = vmatpush1.bf16.msra.mxu0 0
        %1406 = vmatprep.subr.bf16.mxu0 0
        %1407 = vmatpush1.bf16.msra.mxu0 0
        %1408 = vmatprep.subr.bf16.mxu0 0
        %1409 = vmatpush1.bf16.msra.mxu0 0
        %1410 = vmatprep.mubr.bf16.mxu0 0
        %1411 = vmatmul.mubr.bf16.gmra.mrb[0].mxu0 %v1297
        %v1412 = vpop.f32.mrb[0].mxu0
        %v1413 = vadd.f32 0.0, %v1412
        %v1414 = vpop.f32.mrb[0].mxu0
        %v1415 = vpop.f32.mrb[0].mxu0
        %v1416 = vadd.f32 0.0, %v1415
        %v1417 = vpop.f32.mrb[0].mxu0
        %1418 = vmatprep.mubr.bf16.mxu0 0
        %1419 = vmatmul.mubr.bf16.gmra.mrb[0].mxu0 %v1298
        %v1420 = vpop.f32.mrb[0].mxu0
        %v1421 = vadd.f32 0.0, %v1420
        %v1422 = vpop.f32.mrb[0].mxu0
        %v1423 = vpop.f32.mrb[0].mxu0
        %v1424 = vadd.f32 0.0, %v1423
        %v1425 = vpop.f32.mrb[0].mxu0
        %1426 = vmatprep.mubr.bf16.mxu0 0
        %1427 = vmatmul.mubr.bf16.gmra.mrb[0].mxu0 %v1299
        %v1428 = vpop.f32.mrb[0].mxu0
        %v1429 = vadd.f32 0.0, %v1428
        %v1430 = vpop.f32.mrb[0].mxu0
        %v1431 = vpop.f32.mrb[0].mxu0
        %v1432 = vadd.f32 0.0, %v1431
        %v1433 = vpop.f32.mrb[0].mxu0
        %1434 = vmatprep.mubr.bf16.mxu0 0
        %1435 = vmatmul.mubr.bf16.gmra.mrb[0].mxu0 %v1300
        %v1436 = vpop.f32.mrb[0].mxu0
        %v1437 = vadd.f32 0.0, %v1436
        %v1438 = vpop.f32.mrb[0].mxu0
        %v1439 = vpop.f32.mrb[0].mxu0
        %v1440 = vadd.f32 0.0, %v1439
        %v1441 = vpop.f32.mrb[0].mxu0
        %1442 = vmatprep.mubr.bf16.mxu0 0
        %1443 = vmatmul.mubr.bf16.gmra.mrb[0].mxu0 %v1301
        %v1444 = vpop.f32.mrb[0].mxu0
        %v1445 = vadd.f32 0.0, %v1444
        %v1446 = vpop.f32.mrb[0].mxu0
        %v1447 = vpop.f32.mrb[0].mxu0
        %v1448 = vadd.f32 0.0, %v1447
        %v1449 = vpop.f32.mrb[0].mxu0
        %1450 = vmatprep.mubr.bf16.mxu0 0
        %1451 = vmatmul.mubr.bf16.gmra.mrb[0].mxu0 %v1302
        %v1452 = vpop.f32.mrb[0].mxu0
        %v1453 = vadd.f32 0.0, %v1452
        %v1454 = vpop.f32.mrb[0].mxu0
        %v1455 = vpop.f32.mrb[0].mxu0
        %v1456 = vadd.f32 0.0, %v1455
        %v1457 = vpop.f32.mrb[0].mxu0
        %1458 = vmatprep.mubr.bf16.mxu0 0
        %1459 = vmatmul.mubr.bf16.gmra.mrb[0].mxu0 %v1303
        %v1460 = vpop.f32.mrb[0].mxu0
        %v1461 = vadd.f32 0.0, %v1460
        %v1462 = vpop.f32.mrb[0].mxu0
        %v1463 = vpop.f32.mrb[0].mxu0
        %v1464 = vadd.f32 0.0, %v1463
        %v1465 = vpop.f32.mrb[0].mxu0
        %1466 = vmatprep.mubr.bf16.mxu0 0
        %1467 = vmatmul.mubr.bf16.gmra.mrb[0].mxu0 %v1304
        %v1468 = vpop.f32.mrb[0].mxu0
        %v1469 = vadd.f32 0.0, %v1468
        %v1470 = vpop.f32.mrb[0].mxu0
        %v1471 = vpop.f32.mrb[0].mxu0
        %v1472 = vadd.f32 0.0, %v1471
        %v1473 = vpop.f32.mrb[0].mxu0
        %1474 = vmatprep.mubr.bf16.mxu0 0
        %1475 = vmatmul.mubr.bf16.gmra.mrb[0].mxu0 %v1305
        %v1476 = vpop.f32.mrb[0].mxu0
        %v1477 = vadd.f32 0.0, %v1476
        %v1478 = vpop.f32.mrb[0].mxu0
        %v1479 = vpop.f32.mrb[0].mxu0
        %v1480 = vadd.f32 0.0, %v1479
        %v1481 = vpop.f32.mrb[0].mxu0
        %1482 = vmatprep.mubr.bf16.mxu0 0
        %1483 = vmatmul.mubr.bf16.gmra.mrb[0].mxu0 %v1306
        %v1484 = vpop.f32.mrb[0].mxu0
        %v1485 = vadd.f32 0.0, %v1484
        %v1486 = vpop.f32.mrb[0].mxu0
        %v1487 = vpop.f32.mrb[0].mxu0
        %v1488 = vadd.f32 0.0, %v1487
        %v1489 = vpop.f32.mrb[0].mxu0
        %1490 = vmatprep.mubr.bf16.mxu0 0
        %1491 = vmatmul.mubr.bf16.gmra.mrb[0].mxu0 %v1307
        %v1492 = vpop.f32.mrb[0].mxu0
        %v1493 = vadd.f32 0.0, %v1492
        %v1494 = vpop.f32.mrb[0].mxu0
        %v1495 = vpop.f32.mrb[0].mxu0
        %v1496 = vadd.f32 0.0, %v1495
        %v1497 = vpop.f32.mrb[0].mxu0
        %1498 = vmatprep.mubr.bf16.mxu0 0
        %1499 = vmatmul.mubr.bf16.gmra.mrb[0].mxu0 %v1308
        %v1500 = vpop.f32.mrb[0].mxu0
        %v1501 = vadd.f32 0.0, %v1500
        %v1502 = vpop.f32.mrb[0].mxu0
        %v1503 = vpop.f32.mrb[0].mxu0
        %v1504 = vadd.f32 0.0, %v1503
        %v1505 = vpop.f32.mrb[0].mxu0
        %1506 = vmatprep.mubr.bf16.mxu0 0
        %1507 = vmatmul.mubr.bf16.gmra.mrb[0].mxu0 %v1309
        %v1508 = vpop.f32.mrb[0].mxu0
        %v1509 = vadd.f32 0.0, %v1508
        %v1510 = vpop.f32.mrb[0].mxu0
        %v1511 = vpop.f32.mrb[0].mxu0
        %v1512 = vadd.f32 0.0, %v1511
        %v1513 = vpop.f32.mrb[0].mxu0
        %1514 = vmatprep.mubr.bf16.mxu0 0
        %1515 = vmatmul.mubr.bf16.gmra.mrb[0].mxu0 %v1310
        %v1516 = vpop.f32.mrb[0].mxu0
        %v1517 = vadd.f32 0.0, %v1516
        %v1518 = vpop.f32.mrb[0].mxu0
        %v1519 = vpop.f32.mrb[0].mxu0
        %v1520 = vadd.f32 0.0, %v1519
        %v1521 = vpop.f32.mrb[0].mxu0
        %1522 = vmatprep.mubr.bf16.mxu0 0
        %1523 = vmatmul.mubr.bf16.gmra.mrb[0].mxu0 %v1311
        %v1524 = vpop.f32.mrb[0].mxu0
        %v1525 = vadd.f32 0.0, %v1524
        %v1526 = vpop.f32.mrb[0].mxu0
        %v1527 = vpop.f32.mrb[0].mxu0
        %v1528 = vadd.f32 0.0, %v1527
        %v1529 = vpop.f32.mrb[0].mxu0
        %1530 = vmatprep.mubr.bf16.mxu0 0
        %1531 = vmatmul.mubr.bf16.gmra.mrb[0].mxu0 %v1312
        %v1532 = vpop.f32.mrb[0].mxu0
        %v1533 = vadd.f32 0.0, %v1532
        %v1534 = vpop.f32.mrb[0].mxu0
        %v1535 = vpop.f32.mrb[0].mxu0
        %v1536 = vadd.f32 0.0, %v1535
        %v1537 = vpop.f32.mrb[0].mxu0
        %1538 = vdwg.mxu0
        %v1555 = vunpack.c.l.b16 %v1249
        %v1556 = vunpack.c.l.b16 %v1250
        %v1557 = vunpack.c.l.b16 %v1251
        %v1558 = vunpack.c.l.b16 %v1252
        %v1559 = vunpack.c.l.b16 %v1253
        %v1560 = vunpack.c.l.b16 %v1254
        %v1561 = vunpack.c.l.b16 %v1255
        %v1562 = vunpack.c.l.b16 %v1256
        %v1563 = vunpack.c.l.b16 %v1257
        %v1564 = vunpack.c.l.b16 %v1258
        %v1565 = vunpack.c.l.b16 %v1259
        %v1566 = vunpack.c.l.b16 %v1260
        %v1567 = vunpack.c.l.b16 %v1261
        %v1568 = vunpack.c.l.b16 %v1262
        %v1569 = vunpack.c.l.b16 %v1263
        %v1570 = vunpack.c.l.b16 %v1264
        %v1571 = vpack.c.b16 %v1556, %v1555
        %v1572 = vpack.c.b16 %v1558, %v1557
        %v1573 = vpack.c.b16 %v1560, %v1559
        %v1574 = vpack.c.b16 %v1562, %v1561
        %v1575 = vpack.c.b16 %v1564, %v1563
        %v1576 = vpack.c.b16 %v1566, %v1565
        %v1577 = vpack.c.b16 %v1568, %v1567
        %v1578 = vpack.c.b16 %v1570, %v1569
        %1587 = vmatprep.subr.bf16.mxu0 0
        %1588 = vmatpush1.bf16.msra.mxu0 %v1571
        %1589 = vmatprep.subr.bf16.mxu0 0
        %1590 = vmatpush1.bf16.msra.mxu0 %v1572
        %1591 = vmatprep.subr.bf16.mxu0 0
        %1592 = vmatpush1.bf16.msra.mxu0 %v1573
        %1593 = vmatprep.subr.bf16.mxu0 0
        %1594 = vmatpush1.bf16.msra.mxu0 %v1574
        %1595 = vmatprep.subr.bf16.mxu0 0
        %1596 = vmatpush1.bf16.msra.mxu0 %v1575
        %1597 = vmatprep.subr.bf16.mxu0 0
        %1598 = vmatpush1.bf16.msra.mxu0 %v1576
        %1599 = vmatprep.subr.bf16.mxu0 0
        %1600 = vmatpush1.bf16.msra.mxu0 %v1577
        %1601 = vmatprep.subr.bf16.mxu0 0
        %1602 = vmatpush1.bf16.msra.mxu0 %v1578
        %1603 = vmatprep.subr.bf16.mxu0 0
        %1604 = vmatpush1.bf16.msra.mxu0 0
        %1605 = vmatprep.subr.bf16.mxu0 0
        %1606 = vmatpush1.bf16.msra.mxu0 0
        %1607 = vmatprep.subr.bf16.mxu0 0
        %1608 = vmatpush1.bf16.msra.mxu0 0
        %1609 = vmatprep.subr.bf16.mxu0 0
        %1610 = vmatpush1.bf16.msra.mxu0 0
        %1611 = vmatprep.subr.bf16.mxu0 0
        %1612 = vmatpush1.bf16.msra.mxu0 0
        %1613 = vmatprep.subr.bf16.mxu0 0
        %1614 = vmatpush1.bf16.msra.mxu0 0
        %1615 = vmatprep.subr.bf16.mxu0 0
        %1616 = vmatpush1.bf16.msra.mxu0 0
        %1617 = vmatprep.subr.bf16.mxu0 0
        %1618 = vmatpush1.bf16.msra.mxu0 0
        %1619 = vmatprep.mubr.bf16.mxu0 0
        %1620 = vmatmul.mubr.bf16.gmra.mrb[0].mxu0 %v1233
        %v1621 = vpop.f32.mrb[0].mxu0
        %v1622 = vadd.f32 %v1413, %v1621
        %v1623 = vpop.f32.mrb[0].mxu0
        %v1624 = vpop.f32.mrb[0].mxu0
        %v1625 = vadd.f32 %v1416, %v1624
        %v1626 = vpop.f32.mrb[0].mxu0
        %1627 = vmatprep.mubr.bf16.mxu0 0
        %1628 = vmatmul.mubr.bf16.gmra.mrb[0].mxu0 %v1234
        %v1629 = vpop.f32.mrb[0].mxu0
        %v1630 = vadd.f32 %v1421, %v1629
        %v1631 = vpop.f32.mrb[0].mxu0
        %v1632 = vpop.f32.mrb[0].mxu0
        %v1633 = vadd.f32 %v1424, %v1632
        %v1634 = vpop.f32.mrb[0].mxu0
        %1635 = vmatprep.mubr.bf16.mxu0 0
        %1636 = vmatmul.mubr.bf16.gmra.mrb[0].mxu0 %v1235
        %v1637 = vpop.f32.mrb[0].mxu0
        %v1638 = vadd.f32 %v1429, %v1637
        %v1639 = vpop.f32.mrb[0].mxu0
        %v1640 = vpop.f32.mrb[0].mxu0
        %v1641 = vadd.f32 %v1432, %v1640
        %v1642 = vpop.f32.mrb[0].mxu0
        %1643 = vmatprep.mubr.bf16.mxu0 0
        %1644 = vmatmul.mubr.bf16.gmra.mrb[0].mxu0 %v1236
        %v1645 = vpop.f32.mrb[0].mxu0
        %v1646 = vadd.f32 %v1437, %v1645
        %v1647 = vpop.f32.mrb[0].mxu0
        %v1648 = vpop.f32.mrb[0].mxu0
        %v1649 = vadd.f32 %v1440, %v1648
        %v1650 = vpop.f32.mrb[0].mxu0
        %1651 = vmatprep.mubr.bf16.mxu0 0
        %1652 = vmatmul.mubr.bf16.gmra.mrb[0].mxu0 %v1237
        %v1653 = vpop.f32.mrb[0].mxu0
        %v1654 = vadd.f32 %v1445, %v1653
        %v1655 = vpop.f32.mrb[0].mxu0
        %v1656 = vpop.f32.mrb[0].mxu0
        %v1657 = vadd.f32 %v1448, %v1656
        %v1658 = vpop.f32.mrb[0].mxu0
        %1659 = vmatprep.mubr.bf16.mxu0 0
        %1660 = vmatmul.mubr.bf16.gmra.mrb[0].mxu0 %v1238
        %v1661 = vpop.f32.mrb[0].mxu0
        %v1662 = vadd.f32 %v1453, %v1661
        %v1663 = vpop.f32.mrb[0].mxu0
        %v1664 = vpop.f32.mrb[0].mxu0
        %v1665 = vadd.f32 %v1456, %v1664
        %v1666 = vpop.f32.mrb[0].mxu0
        %1667 = vmatprep.mubr.bf16.mxu0 0
        %1668 = vmatmul.mubr.bf16.gmra.mrb[0].mxu0 %v1239
        %v1669 = vpop.f32.mrb[0].mxu0
        %v1670 = vadd.f32 %v1461, %v1669
        %v1671 = vpop.f32.mrb[0].mxu0
        %v1672 = vpop.f32.mrb[0].mxu0
        %v1673 = vadd.f32 %v1464, %v1672
        %v1674 = vpop.f32.mrb[0].mxu0
        %1675 = vmatprep.mubr.bf16.mxu0 0
        %1676 = vmatmul.mubr.bf16.gmra.mrb[0].mxu0 %v1240
        %v1677 = vpop.f32.mrb[0].mxu0
        %v1678 = vadd.f32 %v1469, %v1677
        %v1679 = vpop.f32.mrb[0].mxu0
        %v1680 = vpop.f32.mrb[0].mxu0
        %v1681 = vadd.f32 %v1472, %v1680
        %v1682 = vpop.f32.mrb[0].mxu0
        %1683 = vmatprep.mubr.bf16.mxu0 0
        %1684 = vmatmul.mubr.bf16.gmra.mrb[0].mxu0 %v1241
        %v1685 = vpop.f32.mrb[0].mxu0
        %v1686 = vadd.f32 %v1477, %v1685
        %v1687 = vpop.f32.mrb[0].mxu0
        %v1688 = vpop.f32.mrb[0].mxu0
        %v1689 = vadd.f32 %v1480, %v1688
        %v1690 = vpop.f32.mrb[0].mxu0
        %1691 = vmatprep.mubr.bf16.mxu0 0
        %1692 = vmatmul.mubr.bf16.gmra.mrb[0].mxu0 %v1242
        %v1693 = vpop.f32.mrb[0].mxu0
        %v1694 = vadd.f32 %v1485, %v1693
        %v1695 = vpop.f32.mrb[0].mxu0
        %v1696 = vpop.f32.mrb[0].mxu0
        %v1697 = vadd.f32 %v1488, %v1696
        %v1698 = vpop.f32.mrb[0].mxu0
        %1699 = vmatprep.mubr.bf16.mxu0 0
        %1700 = vmatmul.mubr.bf16.gmra.mrb[0].mxu0 %v1243
        %v1701 = vpop.f32.mrb[0].mxu0
        %v1702 = vadd.f32 %v1493, %v1701
        %v1703 = vpop.f32.mrb[0].mxu0
        %v1704 = vpop.f32.mrb[0].mxu0
        %v1705 = vadd.f32 %v1496, %v1704
        %v1706 = vpop.f32.mrb[0].mxu0
        %1707 = vmatprep.mubr.bf16.mxu0 0
        %1708 = vmatmul.mubr.bf16.gmra.mrb[0].mxu0 %v1244
        %v1709 = vpop.f32.mrb[0].mxu0
        %v1710 = vadd.f32 %v1501, %v1709
        %v1711 = vpop.f32.mrb[0].mxu0
        %v1712 = vpop.f32.mrb[0].mxu0
        %v1713 = vadd.f32 %v1504, %v1712
        %v1714 = vpop.f32.mrb[0].mxu0
        %1715 = vmatprep.mubr.bf16.mxu0 0
        %1716 = vmatmul.mubr.bf16.gmra.mrb[0].mxu0 %v1245
        %v1717 = vpop.f32.mrb[0].mxu0
        %v1718 = vadd.f32 %v1509, %v1717
        %v1719 = vpop.f32.mrb[0].mxu0
        %v1720 = vpop.f32.mrb[0].mxu0
        %v1721 = vadd.f32 %v1512, %v1720
        %v1722 = vpop.f32.mrb[0].mxu0
        %1723 = vmatprep.mubr.bf16.mxu0 0
        %1724 = vmatmul.mubr.bf16.gmra.mrb[0].mxu0 %v1246
        %v1725 = vpop.f32.mrb[0].mxu0
        %v1726 = vadd.f32 %v1517, %v1725
        %v1727 = vpop.f32.mrb[0].mxu0
        %v1728 = vpop.f32.mrb[0].mxu0
        %v1729 = vadd.f32 %v1520, %v1728
        %v1730 = vpop.f32.mrb[0].mxu0
        %1731 = vmatprep.mubr.bf16.mxu0 0
        %1732 = vmatmul.mubr.bf16.gmra.mrb[0].mxu0 %v1247
        %v1733 = vpop.f32.mrb[0].mxu0
        %v1734 = vadd.f32 %v1525, %v1733
        %v1735 = vpop.f32.mrb[0].mxu0
        %v1736 = vpop.f32.mrb[0].mxu0
        %v1737 = vadd.f32 %v1528, %v1736
        %v1738 = vpop.f32.mrb[0].mxu0
        %1739 = vmatprep.mubr.bf16.mxu0 0
        %1740 = vmatmul.mubr.bf16.gmra.mrb[0].mxu0 %v1248
        %v1741 = vpop.f32.mrb[0].mxu0
        %v1742 = vadd.f32 %v1533, %v1741
        %v1743 = vpop.f32.mrb[0].mxu0
        %v1744 = vpop.f32.mrb[0].mxu0
        %v1745 = vadd.f32 %v1536, %v1744
        %v1746 = vpop.f32.mrb[0].mxu0
        %1747 = vdwg.mxu0
        %v1748 = vld [vmem:[#allocation2 + $0x2] sm:$0xff]
        %v1749 = vld [vmem:[#allocation2 + $0xa] sm:$0xff]
        %v1750 = vld [vmem:[#allocation2 + $0x1a] sm:$0xff]
        %v1751 = vld [vmem:[#allocation2 + $0x22] sm:$0xff]
        %v1752 = vld [vmem:[#allocation2 + $0x32] sm:$0xff]
        %v1753 = vld [vmem:[#allocation2 + $0x3a] sm:$0xff]
        %v1754 = vld [vmem:[#allocation2 + $0x4a] sm:$0xff]
        %v1755 = vld [vmem:[#allocation2 + $0x52] sm:$0xff]
        %v1756 = vld [vmem:[#allocation2 + $0x62] sm:$0xff]
        %v1757 = vld [vmem:[#allocation2 + $0x6a] sm:$0xff]
        %v1758 = vld [vmem:[#allocation2 + $0x7a] sm:$0xff]
        %v1759 = vld [vmem:[#allocation2 + $0x82] sm:$0xff]
        %v1760 = vld [vmem:[#allocation2 + $0x92] sm:$0xff]
        %v1761 = vld [vmem:[#allocation2 + $0x9a] sm:$0xff]
        %v1762 = vld [vmem:[#allocation2 + $0xaa] sm:$0xff]
        %v1763 = vld [vmem:[#allocation2 + $0xb2] sm:$0xff]
        %v1764 = vld [vmem:[#allocation2 + $0xc2] sm:$0xff]
        %v1765 = vld [vmem:[#allocation2 + $0xca] sm:$0xff]
        %v1766 = vld [vmem:[#allocation2 + $0xda] sm:$0xff]
        %v1767 = vld [vmem:[#allocation2 + $0xe2] sm:$0xff]
        %v1768 = vld [vmem:[#allocation2 + $0xf2] sm:$0xff]
        %v1769 = vld [vmem:[#allocation2 + $0xfa] sm:$0xff]
        %v1770 = vld [vmem:[#allocation2 + $0x10a] sm:$0xff]
        %v1771 = vld [vmem:[#allocation2 + $0x112] sm:$0xff]
        %v1772 = vld [vmem:[#allocation2 + $0x122] sm:$0xff]
        %v1773 = vld [vmem:[#allocation2 + $0x12a] sm:$0xff]
        %v1774 = vld [vmem:[#allocation2 + $0x13a] sm:$0xff]
        %v1775 = vld [vmem:[#allocation2 + $0x142] sm:$0xff]
        %v1776 = vld [vmem:[#allocation2 + $0x152] sm:$0xff]
        %v1777 = vld [vmem:[#allocation2 + $0x15a] sm:$0xff]
        %v1778 = vld [vmem:[#allocation2 + $0x16a] sm:$0xff]
        %v1779 = vld [vmem:[#allocation2 + $0x172] sm:$0xff]
        %v1780 = vpack.c.bf16 %v1749, %v1748
        %v1781 = vpack.c.bf16 %v1751, %v1750
        %v1782 = vpack.c.bf16 %v1753, %v1752
        %v1783 = vpack.c.bf16 %v1755, %v1754
        %v1784 = vpack.c.bf16 %v1757, %v1756
        %v1785 = vpack.c.bf16 %v1759, %v1758
        %v1786 = vpack.c.bf16 %v1761, %v1760
        %v1787 = vpack.c.bf16 %v1763, %v1762
        %v1788 = vpack.c.bf16 %v1765, %v1764
        %v1789 = vpack.c.bf16 %v1767, %v1766
        %v1790 = vpack.c.bf16 %v1769, %v1768
        %v1791 = vpack.c.bf16 %v1771, %v1770
        %v1792 = vpack.c.bf16 %v1773, %v1772
        %v1793 = vpack.c.bf16 %v1775, %v1774
        %v1794 = vpack.c.bf16 %v1777, %v1776
        %v1795 = vpack.c.bf16 %v1779, %v1778
        %s1796 = scalar_lea.vmem [#allocation8], 128
        %v1797 = vld [vmem:[%s1796] sm:$0xf]
        %v1798 = vld [vmem:[%s1796 + $0x4] sm:$0xf]
        %v1799 = vld [vmem:[%s1796 + $0x8] sm:$0xf]
        %v1800 = vld [vmem:[%s1796 + $0xc] sm:$0xf]
        %v1801 = vld [vmem:[%s1796 + $0x10] sm:$0xf]
        %v1802 = vld [vmem:[%s1796 + $0x14] sm:$0xf]
        %v1803 = vld [vmem:[%s1796 + $0x18] sm:$0xf]
        %v1804 = vld [vmem:[%s1796 + $0x1c] sm:$0xf]
        %v1805 = vld [vmem:[%s1796 + $0x20] sm:$0xf]
        %v1806 = vld [vmem:[%s1796 + $0x24] sm:$0xf]
        %v1807 = vld [vmem:[%s1796 + $0x28] sm:$0xf]
        %v1808 = vld [vmem:[%s1796 + $0x2c] sm:$0xf]
        %v1809 = vld [vmem:[%s1796 + $0x30] sm:$0xf]
        %v1810 = vld [vmem:[%s1796 + $0x34] sm:$0xf]
        %v1811 = vld [vmem:[%s1796 + $0x38] sm:$0xf]
        %v1812 = vld [vmem:[%s1796 + $0x3c] sm:$0xf]
        %v1829 = vunpack.c.l.b16 %v1797
        %v1830 = vunpack.c.l.b16 %v1798
        %v1831 = vunpack.c.l.b16 %v1799
        %v1832 = vunpack.c.l.b16 %v1800
        %v1833 = vunpack.c.l.b16 %v1801
        %v1834 = vunpack.c.l.b16 %v1802
        %v1835 = vunpack.c.l.b16 %v1803
        %v1836 = vunpack.c.l.b16 %v1804
        %v1837 = vunpack.c.l.b16 %v1805
        %v1838 = vunpack.c.l.b16 %v1806
        %v1839 = vunpack.c.l.b16 %v1807
        %v1840 = vunpack.c.l.b16 %v1808
        %v1841 = vunpack.c.l.b16 %v1809
        %v1842 = vunpack.c.l.b16 %v1810
        %v1843 = vunpack.c.l.b16 %v1811
        %v1844 = vunpack.c.l.b16 %v1812
        %v1845 = vpack.c.b16 %v1830, %v1829
        %v1846 = vpack.c.b16 %v1832, %v1831
        %v1847 = vpack.c.b16 %v1834, %v1833
        %v1848 = vpack.c.b16 %v1836, %v1835
        %v1849 = vpack.c.b16 %v1838, %v1837
        %v1850 = vpack.c.b16 %v1840, %v1839
        %v1851 = vpack.c.b16 %v1842, %v1841
        %v1852 = vpack.c.b16 %v1844, %v1843
        %1861 = vmatprep.subr.bf16.mxu0 0
        %1862 = vmatpush1.bf16.msra.mxu0 %v1845
        %1863 = vmatprep.subr.bf16.mxu0 0
        %1864 = vmatpush1.bf16.msra.mxu0 %v1846
        %1865 = vmatprep.subr.bf16.mxu0 0
        %1866 = vmatpush1.bf16.msra.mxu0 %v1847
        %1867 = vmatprep.subr.bf16.mxu0 0
        %1868 = vmatpush1.bf16.msra.mxu0 %v1848
        %1869 = vmatprep.subr.bf16.mxu0 0
        %1870 = vmatpush1.bf16.msra.mxu0 %v1849
        %1871 = vmatprep.subr.bf16.mxu0 0
        %1872 = vmatpush1.bf16.msra.mxu0 %v1850
        %1873 = vmatprep.subr.bf16.mxu0 0
        %1874 = vmatpush1.bf16.msra.mxu0 %v1851
        %1875 = vmatprep.subr.bf16.mxu0 0
        %1876 = vmatpush1.bf16.msra.mxu0 %v1852
        %1877 = vmatprep.subr.bf16.mxu0 0
        %1878 = vmatpush1.bf16.msra.mxu0 0
        %1879 = vmatprep.subr.bf16.mxu0 0
        %1880 = vmatpush1.bf16.msra.mxu0 0
        %1881 = vmatprep.subr.bf16.mxu0 0
        %1882 = vmatpush1.bf16.msra.mxu0 0
        %1883 = vmatprep.subr.bf16.mxu0 0
        %1884 = vmatpush1.bf16.msra.mxu0 0
        %1885 = vmatprep.subr.bf16.mxu0 0
        %1886 = vmatpush1.bf16.msra.mxu0 0
        %1887 = vmatprep.subr.bf16.mxu0 0
        %1888 = vmatpush1.bf16.msra.mxu0 0
        %1889 = vmatprep.subr.bf16.mxu0 0
        %1890 = vmatpush1.bf16.msra.mxu0 0
        %1891 = vmatprep.subr.bf16.mxu0 0
        %1892 = vmatpush1.bf16.msra.mxu0 0
        %1893 = vmatprep.mubr.bf16.mxu0 0
        %1894 = vmatmul.mubr.bf16.gmra.mrb[0].mxu0 %v1780
        %v1895 = vpop.f32.mrb[0].mxu0
        %v1896 = vadd.f32 0.0, %v1895
        %v1897 = vpop.f32.mrb[0].mxu0
        %v1898 = vpop.f32.mrb[0].mxu0
        %v1899 = vadd.f32 0.0, %v1898
        %v1900 = vpop.f32.mrb[0].mxu0
        %1901 = vmatprep.mubr.bf16.mxu0 0
        %1902 = vmatmul.mubr.bf16.gmra.mrb[0].mxu0 %v1781
        %v1903 = vpop.f32.mrb[0].mxu0
        %v1904 = vadd.f32 0.0, %v1903
        %v1905 = vpop.f32.mrb[0].mxu0
        %v1906 = vpop.f32.mrb[0].mxu0
        %v1907 = vadd.f32 0.0, %v1906
        %v1908 = vpop.f32.mrb[0].mxu0
        %1909 = vmatprep.mubr.bf16.mxu0 0
        %1910 = vmatmul.mubr.bf16.gmra.mrb[0].mxu0 %v1782
        %v1911 = vpop.f32.mrb[0].mxu0
        %v1912 = vadd.f32 0.0, %v1911
        %v1913 = vpop.f32.mrb[0].mxu0
        %v1914 = vpop.f32.mrb[0].mxu0
        %v1915 = vadd.f32 0.0, %v1914
        %v1916 = vpop.f32.mrb[0].mxu0
        %1917 = vmatprep.mubr.bf16.mxu0 0
        %1918 = vmatmul.mubr.bf16.gmra.mrb[0].mxu0 %v1783
        %v1919 = vpop.f32.mrb[0].mxu0
        %v1920 = vadd.f32 0.0, %v1919
        %v1921 = vpop.f32.mrb[0].mxu0
        %v1922 = vpop.f32.mrb[0].mxu0
        %v1923 = vadd.f32 0.0, %v1922
        %v1924 = vpop.f32.mrb[0].mxu0
        %1925 = vmatprep.mubr.bf16.mxu0 0
        %1926 = vmatmul.mubr.bf16.gmra.mrb[0].mxu0 %v1784
        %v1927 = vpop.f32.mrb[0].mxu0
        %v1928 = vadd.f32 0.0, %v1927
        %v1929 = vpop.f32.mrb[0].mxu0
        %v1930 = vpop.f32.mrb[0].mxu0
        %v1931 = vadd.f32 0.0, %v1930
        %v1932 = vpop.f32.mrb[0].mxu0
        %1933 = vmatprep.mubr.bf16.mxu0 0
        %1934 = vmatmul.mubr.bf16.gmra.mrb[0].mxu0 %v1785
        %v1935 = vpop.f32.mrb[0].mxu0
        %v1936 = vadd.f32 0.0, %v1935
        %v1937 = vpop.f32.mrb[0].mxu0
        %v1938 = vpop.f32.mrb[0].mxu0
        %v1939 = vadd.f32 0.0, %v1938
        %v1940 = vpop.f32.mrb[0].mxu0
        %1941 = vmatprep.mubr.bf16.mxu0 0
        %1942 = vmatmul.mubr.bf16.gmra.mrb[0].mxu0 %v1786
        %v1943 = vpop.f32.mrb[0].mxu0
        %v1944 = vadd.f32 0.0, %v1943
        %v1945 = vpop.f32.mrb[0].mxu0
        %v1946 = vpop.f32.mrb[0].mxu0
        %v1947 = vadd.f32 0.0, %v1946
        %v1948 = vpop.f32.mrb[0].mxu0
        %1949 = vmatprep.mubr.bf16.mxu0 0
        %1950 = vmatmul.mubr.bf16.gmra.mrb[0].mxu0 %v1787
        %v1951 = vpop.f32.mrb[0].mxu0
        %v1952 = vadd.f32 0.0, %v1951
        %v1953 = vpop.f32.mrb[0].mxu0
        %v1954 = vpop.f32.mrb[0].mxu0
        %v1955 = vadd.f32 0.0, %v1954
        %v1956 = vpop.f32.mrb[0].mxu0
        %1957 = vmatprep.mubr.bf16.mxu0 0
        %1958 = vmatmul.mubr.bf16.gmra.mrb[0].mxu0 %v1788
        %v1959 = vpop.f32.mrb[0].mxu0
        %v1960 = vadd.f32 0.0, %v1959
        %v1961 = vpop.f32.mrb[0].mxu0
        %v1962 = vpop.f32.mrb[0].mxu0
        %v1963 = vadd.f32 0.0, %v1962
        %v1964 = vpop.f32.mrb[0].mxu0
        %1965 = vmatprep.mubr.bf16.mxu0 0
        %1966 = vmatmul.mubr.bf16.gmra.mrb[0].mxu0 %v1789
        %v1967 = vpop.f32.mrb[0].mxu0
        %v1968 = vadd.f32 0.0, %v1967
        %v1969 = vpop.f32.mrb[0].mxu0
        %v1970 = vpop.f32.mrb[0].mxu0
        %v1971 = vadd.f32 0.0, %v1970
        %v1972 = vpop.f32.mrb[0].mxu0
        %1973 = vmatprep.mubr.bf16.mxu0 0
        %1974 = vmatmul.mubr.bf16.gmra.mrb[0].mxu0 %v1790
        %v1975 = vpop.f32.mrb[0].mxu0
        %v1976 = vadd.f32 0.0, %v1975
        %v1977 = vpop.f32.mrb[0].mxu0
        %v1978 = vpop.f32.mrb[0].mxu0
        %v1979 = vadd.f32 0.0, %v1978
        %v1980 = vpop.f32.mrb[0].mxu0
        %1981 = vmatprep.mubr.bf16.mxu0 0
        %1982 = vmatmul.mubr.bf16.gmra.mrb[0].mxu0 %v1791
        %v1983 = vpop.f32.mrb[0].mxu0
        %v1984 = vadd.f32 0.0, %v1983
        %v1985 = vpop.f32.mrb[0].mxu0
        %v1986 = vpop.f32.mrb[0].mxu0
        %v1987 = vadd.f32 0.0, %v1986
        %v1988 = vpop.f32.mrb[0].mxu0
        %1989 = vmatprep.mubr.bf16.mxu0 0
        %1990 = vmatmul.mubr.bf16.gmra.mrb[0].mxu0 %v1792
        %v1991 = vpop.f32.mrb[0].mxu0
        %v1992 = vadd.f32 0.0, %v1991
        %v1993 = vpop.f32.mrb[0].mxu0
        %v1994 = vpop.f32.mrb[0].mxu0
        %v1995 = vadd.f32 0.0, %v1994
        %v1996 = vpop.f32.mrb[0].mxu0
        %1997 = vmatprep.mubr.bf16.mxu0 0
        %1998 = vmatmul.mubr.bf16.gmra.mrb[0].mxu0 %v1793
        %v1999 = vpop.f32.mrb[0].mxu0
        %v2000 = vadd.f32 0.0, %v1999
        %v2001 = vpop.f32.mrb[0].mxu0
        %v2002 = vpop.f32.mrb[0].mxu0
        %v2003 = vadd.f32 0.0, %v2002
        %v2004 = vpop.f32.mrb[0].mxu0
        %2005 = vmatprep.mubr.bf16.mxu0 0
        %2006 = vmatmul.mubr.bf16.gmra.mrb[0].mxu0 %v1794
        %v2007 = vpop.f32.mrb[0].mxu0
        %v2008 = vadd.f32 0.0, %v2007
        %v2009 = vpop.f32.mrb[0].mxu0
        %v2010 = vpop.f32.mrb[0].mxu0
        %v2011 = vadd.f32 0.0, %v2010
        %v2012 = vpop.f32.mrb[0].mxu0
        %2013 = vmatprep.mubr.bf16.mxu0 0
        %2014 = vmatmul.mubr.bf16.gmra.mrb[0].mxu0 %v1795
        %v2015 = vpop.f32.mrb[0].mxu0
        %v2016 = vadd.f32 0.0, %v2015
        %v2017 = vpop.f32.mrb[0].mxu0
        %v2018 = vpop.f32.mrb[0].mxu0
        %v2019 = vadd.f32 0.0, %v2018
        %v2020 = vpop.f32.mrb[0].mxu0
        %2021 = vdwg.mxu0
        %v2022 = vadd.f32 %v1622, %v1896
        %v2023 = vadd.f32 %v1625, %v1899
        %v2024 = vadd.f32 %v1630, %v1904
        %v2025 = vadd.f32 %v1633, %v1907
        %v2026 = vadd.f32 %v1638, %v1912
        %v2027 = vadd.f32 %v1641, %v1915
        %v2028 = vadd.f32 %v1646, %v1920
        %v2029 = vadd.f32 %v1649, %v1923
        %v2030 = vadd.f32 %v1654, %v1928
        %v2031 = vadd.f32 %v1657, %v1931
        %v2032 = vadd.f32 %v1662, %v1936
        %v2033 = vadd.f32 %v1665, %v1939
        %v2034 = vadd.f32 %v1670, %v1944
        %v2035 = vadd.f32 %v1673, %v1947
        %v2036 = vadd.f32 %v1678, %v1952
        %v2037 = vadd.f32 %v1681, %v1955
        %v2038 = vadd.f32 %v1686, %v1960
        %v2039 = vadd.f32 %v1689, %v1963
        %v2040 = vadd.f32 %v1694, %v1968
        %v2041 = vadd.f32 %v1697, %v1971
        %v2042 = vadd.f32 %v1702, %v1976
        %v2043 = vadd.f32 %v1705, %v1979
        %v2044 = vadd.f32 %v1710, %v1984
        %v2045 = vadd.f32 %v1713, %v1987
        %v2046 = vadd.f32 %v1718, %v1992
        %v2047 = vadd.f32 %v1721, %v1995
        %v2048 = vadd.f32 %v1726, %v2000
        %v2049 = vadd.f32 %v1729, %v2003
        %v2050 = vadd.f32 %v1734, %v2008
        %v2051 = vadd.f32 %v1737, %v2011
        %v2052 = vadd.f32 %v1742, %v2016
        %v2053 = vadd.f32 %v1745, %v2019
        %v2054 = vld [vmem:[%s1168] sm:$0xff]
        %v2055 = vld [vmem:[%s1168 + $0x8] sm:$0xff]
        %v2056 = vld [vmem:[%s1168 + $0x18] sm:$0xff]
        %v2057 = vld [vmem:[%s1168 + $0x20] sm:$0xff]
        %v2058 = vld [vmem:[%s1168 + $0x30] sm:$0xff]
        %v2059 = vld [vmem:[%s1168 + $0x38] sm:$0xff]
        %v2060 = vld [vmem:[%s1168 + $0x48] sm:$0xff]
        %v2061 = vld [vmem:[%s1168 + $0x50] sm:$0xff]
        %v2062 = vld [vmem:[%s1168 + $0x60] sm:$0xff]
        %v2063 = vld [vmem:[%s1168 + $0x68] sm:$0xff]
        %v2064 = vld [vmem:[%s1168 + $0x78] sm:$0xff]
        %v2065 = vld [vmem:[%s1168 + $0x80] sm:$0xff]
        %v2066 = vld [vmem:[%s1168 + $0x90] sm:$0xff]
        %v2067 = vld [vmem:[%s1168 + $0x98] sm:$0xff]
        %v2068 = vld [vmem:[%s1168 + $0xa8] sm:$0xff]
        %v2069 = vld [vmem:[%s1168 + $0xb0] sm:$0xff]
        %v2070 = vld [vmem:[%s1168 + $0xc0] sm:$0xff]
        %v2071 = vld [vmem:[%s1168 + $0xc8] sm:$0xff]
        %v2072 = vld [vmem:[%s1168 + $0xd8] sm:$0xff]
        %v2073 = vld [vmem:[%s1168 + $0xe0] sm:$0xff]
        %v2074 = vld [vmem:[%s1168 + $0xf0] sm:$0xff]
        %v2075 = vld [vmem:[%s1168 + $0xf8] sm:$0xff]
        %v2076 = vld [vmem:[%s1168 + $0x108] sm:$0xff]
        %v2077 = vld [vmem:[%s1168 + $0x110] sm:$0xff]
        %v2078 = vld [vmem:[%s1168 + $0x120] sm:$0xff]
        %v2079 = vld [vmem:[%s1168 + $0x128] sm:$0xff]
        %v2080 = vld [vmem:[%s1168 + $0x138] sm:$0xff]
        %v2081 = vld [vmem:[%s1168 + $0x140] sm:$0xff]
        %v2082 = vld [vmem:[%s1168 + $0x150] sm:$0xff]
        %v2083 = vld [vmem:[%s1168 + $0x158] sm:$0xff]
        %v2084 = vld [vmem:[%s1168 + $0x168] sm:$0xff]
        %v2085 = vld [vmem:[%s1168 + $0x170] sm:$0xff]
        %v2086 = vpack.c.bf16 %v2055, %v2054
        %v2087 = vpack.c.bf16 %v2057, %v2056
        %v2088 = vpack.c.bf16 %v2059, %v2058
        %v2089 = vpack.c.bf16 %v2061, %v2060
        %v2090 = vpack.c.bf16 %v2063, %v2062
        %v2091 = vpack.c.bf16 %v2065, %v2064
        %v2092 = vpack.c.bf16 %v2067, %v2066
        %v2093 = vpack.c.bf16 %v2069, %v2068
        %v2094 = vpack.c.bf16 %v2071, %v2070
        %v2095 = vpack.c.bf16 %v2073, %v2072
        %v2096 = vpack.c.bf16 %v2075, %v2074
        %v2097 = vpack.c.bf16 %v2077, %v2076
        %v2098 = vpack.c.bf16 %v2079, %v2078
        %v2099 = vpack.c.bf16 %v2081, %v2080
        %v2100 = vpack.c.bf16 %v2083, %v2082
        %v2101 = vpack.c.bf16 %v2085, %v2084
        %s2102 = scalar_lea.vmem [#allocation8], 192
        %v2103 = vld [vmem:[%s2102] sm:$0xf]
        %v2104 = vld [vmem:[%s2102 + $0x4] sm:$0xf]
        %v2105 = vld [vmem:[%s2102 + $0x8] sm:$0xf]
        %v2106 = vld [vmem:[%s2102 + $0xc] sm:$0xf]
        %v2107 = vld [vmem:[%s2102 + $0x10] sm:$0xf]
        %v2108 = vld [vmem:[%s2102 + $0x14] sm:$0xf]
        %v2109 = vld [vmem:[%s2102 + $0x18] sm:$0xf]
        %v2110 = vld [vmem:[%s2102 + $0x1c] sm:$0xf]
        %v2111 = vld [vmem:[%s2102 + $0x20] sm:$0xf]
        %v2112 = vld [vmem:[%s2102 + $0x24] sm:$0xf]
        %v2113 = vld [vmem:[%s2102 + $0x28] sm:$0xf]
        %v2114 = vld [vmem:[%s2102 + $0x2c] sm:$0xf]
        %v2115 = vld [vmem:[%s2102 + $0x30] sm:$0xf]
        %v2116 = vld [vmem:[%s2102 + $0x34] sm:$0xf]
        %v2117 = vld [vmem:[%s2102 + $0x38] sm:$0xf]
        %v2118 = vld [vmem:[%s2102 + $0x3c] sm:$0xf]
        %v2135 = vunpack.c.l.b16 %v2103
        %v2136 = vunpack.c.l.b16 %v2104
        %v2137 = vunpack.c.l.b16 %v2105
        %v2138 = vunpack.c.l.b16 %v2106
        %v2139 = vunpack.c.l.b16 %v2107
        %v2140 = vunpack.c.l.b16 %v2108
        %v2141 = vunpack.c.l.b16 %v2109
        %v2142 = vunpack.c.l.b16 %v2110
        %v2143 = vunpack.c.l.b16 %v2111
        %v2144 = vunpack.c.l.b16 %v2112
        %v2145 = vunpack.c.l.b16 %v2113
        %v2146 = vunpack.c.l.b16 %v2114
        %v2147 = vunpack.c.l.b16 %v2115
        %v2148 = vunpack.c.l.b16 %v2116
        %v2149 = vunpack.c.l.b16 %v2117
        %v2150 = vunpack.c.l.b16 %v2118
        %v2151 = vpack.c.b16 %v2136, %v2135
        %v2152 = vpack.c.b16 %v2138, %v2137
        %v2153 = vpack.c.b16 %v2140, %v2139
        %v2154 = vpack.c.b16 %v2142, %v2141
        %v2155 = vpack.c.b16 %v2144, %v2143
        %v2156 = vpack.c.b16 %v2146, %v2145
        %v2157 = vpack.c.b16 %v2148, %v2147
        %v2158 = vpack.c.b16 %v2150, %v2149
        %2167 = vmatprep.subr.bf16.mxu0 0
        %2168 = vmatpush1.bf16.msra.mxu0 %v2151
        %2169 = vmatprep.subr.bf16.mxu0 0
        %2170 = vmatpush1.bf16.msra.mxu0 %v2152
        %2171 = vmatprep.subr.bf16.mxu0 0
        %2172 = vmatpush1.bf16.msra.mxu0 %v2153
        %2173 = vmatprep.subr.bf16.mxu0 0
        %2174 = vmatpush1.bf16.msra.mxu0 %v2154
        %2175 = vmatprep.subr.bf16.mxu0 0
        %2176 = vmatpush1.bf16.msra.mxu0 %v2155
        %2177 = vmatprep.subr.bf16.mxu0 0
        %2178 = vmatpush1.bf16.msra.mxu0 %v2156
        %2179 = vmatprep.subr.bf16.mxu0 0
        %2180 = vmatpush1.bf16.msra.mxu0 %v2157
        %2181 = vmatprep.subr.bf16.mxu0 0
        %2182 = vmatpush1.bf16.msra.mxu0 %v2158
        %2183 = vmatprep.subr.bf16.mxu0 0
        %2184 = vmatpush1.bf16.msra.mxu0 0
        %2185 = vmatprep.subr.bf16.mxu0 0
        %2186 = vmatpush1.bf16.msra.mxu0 0
        %2187 = vmatprep.subr.bf16.mxu0 0
        %2188 = vmatpush1.bf16.msra.mxu0 0
        %2189 = vmatprep.subr.bf16.mxu0 0
        %2190 = vmatpush1.bf16.msra.mxu0 0
        %2191 = vmatprep.subr.bf16.mxu0 0
        %2192 = vmatpush1.bf16.msra.mxu0 0
        %2193 = vmatprep.subr.bf16.mxu0 0
        %2194 = vmatpush1.bf16.msra.mxu0 0
        %2195 = vmatprep.subr.bf16.mxu0 0
        %2196 = vmatpush1.bf16.msra.mxu0 0
        %2197 = vmatprep.subr.bf16.mxu0 0
        %2198 = vmatpush1.bf16.msra.mxu0 0
        %2199 = vmatprep.mubr.bf16.mxu0 0
        %2200 = vmatmul.mubr.bf16.gmra.mrb[0].mxu0 %v2086
        %v2201 = vpop.f32.mrb[0].mxu0
        %v2202 = vadd.f32 0.0, %v2201
        %v2203 = vpop.f32.mrb[0].mxu0
        %v2204 = vpop.f32.mrb[0].mxu0
        %v2205 = vadd.f32 0.0, %v2204
        %v2206 = vpop.f32.mrb[0].mxu0
        %2207 = vmatprep.mubr.bf16.mxu0 0
        %2208 = vmatmul.mubr.bf16.gmra.mrb[0].mxu0 %v2087
        %v2209 = vpop.f32.mrb[0].mxu0
        %v2210 = vadd.f32 0.0, %v2209
        %v2211 = vpop.f32.mrb[0].mxu0
        %v2212 = vpop.f32.mrb[0].mxu0
        %v2213 = vadd.f32 0.0, %v2212
        %v2214 = vpop.f32.mrb[0].mxu0
        %2215 = vmatprep.mubr.bf16.mxu0 0
        %2216 = vmatmul.mubr.bf16.gmra.mrb[0].mxu0 %v2088
        %v2217 = vpop.f32.mrb[0].mxu0
        %v2218 = vadd.f32 0.0, %v2217
        %v2219 = vpop.f32.mrb[0].mxu0
        %v2220 = vpop.f32.mrb[0].mxu0
        %v2221 = vadd.f32 0.0, %v2220
        %v2222 = vpop.f32.mrb[0].mxu0
        %2223 = vmatprep.mubr.bf16.mxu0 0
        %2224 = vmatmul.mubr.bf16.gmra.mrb[0].mxu0 %v2089
        %v2225 = vpop.f32.mrb[0].mxu0
        %v2226 = vadd.f32 0.0, %v2225
        %v2227 = vpop.f32.mrb[0].mxu0
        %v2228 = vpop.f32.mrb[0].mxu0
        %v2229 = vadd.f32 0.0, %v2228
        %v2230 = vpop.f32.mrb[0].mxu0
        %2231 = vmatprep.mubr.bf16.mxu0 0
        %2232 = vmatmul.mubr.bf16.gmra.mrb[0].mxu0 %v2090
        %v2233 = vpop.f32.mrb[0].mxu0
        %v2234 = vadd.f32 0.0, %v2233
        %v2235 = vpop.f32.mrb[0].mxu0
        %v2236 = vpop.f32.mrb[0].mxu0
        %v2237 = vadd.f32 0.0, %v2236
        %v2238 = vpop.f32.mrb[0].mxu0
        %2239 = vmatprep.mubr.bf16.mxu0 0
        %2240 = vmatmul.mubr.bf16.gmra.mrb[0].mxu0 %v2091
        %v2241 = vpop.f32.mrb[0].mxu0
        %v2242 = vadd.f32 0.0, %v2241
        %v2243 = vpop.f32.mrb[0].mxu0
        %v2244 = vpop.f32.mrb[0].mxu0
        %v2245 = vadd.f32 0.0, %v2244
        %v2246 = vpop.f32.mrb[0].mxu0
        %2247 = vmatprep.mubr.bf16.mxu0 0
        %2248 = vmatmul.mubr.bf16.gmra.mrb[0].mxu0 %v2092
        %v2249 = vpop.f32.mrb[0].mxu0
        %v2250 = vadd.f32 0.0, %v2249
        %v2251 = vpop.f32.mrb[0].mxu0
        %v2252 = vpop.f32.mrb[0].mxu0
        %v2253 = vadd.f32 0.0, %v2252
        %v2254 = vpop.f32.mrb[0].mxu0
        %2255 = vmatprep.mubr.bf16.mxu0 0
        %2256 = vmatmul.mubr.bf16.gmra.mrb[0].mxu0 %v2093
        %v2257 = vpop.f32.mrb[0].mxu0
        %v2258 = vadd.f32 0.0, %v2257
        %v2259 = vpop.f32.mrb[0].mxu0
        %v2260 = vpop.f32.mrb[0].mxu0
        %v2261 = vadd.f32 0.0, %v2260
        %v2262 = vpop.f32.mrb[0].mxu0
        %2263 = vmatprep.mubr.bf16.mxu0 0
        %2264 = vmatmul.mubr.bf16.gmra.mrb[0].mxu0 %v2094
        %v2265 = vpop.f32.mrb[0].mxu0
        %v2266 = vadd.f32 0.0, %v2265
        %v2267 = vpop.f32.mrb[0].mxu0
        %v2268 = vpop.f32.mrb[0].mxu0
        %v2269 = vadd.f32 0.0, %v2268
        %v2270 = vpop.f32.mrb[0].mxu0
        %2271 = vmatprep.mubr.bf16.mxu0 0
        %2272 = vmatmul.mubr.bf16.gmra.mrb[0].mxu0 %v2095
        %v2273 = vpop.f32.mrb[0].mxu0
        %v2274 = vadd.f32 0.0, %v2273
        %v2275 = vpop.f32.mrb[0].mxu0
        %v2276 = vpop.f32.mrb[0].mxu0
        %v2277 = vadd.f32 0.0, %v2276
        %v2278 = vpop.f32.mrb[0].mxu0
        %2279 = vmatprep.mubr.bf16.mxu0 0
        %2280 = vmatmul.mubr.bf16.gmra.mrb[0].mxu0 %v2096
        %v2281 = vpop.f32.mrb[0].mxu0
        %v2282 = vadd.f32 0.0, %v2281
        %v2283 = vpop.f32.mrb[0].mxu0
        %v2284 = vpop.f32.mrb[0].mxu0
        %v2285 = vadd.f32 0.0, %v2284
        %v2286 = vpop.f32.mrb[0].mxu0
        %2287 = vmatprep.mubr.bf16.mxu0 0
        %2288 = vmatmul.mubr.bf16.gmra.mrb[0].mxu0 %v2097
        %v2289 = vpop.f32.mrb[0].mxu0
        %v2290 = vadd.f32 0.0, %v2289
        %v2291 = vpop.f32.mrb[0].mxu0
        %v2292 = vpop.f32.mrb[0].mxu0
        %v2293 = vadd.f32 0.0, %v2292
        %v2294 = vpop.f32.mrb[0].mxu0
        %2295 = vmatprep.mubr.bf16.mxu0 0
        %2296 = vmatmul.mubr.bf16.gmra.mrb[0].mxu0 %v2098
        %v2297 = vpop.f32.mrb[0].mxu0
        %v2298 = vadd.f32 0.0, %v2297
        %v2299 = vpop.f32.mrb[0].mxu0
        %v2300 = vpop.f32.mrb[0].mxu0
        %v2301 = vadd.f32 0.0, %v2300
        %v2302 = vpop.f32.mrb[0].mxu0
        %2303 = vmatprep.mubr.bf16.mxu0 0
        %2304 = vmatmul.mubr.bf16.gmra.mrb[0].mxu0 %v2099
        %v2305 = vpop.f32.mrb[0].mxu0
        %v2306 = vadd.f32 0.0, %v2305
        %v2307 = vpop.f32.mrb[0].mxu0
        %v2308 = vpop.f32.mrb[0].mxu0
        %v2309 = vadd.f32 0.0, %v2308
        %v2310 = vpop.f32.mrb[0].mxu0
        %2311 = vmatprep.mubr.bf16.mxu0 0
        %2312 = vmatmul.mubr.bf16.gmra.mrb[0].mxu0 %v2100
        %v2313 = vpop.f32.mrb[0].mxu0
        %v2314 = vadd.f32 0.0, %v2313
        %v2315 = vpop.f32.mrb[0].mxu0
        %v2316 = vpop.f32.mrb[0].mxu0
        %v2317 = vadd.f32 0.0, %v2316
        %v2318 = vpop.f32.mrb[0].mxu0
        %2319 = vmatprep.mubr.bf16.mxu0 0
        %2320 = vmatmul.mubr.bf16.gmra.mrb[0].mxu0 %v2101
        %v2321 = vpop.f32.mrb[0].mxu0
        %v2322 = vadd.f32 0.0, %v2321
        %v2323 = vpop.f32.mrb[0].mxu0
        %v2324 = vpop.f32.mrb[0].mxu0
        %v2325 = vadd.f32 0.0, %v2324
        %v2326 = vpop.f32.mrb[0].mxu0
        %2327 = vdwg.mxu0
        %v2328 = vadd.f32 %v2022, %v2202
        %v2329 = vadd.f32 %v2023, %v2205
        %v2330 = vadd.f32 %v2024, %v2210
        %v2331 = vadd.f32 %v2025, %v2213
        %v2332 = vadd.f32 %v2026, %v2218
        %v2333 = vadd.f32 %v2027, %v2221
        %v2334 = vadd.f32 %v2028, %v2226
        %v2335 = vadd.f32 %v2029, %v2229
        %v2336 = vadd.f32 %v2030, %v2234
        %v2337 = vadd.f32 %v2031, %v2237
        %v2338 = vadd.f32 %v2032, %v2242
        %v2339 = vadd.f32 %v2033, %v2245
        %v2340 = vadd.f32 %v2034, %v2250
        %v2341 = vadd.f32 %v2035, %v2253
        %v2342 = vadd.f32 %v2036, %v2258
        %v2343 = vadd.f32 %v2037, %v2261
        %v2344 = vadd.f32 %v2038, %v2266
        %v2345 = vadd.f32 %v2039, %v2269
        %v2346 = vadd.f32 %v2040, %v2274
        %v2347 = vadd.f32 %v2041, %v2277
        %v2348 = vadd.f32 %v2042, %v2282
        %v2349 = vadd.f32 %v2043, %v2285
        %v2350 = vadd.f32 %v2044, %v2290
        %v2351 = vadd.f32 %v2045, %v2293
        %v2352 = vadd.f32 %v2046, %v2298
        %v2353 = vadd.f32 %v2047, %v2301
        %v2354 = vadd.f32 %v2048, %v2306
        %v2355 = vadd.f32 %v2049, %v2309
        %v2356 = vadd.f32 %v2050, %v2314
        %v2357 = vadd.f32 %v2051, %v2317
        %v2358 = vadd.f32 %v2052, %v2322
        %v2359 = vadd.f32 %v2053, %v2325
        %v2360 = vld [vmem:[%s1168 + $0x1] sm:$0xff]
        %v2361 = vld [vmem:[%s1168 + $0x9] sm:$0xff]
        %v2362 = vld [vmem:[%s1168 + $0x19] sm:$0xff]
        %v2363 = vld [vmem:[%s1168 + $0x21] sm:$0xff]
        %v2364 = vld [vmem:[%s1168 + $0x31] sm:$0xff]
        %v2365 = vld [vmem:[%s1168 + $0x39] sm:$0xff]
        %v2366 = vld [vmem:[%s1168 + $0x49] sm:$0xff]
        %v2367 = vld [vmem:[%s1168 + $0x51] sm:$0xff]
        %v2368 = vld [vmem:[%s1168 + $0x61] sm:$0xff]
        %v2369 = vld [vmem:[%s1168 + $0x69] sm:$0xff]
        %v2370 = vld [vmem:[%s1168 + $0x79] sm:$0xff]
        %v2371 = vld [vmem:[%s1168 + $0x81] sm:$0xff]
        %v2372 = vld [vmem:[%s1168 + $0x91] sm:$0xff]
        %v2373 = vld [vmem:[%s1168 + $0x99] sm:$0xff]
        %v2374 = vld [vmem:[%s1168 + $0xa9] sm:$0xff]
        %v2375 = vld [vmem:[%s1168 + $0xb1] sm:$0xff]
        %v2376 = vld [vmem:[%s1168 + $0xc1] sm:$0xff]
        %v2377 = vld [vmem:[%s1168 + $0xc9] sm:$0xff]
        %v2378 = vld [vmem:[%s1168 + $0xd9] sm:$0xff]
        %v2379 = vld [vmem:[%s1168 + $0xe1] sm:$0xff]
        %v2380 = vld [vmem:[%s1168 + $0xf1] sm:$0xff]
        %v2381 = vld [vmem:[%s1168 + $0xf9] sm:$0xff]
        %v2382 = vld [vmem:[%s1168 + $0x109] sm:$0xff]
        %v2383 = vld [vmem:[%s1168 + $0x111] sm:$0xff]
        %v2384 = vld [vmem:[%s1168 + $0x121] sm:$0xff]
        %v2385 = vld [vmem:[%s1168 + $0x129] sm:$0xff]
        %v2386 = vld [vmem:[%s1168 + $0x139] sm:$0xff]
        %v2387 = vld [vmem:[%s1168 + $0x141] sm:$0xff]
        %v2388 = vld [vmem:[%s1168 + $0x151] sm:$0xff]
        %v2389 = vld [vmem:[%s1168 + $0x159] sm:$0xff]
        %v2390 = vld [vmem:[%s1168 + $0x169] sm:$0xff]
        %v2391 = vld [vmem:[%s1168 + $0x171] sm:$0xff]
        %v2392 = vpack.c.bf16 %v2361, %v2360
        %v2393 = vpack.c.bf16 %v2363, %v2362
        %v2394 = vpack.c.bf16 %v2365, %v2364
        %v2395 = vpack.c.bf16 %v2367, %v2366
        %v2396 = vpack.c.bf16 %v2369, %v2368
        %v2397 = vpack.c.bf16 %v2371, %v2370
        %v2398 = vpack.c.bf16 %v2373, %v2372
        %v2399 = vpack.c.bf16 %v2375, %v2374
        %v2400 = vpack.c.bf16 %v2377, %v2376
        %v2401 = vpack.c.bf16 %v2379, %v2378
        %v2402 = vpack.c.bf16 %v2381, %v2380
        %v2403 = vpack.c.bf16 %v2383, %v2382
        %v2404 = vpack.c.bf16 %v2385, %v2384
        %v2405 = vpack.c.bf16 %v2387, %v2386
        %v2406 = vpack.c.bf16 %v2389, %v2388
        %v2407 = vpack.c.bf16 %v2391, %v2390
        %s2408 = scalar_lea.vmem [#allocation8], 256
        %v2409 = vld [vmem:[%s2408] sm:$0xf]
        %v2410 = vld [vmem:[%s2408 + $0x4] sm:$0xf]
        %v2411 = vld [vmem:[%s2408 + $0x8] sm:$0xf]
        %v2412 = vld [vmem:[%s2408 + $0xc] sm:$0xf]
        %v2413 = vld [vmem:[%s2408 + $0x10] sm:$0xf]
        %v2414 = vld [vmem:[%s2408 + $0x14] sm:$0xf]
        %v2415 = vld [vmem:[%s2408 + $0x18] sm:$0xf]
        %v2416 = vld [vmem:[%s2408 + $0x1c] sm:$0xf]
        %v2417 = vld [vmem:[%s2408 + $0x20] sm:$0xf]
        %v2418 = vld [vmem:[%s2408 + $0x24] sm:$0xf]
        %v2419 = vld [vmem:[%s2408 + $0x28] sm:$0xf]
        %v2420 = vld [vmem:[%s2408 + $0x2c] sm:$0xf]
        %v2421 = vld [vmem:[%s2408 + $0x30] sm:$0xf]
        %v2422 = vld [vmem:[%s2408 + $0x34] sm:$0xf]
        %v2423 = vld [vmem:[%s2408 + $0x38] sm:$0xf]
        %v2424 = vld [vmem:[%s2408 + $0x3c] sm:$0xf]
        %v2441 = vunpack.c.l.b16 %v2409
        %v2442 = vunpack.c.l.b16 %v2410
        %v2443 = vunpack.c.l.b16 %v2411
        %v2444 = vunpack.c.l.b16 %v2412
        %v2445 = vunpack.c.l.b16 %v2413
        %v2446 = vunpack.c.l.b16 %v2414
        %v2447 = vunpack.c.l.b16 %v2415
        %v2448 = vunpack.c.l.b16 %v2416
        %v2449 = vunpack.c.l.b16 %v2417
        %v2450 = vunpack.c.l.b16 %v2418
        %v2451 = vunpack.c.l.b16 %v2419
        %v2452 = vunpack.c.l.b16 %v2420
        %v2453 = vunpack.c.l.b16 %v2421
        %v2454 = vunpack.c.l.b16 %v2422
        %v2455 = vunpack.c.l.b16 %v2423
        %v2456 = vunpack.c.l.b16 %v2424
        %v2457 = vpack.c.b16 %v2442, %v2441
        %v2458 = vpack.c.b16 %v2444, %v2443
        %v2459 = vpack.c.b16 %v2446, %v2445
        %v2460 = vpack.c.b16 %v2448, %v2447
        %v2461 = vpack.c.b16 %v2450, %v2449
        %v2462 = vpack.c.b16 %v2452, %v2451
        %v2463 = vpack.c.b16 %v2454, %v2453
        %v2464 = vpack.c.b16 %v2456, %v2455
        %2473 = vmatprep.subr.bf16.mxu0 0
        %2474 = vmatpush1.bf16.msra.mxu0 %v2457
        %2475 = vmatprep.subr.bf16.mxu0 0
        %2476 = vmatpush1.bf16.msra.mxu0 %v2458
        %2477 = vmatprep.subr.bf16.mxu0 0
        %2478 = vmatpush1.bf16.msra.mxu0 %v2459
        %2479 = vmatprep.subr.bf16.mxu0 0
        %2480 = vmatpush1.bf16.msra.mxu0 %v2460
        %2481 = vmatprep.subr.bf16.mxu0 0
        %2482 = vmatpush1.bf16.msra.mxu0 %v2461
        %2483 = vmatprep.subr.bf16.mxu0 0
        %2484 = vmatpush1.bf16.msra.mxu0 %v2462
        %2485 = vmatprep.subr.bf16.mxu0 0
        %2486 = vmatpush1.bf16.msra.mxu0 %v2463
        %2487 = vmatprep.subr.bf16.mxu0 0
        %2488 = vmatpush1.bf16.msra.mxu0 %v2464
        %2489 = vmatprep.subr.bf16.mxu0 0
        %2490 = vmatpush1.bf16.msra.mxu0 0
        %2491 = vmatprep.subr.bf16.mxu0 0
        %2492 = vmatpush1.bf16.msra.mxu0 0
        %2493 = vmatprep.subr.bf16.mxu0 0
        %2494 = vmatpush1.bf16.msra.mxu0 0
        %2495 = vmatprep.subr.bf16.mxu0 0
        %2496 = vmatpush1.bf16.msra.mxu0 0
        %2497 = vmatprep.subr.bf16.mxu0 0
        %2498 = vmatpush1.bf16.msra.mxu0 0
        %2499 = vmatprep.subr.bf16.mxu0 0
        %2500 = vmatpush1.bf16.msra.mxu0 0
        %2501 = vmatprep.subr.bf16.mxu0 0
        %2502 = vmatpush1.bf16.msra.mxu0 0
        %2503 = vmatprep.subr.bf16.mxu0 0
        %2504 = vmatpush1.bf16.msra.mxu0 0
        %2505 = vmatprep.mubr.bf16.mxu0 0
        %2506 = vmatmul.mubr.bf16.gmra.mrb[0].mxu0 %v2392
        %v2507 = vpop.f32.mrb[0].mxu0
        %v2508 = vadd.f32 0.0, %v2507
        %v2509 = vpop.f32.mrb[0].mxu0
        %v2510 = vpop.f32.mrb[0].mxu0
        %v2511 = vadd.f32 0.0, %v2510
        %v2512 = vpop.f32.mrb[0].mxu0
        %2513 = vmatprep.mubr.bf16.mxu0 0
        %2514 = vmatmul.mubr.bf16.gmra.mrb[0].mxu0 %v2393
        %v2515 = vpop.f32.mrb[0].mxu0
        %v2516 = vadd.f32 0.0, %v2515
        %v2517 = vpop.f32.mrb[0].mxu0
        %v2518 = vpop.f32.mrb[0].mxu0
        %v2519 = vadd.f32 0.0, %v2518
        %v2520 = vpop.f32.mrb[0].mxu0
        %2521 = vmatprep.mubr.bf16.mxu0 0
        %2522 = vmatmul.mubr.bf16.gmra.mrb[0].mxu0 %v2394
        %v2523 = vpop.f32.mrb[0].mxu0
        %v2524 = vadd.f32 0.0, %v2523
        %v2525 = vpop.f32.mrb[0].mxu0
        %v2526 = vpop.f32.mrb[0].mxu0
        %v2527 = vadd.f32 0.0, %v2526
        %v2528 = vpop.f32.mrb[0].mxu0
        %2529 = vmatprep.mubr.bf16.mxu0 0
        %2530 = vmatmul.mubr.bf16.gmra.mrb[0].mxu0 %v2395
        %v2531 = vpop.f32.mrb[0].mxu0
        %v2532 = vadd.f32 0.0, %v2531
        %v2533 = vpop.f32.mrb[0].mxu0
        %v2534 = vpop.f32.mrb[0].mxu0
        %v2535 = vadd.f32 0.0, %v2534
        %v2536 = vpop.f32.mrb[0].mxu0
        %2537 = vmatprep.mubr.bf16.mxu0 0
        %2538 = vmatmul.mubr.bf16.gmra.mrb[0].mxu0 %v2396
        %v2539 = vpop.f32.mrb[0].mxu0
        %v2540 = vadd.f32 0.0, %v2539
        %v2541 = vpop.f32.mrb[0].mxu0
        %v2542 = vpop.f32.mrb[0].mxu0
        %v2543 = vadd.f32 0.0, %v2542
        %v2544 = vpop.f32.mrb[0].mxu0
        %2545 = vmatprep.mubr.bf16.mxu0 0
        %2546 = vmatmul.mubr.bf16.gmra.mrb[0].mxu0 %v2397
        %v2547 = vpop.f32.mrb[0].mxu0
        %v2548 = vadd.f32 0.0, %v2547
        %v2549 = vpop.f32.mrb[0].mxu0
        %v2550 = vpop.f32.mrb[0].mxu0
        %v2551 = vadd.f32 0.0, %v2550
        %v2552 = vpop.f32.mrb[0].mxu0
        %2553 = vmatprep.mubr.bf16.mxu0 0
        %2554 = vmatmul.mubr.bf16.gmra.mrb[0].mxu0 %v2398
        %v2555 = vpop.f32.mrb[0].mxu0
        %v2556 = vadd.f32 0.0, %v2555
        %v2557 = vpop.f32.mrb[0].mxu0
        %v2558 = vpop.f32.mrb[0].mxu0
        %v2559 = vadd.f32 0.0, %v2558
        %v2560 = vpop.f32.mrb[0].mxu0
        %2561 = vmatprep.mubr.bf16.mxu0 0
        %2562 = vmatmul.mubr.bf16.gmra.mrb[0].mxu0 %v2399
        %v2563 = vpop.f32.mrb[0].mxu0
        %v2564 = vadd.f32 0.0, %v2563
        %v2565 = vpop.f32.mrb[0].mxu0
        %v2566 = vpop.f32.mrb[0].mxu0
        %v2567 = vadd.f32 0.0, %v2566
        %v2568 = vpop.f32.mrb[0].mxu0
        %2569 = vmatprep.mubr.bf16.mxu0 0
        %2570 = vmatmul.mubr.bf16.gmra.mrb[0].mxu0 %v2400
        %v2571 = vpop.f32.mrb[0].mxu0
        %v2572 = vadd.f32 0.0, %v2571
        %v2573 = vpop.f32.mrb[0].mxu0
        %v2574 = vpop.f32.mrb[0].mxu0
        %v2575 = vadd.f32 0.0, %v2574
        %v2576 = vpop.f32.mrb[0].mxu0
        %2577 = vmatprep.mubr.bf16.mxu0 0
        %2578 = vmatmul.mubr.bf16.gmra.mrb[0].mxu0 %v2401
        %v2579 = vpop.f32.mrb[0].mxu0
        %v2580 = vadd.f32 0.0, %v2579
        %v2581 = vpop.f32.mrb[0].mxu0
        %v2582 = vpop.f32.mrb[0].mxu0
        %v2583 = vadd.f32 0.0, %v2582
        %v2584 = vpop.f32.mrb[0].mxu0
        %2585 = vmatprep.mubr.bf16.mxu0 0
        %2586 = vmatmul.mubr.bf16.gmra.mrb[0].mxu0 %v2402
        %v2587 = vpop.f32.mrb[0].mxu0
        %v2588 = vadd.f32 0.0, %v2587
        %v2589 = vpop.f32.mrb[0].mxu0
        %v2590 = vpop.f32.mrb[0].mxu0
        %v2591 = vadd.f32 0.0, %v2590
        %v2592 = vpop.f32.mrb[0].mxu0
        %2593 = vmatprep.mubr.bf16.mxu0 0
        %2594 = vmatmul.mubr.bf16.gmra.mrb[0].mxu0 %v2403
        %v2595 = vpop.f32.mrb[0].mxu0
        %v2596 = vadd.f32 0.0, %v2595
        %v2597 = vpop.f32.mrb[0].mxu0
        %v2598 = vpop.f32.mrb[0].mxu0
        %v2599 = vadd.f32 0.0, %v2598
        %v2600 = vpop.f32.mrb[0].mxu0
        %2601 = vmatprep.mubr.bf16.mxu0 0
        %2602 = vmatmul.mubr.bf16.gmra.mrb[0].mxu0 %v2404
        %v2603 = vpop.f32.mrb[0].mxu0
        %v2604 = vadd.f32 0.0, %v2603
        %v2605 = vpop.f32.mrb[0].mxu0
        %v2606 = vpop.f32.mrb[0].mxu0
        %v2607 = vadd.f32 0.0, %v2606
        %v2608 = vpop.f32.mrb[0].mxu0
        %2609 = vmatprep.mubr.bf16.mxu0 0
        %2610 = vmatmul.mubr.bf16.gmra.mrb[0].mxu0 %v2405
        %v2611 = vpop.f32.mrb[0].mxu0
        %v2612 = vadd.f32 0.0, %v2611
        %v2613 = vpop.f32.mrb[0].mxu0
        %v2614 = vpop.f32.mrb[0].mxu0
        %v2615 = vadd.f32 0.0, %v2614
        %v2616 = vpop.f32.mrb[0].mxu0
        %2617 = vmatprep.mubr.bf16.mxu0 0
        %2618 = vmatmul.mubr.bf16.gmra.mrb[0].mxu0 %v2406
        %v2619 = vpop.f32.mrb[0].mxu0
        %v2620 = vadd.f32 0.0, %v2619
        %v2621 = vpop.f32.mrb[0].mxu0
        %v2622 = vpop.f32.mrb[0].mxu0
        %v2623 = vadd.f32 0.0, %v2622
        %v2624 = vpop.f32.mrb[0].mxu0
        %2625 = vmatprep.mubr.bf16.mxu0 0
        %2626 = vmatmul.mubr.bf16.gmra.mrb[0].mxu0 %v2407
        %v2627 = vpop.f32.mrb[0].mxu0
        %v2628 = vadd.f32 0.0, %v2627
        %v2629 = vpop.f32.mrb[0].mxu0
        %v2630 = vpop.f32.mrb[0].mxu0
        %v2631 = vadd.f32 0.0, %v2630
        %v2632 = vpop.f32.mrb[0].mxu0
        %2633 = vdwg.mxu0
        %v2634 = vadd.f32 %v2328, %v2508
        %v2635 = vadd.f32 %v2329, %v2511
        %v2636 = vadd.f32 %v2330, %v2516
        %v2637 = vadd.f32 %v2331, %v2519
        %v2638 = vadd.f32 %v2332, %v2524
        %v2639 = vadd.f32 %v2333, %v2527
        %v2640 = vadd.f32 %v2334, %v2532
        %v2641 = vadd.f32 %v2335, %v2535
        %v2642 = vadd.f32 %v2336, %v2540
        %v2643 = vadd.f32 %v2337, %v2543
        %v2644 = vadd.f32 %v2338, %v2548
        %v2645 = vadd.f32 %v2339, %v2551
        %v2646 = vadd.f32 %v2340, %v2556
        %v2647 = vadd.f32 %v2341, %v2559
        %v2648 = vadd.f32 %v2342, %v2564
        %v2649 = vadd.f32 %v2343, %v2567
        %v2650 = vadd.f32 %v2344, %v2572
        %v2651 = vadd.f32 %v2345, %v2575
        %v2652 = vadd.f32 %v2346, %v2580
        %v2653 = vadd.f32 %v2347, %v2583
        %v2654 = vadd.f32 %v2348, %v2588
        %v2655 = vadd.f32 %v2349, %v2591
        %v2656 = vadd.f32 %v2350, %v2596
        %v2657 = vadd.f32 %v2351, %v2599
        %v2658 = vadd.f32 %v2352, %v2604
        %v2659 = vadd.f32 %v2353, %v2607
        %v2660 = vadd.f32 %v2354, %v2612
        %v2661 = vadd.f32 %v2355, %v2615
        %v2662 = vadd.f32 %v2356, %v2620
        %v2663 = vadd.f32 %v2357, %v2623
        %v2664 = vadd.f32 %v2358, %v2628
        %v2665 = vadd.f32 %v2359, %v2631
        %v2666 = vld [vmem:[%s1168 + $0x2] sm:$0xff]
        %v2667 = vld [vmem:[%s1168 + $0xa] sm:$0xff]
        %v2668 = vld [vmem:[%s1168 + $0x1a] sm:$0xff]
        %v2669 = vld [vmem:[%s1168 + $0x22] sm:$0xff]
        %v2670 = vld [vmem:[%s1168 + $0x32] sm:$0xff]
        %v2671 = vld [vmem:[%s1168 + $0x3a] sm:$0xff]
        %v2672 = vld [vmem:[%s1168 + $0x4a] sm:$0xff]
        %v2673 = vld [vmem:[%s1168 + $0x52] sm:$0xff]
        %v2674 = vld [vmem:[%s1168 + $0x62] sm:$0xff]
        %v2675 = vld [vmem:[%s1168 + $0x6a] sm:$0xff]
        %v2676 = vld [vmem:[%s1168 + $0x7a] sm:$0xff]
        %v2677 = vld [vmem:[%s1168 + $0x82] sm:$0xff]
        %v2678 = vld [vmem:[%s1168 + $0x92] sm:$0xff]
        %v2679 = vld [vmem:[%s1168 + $0x9a] sm:$0xff]
        %v2680 = vld [vmem:[%s1168 + $0xaa] sm:$0xff]
        %v2681 = vld [vmem:[%s1168 + $0xb2] sm:$0xff]
        %v2682 = vld [vmem:[%s1168 + $0xc2] sm:$0xff]
        %v2683 = vld [vmem:[%s1168 + $0xca] sm:$0xff]
        %v2684 = vld [vmem:[%s1168 + $0xda] sm:$0xff]
        %v2685 = vld [vmem:[%s1168 + $0xe2] sm:$0xff]
        %v2686 = vld [vmem:[%s1168 + $0xf2] sm:$0xff]
        %v2687 = vld [vmem:[%s1168 + $0xfa] sm:$0xff]
        %v2688 = vld [vmem:[%s1168 + $0x10a] sm:$0xff]
        %v2689 = vld [vmem:[%s1168 + $0x112] sm:$0xff]
        %v2690 = vld [vmem:[%s1168 + $0x122] sm:$0xff]
        %v2691 = vld [vmem:[%s1168 + $0x12a] sm:$0xff]
        %v2692 = vld [vmem:[%s1168 + $0x13a] sm:$0xff]
        %v2693 = vld [vmem:[%s1168 + $0x142] sm:$0xff]
        %v2694 = vld [vmem:[%s1168 + $0x152] sm:$0xff]
        %v2695 = vld [vmem:[%s1168 + $0x15a] sm:$0xff]
        %v2696 = vld [vmem:[%s1168 + $0x16a] sm:$0xff]
        %v2697 = vld [vmem:[%s1168 + $0x172] sm:$0xff]
        %v2698 = vpack.c.bf16 %v2667, %v2666
        %v2699 = vpack.c.bf16 %v2669, %v2668
        %v2700 = vpack.c.bf16 %v2671, %v2670
        %v2701 = vpack.c.bf16 %v2673, %v2672
        %v2702 = vpack.c.bf16 %v2675, %v2674
        %v2703 = vpack.c.bf16 %v2677, %v2676
        %v2704 = vpack.c.bf16 %v2679, %v2678
        %v2705 = vpack.c.bf16 %v2681, %v2680
        %v2706 = vpack.c.bf16 %v2683, %v2682
        %v2707 = vpack.c.bf16 %v2685, %v2684
        %v2708 = vpack.c.bf16 %v2687, %v2686
        %v2709 = vpack.c.bf16 %v2689, %v2688
        %v2710 = vpack.c.bf16 %v2691, %v2690
        %v2711 = vpack.c.bf16 %v2693, %v2692
        %v2712 = vpack.c.bf16 %v2695, %v2694
        %v2713 = vpack.c.bf16 %v2697, %v2696
        %s2714 = scalar_lea.vmem [#allocation8], 320
        %v2715 = vld [vmem:[%s2714] sm:$0xf]
        %v2716 = vld [vmem:[%s2714 + $0x4] sm:$0xf]
        %v2717 = vld [vmem:[%s2714 + $0x8] sm:$0xf]
        %v2718 = vld [vmem:[%s2714 + $0xc] sm:$0xf]
        %v2719 = vld [vmem:[%s2714 + $0x10] sm:$0xf]
        %v2720 = vld [vmem:[%s2714 + $0x14] sm:$0xf]
        %v2721 = vld [vmem:[%s2714 + $0x18] sm:$0xf]
        %v2722 = vld [vmem:[%s2714 + $0x1c] sm:$0xf]
        %v2723 = vld [vmem:[%s2714 + $0x20] sm:$0xf]
        %v2724 = vld [vmem:[%s2714 + $0x24] sm:$0xf]
        %v2725 = vld [vmem:[%s2714 + $0x28] sm:$0xf]
        %v2726 = vld [vmem:[%s2714 + $0x2c] sm:$0xf]
        %v2727 = vld [vmem:[%s2714 + $0x30] sm:$0xf]
        %v2728 = vld [vmem:[%s2714 + $0x34] sm:$0xf]
        %v2729 = vld [vmem:[%s2714 + $0x38] sm:$0xf]
        %v2730 = vld [vmem:[%s2714 + $0x3c] sm:$0xf]
        %v2747 = vunpack.c.l.b16 %v2715
        %v2748 = vunpack.c.l.b16 %v2716
        %v2749 = vunpack.c.l.b16 %v2717
        %v2750 = vunpack.c.l.b16 %v2718
        %v2751 = vunpack.c.l.b16 %v2719
        %v2752 = vunpack.c.l.b16 %v2720
        %v2753 = vunpack.c.l.b16 %v2721
        %v2754 = vunpack.c.l.b16 %v2722
        %v2755 = vunpack.c.l.b16 %v2723
        %v2756 = vunpack.c.l.b16 %v2724
        %v2757 = vunpack.c.l.b16 %v2725
        %v2758 = vunpack.c.l.b16 %v2726
        %v2759 = vunpack.c.l.b16 %v2727
        %v2760 = vunpack.c.l.b16 %v2728
        %v2761 = vunpack.c.l.b16 %v2729
        %v2762 = vunpack.c.l.b16 %v2730
        %v2763 = vpack.c.b16 %v2748, %v2747
        %v2764 = vpack.c.b16 %v2750, %v2749
        %v2765 = vpack.c.b16 %v2752, %v2751
        %v2766 = vpack.c.b16 %v2754, %v2753
        %v2767 = vpack.c.b16 %v2756, %v2755
        %v2768 = vpack.c.b16 %v2758, %v2757
        %v2769 = vpack.c.b16 %v2760, %v2759
        %v2770 = vpack.c.b16 %v2762, %v2761
        %2779 = vmatprep.subr.bf16.mxu0 0
        %2780 = vmatpush1.bf16.msra.mxu0 %v2763
        %2781 = vmatprep.subr.bf16.mxu0 0
        %2782 = vmatpush1.bf16.msra.mxu0 %v2764
        %2783 = vmatprep.subr.bf16.mxu0 0
        %2784 = vmatpush1.bf16.msra.mxu0 %v2765
        %2785 = vmatprep.subr.bf16.mxu0 0
        %2786 = vmatpush1.bf16.msra.mxu0 %v2766
        %2787 = vmatprep.subr.bf16.mxu0 0
        %2788 = vmatpush1.bf16.msra.mxu0 %v2767
        %2789 = vmatprep.subr.bf16.mxu0 0
        %2790 = vmatpush1.bf16.msra.mxu0 %v2768
        %2791 = vmatprep.subr.bf16.mxu0 0
        %2792 = vmatpush1.bf16.msra.mxu0 %v2769
        %2793 = vmatprep.subr.bf16.mxu0 0
        %2794 = vmatpush1.bf16.msra.mxu0 %v2770
        %2795 = vmatprep.subr.bf16.mxu0 0
        %2796 = vmatpush1.bf16.msra.mxu0 0
        %2797 = vmatprep.subr.bf16.mxu0 0
        %2798 = vmatpush1.bf16.msra.mxu0 0
        %2799 = vmatprep.subr.bf16.mxu0 0
        %2800 = vmatpush1.bf16.msra.mxu0 0
        %2801 = vmatprep.subr.bf16.mxu0 0
        %2802 = vmatpush1.bf16.msra.mxu0 0
        %2803 = vmatprep.subr.bf16.mxu0 0
        %2804 = vmatpush1.bf16.msra.mxu0 0
        %2805 = vmatprep.subr.bf16.mxu0 0
        %2806 = vmatpush1.bf16.msra.mxu0 0
        %2807 = vmatprep.subr.bf16.mxu0 0
        %2808 = vmatpush1.bf16.msra.mxu0 0
        %2809 = vmatprep.subr.bf16.mxu0 0
        %2810 = vmatpush1.bf16.msra.mxu0 0
        %2811 = vmatprep.mubr.bf16.mxu0 0
        %2812 = vmatmul.mubr.bf16.gmra.mrb[0].mxu0 %v2698
        %v2813 = vpop.f32.mrb[0].mxu0
        %v2814 = vadd.f32 0.0, %v2813
        %v2815 = vpop.f32.mrb[0].mxu0
        %v2816 = vpop.f32.mrb[0].mxu0
        %v2817 = vadd.f32 0.0, %v2816
        %v2818 = vpop.f32.mrb[0].mxu0
        %2819 = vmatprep.mubr.bf16.mxu0 0
        %2820 = vmatmul.mubr.bf16.gmra.mrb[0].mxu0 %v2699
        %v2821 = vpop.f32.mrb[0].mxu0
        %v2822 = vadd.f32 0.0, %v2821
        %v2823 = vpop.f32.mrb[0].mxu0
        %v2824 = vpop.f32.mrb[0].mxu0
        %v2825 = vadd.f32 0.0, %v2824
        %v2826 = vpop.f32.mrb[0].mxu0
        %2827 = vmatprep.mubr.bf16.mxu0 0
        %2828 = vmatmul.mubr.bf16.gmra.mrb[0].mxu0 %v2700
        %v2829 = vpop.f32.mrb[0].mxu0
        %v2830 = vadd.f32 0.0, %v2829
        %v2831 = vpop.f32.mrb[0].mxu0
        %v2832 = vpop.f32.mrb[0].mxu0
        %v2833 = vadd.f32 0.0, %v2832
        %v2834 = vpop.f32.mrb[0].mxu0
        %2835 = vmatprep.mubr.bf16.mxu0 0
        %2836 = vmatmul.mubr.bf16.gmra.mrb[0].mxu0 %v2701
        %v2837 = vpop.f32.mrb[0].mxu0
        %v2838 = vadd.f32 0.0, %v2837
        %v2839 = vpop.f32.mrb[0].mxu0
        %v2840 = vpop.f32.mrb[0].mxu0
        %v2841 = vadd.f32 0.0, %v2840
        %v2842 = vpop.f32.mrb[0].mxu0
        %2843 = vmatprep.mubr.bf16.mxu0 0
        %2844 = vmatmul.mubr.bf16.gmra.mrb[0].mxu0 %v2702
        %v2845 = vpop.f32.mrb[0].mxu0
        %v2846 = vadd.f32 0.0, %v2845
        %v2847 = vpop.f32.mrb[0].mxu0
        %v2848 = vpop.f32.mrb[0].mxu0
        %v2849 = vadd.f32 0.0, %v2848
        %v2850 = vpop.f32.mrb[0].mxu0
        %2851 = vmatprep.mubr.bf16.mxu0 0
        %2852 = vmatmul.mubr.bf16.gmra.mrb[0].mxu0 %v2703
        %v2853 = vpop.f32.mrb[0].mxu0
        %v2854 = vadd.f32 0.0, %v2853
        %v2855 = vpop.f32.mrb[0].mxu0
        %v2856 = vpop.f32.mrb[0].mxu0
        %v2857 = vadd.f32 0.0, %v2856
        %v2858 = vpop.f32.mrb[0].mxu0
        %2859 = vmatprep.mubr.bf16.mxu0 0
        %2860 = vmatmul.mubr.bf16.gmra.mrb[0].mxu0 %v2704
        %v2861 = vpop.f32.mrb[0].mxu0
        %v2862 = vadd.f32 0.0, %v2861
        %v2863 = vpop.f32.mrb[0].mxu0
        %v2864 = vpop.f32.mrb[0].mxu0
        %v2865 = vadd.f32 0.0, %v2864
        %v2866 = vpop.f32.mrb[0].mxu0
        %2867 = vmatprep.mubr.bf16.mxu0 0
        %2868 = vmatmul.mubr.bf16.gmra.mrb[0].mxu0 %v2705
        %v2869 = vpop.f32.mrb[0].mxu0
        %v2870 = vadd.f32 0.0, %v2869
        %v2871 = vpop.f32.mrb[0].mxu0
        %v2872 = vpop.f32.mrb[0].mxu0
        %v2873 = vadd.f32 0.0, %v2872
        %v2874 = vpop.f32.mrb[0].mxu0
        %2875 = vmatprep.mubr.bf16.mxu0 0
        %2876 = vmatmul.mubr.bf16.gmra.mrb[0].mxu0 %v2706
        %v2877 = vpop.f32.mrb[0].mxu0
        %v2878 = vadd.f32 0.0, %v2877
        %v2879 = vpop.f32.mrb[0].mxu0
        %v2880 = vpop.f32.mrb[0].mxu0
        %v2881 = vadd.f32 0.0, %v2880
        %v2882 = vpop.f32.mrb[0].mxu0
        %2883 = vmatprep.mubr.bf16.mxu0 0
        %2884 = vmatmul.mubr.bf16.gmra.mrb[0].mxu0 %v2707
        %v2885 = vpop.f32.mrb[0].mxu0
        %v2886 = vadd.f32 0.0, %v2885
        %v2887 = vpop.f32.mrb[0].mxu0
        %v2888 = vpop.f32.mrb[0].mxu0
        %v2889 = vadd.f32 0.0, %v2888
        %v2890 = vpop.f32.mrb[0].mxu0
        %2891 = vmatprep.mubr.bf16.mxu0 0
        %2892 = vmatmul.mubr.bf16.gmra.mrb[0].mxu0 %v2708
        %v2893 = vpop.f32.mrb[0].mxu0
        %v2894 = vadd.f32 0.0, %v2893
        %v2895 = vpop.f32.mrb[0].mxu0
        %v2896 = vpop.f32.mrb[0].mxu0
        %v2897 = vadd.f32 0.0, %v2896
        %v2898 = vpop.f32.mrb[0].mxu0
        %2899 = vmatprep.mubr.bf16.mxu0 0
        %2900 = vmatmul.mubr.bf16.gmra.mrb[0].mxu0 %v2709
        %v2901 = vpop.f32.mrb[0].mxu0
        %v2902 = vadd.f32 0.0, %v2901
        %v2903 = vpop.f32.mrb[0].mxu0
        %v2904 = vpop.f32.mrb[0].mxu0
        %v2905 = vadd.f32 0.0, %v2904
        %v2906 = vpop.f32.mrb[0].mxu0
        %2907 = vmatprep.mubr.bf16.mxu0 0
        %2908 = vmatmul.mubr.bf16.gmra.mrb[0].mxu0 %v2710
        %v2909 = vpop.f32.mrb[0].mxu0
        %v2910 = vadd.f32 0.0, %v2909
        %v2911 = vpop.f32.mrb[0].mxu0
        %v2912 = vpop.f32.mrb[0].mxu0
        %v2913 = vadd.f32 0.0, %v2912
        %v2914 = vpop.f32.mrb[0].mxu0
        %2915 = vmatprep.mubr.bf16.mxu0 0
        %2916 = vmatmul.mubr.bf16.gmra.mrb[0].mxu0 %v2711
        %v2917 = vpop.f32.mrb[0].mxu0
        %v2918 = vadd.f32 0.0, %v2917
        %v2919 = vpop.f32.mrb[0].mxu0
        %v2920 = vpop.f32.mrb[0].mxu0
        %v2921 = vadd.f32 0.0, %v2920
        %v2922 = vpop.f32.mrb[0].mxu0
        %2923 = vmatprep.mubr.bf16.mxu0 0
        %2924 = vmatmul.mubr.bf16.gmra.mrb[0].mxu0 %v2712
        %v2925 = vpop.f32.mrb[0].mxu0
        %v2926 = vadd.f32 0.0, %v2925
        %v2927 = vpop.f32.mrb[0].mxu0
        %v2928 = vpop.f32.mrb[0].mxu0
        %v2929 = vadd.f32 0.0, %v2928
        %v2930 = vpop.f32.mrb[0].mxu0
        %2931 = vmatprep.mubr.bf16.mxu0 0
        %2932 = vmatmul.mubr.bf16.gmra.mrb[0].mxu0 %v2713
        %v2933 = vpop.f32.mrb[0].mxu0
        %v2934 = vadd.f32 0.0, %v2933
        %v2935 = vpop.f32.mrb[0].mxu0
        %v2936 = vpop.f32.mrb[0].mxu0
        %v2937 = vadd.f32 0.0, %v2936
        %v2938 = vpop.f32.mrb[0].mxu0
        %2939 = vdwg.mxu0
        %v2940 = vadd.f32 %v2634, %v2814
        %v2941 = vadd.f32 %v2635, %v2817
        %v2942 = vadd.f32 %v2636, %v2822
        %v2943 = vadd.f32 %v2637, %v2825
        %v2944 = vadd.f32 %v2638, %v2830
        %v2945 = vadd.f32 %v2639, %v2833
        %v2946 = vadd.f32 %v2640, %v2838
        %v2947 = vadd.f32 %v2641, %v2841
        %v2948 = vadd.f32 %v2642, %v2846
        %v2949 = vadd.f32 %v2643, %v2849
        %v2950 = vadd.f32 %v2644, %v2854
        %v2951 = vadd.f32 %v2645, %v2857
        %v2952 = vadd.f32 %v2646, %v2862
        %v2953 = vadd.f32 %v2647, %v2865
        %v2954 = vadd.f32 %v2648, %v2870
        %v2955 = vadd.f32 %v2649, %v2873
        %v2956 = vadd.f32 %v2650, %v2878
        %v2957 = vadd.f32 %v2651, %v2881
        %v2958 = vadd.f32 %v2652, %v2886
        %v2959 = vadd.f32 %v2653, %v2889
        %v2960 = vadd.f32 %v2654, %v2894
        %v2961 = vadd.f32 %v2655, %v2897
        %v2962 = vadd.f32 %v2656, %v2902
        %v2963 = vadd.f32 %v2657, %v2905
        %v2964 = vadd.f32 %v2658, %v2910
        %v2965 = vadd.f32 %v2659, %v2913
        %v2966 = vadd.f32 %v2660, %v2918
        %v2967 = vadd.f32 %v2661, %v2921
        %v2968 = vadd.f32 %v2662, %v2926
        %v2969 = vadd.f32 %v2663, %v2929
        %v2970 = vadd.f32 %v2664, %v2934
        %v2971 = vadd.f32 %v2665, %v2937
        %s2972 = scalar_lea.vmem [#allocation2], 48
        %v2973 = vld [vmem:[%s2972] sm:$0xff]
        %v2974 = vld [vmem:[%s2972 + $0x8] sm:$0xff]
        %v2975 = vld [vmem:[%s2972 + $0x18] sm:$0xff]
        %v2976 = vld [vmem:[%s2972 + $0x20] sm:$0xff]
        %v2977 = vld [vmem:[%s2972 + $0x30] sm:$0xff]
        %v2978 = vld [vmem:[%s2972 + $0x38] sm:$0xff]
        %v2979 = vld [vmem:[%s2972 + $0x48] sm:$0xff]
        %v2980 = vld [vmem:[%s2972 + $0x50] sm:$0xff]
        %v2981 = vld [vmem:[%s2972 + $0x60] sm:$0xff]
        %v2982 = vld [vmem:[%s2972 + $0x68] sm:$0xff]
        %v2983 = vld [vmem:[%s2972 + $0x78] sm:$0xff]
        %v2984 = vld [vmem:[%s2972 + $0x80] sm:$0xff]
        %v2985 = vld [vmem:[%s2972 + $0x90] sm:$0xff]
        %v2986 = vld [vmem:[%s2972 + $0x98] sm:$0xff]
        %v2987 = vld [vmem:[%s2972 + $0xa8] sm:$0xff]
        %v2988 = vld [vmem:[%s2972 + $0xb0] sm:$0xff]
        %v2989 = vld [vmem:[%s2972 + $0xc0] sm:$0xff]
        %v2990 = vld [vmem:[%s2972 + $0xc8] sm:$0xff]
        %v2991 = vld [vmem:[%s2972 + $0xd8] sm:$0xff]
        %v2992 = vld [vmem:[%s2972 + $0xe0] sm:$0xff]
        %v2993 = vld [vmem:[%s2972 + $0xf0] sm:$0xff]
        %v2994 = vld [vmem:[%s2972 + $0xf8] sm:$0xff]
        %v2995 = vld [vmem:[%s2972 + $0x108] sm:$0xff]
        %v2996 = vld [vmem:[%s2972 + $0x110] sm:$0xff]
        %v2997 = vld [vmem:[%s2972 + $0x120] sm:$0xff]
        %v2998 = vld [vmem:[%s2972 + $0x128] sm:$0xff]
        %v2999 = vld [vmem:[%s2972 + $0x138] sm:$0xff]
        %v3000 = vld [vmem:[%s2972 + $0x140] sm:$0xff]
        %v3001 = vld [vmem:[%s2972 + $0x150] sm:$0xff]
        %v3002 = vld [vmem:[%s2972 + $0x158] sm:$0xff]
        %v3003 = vld [vmem:[%s2972 + $0x168] sm:$0xff]
        %v3004 = vld [vmem:[%s2972 + $0x170] sm:$0xff]
        %v3005 = vpack.c.bf16 %v2974, %v2973
        %v3006 = vpack.c.bf16 %v2976, %v2975
        %v3007 = vpack.c.bf16 %v2978, %v2977
        %v3008 = vpack.c.bf16 %v2980, %v2979
        %v3009 = vpack.c.bf16 %v2982, %v2981
        %v3010 = vpack.c.bf16 %v2984, %v2983
        %v3011 = vpack.c.bf16 %v2986, %v2985
        %v3012 = vpack.c.bf16 %v2988, %v2987
        %v3013 = vpack.c.bf16 %v2990, %v2989
        %v3014 = vpack.c.bf16 %v2992, %v2991
        %v3015 = vpack.c.bf16 %v2994, %v2993
        %v3016 = vpack.c.bf16 %v2996, %v2995
        %v3017 = vpack.c.bf16 %v2998, %v2997
        %v3018 = vpack.c.bf16 %v3000, %v2999
        %v3019 = vpack.c.bf16 %v3002, %v3001
        %v3020 = vpack.c.bf16 %v3004, %v3003
        %s3021 = scalar_lea.vmem [#allocation8], 384
        %v3022 = vld [vmem:[%s3021] sm:$0xf]
        %v3023 = vld [vmem:[%s3021 + $0x4] sm:$0xf]
        %v3024 = vld [vmem:[%s3021 + $0x8] sm:$0xf]
        %v3025 = vld [vmem:[%s3021 + $0xc] sm:$0xf]
        %v3026 = vld [vmem:[%s3021 + $0x10] sm:$0xf]
        %v3027 = vld [vmem:[%s3021 + $0x14] sm:$0xf]
        %v3028 = vld [vmem:[%s3021 + $0x18] sm:$0xf]
        %v3029 = vld [vmem:[%s3021 + $0x1c] sm:$0xf]
        %v3030 = vld [vmem:[%s3021 + $0x20] sm:$0xf]
        %v3031 = vld [vmem:[%s3021 + $0x24] sm:$0xf]
        %v3032 = vld [vmem:[%s3021 + $0x28] sm:$0xf]
        %v3033 = vld [vmem:[%s3021 + $0x2c] sm:$0xf]
        %v3034 = vld [vmem:[%s3021 + $0x30] sm:$0xf]
        %v3035 = vld [vmem:[%s3021 + $0x34] sm:$0xf]
        %v3036 = vld [vmem:[%s3021 + $0x38] sm:$0xf]
        %v3037 = vld [vmem:[%s3021 + $0x3c] sm:$0xf]
        %v3054 = vunpack.c.l.b16 %v3022
        %v3055 = vunpack.c.l.b16 %v3023
        %v3056 = vunpack.c.l.b16 %v3024
        %v3057 = vunpack.c.l.b16 %v3025
        %v3058 = vunpack.c.l.b16 %v3026
        %v3059 = vunpack.c.l.b16 %v3027
        %v3060 = vunpack.c.l.b16 %v3028
        %v3061 = vunpack.c.l.b16 %v3029
        %v3062 = vunpack.c.l.b16 %v3030
        %v3063 = vunpack.c.l.b16 %v3031
        %v3064 = vunpack.c.l.b16 %v3032
        %v3065 = vunpack.c.l.b16 %v3033
        %v3066 = vunpack.c.l.b16 %v3034
        %v3067 = vunpack.c.l.b16 %v3035
        %v3068 = vunpack.c.l.b16 %v3036
        %v3069 = vunpack.c.l.b16 %v3037
        %v3070 = vpack.c.b16 %v3055, %v3054
        %v3071 = vpack.c.b16 %v3057, %v3056
        %v3072 = vpack.c.b16 %v3059, %v3058
        %v3073 = vpack.c.b16 %v3061, %v3060
        %v3074 = vpack.c.b16 %v3063, %v3062
        %v3075 = vpack.c.b16 %v3065, %v3064
        %v3076 = vpack.c.b16 %v3067, %v3066
        %v3077 = vpack.c.b16 %v3069, %v3068
        %3086 = vmatprep.subr.bf16.mxu0 0
        %3087 = vmatpush1.bf16.msra.mxu0 %v3070
        %3088 = vmatprep.subr.bf16.mxu0 0
        %3089 = vmatpush1.bf16.msra.mxu0 %v3071
        %3090 = vmatprep.subr.bf16.mxu0 0
        %3091 = vmatpush1.bf16.msra.mxu0 %v3072
        %3092 = vmatprep.subr.bf16.mxu0 0
        %3093 = vmatpush1.bf16.msra.mxu0 %v3073
        %3094 = vmatprep.subr.bf16.mxu0 0
        %3095 = vmatpush1.bf16.msra.mxu0 %v3074
        %3096 = vmatprep.subr.bf16.mxu0 0
        %3097 = vmatpush1.bf16.msra.mxu0 %v3075
        %3098 = vmatprep.subr.bf16.mxu0 0
        %3099 = vmatpush1.bf16.msra.mxu0 %v3076
        %3100 = vmatprep.subr.bf16.mxu0 0
        %3101 = vmatpush1.bf16.msra.mxu0 %v3077
        %3102 = vmatprep.subr.bf16.mxu0 0
        %3103 = vmatpush1.bf16.msra.mxu0 0
        %3104 = vmatprep.subr.bf16.mxu0 0
        %3105 = vmatpush1.bf16.msra.mxu0 0
        %3106 = vmatprep.subr.bf16.mxu0 0
        %3107 = vmatpush1.bf16.msra.mxu0 0
        %3108 = vmatprep.subr.bf16.mxu0 0
        %3109 = vmatpush1.bf16.msra.mxu0 0
        %3110 = vmatprep.subr.bf16.mxu0 0
        %3111 = vmatpush1.bf16.msra.mxu0 0
        %3112 = vmatprep.subr.bf16.mxu0 0
        %3113 = vmatpush1.bf16.msra.mxu0 0
        %3114 = vmatprep.subr.bf16.mxu0 0
        %3115 = vmatpush1.bf16.msra.mxu0 0
        %3116 = vmatprep.subr.bf16.mxu0 0
        %3117 = vmatpush1.bf16.msra.mxu0 0
        %3118 = vmatprep.mubr.bf16.mxu0 0
        %3119 = vmatmul.mubr.bf16.gmra.mrb[0].mxu0 %v3005
        %v3120 = vpop.f32.mrb[0].mxu0
        %v3121 = vadd.f32 0.0, %v3120
        %v3122 = vpop.f32.mrb[0].mxu0
        %v3123 = vpop.f32.mrb[0].mxu0
        %v3124 = vadd.f32 0.0, %v3123
        %v3125 = vpop.f32.mrb[0].mxu0
        %3126 = vmatprep.mubr.bf16.mxu0 0
        %3127 = vmatmul.mubr.bf16.gmra.mrb[0].mxu0 %v3006
        %v3128 = vpop.f32.mrb[0].mxu0
        %v3129 = vadd.f32 0.0, %v3128
        %v3130 = vpop.f32.mrb[0].mxu0
        %v3131 = vpop.f32.mrb[0].mxu0
        %v3132 = vadd.f32 0.0, %v3131
        %v3133 = vpop.f32.mrb[0].mxu0
        %3134 = vmatprep.mubr.bf16.mxu0 0
        %3135 = vmatmul.mubr.bf16.gmra.mrb[0].mxu0 %v3007
        %v3136 = vpop.f32.mrb[0].mxu0
        %v3137 = vadd.f32 0.0, %v3136
        %v3138 = vpop.f32.mrb[0].mxu0
        %v3139 = vpop.f32.mrb[0].mxu0
        %v3140 = vadd.f32 0.0, %v3139
        %v3141 = vpop.f32.mrb[0].mxu0
        %3142 = vmatprep.mubr.bf16.mxu0 0
        %3143 = vmatmul.mubr.bf16.gmra.mrb[0].mxu0 %v3008
        %v3144 = vpop.f32.mrb[0].mxu0
        %v3145 = vadd.f32 0.0, %v3144
        %v3146 = vpop.f32.mrb[0].mxu0
        %v3147 = vpop.f32.mrb[0].mxu0
        %v3148 = vadd.f32 0.0, %v3147
        %v3149 = vpop.f32.mrb[0].mxu0
        %3150 = vmatprep.mubr.bf16.mxu0 0
        %3151 = vmatmul.mubr.bf16.gmra.mrb[0].mxu0 %v3009
        %v3152 = vpop.f32.mrb[0].mxu0
        %v3153 = vadd.f32 0.0, %v3152
        %v3154 = vpop.f32.mrb[0].mxu0
        %v3155 = vpop.f32.mrb[0].mxu0
        %v3156 = vadd.f32 0.0, %v3155
        %v3157 = vpop.f32.mrb[0].mxu0
        %3158 = vmatprep.mubr.bf16.mxu0 0
        %3159 = vmatmul.mubr.bf16.gmra.mrb[0].mxu0 %v3010
        %v3160 = vpop.f32.mrb[0].mxu0
        %v3161 = vadd.f32 0.0, %v3160
        %v3162 = vpop.f32.mrb[0].mxu0
        %v3163 = vpop.f32.mrb[0].mxu0
        %v3164 = vadd.f32 0.0, %v3163
        %v3165 = vpop.f32.mrb[0].mxu0
        %3166 = vmatprep.mubr.bf16.mxu0 0
        %3167 = vmatmul.mubr.bf16.gmra.mrb[0].mxu0 %v3011
        %v3168 = vpop.f32.mrb[0].mxu0
        %v3169 = vadd.f32 0.0, %v3168
        %v3170 = vpop.f32.mrb[0].mxu0
        %v3171 = vpop.f32.mrb[0].mxu0
        %v3172 = vadd.f32 0.0, %v3171
        %v3173 = vpop.f32.mrb[0].mxu0
        %3174 = vmatprep.mubr.bf16.mxu0 0
        %3175 = vmatmul.mubr.bf16.gmra.mrb[0].mxu0 %v3012
        %v3176 = vpop.f32.mrb[0].mxu0
        %v3177 = vadd.f32 0.0, %v3176
        %v3178 = vpop.f32.mrb[0].mxu0
        %v3179 = vpop.f32.mrb[0].mxu0
        %v3180 = vadd.f32 0.0, %v3179
        %v3181 = vpop.f32.mrb[0].mxu0
        %3182 = vmatprep.mubr.bf16.mxu0 0
        %3183 = vmatmul.mubr.bf16.gmra.mrb[0].mxu0 %v3013
        %v3184 = vpop.f32.mrb[0].mxu0
        %v3185 = vadd.f32 0.0, %v3184
        %v3186 = vpop.f32.mrb[0].mxu0
        %v3187 = vpop.f32.mrb[0].mxu0
        %v3188 = vadd.f32 0.0, %v3187
        %v3189 = vpop.f32.mrb[0].mxu0
        %3190 = vmatprep.mubr.bf16.mxu0 0
        %3191 = vmatmul.mubr.bf16.gmra.mrb[0].mxu0 %v3014
        %v3192 = vpop.f32.mrb[0].mxu0
        %v3193 = vadd.f32 0.0, %v3192
        %v3194 = vpop.f32.mrb[0].mxu0
        %v3195 = vpop.f32.mrb[0].mxu0
        %v3196 = vadd.f32 0.0, %v3195
        %v3197 = vpop.f32.mrb[0].mxu0
        %3198 = vmatprep.mubr.bf16.mxu0 0
        %3199 = vmatmul.mubr.bf16.gmra.mrb[0].mxu0 %v3015
        %v3200 = vpop.f32.mrb[0].mxu0
        %v3201 = vadd.f32 0.0, %v3200
        %v3202 = vpop.f32.mrb[0].mxu0
        %v3203 = vpop.f32.mrb[0].mxu0
        %v3204 = vadd.f32 0.0, %v3203
        %v3205 = vpop.f32.mrb[0].mxu0
        %3206 = vmatprep.mubr.bf16.mxu0 0
        %3207 = vmatmul.mubr.bf16.gmra.mrb[0].mxu0 %v3016
        %v3208 = vpop.f32.mrb[0].mxu0
        %v3209 = vadd.f32 0.0, %v3208
        %v3210 = vpop.f32.mrb[0].mxu0
        %v3211 = vpop.f32.mrb[0].mxu0
        %v3212 = vadd.f32 0.0, %v3211
        %v3213 = vpop.f32.mrb[0].mxu0
        %3214 = vmatprep.mubr.bf16.mxu0 0
        %3215 = vmatmul.mubr.bf16.gmra.mrb[0].mxu0 %v3017
        %v3216 = vpop.f32.mrb[0].mxu0
        %v3217 = vadd.f32 0.0, %v3216
        %v3218 = vpop.f32.mrb[0].mxu0
        %v3219 = vpop.f32.mrb[0].mxu0
        %v3220 = vadd.f32 0.0, %v3219
        %v3221 = vpop.f32.mrb[0].mxu0
        %3222 = vmatprep.mubr.bf16.mxu0 0
        %3223 = vmatmul.mubr.bf16.gmra.mrb[0].mxu0 %v3018
        %v3224 = vpop.f32.mrb[0].mxu0
        %v3225 = vadd.f32 0.0, %v3224
        %v3226 = vpop.f32.mrb[0].mxu0
        %v3227 = vpop.f32.mrb[0].mxu0
        %v3228 = vadd.f32 0.0, %v3227
        %v3229 = vpop.f32.mrb[0].mxu0
        %3230 = vmatprep.mubr.bf16.mxu0 0
        %3231 = vmatmul.mubr.bf16.gmra.mrb[0].mxu0 %v3019
        %v3232 = vpop.f32.mrb[0].mxu0
        %v3233 = vadd.f32 0.0, %v3232
        %v3234 = vpop.f32.mrb[0].mxu0
        %v3235 = vpop.f32.mrb[0].mxu0
        %v3236 = vadd.f32 0.0, %v3235
        %v3237 = vpop.f32.mrb[0].mxu0
        %3238 = vmatprep.mubr.bf16.mxu0 0
        %3239 = vmatmul.mubr.bf16.gmra.mrb[0].mxu0 %v3020
        %v3240 = vpop.f32.mrb[0].mxu0
        %v3241 = vadd.f32 0.0, %v3240
        %v3242 = vpop.f32.mrb[0].mxu0
        %v3243 = vpop.f32.mrb[0].mxu0
        %v3244 = vadd.f32 0.0, %v3243
        %v3245 = vpop.f32.mrb[0].mxu0
        %3246 = vdwg.mxu0
        %v3247 = vadd.f32 %v2940, %v3121
        %v3248 = vadd.f32 %v2941, %v3124
        %v3249 = vadd.f32 %v2942, %v3129
        %v3250 = vadd.f32 %v2943, %v3132
        %v3251 = vadd.f32 %v2944, %v3137
        %v3252 = vadd.f32 %v2945, %v3140
        %v3253 = vadd.f32 %v2946, %v3145
        %v3254 = vadd.f32 %v2947, %v3148
        %v3255 = vadd.f32 %v2948, %v3153
        %v3256 = vadd.f32 %v2949, %v3156
        %v3257 = vadd.f32 %v2950, %v3161
        %v3258 = vadd.f32 %v2951, %v3164
        %v3259 = vadd.f32 %v2952, %v3169
        %v3260 = vadd.f32 %v2953, %v3172
        %v3261 = vadd.f32 %v2954, %v3177
        %v3262 = vadd.f32 %v2955, %v3180
        %v3263 = vadd.f32 %v2956, %v3185
        %v3264 = vadd.f32 %v2957, %v3188
        %v3265 = vadd.f32 %v2958, %v3193
        %v3266 = vadd.f32 %v2959, %v3196
        %v3267 = vadd.f32 %v2960, %v3201
        %v3268 = vadd.f32 %v2961, %v3204
        %v3269 = vadd.f32 %v2962, %v3209
        %v3270 = vadd.f32 %v2963, %v3212
        %v3271 = vadd.f32 %v2964, %v3217
        %v3272 = vadd.f32 %v2965, %v3220
        %v3273 = vadd.f32 %v2966, %v3225
        %v3274 = vadd.f32 %v2967, %v3228
        %v3275 = vadd.f32 %v2968, %v3233
        %v3276 = vadd.f32 %v2969, %v3236
        %v3277 = vadd.f32 %v2970, %v3241
        %v3278 = vadd.f32 %v2971, %v3244
        %v3279 = vld [vmem:[%s2972 + $0x1] sm:$0xff]
        %v3280 = vld [vmem:[%s2972 + $0x9] sm:$0xff]
        %v3281 = vld [vmem:[%s2972 + $0x19] sm:$0xff]
        %v3282 = vld [vmem:[%s2972 + $0x21] sm:$0xff]
        %v3283 = vld [vmem:[%s2972 + $0x31] sm:$0xff]
        %v3284 = vld [vmem:[%s2972 + $0x39] sm:$0xff]
        %v3285 = vld [vmem:[%s2972 + $0x49] sm:$0xff]
        %v3286 = vld [vmem:[%s2972 + $0x51] sm:$0xff]
        %v3287 = vld [vmem:[%s2972 + $0x61] sm:$0xff]
        %v3288 = vld [vmem:[%s2972 + $0x69] sm:$0xff]
        %v3289 = vld [vmem:[%s2972 + $0x79] sm:$0xff]
        %v3290 = vld [vmem:[%s2972 + $0x81] sm:$0xff]
        %v3291 = vld [vmem:[%s2972 + $0x91] sm:$0xff]
        %v3292 = vld [vmem:[%s2972 + $0x99] sm:$0xff]
        %v3293 = vld [vmem:[%s2972 + $0xa9] sm:$0xff]
        %v3294 = vld [vmem:[%s2972 + $0xb1] sm:$0xff]
        %v3295 = vld [vmem:[%s2972 + $0xc1] sm:$0xff]
        %v3296 = vld [vmem:[%s2972 + $0xc9] sm:$0xff]
        %v3297 = vld [vmem:[%s2972 + $0xd9] sm:$0xff]
        %v3298 = vld [vmem:[%s2972 + $0xe1] sm:$0xff]
        %v3299 = vld [vmem:[%s2972 + $0xf1] sm:$0xff]
        %v3300 = vld [vmem:[%s2972 + $0xf9] sm:$0xff]
        %v3301 = vld [vmem:[%s2972 + $0x109] sm:$0xff]
        %v3302 = vld [vmem:[%s2972 + $0x111] sm:$0xff]
        %v3303 = vld [vmem:[%s2972 + $0x121] sm:$0xff]
        %v3304 = vld [vmem:[%s2972 + $0x129] sm:$0xff]
        %v3305 = vld [vmem:[%s2972 + $0x139] sm:$0xff]
        %v3306 = vld [vmem:[%s2972 + $0x141] sm:$0xff]
        %v3307 = vld [vmem:[%s2972 + $0x151] sm:$0xff]
        %v3308 = vld [vmem:[%s2972 + $0x159] sm:$0xff]
        %v3309 = vld [vmem:[%s2972 + $0x169] sm:$0xff]
        %v3310 = vld [vmem:[%s2972 + $0x171] sm:$0xff]
        %v3311 = vpack.c.bf16 %v3280, %v3279
        %v3312 = vpack.c.bf16 %v3282, %v3281
        %v3313 = vpack.c.bf16 %v3284, %v3283
        %v3314 = vpack.c.bf16 %v3286, %v3285
        %v3315 = vpack.c.bf16 %v3288, %v3287
        %v3316 = vpack.c.bf16 %v3290, %v3289
        %v3317 = vpack.c.bf16 %v3292, %v3291
        %v3318 = vpack.c.bf16 %v3294, %v3293
        %v3319 = vpack.c.bf16 %v3296, %v3295
        %v3320 = vpack.c.bf16 %v3298, %v3297
        %v3321 = vpack.c.bf16 %v3300, %v3299
        %v3322 = vpack.c.bf16 %v3302, %v3301
        %v3323 = vpack.c.bf16 %v3304, %v3303
        %v3324 = vpack.c.bf16 %v3306, %v3305
        %v3325 = vpack.c.bf16 %v3308, %v3307
        %v3326 = vpack.c.bf16 %v3310, %v3309
        %s3327 = scalar_lea.vmem [#allocation8], 448
        %v3328 = vld [vmem:[%s3327] sm:$0xf]
        %v3329 = vld [vmem:[%s3327 + $0x4] sm:$0xf]
        %v3330 = vld [vmem:[%s3327 + $0x8] sm:$0xf]
        %v3331 = vld [vmem:[%s3327 + $0xc] sm:$0xf]
        %v3332 = vld [vmem:[%s3327 + $0x10] sm:$0xf]
        %v3333 = vld [vmem:[%s3327 + $0x14] sm:$0xf]
        %v3334 = vld [vmem:[%s3327 + $0x18] sm:$0xf]
        %v3335 = vld [vmem:[%s3327 + $0x1c] sm:$0xf]
        %v3336 = vld [vmem:[%s3327 + $0x20] sm:$0xf]
        %v3337 = vld [vmem:[%s3327 + $0x24] sm:$0xf]
        %v3338 = vld [vmem:[%s3327 + $0x28] sm:$0xf]
        %v3339 = vld [vmem:[%s3327 + $0x2c] sm:$0xf]
        %v3340 = vld [vmem:[%s3327 + $0x30] sm:$0xf]
        %v3341 = vld [vmem:[%s3327 + $0x34] sm:$0xf]
        %v3342 = vld [vmem:[%s3327 + $0x38] sm:$0xf]
        %v3343 = vld [vmem:[%s3327 + $0x3c] sm:$0xf]
        %v3360 = vunpack.c.l.b16 %v3328
        %v3361 = vunpack.c.l.b16 %v3329
        %v3362 = vunpack.c.l.b16 %v3330
        %v3363 = vunpack.c.l.b16 %v3331
        %v3364 = vunpack.c.l.b16 %v3332
        %v3365 = vunpack.c.l.b16 %v3333
        %v3366 = vunpack.c.l.b16 %v3334
        %v3367 = vunpack.c.l.b16 %v3335
        %v3368 = vunpack.c.l.b16 %v3336
        %v3369 = vunpack.c.l.b16 %v3337
        %v3370 = vunpack.c.l.b16 %v3338
        %v3371 = vunpack.c.l.b16 %v3339
        %v3372 = vunpack.c.l.b16 %v3340
        %v3373 = vunpack.c.l.b16 %v3341
        %v3374 = vunpack.c.l.b16 %v3342
        %v3375 = vunpack.c.l.b16 %v3343
        %v3376 = vpack.c.b16 %v3361, %v3360
        %v3377 = vpack.c.b16 %v3363, %v3362
        %v3378 = vpack.c.b16 %v3365, %v3364
        %v3379 = vpack.c.b16 %v3367, %v3366
        %v3380 = vpack.c.b16 %v3369, %v3368
        %v3381 = vpack.c.b16 %v3371, %v3370
        %v3382 = vpack.c.b16 %v3373, %v3372
        %v3383 = vpack.c.b16 %v3375, %v3374
        %3392 = vmatprep.subr.bf16.mxu0 0
        %3393 = vmatpush1.bf16.msra.mxu0 %v3376
        %3394 = vmatprep.subr.bf16.mxu0 0
        %3395 = vmatpush1.bf16.msra.mxu0 %v3377
        %3396 = vmatprep.subr.bf16.mxu0 0
        %3397 = vmatpush1.bf16.msra.mxu0 %v3378
        %3398 = vmatprep.subr.bf16.mxu0 0
        %3399 = vmatpush1.bf16.msra.mxu0 %v3379
        %3400 = vmatprep.subr.bf16.mxu0 0
        %3401 = vmatpush1.bf16.msra.mxu0 %v3380
        %3402 = vmatprep.subr.bf16.mxu0 0
        %3403 = vmatpush1.bf16.msra.mxu0 %v3381
        %3404 = vmatprep.subr.bf16.mxu0 0
        %3405 = vmatpush1.bf16.msra.mxu0 %v3382
        %3406 = vmatprep.subr.bf16.mxu0 0
        %3407 = vmatpush1.bf16.msra.mxu0 %v3383
        %3408 = vmatprep.subr.bf16.mxu0 0
        %3409 = vmatpush1.bf16.msra.mxu0 0
        %3410 = vmatprep.subr.bf16.mxu0 0
        %3411 = vmatpush1.bf16.msra.mxu0 0
        %3412 = vmatprep.subr.bf16.mxu0 0
        %3413 = vmatpush1.bf16.msra.mxu0 0
        %3414 = vmatprep.subr.bf16.mxu0 0
        %3415 = vmatpush1.bf16.msra.mxu0 0
        %3416 = vmatprep.subr.bf16.mxu0 0
        %3417 = vmatpush1.bf16.msra.mxu0 0
        %3418 = vmatprep.subr.bf16.mxu0 0
        %3419 = vmatpush1.bf16.msra.mxu0 0
        %3420 = vmatprep.subr.bf16.mxu0 0
        %3421 = vmatpush1.bf16.msra.mxu0 0
        %3422 = vmatprep.subr.bf16.mxu0 0
        %3423 = vmatpush1.bf16.msra.mxu0 0
        %3424 = vmatprep.mubr.bf16.mxu0 0
        %3425 = vmatmul.mubr.bf16.gmra.mrb[0].mxu0 %v3311
        %v3426 = vpop.f32.mrb[0].mxu0
        %v3427 = vadd.f32 0.0, %v3426
        %v3428 = vpop.f32.mrb[0].mxu0
        %v3429 = vpop.f32.mrb[0].mxu0
        %v3430 = vadd.f32 0.0, %v3429
        %v3431 = vpop.f32.mrb[0].mxu0
        %3432 = vmatprep.mubr.bf16.mxu0 0
        %3433 = vmatmul.mubr.bf16.gmra.mrb[0].mxu0 %v3312
        %v3434 = vpop.f32.mrb[0].mxu0
        %v3435 = vadd.f32 0.0, %v3434
        %v3436 = vpop.f32.mrb[0].mxu0
        %v3437 = vpop.f32.mrb[0].mxu0
        %v3438 = vadd.f32 0.0, %v3437
        %v3439 = vpop.f32.mrb[0].mxu0
        %3440 = vmatprep.mubr.bf16.mxu0 0
        %3441 = vmatmul.mubr.bf16.gmra.mrb[0].mxu0 %v3313
        %v3442 = vpop.f32.mrb[0].mxu0
        %v3443 = vadd.f32 0.0, %v3442
        %v3444 = vpop.f32.mrb[0].mxu0
        %v3445 = vpop.f32.mrb[0].mxu0
        %v3446 = vadd.f32 0.0, %v3445
        %v3447 = vpop.f32.mrb[0].mxu0
        %3448 = vmatprep.mubr.bf16.mxu0 0
        %3449 = vmatmul.mubr.bf16.gmra.mrb[0].mxu0 %v3314
        %v3450 = vpop.f32.mrb[0].mxu0
        %v3451 = vadd.f32 0.0, %v3450
        %v3452 = vpop.f32.mrb[0].mxu0
        %v3453 = vpop.f32.mrb[0].mxu0
        %v3454 = vadd.f32 0.0, %v3453
        %v3455 = vpop.f32.mrb[0].mxu0
        %3456 = vmatprep.mubr.bf16.mxu0 0
        %3457 = vmatmul.mubr.bf16.gmra.mrb[0].mxu0 %v3315
        %v3458 = vpop.f32.mrb[0].mxu0
        %v3459 = vadd.f32 0.0, %v3458
        %v3460 = vpop.f32.mrb[0].mxu0
        %v3461 = vpop.f32.mrb[0].mxu0
        %v3462 = vadd.f32 0.0, %v3461
        %v3463 = vpop.f32.mrb[0].mxu0
        %3464 = vmatprep.mubr.bf16.mxu0 0
        %3465 = vmatmul.mubr.bf16.gmra.mrb[0].mxu0 %v3316
        %v3466 = vpop.f32.mrb[0].mxu0
        %v3467 = vadd.f32 0.0, %v3466
        %v3468 = vpop.f32.mrb[0].mxu0
        %v3469 = vpop.f32.mrb[0].mxu0
        %v3470 = vadd.f32 0.0, %v3469
        %v3471 = vpop.f32.mrb[0].mxu0
        %3472 = vmatprep.mubr.bf16.mxu0 0
        %3473 = vmatmul.mubr.bf16.gmra.mrb[0].mxu0 %v3317
        %v3474 = vpop.f32.mrb[0].mxu0
        %v3475 = vadd.f32 0.0, %v3474
        %v3476 = vpop.f32.mrb[0].mxu0
        %v3477 = vpop.f32.mrb[0].mxu0
        %v3478 = vadd.f32 0.0, %v3477
        %v3479 = vpop.f32.mrb[0].mxu0
        %3480 = vmatprep.mubr.bf16.mxu0 0
        %3481 = vmatmul.mubr.bf16.gmra.mrb[0].mxu0 %v3318
        %v3482 = vpop.f32.mrb[0].mxu0
        %v3483 = vadd.f32 0.0, %v3482
        %v3484 = vpop.f32.mrb[0].mxu0
        %v3485 = vpop.f32.mrb[0].mxu0
        %v3486 = vadd.f32 0.0, %v3485
        %v3487 = vpop.f32.mrb[0].mxu0
        %3488 = vmatprep.mubr.bf16.mxu0 0
        %3489 = vmatmul.mubr.bf16.gmra.mrb[0].mxu0 %v3319
        %v3490 = vpop.f32.mrb[0].mxu0
        %v3491 = vadd.f32 0.0, %v3490
        %v3492 = vpop.f32.mrb[0].mxu0
        %v3493 = vpop.f32.mrb[0].mxu0
        %v3494 = vadd.f32 0.0, %v3493
        %v3495 = vpop.f32.mrb[0].mxu0
        %3496 = vmatprep.mubr.bf16.mxu0 0
        %3497 = vmatmul.mubr.bf16.gmra.mrb[0].mxu0 %v3320
        %v3498 = vpop.f32.mrb[0].mxu0
        %v3499 = vadd.f32 0.0, %v3498
        %v3500 = vpop.f32.mrb[0].mxu0
        %v3501 = vpop.f32.mrb[0].mxu0
        %v3502 = vadd.f32 0.0, %v3501
        %v3503 = vpop.f32.mrb[0].mxu0
        %3504 = vmatprep.mubr.bf16.mxu0 0
        %3505 = vmatmul.mubr.bf16.gmra.mrb[0].mxu0 %v3321
        %v3506 = vpop.f32.mrb[0].mxu0
        %v3507 = vadd.f32 0.0, %v3506
        %v3508 = vpop.f32.mrb[0].mxu0
        %v3509 = vpop.f32.mrb[0].mxu0
        %v3510 = vadd.f32 0.0, %v3509
        %v3511 = vpop.f32.mrb[0].mxu0
        %3512 = vmatprep.mubr.bf16.mxu0 0
        %3513 = vmatmul.mubr.bf16.gmra.mrb[0].mxu0 %v3322
        %v3514 = vpop.f32.mrb[0].mxu0
        %v3515 = vadd.f32 0.0, %v3514
        %v3516 = vpop.f32.mrb[0].mxu0
        %v3517 = vpop.f32.mrb[0].mxu0
        %v3518 = vadd.f32 0.0, %v3517
        %v3519 = vpop.f32.mrb[0].mxu0
        %3520 = vmatprep.mubr.bf16.mxu0 0
        %3521 = vmatmul.mubr.bf16.gmra.mrb[0].mxu0 %v3323
        %v3522 = vpop.f32.mrb[0].mxu0
        %v3523 = vadd.f32 0.0, %v3522
        %v3524 = vpop.f32.mrb[0].mxu0
        %v3525 = vpop.f32.mrb[0].mxu0
        %v3526 = vadd.f32 0.0, %v3525
        %v3527 = vpop.f32.mrb[0].mxu0
        %3528 = vmatprep.mubr.bf16.mxu0 0
        %3529 = vmatmul.mubr.bf16.gmra.mrb[0].mxu0 %v3324
        %v3530 = vpop.f32.mrb[0].mxu0
        %v3531 = vadd.f32 0.0, %v3530
        %v3532 = vpop.f32.mrb[0].mxu0
        %v3533 = vpop.f32.mrb[0].mxu0
        %v3534 = vadd.f32 0.0, %v3533
        %v3535 = vpop.f32.mrb[0].mxu0
        %3536 = vmatprep.mubr.bf16.mxu0 0
        %3537 = vmatmul.mubr.bf16.gmra.mrb[0].mxu0 %v3325
        %v3538 = vpop.f32.mrb[0].mxu0
        %v3539 = vadd.f32 0.0, %v3538
        %v3540 = vpop.f32.mrb[0].mxu0
        %v3541 = vpop.f32.mrb[0].mxu0
        %v3542 = vadd.f32 0.0, %v3541
        %v3543 = vpop.f32.mrb[0].mxu0
        %3544 = vmatprep.mubr.bf16.mxu0 0
        %3545 = vmatmul.mubr.bf16.gmra.mrb[0].mxu0 %v3326
        %v3546 = vpop.f32.mrb[0].mxu0
        %v3547 = vadd.f32 0.0, %v3546
        %v3548 = vpop.f32.mrb[0].mxu0
        %v3549 = vpop.f32.mrb[0].mxu0
        %v3550 = vadd.f32 0.0, %v3549
        %v3551 = vpop.f32.mrb[0].mxu0
        %3552 = vdwg.mxu0
        %v3553 = vadd.f32 %v3247, %v3427
        %v3554 = vadd.f32 %v3248, %v3430
        %v3555 = vadd.f32 %v3249, %v3435
        %v3556 = vadd.f32 %v3250, %v3438
        %v3557 = vadd.f32 %v3251, %v3443
        %v3558 = vadd.f32 %v3252, %v3446
        %v3559 = vadd.f32 %v3253, %v3451
        %v3560 = vadd.f32 %v3254, %v3454
        %v3561 = vadd.f32 %v3255, %v3459
        %v3562 = vadd.f32 %v3256, %v3462
        %v3563 = vadd.f32 %v3257, %v3467
        %v3564 = vadd.f32 %v3258, %v3470
        %v3565 = vadd.f32 %v3259, %v3475
        %v3566 = vadd.f32 %v3260, %v3478
        %v3567 = vadd.f32 %v3261, %v3483
        %v3568 = vadd.f32 %v3262, %v3486
        %v3569 = vadd.f32 %v3263, %v3491
        %v3570 = vadd.f32 %v3264, %v3494
        %v3571 = vadd.f32 %v3265, %v3499
        %v3572 = vadd.f32 %v3266, %v3502
        %v3573 = vadd.f32 %v3267, %v3507
        %v3574 = vadd.f32 %v3268, %v3510
        %v3575 = vadd.f32 %v3269, %v3515
        %v3576 = vadd.f32 %v3270, %v3518
        %v3577 = vadd.f32 %v3271, %v3523
        %v3578 = vadd.f32 %v3272, %v3526
        %v3579 = vadd.f32 %v3273, %v3531
        %v3580 = vadd.f32 %v3274, %v3534
        %v3581 = vadd.f32 %v3275, %v3539
        %v3582 = vadd.f32 %v3276, %v3542
        %v3583 = vadd.f32 %v3277, %v3547
        %v3584 = vadd.f32 %v3278, %v3550
        %v3585 = vld [vmem:[%s2972 + $0x2] sm:$0xff]
        %v3586 = vld [vmem:[%s2972 + $0xa] sm:$0xff]
        %v3587 = vld [vmem:[%s2972 + $0x1a] sm:$0xff]
        %v3588 = vld [vmem:[%s2972 + $0x22] sm:$0xff]
        %v3589 = vld [vmem:[%s2972 + $0x32] sm:$0xff]
        %v3590 = vld [vmem:[%s2972 + $0x3a] sm:$0xff]
        %v3591 = vld [vmem:[%s2972 + $0x4a] sm:$0xff]
        %v3592 = vld [vmem:[%s2972 + $0x52] sm:$0xff]
        %v3593 = vld [vmem:[%s2972 + $0x62] sm:$0xff]
        %v3594 = vld [vmem:[%s2972 + $0x6a] sm:$0xff]
        %v3595 = vld [vmem:[%s2972 + $0x7a] sm:$0xff]
        %v3596 = vld [vmem:[%s2972 + $0x82] sm:$0xff]
        %v3597 = vld [vmem:[%s2972 + $0x92] sm:$0xff]
        %v3598 = vld [vmem:[%s2972 + $0x9a] sm:$0xff]
        %v3599 = vld [vmem:[%s2972 + $0xaa] sm:$0xff]
        %v3600 = vld [vmem:[%s2972 + $0xb2] sm:$0xff]
        %v3601 = vld [vmem:[%s2972 + $0xc2] sm:$0xff]
        %v3602 = vld [vmem:[%s2972 + $0xca] sm:$0xff]
        %v3603 = vld [vmem:[%s2972 + $0xda] sm:$0xff]
        %v3604 = vld [vmem:[%s2972 + $0xe2] sm:$0xff]
        %v3605 = vld [vmem:[%s2972 + $0xf2] sm:$0xff]
        %v3606 = vld [vmem:[%s2972 + $0xfa] sm:$0xff]
        %v3607 = vld [vmem:[%s2972 + $0x10a] sm:$0xff]
        %v3608 = vld [vmem:[%s2972 + $0x112] sm:$0xff]
        %v3609 = vld [vmem:[%s2972 + $0x122] sm:$0xff]
        %v3610 = vld [vmem:[%s2972 + $0x12a] sm:$0xff]
        %v3611 = vld [vmem:[%s2972 + $0x13a] sm:$0xff]
        %v3612 = vld [vmem:[%s2972 + $0x142] sm:$0xff]
        %v3613 = vld [vmem:[%s2972 + $0x152] sm:$0xff]
        %v3614 = vld [vmem:[%s2972 + $0x15a] sm:$0xff]
        %v3615 = vld [vmem:[%s2972 + $0x16a] sm:$0xff]
        %v3616 = vld [vmem:[%s2972 + $0x172] sm:$0xff]
        %v3617 = vpack.c.bf16 %v3586, %v3585
        %v3618 = vpack.c.bf16 %v3588, %v3587
        %v3619 = vpack.c.bf16 %v3590, %v3589
        %v3620 = vpack.c.bf16 %v3592, %v3591
        %v3621 = vpack.c.bf16 %v3594, %v3593
        %v3622 = vpack.c.bf16 %v3596, %v3595
        %v3623 = vpack.c.bf16 %v3598, %v3597
        %v3624 = vpack.c.bf16 %v3600, %v3599
        %v3625 = vpack.c.bf16 %v3602, %v3601
        %v3626 = vpack.c.bf16 %v3604, %v3603
        %v3627 = vpack.c.bf16 %v3606, %v3605
        %v3628 = vpack.c.bf16 %v3608, %v3607
        %v3629 = vpack.c.bf16 %v3610, %v3609
        %v3630 = vpack.c.bf16 %v3612, %v3611
        %v3631 = vpack.c.bf16 %v3614, %v3613
        %v3632 = vpack.c.bf16 %v3616, %v3615
        %s3633 = scalar_lea.vmem [#allocation8], 512
        %v3634 = vld [vmem:[%s3633] sm:$0xf]
        %v3635 = vld [vmem:[%s3633 + $0x4] sm:$0xf]
        %v3636 = vld [vmem:[%s3633 + $0x8] sm:$0xf]
        %v3637 = vld [vmem:[%s3633 + $0xc] sm:$0xf]
        %v3638 = vld [vmem:[%s3633 + $0x10] sm:$0xf]
        %v3639 = vld [vmem:[%s3633 + $0x14] sm:$0xf]
        %v3640 = vld [vmem:[%s3633 + $0x18] sm:$0xf]
        %v3641 = vld [vmem:[%s3633 + $0x1c] sm:$0xf]
        %v3642 = vld [vmem:[%s3633 + $0x20] sm:$0xf]
        %v3643 = vld [vmem:[%s3633 + $0x24] sm:$0xf]
        %v3644 = vld [vmem:[%s3633 + $0x28] sm:$0xf]
        %v3645 = vld [vmem:[%s3633 + $0x2c] sm:$0xf]
        %v3646 = vld [vmem:[%s3633 + $0x30] sm:$0xf]
        %v3647 = vld [vmem:[%s3633 + $0x34] sm:$0xf]
        %v3648 = vld [vmem:[%s3633 + $0x38] sm:$0xf]
        %v3649 = vld [vmem:[%s3633 + $0x3c] sm:$0xf]
        %v3666 = vunpack.c.l.b16 %v3634
        %v3667 = vunpack.c.l.b16 %v3635
        %v3668 = vunpack.c.l.b16 %v3636
        %v3669 = vunpack.c.l.b16 %v3637
        %v3670 = vunpack.c.l.b16 %v3638
        %v3671 = vunpack.c.l.b16 %v3639
        %v3672 = vunpack.c.l.b16 %v3640
        %v3673 = vunpack.c.l.b16 %v3641
        %v3674 = vunpack.c.l.b16 %v3642
        %v3675 = vunpack.c.l.b16 %v3643
        %v3676 = vunpack.c.l.b16 %v3644
        %v3677 = vunpack.c.l.b16 %v3645
        %v3678 = vunpack.c.l.b16 %v3646
        %v3679 = vunpack.c.l.b16 %v3647
        %v3680 = vunpack.c.l.b16 %v3648
        %v3681 = vunpack.c.l.b16 %v3649
        %v3682 = vpack.c.b16 %v3667, %v3666
        %v3683 = vpack.c.b16 %v3669, %v3668
        %v3684 = vpack.c.b16 %v3671, %v3670
        %v3685 = vpack.c.b16 %v3673, %v3672
        %v3686 = vpack.c.b16 %v3675, %v3674
        %v3687 = vpack.c.b16 %v3677, %v3676
        %v3688 = vpack.c.b16 %v3679, %v3678
        %v3689 = vpack.c.b16 %v3681, %v3680
        %3698 = vmatprep.subr.bf16.mxu0 0
        %3699 = vmatpush1.bf16.msra.mxu0 %v3682
        %3700 = vmatprep.subr.bf16.mxu0 0
        %3701 = vmatpush1.bf16.msra.mxu0 %v3683
        %3702 = vmatprep.subr.bf16.mxu0 0
        %3703 = vmatpush1.bf16.msra.mxu0 %v3684
        %3704 = vmatprep.subr.bf16.mxu0 0
        %3705 = vmatpush1.bf16.msra.mxu0 %v3685
        %3706 = vmatprep.subr.bf16.mxu0 0
        %3707 = vmatpush1.bf16.msra.mxu0 %v3686
        %3708 = vmatprep.subr.bf16.mxu0 0
        %3709 = vmatpush1.bf16.msra.mxu0 %v3687
        %3710 = vmatprep.subr.bf16.mxu0 0
        %3711 = vmatpush1.bf16.msra.mxu0 %v3688
        %3712 = vmatprep.subr.bf16.mxu0 0
        %3713 = vmatpush1.bf16.msra.mxu0 %v3689
        %3714 = vmatprep.subr.bf16.mxu0 0
        %3715 = vmatpush1.bf16.msra.mxu0 0
        %3716 = vmatprep.subr.bf16.mxu0 0
        %3717 = vmatpush1.bf16.msra.mxu0 0
        %3718 = vmatprep.subr.bf16.mxu0 0
        %3719 = vmatpush1.bf16.msra.mxu0 0
        %3720 = vmatprep.subr.bf16.mxu0 0
        %3721 = vmatpush1.bf16.msra.mxu0 0
        %3722 = vmatprep.subr.bf16.mxu0 0
        %3723 = vmatpush1.bf16.msra.mxu0 0
        %3724 = vmatprep.subr.bf16.mxu0 0
        %3725 = vmatpush1.bf16.msra.mxu0 0
        %3726 = vmatprep.subr.bf16.mxu0 0
        %3727 = vmatpush1.bf16.msra.mxu0 0
        %3728 = vmatprep.subr.bf16.mxu0 0
        %3729 = vmatpush1.bf16.msra.mxu0 0
        %3730 = vmatprep.mubr.bf16.mxu0 0
        %3731 = vmatmul.mubr.bf16.gmra.mrb[0].mxu0 %v3617
        %v3732 = vpop.f32.mrb[0].mxu0
        %v3733 = vadd.f32 0.0, %v3732
        %v3734 = vpop.f32.mrb[0].mxu0
        %v3735 = vpop.f32.mrb[0].mxu0
        %v3736 = vadd.f32 0.0, %v3735
        %v3737 = vpop.f32.mrb[0].mxu0
        %3738 = vmatprep.mubr.bf16.mxu0 0
        %3739 = vmatmul.mubr.bf16.gmra.mrb[0].mxu0 %v3618
        %v3740 = vpop.f32.mrb[0].mxu0
        %v3741 = vadd.f32 0.0, %v3740
        %v3742 = vpop.f32.mrb[0].mxu0
        %v3743 = vpop.f32.mrb[0].mxu0
        %v3744 = vadd.f32 0.0, %v3743
        %v3745 = vpop.f32.mrb[0].mxu0
        %3746 = vmatprep.mubr.bf16.mxu0 0
        %3747 = vmatmul.mubr.bf16.gmra.mrb[0].mxu0 %v3619
        %v3748 = vpop.f32.mrb[0].mxu0
        %v3749 = vadd.f32 0.0, %v3748
        %v3750 = vpop.f32.mrb[0].mxu0
        %v3751 = vpop.f32.mrb[0].mxu0
        %v3752 = vadd.f32 0.0, %v3751
        %v3753 = vpop.f32.mrb[0].mxu0
        %3754 = vmatprep.mubr.bf16.mxu0 0
        %3755 = vmatmul.mubr.bf16.gmra.mrb[0].mxu0 %v3620
        %v3756 = vpop.f32.mrb[0].mxu0
        %v3757 = vadd.f32 0.0, %v3756
        %v3758 = vpop.f32.mrb[0].mxu0
        %v3759 = vpop.f32.mrb[0].mxu0
        %v3760 = vadd.f32 0.0, %v3759
        %v3761 = vpop.f32.mrb[0].mxu0
        %3762 = vmatprep.mubr.bf16.mxu0 0
        %3763 = vmatmul.mubr.bf16.gmra.mrb[0].mxu0 %v3621
        %v3764 = vpop.f32.mrb[0].mxu0
        %v3765 = vadd.f32 0.0, %v3764
        %v3766 = vpop.f32.mrb[0].mxu0
        %v3767 = vpop.f32.mrb[0].mxu0
        %v3768 = vadd.f32 0.0, %v3767
        %v3769 = vpop.f32.mrb[0].mxu0
        %3770 = vmatprep.mubr.bf16.mxu0 0
        %3771 = vmatmul.mubr.bf16.gmra.mrb[0].mxu0 %v3622
        %v3772 = vpop.f32.mrb[0].mxu0
        %v3773 = vadd.f32 0.0, %v3772
        %v3774 = vpop.f32.mrb[0].mxu0
        %v3775 = vpop.f32.mrb[0].mxu0
        %v3776 = vadd.f32 0.0, %v3775
        %v3777 = vpop.f32.mrb[0].mxu0
        %3778 = vmatprep.mubr.bf16.mxu0 0
        %3779 = vmatmul.mubr.bf16.gmra.mrb[0].mxu0 %v3623
        %v3780 = vpop.f32.mrb[0].mxu0
        %v3781 = vadd.f32 0.0, %v3780
        %v3782 = vpop.f32.mrb[0].mxu0
        %v3783 = vpop.f32.mrb[0].mxu0
        %v3784 = vadd.f32 0.0, %v3783
        %v3785 = vpop.f32.mrb[0].mxu0
        %3786 = vmatprep.mubr.bf16.mxu0 0
        %3787 = vmatmul.mubr.bf16.gmra.mrb[0].mxu0 %v3624
        %v3788 = vpop.f32.mrb[0].mxu0
        %v3789 = vadd.f32 0.0, %v3788
        %v3790 = vpop.f32.mrb[0].mxu0
        %v3791 = vpop.f32.mrb[0].mxu0
        %v3792 = vadd.f32 0.0, %v3791
        %v3793 = vpop.f32.mrb[0].mxu0
        %3794 = vmatprep.mubr.bf16.mxu0 0
        %3795 = vmatmul.mubr.bf16.gmra.mrb[0].mxu0 %v3625
        %v3796 = vpop.f32.mrb[0].mxu0
        %v3797 = vadd.f32 0.0, %v3796
        %v3798 = vpop.f32.mrb[0].mxu0
        %v3799 = vpop.f32.mrb[0].mxu0
        %v3800 = vadd.f32 0.0, %v3799
        %v3801 = vpop.f32.mrb[0].mxu0
        %3802 = vmatprep.mubr.bf16.mxu0 0
        %3803 = vmatmul.mubr.bf16.gmra.mrb[0].mxu0 %v3626
        %v3804 = vpop.f32.mrb[0].mxu0
        %v3805 = vadd.f32 0.0, %v3804
        %v3806 = vpop.f32.mrb[0].mxu0
        %v3807 = vpop.f32.mrb[0].mxu0
        %v3808 = vadd.f32 0.0, %v3807
        %v3809 = vpop.f32.mrb[0].mxu0
        %3810 = vmatprep.mubr.bf16.mxu0 0
        %3811 = vmatmul.mubr.bf16.gmra.mrb[0].mxu0 %v3627
        %v3812 = vpop.f32.mrb[0].mxu0
        %v3813 = vadd.f32 0.0, %v3812
        %v3814 = vpop.f32.mrb[0].mxu0
        %v3815 = vpop.f32.mrb[0].mxu0
        %v3816 = vadd.f32 0.0, %v3815
        %v3817 = vpop.f32.mrb[0].mxu0
        %3818 = vmatprep.mubr.bf16.mxu0 0
        %3819 = vmatmul.mubr.bf16.gmra.mrb[0].mxu0 %v3628
        %v3820 = vpop.f32.mrb[0].mxu0
        %v3821 = vadd.f32 0.0, %v3820
        %v3822 = vpop.f32.mrb[0].mxu0
        %v3823 = vpop.f32.mrb[0].mxu0
        %v3824 = vadd.f32 0.0, %v3823
        %v3825 = vpop.f32.mrb[0].mxu0
        %3826 = vmatprep.mubr.bf16.mxu0 0
        %3827 = vmatmul.mubr.bf16.gmra.mrb[0].mxu0 %v3629
        %v3828 = vpop.f32.mrb[0].mxu0
        %v3829 = vadd.f32 0.0, %v3828
        %v3830 = vpop.f32.mrb[0].mxu0
        %v3831 = vpop.f32.mrb[0].mxu0
        %v3832 = vadd.f32 0.0, %v3831
        %v3833 = vpop.f32.mrb[0].mxu0
        %3834 = vmatprep.mubr.bf16.mxu0 0
        %3835 = vmatmul.mubr.bf16.gmra.mrb[0].mxu0 %v3630
        %v3836 = vpop.f32.mrb[0].mxu0
        %v3837 = vadd.f32 0.0, %v3836
        %v3838 = vpop.f32.mrb[0].mxu0
        %v3839 = vpop.f32.mrb[0].mxu0
        %v3840 = vadd.f32 0.0, %v3839
        %v3841 = vpop.f32.mrb[0].mxu0
        %3842 = vmatprep.mubr.bf16.mxu0 0
        %3843 = vmatmul.mubr.bf16.gmra.mrb[0].mxu0 %v3631
        %v3844 = vpop.f32.mrb[0].mxu0
        %v3845 = vadd.f32 0.0, %v3844
        %v3846 = vpop.f32.mrb[0].mxu0
        %v3847 = vpop.f32.mrb[0].mxu0
        %v3848 = vadd.f32 0.0, %v3847
        %v3849 = vpop.f32.mrb[0].mxu0
        %3850 = vmatprep.mubr.bf16.mxu0 0
        %3851 = vmatmul.mubr.bf16.gmra.mrb[0].mxu0 %v3632
        %v3852 = vpop.f32.mrb[0].mxu0
        %v3853 = vadd.f32 0.0, %v3852
        %v3854 = vpop.f32.mrb[0].mxu0
        %v3855 = vpop.f32.mrb[0].mxu0
        %v3856 = vadd.f32 0.0, %v3855
        %v3857 = vpop.f32.mrb[0].mxu0
        %3858 = vdwg.mxu0
        %v3859 = vadd.f32 %v3553, %v3733
        %v3860 = vadd.f32 %v3554, %v3736
        %v3861 = vadd.f32 %v3555, %v3741
        %v3862 = vadd.f32 %v3556, %v3744
        %v3863 = vadd.f32 %v3557, %v3749
        %v3864 = vadd.f32 %v3558, %v3752
        %v3865 = vadd.f32 %v3559, %v3757
        %v3866 = vadd.f32 %v3560, %v3760
        %v3867 = vadd.f32 %v3561, %v3765
        %v3868 = vadd.f32 %v3562, %v3768
        %v3869 = vadd.f32 %v3563, %v3773
        %v3870 = vadd.f32 %v3564, %v3776
        %v3871 = vadd.f32 %v3565, %v3781
        %v3872 = vadd.f32 %v3566, %v3784
        %v3873 = vadd.f32 %v3567, %v3789
        %v3874 = vadd.f32 %v3568, %v3792
        %v3875 = vadd.f32 %v3569, %v3797
        %v3876 = vadd.f32 %v3570, %v3800
        %v3877 = vadd.f32 %v3571, %v3805
        %v3878 = vadd.f32 %v3572, %v3808
        %v3879 = vadd.f32 %v3573, %v3813
        %v3880 = vadd.f32 %v3574, %v3816
        %v3881 = vadd.f32 %v3575, %v3821
        %v3882 = vadd.f32 %v3576, %v3824
        %v3883 = vadd.f32 %v3577, %v3829
        %v3884 = vadd.f32 %v3578, %v3832
        %v3885 = vadd.f32 %v3579, %v3837
        %v3886 = vadd.f32 %v3580, %v3840
        %v3887 = vadd.f32 %v3581, %v3845
        %v3888 = vadd.f32 %v3582, %v3848
        %v3889 = vadd.f32 %v3583, %v3853
        %v3890 = vadd.f32 %v3584, %v3856
        %v3891 = vld [vmem:[%s5] sm:$0x1]
        %v3893 = vlaneseq
        %v3894 = vshrl.u32 %v3893, 7
        %v3895 = vsub.s32 0, %v3894
        %v3896 = vrot.slane %v3891, %v3895
        %v3898 = vmul.f32 %v3859, %v3896
        %v3899 = vmul.f32 %v3860, %v3896
        %v3900 = vmul.f32 %v3861, %v3896
        %v3901 = vmul.f32 %v3862, %v3896
        %v3902 = vmul.f32 %v3863, %v3896
        %v3903 = vmul.f32 %v3864, %v3896
        %v3904 = vmul.f32 %v3865, %v3896
        %v3905 = vmul.f32 %v3866, %v3896
        %v3906 = vmul.f32 %v3867, %v3896
        %v3907 = vmul.f32 %v3868, %v3896
        %v3908 = vmul.f32 %v3869, %v3896
        %v3909 = vmul.f32 %v3870, %v3896
        %v3910 = vmul.f32 %v3871, %v3896
        %v3911 = vmul.f32 %v3872, %v3896
        %v3912 = vmul.f32 %v3873, %v3896
        %v3913 = vmul.f32 %v3874, %v3896
        %v3914 = vmul.f32 %v3875, %v3896
        %v3915 = vmul.f32 %v3876, %v3896
        %v3916 = vmul.f32 %v3877, %v3896
        %v3917 = vmul.f32 %v3878, %v3896
        %v3918 = vmul.f32 %v3879, %v3896
        %v3919 = vmul.f32 %v3880, %v3896
        %v3920 = vmul.f32 %v3881, %v3896
        %v3921 = vmul.f32 %v3882, %v3896
        %v3922 = vmul.f32 %v3883, %v3896
        %v3923 = vmul.f32 %v3884, %v3896
        %v3924 = vmul.f32 %v3885, %v3896
        %v3925 = vmul.f32 %v3886, %v3896
        %v3926 = vmul.f32 %v3887, %v3896
        %v3927 = vmul.f32 %v3888, %v3896
        %v3928 = vmul.f32 %v3889, %v3896
        %v3929 = vmul.f32 %v3890, %v3896
        %v3930 = vld [vmem:[%s6] sm:$0x1]
        %v3932 = vlaneseq
        %v3933 = vshrl.u32 %v3932, 7
        %v3934 = vsub.s32 0, %v3933
        %v3935 = vrot.slane %v3930, %v3934
        %v3937 = vadd.f32 %v3898, %v3935
        %v3938 = vadd.f32 %v3899, %v3935
        %v3939 = vadd.f32 %v3900, %v3935
        %v3940 = vadd.f32 %v3901, %v3935
        %v3941 = vadd.f32 %v3902, %v3935
        %v3942 = vadd.f32 %v3903, %v3935
        %v3943 = vadd.f32 %v3904, %v3935
        %v3944 = vadd.f32 %v3905, %v3935
        %v3945 = vadd.f32 %v3906, %v3935
        %v3946 = vadd.f32 %v3907, %v3935
        %v3947 = vadd.f32 %v3908, %v3935
        %v3948 = vadd.f32 %v3909, %v3935
        %v3949 = vadd.f32 %v3910, %v3935
        %v3950 = vadd.f32 %v3911, %v3935
        %v3951 = vadd.f32 %v3912, %v3935
        %v3952 = vadd.f32 %v3913, %v3935
        %v3953 = vadd.f32 %v3914, %v3935
        %v3954 = vadd.f32 %v3915, %v3935
        %v3955 = vadd.f32 %v3916, %v3935
        %v3956 = vadd.f32 %v3917, %v3935
        %v3957 = vadd.f32 %v3918, %v3935
        %v3958 = vadd.f32 %v3919, %v3935
        %v3959 = vadd.f32 %v3920, %v3935
        %v3960 = vadd.f32 %v3921, %v3935
        %v3961 = vadd.f32 %v3922, %v3935
        %v3962 = vadd.f32 %v3923, %v3935
        %v3963 = vadd.f32 %v3924, %v3935
        %v3964 = vadd.f32 %v3925, %v3935
        %v3965 = vadd.f32 %v3926, %v3935
        %v3966 = vadd.f32 %v3927, %v3935
        %v3967 = vadd.f32 %v3928, %v3935
        %v3968 = vadd.f32 %v3929, %v3935
        %vm3969 = vcmp.gt.f32.partialorder %v3937, 0.0
        %vm3970 = vcmp.gt.f32.partialorder %v3938, 0.0
        %vm3971 = vcmp.gt.f32.partialorder %v3939, 0.0
        %vm3972 = vcmp.gt.f32.partialorder %v3940, 0.0
        %vm3973 = vcmp.gt.f32.partialorder %v3941, 0.0
        %vm3974 = vcmp.gt.f32.partialorder %v3942, 0.0
        %vm3975 = vcmp.gt.f32.partialorder %v3943, 0.0
        %vm3976 = vcmp.gt.f32.partialorder %v3944, 0.0
        %vm3977 = vcmp.gt.f32.partialorder %v3945, 0.0
        %vm3978 = vcmp.gt.f32.partialorder %v3946, 0.0
        %vm3979 = vcmp.gt.f32.partialorder %v3947, 0.0
        %vm3980 = vcmp.gt.f32.partialorder %v3948, 0.0
        %vm3981 = vcmp.gt.f32.partialorder %v3949, 0.0
        %vm3982 = vcmp.gt.f32.partialorder %v3950, 0.0
        %vm3983 = vcmp.gt.f32.partialorder %v3951, 0.0
        %vm3984 = vcmp.gt.f32.partialorder %v3952, 0.0
        %vm3985 = vcmp.gt.f32.partialorder %v3953, 0.0
        %vm3986 = vcmp.gt.f32.partialorder %v3954, 0.0
        %vm3987 = vcmp.gt.f32.partialorder %v3955, 0.0
        %vm3988 = vcmp.gt.f32.partialorder %v3956, 0.0
        %vm3989 = vcmp.gt.f32.partialorder %v3957, 0.0
        %vm3990 = vcmp.gt.f32.partialorder %v3958, 0.0
        %vm3991 = vcmp.gt.f32.partialorder %v3959, 0.0
        %vm3992 = vcmp.gt.f32.partialorder %v3960, 0.0
        %vm3993 = vcmp.gt.f32.partialorder %v3961, 0.0
        %vm3994 = vcmp.gt.f32.partialorder %v3962, 0.0
        %vm3995 = vcmp.gt.f32.partialorder %v3963, 0.0
        %vm3996 = vcmp.gt.f32.partialorder %v3964, 0.0
        %vm3997 = vcmp.gt.f32.partialorder %v3965, 0.0
        %vm3998 = vcmp.gt.f32.partialorder %v3966, 0.0
        %vm3999 = vcmp.gt.f32.partialorder %v3967, 0.0
        %vm4000 = vcmp.gt.f32.partialorder %v3968, 0.0
        %v4001 = vmul.f32 %v3937, 0.1
        %v4002 = vmul.f32 %v3938, 0.1
        %v4003 = vmul.f32 %v3939, 0.1
        %v4004 = vmul.f32 %v3940, 0.1
        %v4005 = vmul.f32 %v3941, 0.1
        %v4006 = vmul.f32 %v3942, 0.1
        %v4007 = vmul.f32 %v3943, 0.1
        %v4008 = vmul.f32 %v3944, 0.1
        %v4009 = vmul.f32 %v3945, 0.1
        %v4010 = vmul.f32 %v3946, 0.1
        %v4011 = vmul.f32 %v3947, 0.1
        %v4012 = vmul.f32 %v3948, 0.1
        %v4013 = vmul.f32 %v3949, 0.1
        %v4014 = vmul.f32 %v3950, 0.1
        %v4015 = vmul.f32 %v3951, 0.1
        %v4016 = vmul.f32 %v3952, 0.1
        %v4017 = vmul.f32 %v3953, 0.1
        %v4018 = vmul.f32 %v3954, 0.1
        %v4019 = vmul.f32 %v3955, 0.1
        %v4020 = vmul.f32 %v3956, 0.1
        %v4021 = vmul.f32 %v3957, 0.1
        %v4022 = vmul.f32 %v3958, 0.1
        %v4023 = vmul.f32 %v3959, 0.1
        %v4024 = vmul.f32 %v3960, 0.1
        %v4025 = vmul.f32 %v3961, 0.1
        %v4026 = vmul.f32 %v3962, 0.1
        %v4027 = vmul.f32 %v3963, 0.1
        %v4028 = vmul.f32 %v3964, 0.1
        %v4029 = vmul.f32 %v3965, 0.1
        %v4030 = vmul.f32 %v3966, 0.1
        %v4031 = vmul.f32 %v3967, 0.1
        %v4032 = vmul.f32 %v3968, 0.1
        %v4033 = vsel %vm3969, %v3937, %v4001
        %v4034 = vsel %vm3970, %v3938, %v4002
        %v4035 = vsel %vm3971, %v3939, %v4003
        %v4036 = vsel %vm3972, %v3940, %v4004
        %v4037 = vsel %vm3973, %v3941, %v4005
        %v4038 = vsel %vm3974, %v3942, %v4006
        %v4039 = vsel %vm3975, %v3943, %v4007
        %v4040 = vsel %vm3976, %v3944, %v4008
        %v4041 = vsel %vm3977, %v3945, %v4009
        %v4042 = vsel %vm3978, %v3946, %v4010
        %v4043 = vsel %vm3979, %v3947, %v4011
        %v4044 = vsel %vm3980, %v3948, %v4012
        %v4045 = vsel %vm3981, %v3949, %v4013
        %v4046 = vsel %vm3982, %v3950, %v4014
        %v4047 = vsel %vm3983, %v3951, %v4015
        %v4048 = vsel %vm3984, %v3952, %v4016
        %v4049 = vsel %vm3985, %v3953, %v4017
        %v4050 = vsel %vm3986, %v3954, %v4018
        %v4051 = vsel %vm3987, %v3955, %v4019
        %v4052 = vsel %vm3988, %v3956, %v4020
        %v4053 = vsel %vm3989, %v3957, %v4021
        %v4054 = vsel %vm3990, %v3958, %v4022
        %v4055 = vsel %vm3991, %v3959, %v4023
        %v4056 = vsel %vm3992, %v3960, %v4024
        %v4057 = vsel %vm3993, %v3961, %v4025
        %v4058 = vsel %vm3994, %v3962, %v4026
        %v4059 = vsel %vm3995, %v3963, %v4027
        %v4060 = vsel %vm3996, %v3964, %v4028
        %v4061 = vsel %vm3997, %v3965, %v4029
        %v4062 = vsel %vm3998, %v3966, %v4030
        %v4063 = vsel %vm3999, %v3967, %v4031
        %v4064 = vsel %vm4000, %v3968, %v4032
        %v4065 = vpack.c.bf16 %v4034, %v4033
        %v4066 = vpack.c.bf16 %v4036, %v4035
        %v4067 = vpack.c.bf16 %v4038, %v4037
        %v4068 = vpack.c.bf16 %v4040, %v4039
        %v4069 = vpack.c.bf16 %v4042, %v4041
        %v4070 = vpack.c.bf16 %v4044, %v4043
        %v4071 = vpack.c.bf16 %v4046, %v4045
        %v4072 = vpack.c.bf16 %v4048, %v4047
        %v4073 = vpack.c.bf16 %v4050, %v4049
        %v4074 = vpack.c.bf16 %v4052, %v4051
        %v4075 = vpack.c.bf16 %v4054, %v4053
        %v4076 = vpack.c.bf16 %v4056, %v4055
        %v4077 = vpack.c.bf16 %v4058, %v4057
        %v4078 = vpack.c.bf16 %v4060, %v4059
        %v4079 = vpack.c.bf16 %v4062, %v4061
        %v4080 = vpack.c.bf16 %v4064, %v4063
        %v4081 = vld [vmem:[#allocation9] sm:$0xf]
        %v4082 = vld [vmem:[#allocation9 + $0x4] sm:$0xf]
        %v4083 = vld [vmem:[#allocation9 + $0x8] sm:$0xf]
        %v4084 = vld [vmem:[#allocation9 + $0xc] sm:$0xf]
        %v4085 = vld [vmem:[#allocation9 + $0x10] sm:$0xf]
        %v4086 = vld [vmem:[#allocation9 + $0x14] sm:$0xf]
        %v4087 = vld [vmem:[#allocation9 + $0x18] sm:$0xf]
        %v4088 = vld [vmem:[#allocation9 + $0x1c] sm:$0xf]
        %v4089 = vld [vmem:[#allocation9 + $0x20] sm:$0xf]
        %v4090 = vld [vmem:[#allocation9 + $0x24] sm:$0xf]
        %v4091 = vld [vmem:[#allocation9 + $0x28] sm:$0xf]
        %v4092 = vld [vmem:[#allocation9 + $0x2c] sm:$0xf]
        %v4093 = vld [vmem:[#allocation9 + $0x30] sm:$0xf]
        %v4094 = vld [vmem:[#allocation9 + $0x34] sm:$0xf]
        %v4095 = vld [vmem:[#allocation9 + $0x38] sm:$0xf]
        %v4096 = vld [vmem:[#allocation9 + $0x3c] sm:$0xf]
        %v4113 = vunpack.c.l.b16 %v4081
        %v4114 = vunpack.c.l.b16 %v4082
        %v4115 = vunpack.c.l.b16 %v4083
        %v4116 = vunpack.c.l.b16 %v4084
        %v4117 = vunpack.c.l.b16 %v4085
        %v4118 = vunpack.c.l.b16 %v4086
        %v4119 = vunpack.c.l.b16 %v4087
        %v4120 = vunpack.c.l.b16 %v4088
        %v4121 = vunpack.c.l.b16 %v4089
        %v4122 = vunpack.c.l.b16 %v4090
        %v4123 = vunpack.c.l.b16 %v4091
        %v4124 = vunpack.c.l.b16 %v4092
        %v4125 = vunpack.c.l.b16 %v4093
        %v4126 = vunpack.c.l.b16 %v4094
        %v4127 = vunpack.c.l.b16 %v4095
        %v4128 = vunpack.c.l.b16 %v4096
        %v4129 = vpack.c.b16 %v4114, %v4113
        %v4130 = vpack.c.b16 %v4116, %v4115
        %v4131 = vpack.c.b16 %v4118, %v4117
        %v4132 = vpack.c.b16 %v4120, %v4119
        %v4133 = vpack.c.b16 %v4122, %v4121
        %v4134 = vpack.c.b16 %v4124, %v4123
        %v4135 = vpack.c.b16 %v4126, %v4125
        %v4136 = vpack.c.b16 %v4128, %v4127
        %4145 = vmatprep.subr.bf16.mxu0 0
        %4146 = vmatpush1.bf16.msra.mxu0 %v4129
        %4147 = vmatprep.subr.bf16.mxu0 0
        %4148 = vmatpush1.bf16.msra.mxu0 %v4130
        %4149 = vmatprep.subr.bf16.mxu0 0
        %4150 = vmatpush1.bf16.msra.mxu0 %v4131
        %4151 = vmatprep.subr.bf16.mxu0 0
        %4152 = vmatpush1.bf16.msra.mxu0 %v4132
        %4153 = vmatprep.subr.bf16.mxu0 0
        %4154 = vmatpush1.bf16.msra.mxu0 %v4133
        %4155 = vmatprep.subr.bf16.mxu0 0
        %4156 = vmatpush1.bf16.msra.mxu0 %v4134
        %4157 = vmatprep.subr.bf16.mxu0 0
        %4158 = vmatpush1.bf16.msra.mxu0 %v4135
        %4159 = vmatprep.subr.bf16.mxu0 0
        %4160 = vmatpush1.bf16.msra.mxu0 %v4136
        %4161 = vmatprep.subr.bf16.mxu0 0
        %4162 = vmatpush1.bf16.msra.mxu0 0
        %4163 = vmatprep.subr.bf16.mxu0 0
        %4164 = vmatpush1.bf16.msra.mxu0 0
        %4165 = vmatprep.subr.bf16.mxu0 0
        %4166 = vmatpush1.bf16.msra.mxu0 0
        %4167 = vmatprep.subr.bf16.mxu0 0
        %4168 = vmatpush1.bf16.msra.mxu0 0
        %4169 = vmatprep.subr.bf16.mxu0 0
        %4170 = vmatpush1.bf16.msra.mxu0 0
        %4171 = vmatprep.subr.bf16.mxu0 0
        %4172 = vmatpush1.bf16.msra.mxu0 0
        %4173 = vmatprep.subr.bf16.mxu0 0
        %4174 = vmatpush1.bf16.msra.mxu0 0
        %4175 = vmatprep.subr.bf16.mxu0 0
        %4176 = vmatpush1.bf16.msra.mxu0 0
        %4177 = vmatprep.mubr.bf16.mxu0 0
        %4178 = vmatmul.mubr.bf16.gmra.mrb[0].mxu0 %v4065
        %v4179 = vpop.f32.mrb[0].mxu0
        %v4180 = vadd.f32 0.0, %v4179
        %v4181 = vpop.f32.mrb[0].mxu0
        %v4182 = vpop.f32.mrb[0].mxu0
        %v4183 = vadd.f32 0.0, %v4182
        %v4184 = vpop.f32.mrb[0].mxu0
        %4185 = vmatprep.mubr.bf16.mxu0 0
        %4186 = vmatmul.mubr.bf16.gmra.mrb[0].mxu0 %v4066
        %v4187 = vpop.f32.mrb[0].mxu0
        %v4188 = vadd.f32 0.0, %v4187
        %v4189 = vpop.f32.mrb[0].mxu0
        %v4190 = vpop.f32.mrb[0].mxu0
        %v4191 = vadd.f32 0.0, %v4190
        %v4192 = vpop.f32.mrb[0].mxu0
        %4193 = vmatprep.mubr.bf16.mxu0 0
        %4194 = vmatmul.mubr.bf16.gmra.mrb[0].mxu0 %v4067
        %v4195 = vpop.f32.mrb[0].mxu0
        %v4196 = vadd.f32 0.0, %v4195
        %v4197 = vpop.f32.mrb[0].mxu0
        %v4198 = vpop.f32.mrb[0].mxu0
        %v4199 = vadd.f32 0.0, %v4198
        %v4200 = vpop.f32.mrb[0].mxu0
        %4201 = vmatprep.mubr.bf16.mxu0 0
        %4202 = vmatmul.mubr.bf16.gmra.mrb[0].mxu0 %v4068
        %v4203 = vpop.f32.mrb[0].mxu0
        %v4204 = vadd.f32 0.0, %v4203
        %v4205 = vpop.f32.mrb[0].mxu0
        %v4206 = vpop.f32.mrb[0].mxu0
        %v4207 = vadd.f32 0.0, %v4206
        %v4208 = vpop.f32.mrb[0].mxu0
        %4209 = vmatprep.mubr.bf16.mxu0 0
        %4210 = vmatmul.mubr.bf16.gmra.mrb[0].mxu0 %v4069
        %v4211 = vpop.f32.mrb[0].mxu0
        %v4212 = vadd.f32 0.0, %v4211
        %v4213 = vpop.f32.mrb[0].mxu0
        %v4214 = vpop.f32.mrb[0].mxu0
        %v4215 = vadd.f32 0.0, %v4214
        %v4216 = vpop.f32.mrb[0].mxu0
        %4217 = vmatprep.mubr.bf16.mxu0 0
        %4218 = vmatmul.mubr.bf16.gmra.mrb[0].mxu0 %v4070
        %v4219 = vpop.f32.mrb[0].mxu0
        %v4220 = vadd.f32 0.0, %v4219
        %v4221 = vpop.f32.mrb[0].mxu0
        %v4222 = vpop.f32.mrb[0].mxu0
        %v4223 = vadd.f32 0.0, %v4222
        %v4224 = vpop.f32.mrb[0].mxu0
        %4225 = vmatprep.mubr.bf16.mxu0 0
        %4226 = vmatmul.mubr.bf16.gmra.mrb[0].mxu0 %v4071
        %v4227 = vpop.f32.mrb[0].mxu0
        %v4228 = vadd.f32 0.0, %v4227
        %v4229 = vpop.f32.mrb[0].mxu0
        %v4230 = vpop.f32.mrb[0].mxu0
        %v4231 = vadd.f32 0.0, %v4230
        %v4232 = vpop.f32.mrb[0].mxu0
        %4233 = vmatprep.mubr.bf16.mxu0 0
        %4234 = vmatmul.mubr.bf16.gmra.mrb[0].mxu0 %v4072
        %v4235 = vpop.f32.mrb[0].mxu0
        %v4236 = vadd.f32 0.0, %v4235
        %v4237 = vpop.f32.mrb[0].mxu0
        %v4238 = vpop.f32.mrb[0].mxu0
        %v4239 = vadd.f32 0.0, %v4238
        %v4240 = vpop.f32.mrb[0].mxu0
        %4241 = vmatprep.mubr.bf16.mxu0 0
        %4242 = vmatmul.mubr.bf16.gmra.mrb[0].mxu0 %v4073
        %v4243 = vpop.f32.mrb[0].mxu0
        %v4244 = vadd.f32 0.0, %v4243
        %v4245 = vpop.f32.mrb[0].mxu0
        %v4246 = vpop.f32.mrb[0].mxu0
        %v4247 = vadd.f32 0.0, %v4246
        %v4248 = vpop.f32.mrb[0].mxu0
        %4249 = vmatprep.mubr.bf16.mxu0 0
        %4250 = vmatmul.mubr.bf16.gmra.mrb[0].mxu0 %v4074
        %v4251 = vpop.f32.mrb[0].mxu0
        %v4252 = vadd.f32 0.0, %v4251
        %v4253 = vpop.f32.mrb[0].mxu0
        %v4254 = vpop.f32.mrb[0].mxu0
        %v4255 = vadd.f32 0.0, %v4254
        %v4256 = vpop.f32.mrb[0].mxu0
        %4257 = vmatprep.mubr.bf16.mxu0 0
        %4258 = vmatmul.mubr.bf16.gmra.mrb[0].mxu0 %v4075
        %v4259 = vpop.f32.mrb[0].mxu0
        %v4260 = vadd.f32 0.0, %v4259
        %v4261 = vpop.f32.mrb[0].mxu0
        %v4262 = vpop.f32.mrb[0].mxu0
        %v4263 = vadd.f32 0.0, %v4262
        %v4264 = vpop.f32.mrb[0].mxu0
        %4265 = vmatprep.mubr.bf16.mxu0 0
        %4266 = vmatmul.mubr.bf16.gmra.mrb[0].mxu0 %v4076
        %v4267 = vpop.f32.mrb[0].mxu0
        %v4268 = vadd.f32 0.0, %v4267
        %v4269 = vpop.f32.mrb[0].mxu0
        %v4270 = vpop.f32.mrb[0].mxu0
        %v4271 = vadd.f32 0.0, %v4270
        %v4272 = vpop.f32.mrb[0].mxu0
        %4273 = vmatprep.mubr.bf16.mxu0 0
        %4274 = vmatmul.mubr.bf16.gmra.mrb[0].mxu0 %v4077
        %v4275 = vpop.f32.mrb[0].mxu0
        %v4276 = vadd.f32 0.0, %v4275
        %v4277 = vpop.f32.mrb[0].mxu0
        %v4278 = vpop.f32.mrb[0].mxu0
        %v4279 = vadd.f32 0.0, %v4278
        %v4280 = vpop.f32.mrb[0].mxu0
        %4281 = vmatprep.mubr.bf16.mxu0 0
        %4282 = vmatmul.mubr.bf16.gmra.mrb[0].mxu0 %v4078
        %v4283 = vpop.f32.mrb[0].mxu0
        %v4284 = vadd.f32 0.0, %v4283
        %v4285 = vpop.f32.mrb[0].mxu0
        %v4286 = vpop.f32.mrb[0].mxu0
        %v4287 = vadd.f32 0.0, %v4286
        %v4288 = vpop.f32.mrb[0].mxu0
        %4289 = vmatprep.mubr.bf16.mxu0 0
        %4290 = vmatmul.mubr.bf16.gmra.mrb[0].mxu0 %v4079
        %v4291 = vpop.f32.mrb[0].mxu0
        %v4292 = vadd.f32 0.0, %v4291
        %v4293 = vpop.f32.mrb[0].mxu0
        %v4294 = vpop.f32.mrb[0].mxu0
        %v4295 = vadd.f32 0.0, %v4294
        %v4296 = vpop.f32.mrb[0].mxu0
        %4297 = vmatprep.mubr.bf16.mxu0 0
        %4298 = vmatmul.mubr.bf16.gmra.mrb[0].mxu0 %v4080
        %v4299 = vpop.f32.mrb[0].mxu0
        %v4300 = vadd.f32 0.0, %v4299
        %v4301 = vpop.f32.mrb[0].mxu0
        %v4302 = vpop.f32.mrb[0].mxu0
        %v4303 = vadd.f32 0.0, %v4302
        %v4304 = vpop.f32.mrb[0].mxu0
        %4305 = vdwg.mxu0
        %v4306 = vld [vmem:[%s8] sm:$0x1]
        %v4308 = vlaneseq
        %v4309 = vshrl.u32 %v4308, 7
        %v4310 = vsub.s32 0, %v4309
        %v4311 = vrot.slane %v4306, %v4310
        %v4313 = vmul.f32 %v4180, %v4311
        %v4314 = vmul.f32 %v4183, %v4311
        %v4315 = vmul.f32 %v4188, %v4311
        %v4316 = vmul.f32 %v4191, %v4311
        %v4317 = vmul.f32 %v4196, %v4311
        %v4318 = vmul.f32 %v4199, %v4311
        %v4319 = vmul.f32 %v4204, %v4311
        %v4320 = vmul.f32 %v4207, %v4311
        %v4321 = vmul.f32 %v4212, %v4311
        %v4322 = vmul.f32 %v4215, %v4311
        %v4323 = vmul.f32 %v4220, %v4311
        %v4324 = vmul.f32 %v4223, %v4311
        %v4325 = vmul.f32 %v4228, %v4311
        %v4326 = vmul.f32 %v4231, %v4311
        %v4327 = vmul.f32 %v4236, %v4311
        %v4328 = vmul.f32 %v4239, %v4311
        %v4329 = vmul.f32 %v4244, %v4311
        %v4330 = vmul.f32 %v4247, %v4311
        %v4331 = vmul.f32 %v4252, %v4311
        %v4332 = vmul.f32 %v4255, %v4311
        %v4333 = vmul.f32 %v4260, %v4311
        %v4334 = vmul.f32 %v4263, %v4311
        %v4335 = vmul.f32 %v4268, %v4311
        %v4336 = vmul.f32 %v4271, %v4311
        %v4337 = vmul.f32 %v4276, %v4311
        %v4338 = vmul.f32 %v4279, %v4311
        %v4339 = vmul.f32 %v4284, %v4311
        %v4340 = vmul.f32 %v4287, %v4311
        %v4341 = vmul.f32 %v4292, %v4311
        %v4342 = vmul.f32 %v4295, %v4311
        %v4343 = vmul.f32 %v4300, %v4311
        %v4344 = vmul.f32 %v4303, %v4311
        %v4345 = vld [vmem:[%s9] sm:$0x1]
        %v4347 = vlaneseq
        %v4348 = vshrl.u32 %v4347, 7
        %v4349 = vsub.s32 0, %v4348
        %v4350 = vrot.slane %v4345, %v4349
        %v4352 = vadd.f32 %v4313, %v4350
        %v4353 = vadd.f32 %v4314, %v4350
        %v4354 = vadd.f32 %v4315, %v4350
        %v4355 = vadd.f32 %v4316, %v4350
        %v4356 = vadd.f32 %v4317, %v4350
        %v4357 = vadd.f32 %v4318, %v4350
        %v4358 = vadd.f32 %v4319, %v4350
        %v4359 = vadd.f32 %v4320, %v4350
        %v4360 = vadd.f32 %v4321, %v4350
        %v4361 = vadd.f32 %v4322, %v4350
        %v4362 = vadd.f32 %v4323, %v4350
        %v4363 = vadd.f32 %v4324, %v4350
        %v4364 = vadd.f32 %v4325, %v4350
        %v4365 = vadd.f32 %v4326, %v4350
        %v4366 = vadd.f32 %v4327, %v4350
        %v4367 = vadd.f32 %v4328, %v4350
        %v4368 = vadd.f32 %v4329, %v4350
        %v4369 = vadd.f32 %v4330, %v4350
        %v4370 = vadd.f32 %v4331, %v4350
        %v4371 = vadd.f32 %v4332, %v4350
        %v4372 = vadd.f32 %v4333, %v4350
        %v4373 = vadd.f32 %v4334, %v4350
        %v4374 = vadd.f32 %v4335, %v4350
        %v4375 = vadd.f32 %v4336, %v4350
        %v4376 = vadd.f32 %v4337, %v4350
        %v4377 = vadd.f32 %v4338, %v4350
        %v4378 = vadd.f32 %v4339, %v4350
        %v4379 = vadd.f32 %v4340, %v4350
        %v4380 = vadd.f32 %v4341, %v4350
        %v4381 = vadd.f32 %v4342, %v4350
        %v4382 = vadd.f32 %v4343, %v4350
        %v4383 = vadd.f32 %v4344, %v4350
        %vm4384 = vcmp.gt.f32.partialorder %v4352, 0.0
        %vm4385 = vcmp.gt.f32.partialorder %v4353, 0.0
        %vm4386 = vcmp.gt.f32.partialorder %v4354, 0.0
        %vm4387 = vcmp.gt.f32.partialorder %v4355, 0.0
        %vm4388 = vcmp.gt.f32.partialorder %v4356, 0.0
        %vm4389 = vcmp.gt.f32.partialorder %v4357, 0.0
        %vm4390 = vcmp.gt.f32.partialorder %v4358, 0.0
        %vm4391 = vcmp.gt.f32.partialorder %v4359, 0.0
        %vm4392 = vcmp.gt.f32.partialorder %v4360, 0.0
        %vm4393 = vcmp.gt.f32.partialorder %v4361, 0.0
        %vm4394 = vcmp.gt.f32.partialorder %v4362, 0.0
        %vm4395 = vcmp.gt.f32.partialorder %v4363, 0.0
        %vm4396 = vcmp.gt.f32.partialorder %v4364, 0.0
        %vm4397 = vcmp.gt.f32.partialorder %v4365, 0.0
        %vm4398 = vcmp.gt.f32.partialorder %v4366, 0.0
        %vm4399 = vcmp.gt.f32.partialorder %v4367, 0.0
        %vm4400 = vcmp.gt.f32.partialorder %v4368, 0.0
        %vm4401 = vcmp.gt.f32.partialorder %v4369, 0.0
        %vm4402 = vcmp.gt.f32.partialorder %v4370, 0.0
        %vm4403 = vcmp.gt.f32.partialorder %v4371, 0.0
        %vm4404 = vcmp.gt.f32.partialorder %v4372, 0.0
        %vm4405 = vcmp.gt.f32.partialorder %v4373, 0.0
        %vm4406 = vcmp.gt.f32.partialorder %v4374, 0.0
        %vm4407 = vcmp.gt.f32.partialorder %v4375, 0.0
        %vm4408 = vcmp.gt.f32.partialorder %v4376, 0.0
        %vm4409 = vcmp.gt.f32.partialorder %v4377, 0.0
        %vm4410 = vcmp.gt.f32.partialorder %v4378, 0.0
        %vm4411 = vcmp.gt.f32.partialorder %v4379, 0.0
        %vm4412 = vcmp.gt.f32.partialorder %v4380, 0.0
        %vm4413 = vcmp.gt.f32.partialorder %v4381, 0.0
        %vm4414 = vcmp.gt.f32.partialorder %v4382, 0.0
        %vm4415 = vcmp.gt.f32.partialorder %v4383, 0.0
        %v4416 = vmul.f32 %v4352, 0.1
        %v4417 = vmul.f32 %v4353, 0.1
        %v4418 = vmul.f32 %v4354, 0.1
        %v4419 = vmul.f32 %v4355, 0.1
        %v4420 = vmul.f32 %v4356, 0.1
        %v4421 = vmul.f32 %v4357, 0.1
        %v4422 = vmul.f32 %v4358, 0.1
        %v4423 = vmul.f32 %v4359, 0.1
        %v4424 = vmul.f32 %v4360, 0.1
        %v4425 = vmul.f32 %v4361, 0.1
        %v4426 = vmul.f32 %v4362, 0.1
        %v4427 = vmul.f32 %v4363, 0.1
        %v4428 = vmul.f32 %v4364, 0.1
        %v4429 = vmul.f32 %v4365, 0.1
        %v4430 = vmul.f32 %v4366, 0.1
        %v4431 = vmul.f32 %v4367, 0.1
        %v4432 = vmul.f32 %v4368, 0.1
        %v4433 = vmul.f32 %v4369, 0.1
        %v4434 = vmul.f32 %v4370, 0.1
        %v4435 = vmul.f32 %v4371, 0.1
        %v4436 = vmul.f32 %v4372, 0.1
        %v4437 = vmul.f32 %v4373, 0.1
        %v4438 = vmul.f32 %v4374, 0.1
        %v4439 = vmul.f32 %v4375, 0.1
        %v4440 = vmul.f32 %v4376, 0.1
        %v4441 = vmul.f32 %v4377, 0.1
        %v4442 = vmul.f32 %v4378, 0.1
        %v4443 = vmul.f32 %v4379, 0.1
        %v4444 = vmul.f32 %v4380, 0.1
        %v4445 = vmul.f32 %v4381, 0.1
        %v4446 = vmul.f32 %v4382, 0.1
        %v4447 = vmul.f32 %v4383, 0.1
        %v4448 = vsel %vm4384, %v4352, %v4416
        %v4449 = vsel %vm4385, %v4353, %v4417
        %v4450 = vsel %vm4386, %v4354, %v4418
        %v4451 = vsel %vm4387, %v4355, %v4419
        %v4452 = vsel %vm4388, %v4356, %v4420
        %v4453 = vsel %vm4389, %v4357, %v4421
        %v4454 = vsel %vm4390, %v4358, %v4422
        %v4455 = vsel %vm4391, %v4359, %v4423
        %v4456 = vsel %vm4392, %v4360, %v4424
        %v4457 = vsel %vm4393, %v4361, %v4425
        %v4458 = vsel %vm4394, %v4362, %v4426
        %v4459 = vsel %vm4395, %v4363, %v4427
        %v4460 = vsel %vm4396, %v4364, %v4428
        %v4461 = vsel %vm4397, %v4365, %v4429
        %v4462 = vsel %vm4398, %v4366, %v4430
        %v4463 = vsel %vm4399, %v4367, %v4431
        %v4464 = vsel %vm4400, %v4368, %v4432
        %v4465 = vsel %vm4401, %v4369, %v4433
        %v4466 = vsel %vm4402, %v4370, %v4434
        %v4467 = vsel %vm4403, %v4371, %v4435
        %v4468 = vsel %vm4404, %v4372, %v4436
        %v4469 = vsel %vm4405, %v4373, %v4437
        %v4470 = vsel %vm4406, %v4374, %v4438
        %v4471 = vsel %vm4407, %v4375, %v4439
        %v4472 = vsel %vm4408, %v4376, %v4440
        %v4473 = vsel %vm4409, %v4377, %v4441
        %v4474 = vsel %vm4410, %v4378, %v4442
        %v4475 = vsel %vm4411, %v4379, %v4443
        %v4476 = vsel %vm4412, %v4380, %v4444
        %v4477 = vsel %vm4413, %v4381, %v4445
        %v4478 = vsel %vm4414, %v4382, %v4446
        %v4479 = vsel %vm4415, %v4383, %v4447
        %4480 = vst [vmem:[%s1168 + $0x1] sm:$0xff] %v4448
        %4481 = vst [vmem:[%s1168 + $0x9] sm:$0xff] %v4449
        %4482 = vst [vmem:[%s1168 + $0x19] sm:$0xff] %v4450
        %4483 = vst [vmem:[%s1168 + $0x21] sm:$0xff] %v4451
        %4484 = vst [vmem:[%s1168 + $0x31] sm:$0xff] %v4452
        %4485 = vst [vmem:[%s1168 + $0x39] sm:$0xff] %v4453
        %4486 = vst [vmem:[%s1168 + $0x49] sm:$0xff] %v4454
        %4487 = vst [vmem:[%s1168 + $0x51] sm:$0xff] %v4455
        %4488 = vst [vmem:[%s1168 + $0x61] sm:$0xff] %v4456
        %4489 = vst [vmem:[%s1168 + $0x69] sm:$0xff] %v4457
        %4490 = vst [vmem:[%s1168 + $0x79] sm:$0xff] %v4458
        %4491 = vst [vmem:[%s1168 + $0x81] sm:$0xff] %v4459
        %4492 = vst [vmem:[%s1168 + $0x91] sm:$0xff] %v4460
        %4493 = vst [vmem:[%s1168 + $0x99] sm:$0xff] %v4461
        %4494 = vst [vmem:[%s1168 + $0xa9] sm:$0xff] %v4462
        %4495 = vst [vmem:[%s1168 + $0xb1] sm:$0xff] %v4463
        %4496 = vst [vmem:[%s1168 + $0xc1] sm:$0xff] %v4464
        %4497 = vst [vmem:[%s1168 + $0xc9] sm:$0xff] %v4465
        %4498 = vst [vmem:[%s1168 + $0xd9] sm:$0xff] %v4466
        %4499 = vst [vmem:[%s1168 + $0xe1] sm:$0xff] %v4467
        %4500 = vst [vmem:[%s1168 + $0xf1] sm:$0xff] %v4468
        %4501 = vst [vmem:[%s1168 + $0xf9] sm:$0xff] %v4469
        %4502 = vst [vmem:[%s1168 + $0x109] sm:$0xff] %v4470
        %4503 = vst [vmem:[%s1168 + $0x111] sm:$0xff] %v4471
        %4504 = vst [vmem:[%s1168 + $0x121] sm:$0xff] %v4472
        %4505 = vst [vmem:[%s1168 + $0x129] sm:$0xff] %v4473
        %4506 = vst [vmem:[%s1168 + $0x139] sm:$0xff] %v4474
        %4507 = vst [vmem:[%s1168 + $0x141] sm:$0xff] %v4475
        %4508 = vst [vmem:[%s1168 + $0x151] sm:$0xff] %v4476
        %4509 = vst [vmem:[%s1168 + $0x159] sm:$0xff] %v4477
        %4510 = vst [vmem:[%s1168 + $0x169] sm:$0xff] %v4478
        %4511 = vst [vmem:[%s1168 + $0x171] sm:$0xff] %v4479
        %v4512 = vld [vmem:[#allocation2] sm:$0xff]
        %v4513 = vld [vmem:[#allocation2 + $0x8] sm:$0xff]
        %v4514 = vld [vmem:[#allocation2 + $0x18] sm:$0xff]
        %v4515 = vld [vmem:[#allocation2 + $0x20] sm:$0xff]
        %v4516 = vld [vmem:[#allocation2 + $0x30] sm:$0xff]
        %v4517 = vld [vmem:[#allocation2 + $0x38] sm:$0xff]
        %v4518 = vld [vmem:[#allocation2 + $0x48] sm:$0xff]
        %v4519 = vld [vmem:[#allocation2 + $0x50] sm:$0xff]
        %v4520 = vld [vmem:[#allocation2 + $0x60] sm:$0xff]
        %v4521 = vld [vmem:[#allocation2 + $0x68] sm:$0xff]
        %v4522 = vld [vmem:[#allocation2 + $0x78] sm:$0xff]
        %v4523 = vld [vmem:[#allocation2 + $0x80] sm:$0xff]
        %v4524 = vld [vmem:[#allocation2 + $0x90] sm:$0xff]
        %v4525 = vld [vmem:[#allocation2 + $0x98] sm:$0xff]
        %v4526 = vld [vmem:[#allocation2 + $0xa8] sm:$0xff]
        %v4527 = vld [vmem:[#allocation2 + $0xb0] sm:$0xff]
        %v4528 = vld [vmem:[#allocation2 + $0xc0] sm:$0xff]
        %v4529 = vld [vmem:[#allocation2 + $0xc8] sm:$0xff]
        %v4530 = vld [vmem:[#allocation2 + $0xd8] sm:$0xff]
        %v4531 = vld [vmem:[#allocation2 + $0xe0] sm:$0xff]
        %v4532 = vld [vmem:[#allocation2 + $0xf0] sm:$0xff]
        %v4533 = vld [vmem:[#allocation2 + $0xf8] sm:$0xff]
        %v4534 = vld [vmem:[#allocation2 + $0x108] sm:$0xff]
        %v4535 = vld [vmem:[#allocation2 + $0x110] sm:$0xff]
        %v4536 = vld [vmem:[#allocation2 + $0x120] sm:$0xff]
        %v4537 = vld [vmem:[#allocation2 + $0x128] sm:$0xff]
        %v4538 = vld [vmem:[#allocation2 + $0x138] sm:$0xff]
        %v4539 = vld [vmem:[#allocation2 + $0x140] sm:$0xff]
        %v4540 = vld [vmem:[#allocation2 + $0x150] sm:$0xff]
        %v4541 = vld [vmem:[#allocation2 + $0x158] sm:$0xff]
        %v4542 = vld [vmem:[#allocation2 + $0x168] sm:$0xff]
        %v4543 = vld [vmem:[#allocation2 + $0x170] sm:$0xff]
        %v4544 = vpack.c.bf16 %v4513, %v4512
        %v4545 = vpack.c.bf16 %v4515, %v4514
        %v4546 = vpack.c.bf16 %v4517, %v4516
        %v4547 = vpack.c.bf16 %v4519, %v4518
        %v4548 = vpack.c.bf16 %v4521, %v4520
        %v4549 = vpack.c.bf16 %v4523, %v4522
        %v4550 = vpack.c.bf16 %v4525, %v4524
        %v4551 = vpack.c.bf16 %v4527, %v4526
        %v4552 = vpack.c.bf16 %v4529, %v4528
        %v4553 = vpack.c.bf16 %v4531, %v4530
        %v4554 = vpack.c.bf16 %v4533, %v4532
        %v4555 = vpack.c.bf16 %v4535, %v4534
        %v4556 = vpack.c.bf16 %v4537, %v4536
        %v4557 = vpack.c.bf16 %v4539, %v4538
        %v4558 = vpack.c.bf16 %v4541, %v4540
        %v4559 = vpack.c.bf16 %v4543, %v4542
        %v4560 = vld [vmem:[#allocation11] sm:$0xf]
        %v4561 = vld [vmem:[#allocation11 + $0x4] sm:$0xf]
        %v4562 = vld [vmem:[#allocation11 + $0x8] sm:$0xf]
        %v4563 = vld [vmem:[#allocation11 + $0xc] sm:$0xf]
        %v4564 = vld [vmem:[#allocation11 + $0x10] sm:$0xf]
        %v4565 = vld [vmem:[#allocation11 + $0x14] sm:$0xf]
        %v4566 = vld [vmem:[#allocation11 + $0x18] sm:$0xf]
        %v4567 = vld [vmem:[#allocation11 + $0x1c] sm:$0xf]
        %v4568 = vld [vmem:[#allocation11 + $0x20] sm:$0xf]
        %v4569 = vld [vmem:[#allocation11 + $0x24] sm:$0xf]
        %v4570 = vld [vmem:[#allocation11 + $0x28] sm:$0xf]
        %v4571 = vld [vmem:[#allocation11 + $0x2c] sm:$0xf]
        %v4572 = vld [vmem:[#allocation11 + $0x30] sm:$0xf]
        %v4573 = vld [vmem:[#allocation11 + $0x34] sm:$0xf]
        %v4574 = vld [vmem:[#allocation11 + $0x38] sm:$0xf]
        %v4575 = vld [vmem:[#allocation11 + $0x3c] sm:$0xf]
        %v4576 = vld [vmem:[#allocation2 + $0x1] sm:$0xff]
        %v4577 = vld [vmem:[#allocation2 + $0x9] sm:$0xff]
        %v4578 = vld [vmem:[#allocation2 + $0x19] sm:$0xff]
        %v4579 = vld [vmem:[#allocation2 + $0x21] sm:$0xff]
        %v4580 = vld [vmem:[#allocation2 + $0x31] sm:$0xff]
        %v4581 = vld [vmem:[#allocation2 + $0x39] sm:$0xff]
        %v4582 = vld [vmem:[#allocation2 + $0x49] sm:$0xff]
        %v4583 = vld [vmem:[#allocation2 + $0x51] sm:$0xff]
        %v4584 = vld [vmem:[#allocation2 + $0x61] sm:$0xff]
        %v4585 = vld [vmem:[#allocation2 + $0x69] sm:$0xff]
        %v4586 = vld [vmem:[#allocation2 + $0x79] sm:$0xff]
        %v4587 = vld [vmem:[#allocation2 + $0x81] sm:$0xff]
        %v4588 = vld [vmem:[#allocation2 + $0x91] sm:$0xff]
        %v4589 = vld [vmem:[#allocation2 + $0x99] sm:$0xff]
        %v4590 = vld [vmem:[#allocation2 + $0xa9] sm:$0xff]
        %v4591 = vld [vmem:[#allocation2 + $0xb1] sm:$0xff]
        %v4592 = vld [vmem:[#allocation2 + $0xc1] sm:$0xff]
        %v4593 = vld [vmem:[#allocation2 + $0xc9] sm:$0xff]
        %v4594 = vld [vmem:[#allocation2 + $0xd9] sm:$0xff]
        %v4595 = vld [vmem:[#allocation2 + $0xe1] sm:$0xff]
        %v4596 = vld [vmem:[#allocation2 + $0xf1] sm:$0xff]
        %v4597 = vld [vmem:[#allocation2 + $0xf9] sm:$0xff]
        %v4598 = vld [vmem:[#allocation2 + $0x109] sm:$0xff]
        %v4599 = vld [vmem:[#allocation2 + $0x111] sm:$0xff]
        %v4600 = vld [vmem:[#allocation2 + $0x121] sm:$0xff]
        %v4601 = vld [vmem:[#allocation2 + $0x129] sm:$0xff]
        %v4602 = vld [vmem:[#allocation2 + $0x139] sm:$0xff]
        %v4603 = vld [vmem:[#allocation2 + $0x141] sm:$0xff]
        %v4604 = vld [vmem:[#allocation2 + $0x151] sm:$0xff]
        %v4605 = vld [vmem:[#allocation2 + $0x159] sm:$0xff]
        %v4606 = vld [vmem:[#allocation2 + $0x169] sm:$0xff]
        %v4607 = vld [vmem:[#allocation2 + $0x171] sm:$0xff]
        %v4608 = vpack.c.bf16 %v4577, %v4576
        %v4609 = vpack.c.bf16 %v4579, %v4578
        %v4610 = vpack.c.bf16 %v4581, %v4580
        %v4611 = vpack.c.bf16 %v4583, %v4582
        %v4612 = vpack.c.bf16 %v4585, %v4584
        %v4613 = vpack.c.bf16 %v4587, %v4586
        %v4614 = vpack.c.bf16 %v4589, %v4588
        %v4615 = vpack.c.bf16 %v4591, %v4590
        %v4616 = vpack.c.bf16 %v4593, %v4592
        %v4617 = vpack.c.bf16 %v4595, %v4594
        %v4618 = vpack.c.bf16 %v4597, %v4596
        %v4619 = vpack.c.bf16 %v4599, %v4598
        %v4620 = vpack.c.bf16 %v4601, %v4600
        %v4621 = vpack.c.bf16 %v4603, %v4602
        %v4622 = vpack.c.bf16 %v4605, %v4604
        %v4623 = vpack.c.bf16 %v4607, %v4606
        %s4624 = scalar_lea.vmem [#allocation11], 64
        %v4625 = vld [vmem:[%s4624] sm:$0xf]
        %v4626 = vld [vmem:[%s4624 + $0x4] sm:$0xf]
        %v4627 = vld [vmem:[%s4624 + $0x8] sm:$0xf]
        %v4628 = vld [vmem:[%s4624 + $0xc] sm:$0xf]
        %v4629 = vld [vmem:[%s4624 + $0x10] sm:$0xf]
        %v4630 = vld [vmem:[%s4624 + $0x14] sm:$0xf]
        %v4631 = vld [vmem:[%s4624 + $0x18] sm:$0xf]
        %v4632 = vld [vmem:[%s4624 + $0x1c] sm:$0xf]
        %v4633 = vld [vmem:[%s4624 + $0x20] sm:$0xf]
        %v4634 = vld [vmem:[%s4624 + $0x24] sm:$0xf]
        %v4635 = vld [vmem:[%s4624 + $0x28] sm:$0xf]
        %v4636 = vld [vmem:[%s4624 + $0x2c] sm:$0xf]
        %v4637 = vld [vmem:[%s4624 + $0x30] sm:$0xf]
        %v4638 = vld [vmem:[%s4624 + $0x34] sm:$0xf]
        %v4639 = vld [vmem:[%s4624 + $0x38] sm:$0xf]
        %v4640 = vld [vmem:[%s4624 + $0x3c] sm:$0xf]
        %v4657 = vunpack.c.l.b16 %v4625
        %v4658 = vunpack.c.l.b16 %v4626
        %v4659 = vunpack.c.l.b16 %v4627
        %v4660 = vunpack.c.l.b16 %v4628
        %v4661 = vunpack.c.l.b16 %v4629
        %v4662 = vunpack.c.l.b16 %v4630
        %v4663 = vunpack.c.l.b16 %v4631
        %v4664 = vunpack.c.l.b16 %v4632
        %v4665 = vunpack.c.l.b16 %v4633
        %v4666 = vunpack.c.l.b16 %v4634
        %v4667 = vunpack.c.l.b16 %v4635
        %v4668 = vunpack.c.l.b16 %v4636
        %v4669 = vunpack.c.l.b16 %v4637
        %v4670 = vunpack.c.l.b16 %v4638
        %v4671 = vunpack.c.l.b16 %v4639
        %v4672 = vunpack.c.l.b16 %v4640
        %v4673 = vpack.c.b16 %v4658, %v4657
        %v4674 = vpack.c.b16 %v4660, %v4659
        %v4675 = vpack.c.b16 %v4662, %v4661
        %v4676 = vpack.c.b16 %v4664, %v4663
        %v4677 = vpack.c.b16 %v4666, %v4665
        %v4678 = vpack.c.b16 %v4668, %v4667
        %v4679 = vpack.c.b16 %v4670, %v4669
        %v4680 = vpack.c.b16 %v4672, %v4671
        %4689 = vmatprep.subr.bf16.mxu0 0
        %4690 = vmatpush1.bf16.msra.mxu0 %v4673
        %4691 = vmatprep.subr.bf16.mxu0 0
        %4692 = vmatpush1.bf16.msra.mxu0 %v4674
        %4693 = vmatprep.subr.bf16.mxu0 0
        %4694 = vmatpush1.bf16.msra.mxu0 %v4675
        %4695 = vmatprep.subr.bf16.mxu0 0
        %4696 = vmatpush1.bf16.msra.mxu0 %v4676
        %4697 = vmatprep.subr.bf16.mxu0 0
        %4698 = vmatpush1.bf16.msra.mxu0 %v4677
        %4699 = vmatprep.subr.bf16.mxu0 0
        %4700 = vmatpush1.bf16.msra.mxu0 %v4678
        %4701 = vmatprep.subr.bf16.mxu0 0
        %4702 = vmatpush1.bf16.msra.mxu0 %v4679
        %4703 = vmatprep.subr.bf16.mxu0 0
        %4704 = vmatpush1.bf16.msra.mxu0 %v4680
        %4705 = vmatprep.subr.bf16.mxu0 0
        %4706 = vmatpush1.bf16.msra.mxu0 0
        %4707 = vmatprep.subr.bf16.mxu0 0
        %4708 = vmatpush1.bf16.msra.mxu0 0
        %4709 = vmatprep.subr.bf16.mxu0 0
        %4710 = vmatpush1.bf16.msra.mxu0 0
        %4711 = vmatprep.subr.bf16.mxu0 0
        %4712 = vmatpush1.bf16.msra.mxu0 0
        %4713 = vmatprep.subr.bf16.mxu0 0
        %4714 = vmatpush1.bf16.msra.mxu0 0
        %4715 = vmatprep.subr.bf16.mxu0 0
        %4716 = vmatpush1.bf16.msra.mxu0 0
        %4717 = vmatprep.subr.bf16.mxu0 0
        %4718 = vmatpush1.bf16.msra.mxu0 0
        %4719 = vmatprep.subr.bf16.mxu0 0
        %4720 = vmatpush1.bf16.msra.mxu0 0
        %4721 = vmatprep.mubr.bf16.mxu0 0
        %4722 = vmatmul.mubr.bf16.gmra.mrb[0].mxu0 %v4608
        %v4723 = vpop.f32.mrb[0].mxu0
        %v4724 = vadd.f32 0.0, %v4723
        %v4725 = vpop.f32.mrb[0].mxu0
        %v4726 = vpop.f32.mrb[0].mxu0
        %v4727 = vadd.f32 0.0, %v4726
        %v4728 = vpop.f32.mrb[0].mxu0
        %4729 = vmatprep.mubr.bf16.mxu0 0
        %4730 = vmatmul.mubr.bf16.gmra.mrb[0].mxu0 %v4609
        %v4731 = vpop.f32.mrb[0].mxu0
        %v4732 = vadd.f32 0.0, %v4731
        %v4733 = vpop.f32.mrb[0].mxu0
        %v4734 = vpop.f32.mrb[0].mxu0
        %v4735 = vadd.f32 0.0, %v4734
        %v4736 = vpop.f32.mrb[0].mxu0
        %4737 = vmatprep.mubr.bf16.mxu0 0
        %4738 = vmatmul.mubr.bf16.gmra.mrb[0].mxu0 %v4610
        %v4739 = vpop.f32.mrb[0].mxu0
        %v4740 = vadd.f32 0.0, %v4739
        %v4741 = vpop.f32.mrb[0].mxu0
        %v4742 = vpop.f32.mrb[0].mxu0
        %v4743 = vadd.f32 0.0, %v4742
        %v4744 = vpop.f32.mrb[0].mxu0
        %4745 = vmatprep.mubr.bf16.mxu0 0
        %4746 = vmatmul.mubr.bf16.gmra.mrb[0].mxu0 %v4611
        %v4747 = vpop.f32.mrb[0].mxu0
        %v4748 = vadd.f32 0.0, %v4747
        %v4749 = vpop.f32.mrb[0].mxu0
        %v4750 = vpop.f32.mrb[0].mxu0
        %v4751 = vadd.f32 0.0, %v4750
        %v4752 = vpop.f32.mrb[0].mxu0
        %4753 = vmatprep.mubr.bf16.mxu0 0
        %4754 = vmatmul.mubr.bf16.gmra.mrb[0].mxu0 %v4612
        %v4755 = vpop.f32.mrb[0].mxu0
        %v4756 = vadd.f32 0.0, %v4755
        %v4757 = vpop.f32.mrb[0].mxu0
        %v4758 = vpop.f32.mrb[0].mxu0
        %v4759 = vadd.f32 0.0, %v4758
        %v4760 = vpop.f32.mrb[0].mxu0
        %4761 = vmatprep.mubr.bf16.mxu0 0
        %4762 = vmatmul.mubr.bf16.gmra.mrb[0].mxu0 %v4613
        %v4763 = vpop.f32.mrb[0].mxu0
        %v4764 = vadd.f32 0.0, %v4763
        %v4765 = vpop.f32.mrb[0].mxu0
        %v4766 = vpop.f32.mrb[0].mxu0
        %v4767 = vadd.f32 0.0, %v4766
        %v4768 = vpop.f32.mrb[0].mxu0
        %4769 = vmatprep.mubr.bf16.mxu0 0
        %4770 = vmatmul.mubr.bf16.gmra.mrb[0].mxu0 %v4614
        %v4771 = vpop.f32.mrb[0].mxu0
        %v4772 = vadd.f32 0.0, %v4771
        %v4773 = vpop.f32.mrb[0].mxu0
        %v4774 = vpop.f32.mrb[0].mxu0
        %v4775 = vadd.f32 0.0, %v4774
        %v4776 = vpop.f32.mrb[0].mxu0
        %4777 = vmatprep.mubr.bf16.mxu0 0
        %4778 = vmatmul.mubr.bf16.gmra.mrb[0].mxu0 %v4615
        %v4779 = vpop.f32.mrb[0].mxu0
        %v4780 = vadd.f32 0.0, %v4779
        %v4781 = vpop.f32.mrb[0].mxu0
        %v4782 = vpop.f32.mrb[0].mxu0
        %v4783 = vadd.f32 0.0, %v4782
        %v4784 = vpop.f32.mrb[0].mxu0
        %4785 = vmatprep.mubr.bf16.mxu0 0
        %4786 = vmatmul.mubr.bf16.gmra.mrb[0].mxu0 %v4616
        %v4787 = vpop.f32.mrb[0].mxu0
        %v4788 = vadd.f32 0.0, %v4787
        %v4789 = vpop.f32.mrb[0].mxu0
        %v4790 = vpop.f32.mrb[0].mxu0
        %v4791 = vadd.f32 0.0, %v4790
        %v4792 = vpop.f32.mrb[0].mxu0
        %4793 = vmatprep.mubr.bf16.mxu0 0
        %4794 = vmatmul.mubr.bf16.gmra.mrb[0].mxu0 %v4617
        %v4795 = vpop.f32.mrb[0].mxu0
        %v4796 = vadd.f32 0.0, %v4795
        %v4797 = vpop.f32.mrb[0].mxu0
        %v4798 = vpop.f32.mrb[0].mxu0
        %v4799 = vadd.f32 0.0, %v4798
        %v4800 = vpop.f32.mrb[0].mxu0
        %4801 = vmatprep.mubr.bf16.mxu0 0
        %4802 = vmatmul.mubr.bf16.gmra.mrb[0].mxu0 %v4618
        %v4803 = vpop.f32.mrb[0].mxu0
        %v4804 = vadd.f32 0.0, %v4803
        %v4805 = vpop.f32.mrb[0].mxu0
        %v4806 = vpop.f32.mrb[0].mxu0
        %v4807 = vadd.f32 0.0, %v4806
        %v4808 = vpop.f32.mrb[0].mxu0
        %4809 = vmatprep.mubr.bf16.mxu0 0
        %4810 = vmatmul.mubr.bf16.gmra.mrb[0].mxu0 %v4619
        %v4811 = vpop.f32.mrb[0].mxu0
        %v4812 = vadd.f32 0.0, %v4811
        %v4813 = vpop.f32.mrb[0].mxu0
        %v4814 = vpop.f32.mrb[0].mxu0
        %v4815 = vadd.f32 0.0, %v4814
        %v4816 = vpop.f32.mrb[0].mxu0
        %4817 = vmatprep.mubr.bf16.mxu0 0
        %4818 = vmatmul.mubr.bf16.gmra.mrb[0].mxu0 %v4620
        %v4819 = vpop.f32.mrb[0].mxu0
        %v4820 = vadd.f32 0.0, %v4819
        %v4821 = vpop.f32.mrb[0].mxu0
        %v4822 = vpop.f32.mrb[0].mxu0
        %v4823 = vadd.f32 0.0, %v4822
        %v4824 = vpop.f32.mrb[0].mxu0
        %4825 = vmatprep.mubr.bf16.mxu0 0
        %4826 = vmatmul.mubr.bf16.gmra.mrb[0].mxu0 %v4621
        %v4827 = vpop.f32.mrb[0].mxu0
        %v4828 = vadd.f32 0.0, %v4827
        %v4829 = vpop.f32.mrb[0].mxu0
        %v4830 = vpop.f32.mrb[0].mxu0
        %v4831 = vadd.f32 0.0, %v4830
        %v4832 = vpop.f32.mrb[0].mxu0
        %4833 = vmatprep.mubr.bf16.mxu0 0
        %4834 = vmatmul.mubr.bf16.gmra.mrb[0].mxu0 %v4622
        %v4835 = vpop.f32.mrb[0].mxu0
        %v4836 = vadd.f32 0.0, %v4835
        %v4837 = vpop.f32.mrb[0].mxu0
        %v4838 = vpop.f32.mrb[0].mxu0
        %v4839 = vadd.f32 0.0, %v4838
        %v4840 = vpop.f32.mrb[0].mxu0
        %4841 = vmatprep.mubr.bf16.mxu0 0
        %4842 = vmatmul.mubr.bf16.gmra.mrb[0].mxu0 %v4623
        %v4843 = vpop.f32.mrb[0].mxu0
        %v4844 = vadd.f32 0.0, %v4843
        %v4845 = vpop.f32.mrb[0].mxu0
        %v4846 = vpop.f32.mrb[0].mxu0
        %v4847 = vadd.f32 0.0, %v4846
        %v4848 = vpop.f32.mrb[0].mxu0
        %4849 = vdwg.mxu0
        %v4866 = vunpack.c.l.b16 %v4560
        %v4867 = vunpack.c.l.b16 %v4561
        %v4868 = vunpack.c.l.b16 %v4562
        %v4869 = vunpack.c.l.b16 %v4563
        %v4870 = vunpack.c.l.b16 %v4564
        %v4871 = vunpack.c.l.b16 %v4565
        %v4872 = vunpack.c.l.b16 %v4566
        %v4873 = vunpack.c.l.b16 %v4567
        %v4874 = vunpack.c.l.b16 %v4568
        %v4875 = vunpack.c.l.b16 %v4569
        %v4876 = vunpack.c.l.b16 %v4570
        %v4877 = vunpack.c.l.b16 %v4571
        %v4878 = vunpack.c.l.b16 %v4572
        %v4879 = vunpack.c.l.b16 %v4573
        %v4880 = vunpack.c.l.b16 %v4574
        %v4881 = vunpack.c.l.b16 %v4575
        %v4882 = vpack.c.b16 %v4867, %v4866
        %v4883 = vpack.c.b16 %v4869, %v4868
        %v4884 = vpack.c.b16 %v4871, %v4870
        %v4885 = vpack.c.b16 %v4873, %v4872
        %v4886 = vpack.c.b16 %v4875, %v4874
        %v4887 = vpack.c.b16 %v4877, %v4876
        %v4888 = vpack.c.b16 %v4879, %v4878
        %v4889 = vpack.c.b16 %v4881, %v4880
        %4898 = vmatprep.subr.bf16.mxu0 0
        %4899 = vmatpush1.bf16.msra.mxu0 %v4882
        %4900 = vmatprep.subr.bf16.mxu0 0
        %4901 = vmatpush1.bf16.msra.mxu0 %v4883
        %4902 = vmatprep.subr.bf16.mxu0 0
        %4903 = vmatpush1.bf16.msra.mxu0 %v4884
        %4904 = vmatprep.subr.bf16.mxu0 0
        %4905 = vmatpush1.bf16.msra.mxu0 %v4885
        %4906 = vmatprep.subr.bf16.mxu0 0
        %4907 = vmatpush1.bf16.msra.mxu0 %v4886
        %4908 = vmatprep.subr.bf16.mxu0 0
        %4909 = vmatpush1.bf16.msra.mxu0 %v4887
        %4910 = vmatprep.subr.bf16.mxu0 0
        %4911 = vmatpush1.bf16.msra.mxu0 %v4888
        %4912 = vmatprep.subr.bf16.mxu0 0
        %4913 = vmatpush1.bf16.msra.mxu0 %v4889
        %4914 = vmatprep.subr.bf16.mxu0 0
        %4915 = vmatpush1.bf16.msra.mxu0 0
        %4916 = vmatprep.subr.bf16.mxu0 0
        %4917 = vmatpush1.bf16.msra.mxu0 0
        %4918 = vmatprep.subr.bf16.mxu0 0
        %4919 = vmatpush1.bf16.msra.mxu0 0
        %4920 = vmatprep.subr.bf16.mxu0 0
        %4921 = vmatpush1.bf16.msra.mxu0 0
        %4922 = vmatprep.subr.bf16.mxu0 0
        %4923 = vmatpush1.bf16.msra.mxu0 0
        %4924 = vmatprep.subr.bf16.mxu0 0
        %4925 = vmatpush1.bf16.msra.mxu0 0
        %4926 = vmatprep.subr.bf16.mxu0 0
        %4927 = vmatpush1.bf16.msra.mxu0 0
        %4928 = vmatprep.subr.bf16.mxu0 0
        %4929 = vmatpush1.bf16.msra.mxu0 0
        %4930 = vmatprep.mubr.bf16.mxu0 0
        %4931 = vmatmul.mubr.bf16.gmra.mrb[0].mxu0 %v4544
        %v4932 = vpop.f32.mrb[0].mxu0
        %v4933 = vadd.f32 %v4724, %v4932
        %v4934 = vpop.f32.mrb[0].mxu0
        %v4935 = vpop.f32.mrb[0].mxu0
        %v4936 = vadd.f32 %v4727, %v4935
        %v4937 = vpop.f32.mrb[0].mxu0
        %4938 = vmatprep.mubr.bf16.mxu0 0
        %4939 = vmatmul.mubr.bf16.gmra.mrb[0].mxu0 %v4545
        %v4940 = vpop.f32.mrb[0].mxu0
        %v4941 = vadd.f32 %v4732, %v4940
        %v4942 = vpop.f32.mrb[0].mxu0
        %v4943 = vpop.f32.mrb[0].mxu0
        %v4944 = vadd.f32 %v4735, %v4943
        %v4945 = vpop.f32.mrb[0].mxu0
        %4946 = vmatprep.mubr.bf16.mxu0 0
        %4947 = vmatmul.mubr.bf16.gmra.mrb[0].mxu0 %v4546
        %v4948 = vpop.f32.mrb[0].mxu0
        %v4949 = vadd.f32 %v4740, %v4948
        %v4950 = vpop.f32.mrb[0].mxu0
        %v4951 = vpop.f32.mrb[0].mxu0
        %v4952 = vadd.f32 %v4743, %v4951
        %v4953 = vpop.f32.mrb[0].mxu0
        %4954 = vmatprep.mubr.bf16.mxu0 0
        %4955 = vmatmul.mubr.bf16.gmra.mrb[0].mxu0 %v4547
        %v4956 = vpop.f32.mrb[0].mxu0
        %v4957 = vadd.f32 %v4748, %v4956
        %v4958 = vpop.f32.mrb[0].mxu0
        %v4959 = vpop.f32.mrb[0].mxu0
        %v4960 = vadd.f32 %v4751, %v4959
        %v4961 = vpop.f32.mrb[0].mxu0
        %4962 = vmatprep.mubr.bf16.mxu0 0
        %4963 = vmatmul.mubr.bf16.gmra.mrb[0].mxu0 %v4548
        %v4964 = vpop.f32.mrb[0].mxu0
        %v4965 = vadd.f32 %v4756, %v4964
        %v4966 = vpop.f32.mrb[0].mxu0
        %v4967 = vpop.f32.mrb[0].mxu0
        %v4968 = vadd.f32 %v4759, %v4967
        %v4969 = vpop.f32.mrb[0].mxu0
        %4970 = vmatprep.mubr.bf16.mxu0 0
        %4971 = vmatmul.mubr.bf16.gmra.mrb[0].mxu0 %v4549
        %v4972 = vpop.f32.mrb[0].mxu0
        %v4973 = vadd.f32 %v4764, %v4972
        %v4974 = vpop.f32.mrb[0].mxu0
        %v4975 = vpop.f32.mrb[0].mxu0
        %v4976 = vadd.f32 %v4767, %v4975
        %v4977 = vpop.f32.mrb[0].mxu0
        %4978 = vmatprep.mubr.bf16.mxu0 0
        %4979 = vmatmul.mubr.bf16.gmra.mrb[0].mxu0 %v4550
        %v4980 = vpop.f32.mrb[0].mxu0
        %v4981 = vadd.f32 %v4772, %v4980
        %v4982 = vpop.f32.mrb[0].mxu0
        %v4983 = vpop.f32.mrb[0].mxu0
        %v4984 = vadd.f32 %v4775, %v4983
        %v4985 = vpop.f32.mrb[0].mxu0
        %4986 = vmatprep.mubr.bf16.mxu0 0
        %4987 = vmatmul.mubr.bf16.gmra.mrb[0].mxu0 %v4551
        %v4988 = vpop.f32.mrb[0].mxu0
        %v4989 = vadd.f32 %v4780, %v4988
        %v4990 = vpop.f32.mrb[0].mxu0
        %v4991 = vpop.f32.mrb[0].mxu0
        %v4992 = vadd.f32 %v4783, %v4991
        %v4993 = vpop.f32.mrb[0].mxu0
        %4994 = vmatprep.mubr.bf16.mxu0 0
        %4995 = vmatmul.mubr.bf16.gmra.mrb[0].mxu0 %v4552
        %v4996 = vpop.f32.mrb[0].mxu0
        %v4997 = vadd.f32 %v4788, %v4996
        %v4998 = vpop.f32.mrb[0].mxu0
        %v4999 = vpop.f32.mrb[0].mxu0
        %v5000 = vadd.f32 %v4791, %v4999
        %v5001 = vpop.f32.mrb[0].mxu0
        %5002 = vmatprep.mubr.bf16.mxu0 0
        %5003 = vmatmul.mubr.bf16.gmra.mrb[0].mxu0 %v4553
        %v5004 = vpop.f32.mrb[0].mxu0
        %v5005 = vadd.f32 %v4796, %v5004
        %v5006 = vpop.f32.mrb[0].mxu0
        %v5007 = vpop.f32.mrb[0].mxu0
        %v5008 = vadd.f32 %v4799, %v5007
        %v5009 = vpop.f32.mrb[0].mxu0
        %5010 = vmatprep.mubr.bf16.mxu0 0
        %5011 = vmatmul.mubr.bf16.gmra.mrb[0].mxu0 %v4554
        %v5012 = vpop.f32.mrb[0].mxu0
        %v5013 = vadd.f32 %v4804, %v5012
        %v5014 = vpop.f32.mrb[0].mxu0
        %v5015 = vpop.f32.mrb[0].mxu0
        %v5016 = vadd.f32 %v4807, %v5015
        %v5017 = vpop.f32.mrb[0].mxu0
        %5018 = vmatprep.mubr.bf16.mxu0 0
        %5019 = vmatmul.mubr.bf16.gmra.mrb[0].mxu0 %v4555
        %v5020 = vpop.f32.mrb[0].mxu0
        %v5021 = vadd.f32 %v4812, %v5020
        %v5022 = vpop.f32.mrb[0].mxu0
        %v5023 = vpop.f32.mrb[0].mxu0
        %v5024 = vadd.f32 %v4815, %v5023
        %v5025 = vpop.f32.mrb[0].mxu0
        %5026 = vmatprep.mubr.bf16.mxu0 0
        %5027 = vmatmul.mubr.bf16.gmra.mrb[0].mxu0 %v4556
        %v5028 = vpop.f32.mrb[0].mxu0
        %v5029 = vadd.f32 %v4820, %v5028
        %v5030 = vpop.f32.mrb[0].mxu0
        %v5031 = vpop.f32.mrb[0].mxu0
        %v5032 = vadd.f32 %v4823, %v5031
        %v5033 = vpop.f32.mrb[0].mxu0
        %5034 = vmatprep.mubr.bf16.mxu0 0
        %5035 = vmatmul.mubr.bf16.gmra.mrb[0].mxu0 %v4557
        %v5036 = vpop.f32.mrb[0].mxu0
        %v5037 = vadd.f32 %v4828, %v5036
        %v5038 = vpop.f32.mrb[0].mxu0
        %v5039 = vpop.f32.mrb[0].mxu0
        %v5040 = vadd.f32 %v4831, %v5039
        %v5041 = vpop.f32.mrb[0].mxu0
        %5042 = vmatprep.mubr.bf16.mxu0 0
        %5043 = vmatmul.mubr.bf16.gmra.mrb[0].mxu0 %v4558
        %v5044 = vpop.f32.mrb[0].mxu0
        %v5045 = vadd.f32 %v4836, %v5044
        %v5046 = vpop.f32.mrb[0].mxu0
        %v5047 = vpop.f32.mrb[0].mxu0
        %v5048 = vadd.f32 %v4839, %v5047
        %v5049 = vpop.f32.mrb[0].mxu0
        %5050 = vmatprep.mubr.bf16.mxu0 0
        %5051 = vmatmul.mubr.bf16.gmra.mrb[0].mxu0 %v4559
        %v5052 = vpop.f32.mrb[0].mxu0
        %v5053 = vadd.f32 %v4844, %v5052
        %v5054 = vpop.f32.mrb[0].mxu0
        %v5055 = vpop.f32.mrb[0].mxu0
        %v5056 = vadd.f32 %v4847, %v5055
        %v5057 = vpop.f32.mrb[0].mxu0
        %5058 = vdwg.mxu0
        %v5059 = vld [vmem:[#allocation2 + $0x2] sm:$0xff]
        %v5060 = vld [vmem:[#allocation2 + $0xa] sm:$0xff]
        %v5061 = vld [vmem:[#allocation2 + $0x1a] sm:$0xff]
        %v5062 = vld [vmem:[#allocation2 + $0x22] sm:$0xff]
        %v5063 = vld [vmem:[#allocation2 + $0x32] sm:$0xff]
        %v5064 = vld [vmem:[#allocation2 + $0x3a] sm:$0xff]
        %v5065 = vld [vmem:[#allocation2 + $0x4a] sm:$0xff]
        %v5066 = vld [vmem:[#allocation2 + $0x52] sm:$0xff]
        %v5067 = vld [vmem:[#allocation2 + $0x62] sm:$0xff]
        %v5068 = vld [vmem:[#allocation2 + $0x6a] sm:$0xff]
        %v5069 = vld [vmem:[#allocation2 + $0x7a] sm:$0xff]
        %v5070 = vld [vmem:[#allocation2 + $0x82] sm:$0xff]
        %v5071 = vld [vmem:[#allocation2 + $0x92] sm:$0xff]
        %v5072 = vld [vmem:[#allocation2 + $0x9a] sm:$0xff]
        %v5073 = vld [vmem:[#allocation2 + $0xaa] sm:$0xff]
        %v5074 = vld [vmem:[#allocation2 + $0xb2] sm:$0xff]
        %v5075 = vld [vmem:[#allocation2 + $0xc2] sm:$0xff]
        %v5076 = vld [vmem:[#allocation2 + $0xca] sm:$0xff]
        %v5077 = vld [vmem:[#allocation2 + $0xda] sm:$0xff]
        %v5078 = vld [vmem:[#allocation2 + $0xe2] sm:$0xff]
        %v5079 = vld [vmem:[#allocation2 + $0xf2] sm:$0xff]
        %v5080 = vld [vmem:[#allocation2 + $0xfa] sm:$0xff]
        %v5081 = vld [vmem:[#allocation2 + $0x10a] sm:$0xff]
        %v5082 = vld [vmem:[#allocation2 + $0x112] sm:$0xff]
        %v5083 = vld [vmem:[#allocation2 + $0x122] sm:$0xff]
        %v5084 = vld [vmem:[#allocation2 + $0x12a] sm:$0xff]
        %v5085 = vld [vmem:[#allocation2 + $0x13a] sm:$0xff]
        %v5086 = vld [vmem:[#allocation2 + $0x142] sm:$0xff]
        %v5087 = vld [vmem:[#allocation2 + $0x152] sm:$0xff]
        %v5088 = vld [vmem:[#allocation2 + $0x15a] sm:$0xff]
        %v5089 = vld [vmem:[#allocation2 + $0x16a] sm:$0xff]
        %v5090 = vld [vmem:[#allocation2 + $0x172] sm:$0xff]
        %v5091 = vpack.c.bf16 %v5060, %v5059
        %v5092 = vpack.c.bf16 %v5062, %v5061
        %v5093 = vpack.c.bf16 %v5064, %v5063
        %v5094 = vpack.c.bf16 %v5066, %v5065
        %v5095 = vpack.c.bf16 %v5068, %v5067
        %v5096 = vpack.c.bf16 %v5070, %v5069
        %v5097 = vpack.c.bf16 %v5072, %v5071
        %v5098 = vpack.c.bf16 %v5074, %v5073
        %v5099 = vpack.c.bf16 %v5076, %v5075
        %v5100 = vpack.c.bf16 %v5078, %v5077
        %v5101 = vpack.c.bf16 %v5080, %v5079
        %v5102 = vpack.c.bf16 %v5082, %v5081
        %v5103 = vpack.c.bf16 %v5084, %v5083
        %v5104 = vpack.c.bf16 %v5086, %v5085
        %v5105 = vpack.c.bf16 %v5088, %v5087
        %v5106 = vpack.c.bf16 %v5090, %v5089
        %s5107 = scalar_lea.vmem [#allocation11], 128
        %v5108 = vld [vmem:[%s5107] sm:$0xf]
        %v5109 = vld [vmem:[%s5107 + $0x4] sm:$0xf]
        %v5110 = vld [vmem:[%s5107 + $0x8] sm:$0xf]
        %v5111 = vld [vmem:[%s5107 + $0xc] sm:$0xf]
        %v5112 = vld [vmem:[%s5107 + $0x10] sm:$0xf]
        %v5113 = vld [vmem:[%s5107 + $0x14] sm:$0xf]
        %v5114 = vld [vmem:[%s5107 + $0x18] sm:$0xf]
        %v5115 = vld [vmem:[%s5107 + $0x1c] sm:$0xf]
        %v5116 = vld [vmem:[%s5107 + $0x20] sm:$0xf]
        %v5117 = vld [vmem:[%s5107 + $0x24] sm:$0xf]
        %v5118 = vld [vmem:[%s5107 + $0x28] sm:$0xf]
        %v5119 = vld [vmem:[%s5107 + $0x2c] sm:$0xf]
        %v5120 = vld [vmem:[%s5107 + $0x30] sm:$0xf]
        %v5121 = vld [vmem:[%s5107 + $0x34] sm:$0xf]
        %v5122 = vld [vmem:[%s5107 + $0x38] sm:$0xf]
        %v5123 = vld [vmem:[%s5107 + $0x3c] sm:$0xf]
        %v5140 = vunpack.c.l.b16 %v5108
        %v5141 = vunpack.c.l.b16 %v5109
        %v5142 = vunpack.c.l.b16 %v5110
        %v5143 = vunpack.c.l.b16 %v5111
        %v5144 = vunpack.c.l.b16 %v5112
        %v5145 = vunpack.c.l.b16 %v5113
        %v5146 = vunpack.c.l.b16 %v5114
        %v5147 = vunpack.c.l.b16 %v5115
        %v5148 = vunpack.c.l.b16 %v5116
        %v5149 = vunpack.c.l.b16 %v5117
        %v5150 = vunpack.c.l.b16 %v5118
        %v5151 = vunpack.c.l.b16 %v5119
        %v5152 = vunpack.c.l.b16 %v5120
        %v5153 = vunpack.c.l.b16 %v5121
        %v5154 = vunpack.c.l.b16 %v5122
        %v5155 = vunpack.c.l.b16 %v5123
        %v5156 = vpack.c.b16 %v5141, %v5140
        %v5157 = vpack.c.b16 %v5143, %v5142
        %v5158 = vpack.c.b16 %v5145, %v5144
        %v5159 = vpack.c.b16 %v5147, %v5146
        %v5160 = vpack.c.b16 %v5149, %v5148
        %v5161 = vpack.c.b16 %v5151, %v5150
        %v5162 = vpack.c.b16 %v5153, %v5152
        %v5163 = vpack.c.b16 %v5155, %v5154
        %5172 = vmatprep.subr.bf16.mxu0 0
        %5173 = vmatpush1.bf16.msra.mxu0 %v5156
        %5174 = vmatprep.subr.bf16.mxu0 0
        %5175 = vmatpush1.bf16.msra.mxu0 %v5157
        %5176 = vmatprep.subr.bf16.mxu0 0
        %5177 = vmatpush1.bf16.msra.mxu0 %v5158
        %5178 = vmatprep.subr.bf16.mxu0 0
        %5179 = vmatpush1.bf16.msra.mxu0 %v5159
        %5180 = vmatprep.subr.bf16.mxu0 0
        %5181 = vmatpush1.bf16.msra.mxu0 %v5160
        %5182 = vmatprep.subr.bf16.mxu0 0
        %5183 = vmatpush1.bf16.msra.mxu0 %v5161
        %5184 = vmatprep.subr.bf16.mxu0 0
        %5185 = vmatpush1.bf16.msra.mxu0 %v5162
        %5186 = vmatprep.subr.bf16.mxu0 0
        %5187 = vmatpush1.bf16.msra.mxu0 %v5163
        %5188 = vmatprep.subr.bf16.mxu0 0
        %5189 = vmatpush1.bf16.msra.mxu0 0
        %5190 = vmatprep.subr.bf16.mxu0 0
        %5191 = vmatpush1.bf16.msra.mxu0 0
        %5192 = vmatprep.subr.bf16.mxu0 0
        %5193 = vmatpush1.bf16.msra.mxu0 0
        %5194 = vmatprep.subr.bf16.mxu0 0
        %5195 = vmatpush1.bf16.msra.mxu0 0
        %5196 = vmatprep.subr.bf16.mxu0 0
        %5197 = vmatpush1.bf16.msra.mxu0 0
        %5198 = vmatprep.subr.bf16.mxu0 0
        %5199 = vmatpush1.bf16.msra.mxu0 0
        %5200 = vmatprep.subr.bf16.mxu0 0
        %5201 = vmatpush1.bf16.msra.mxu0 0
        %5202 = vmatprep.subr.bf16.mxu0 0
        %5203 = vmatpush1.bf16.msra.mxu0 0
        %5204 = vmatprep.mubr.bf16.mxu0 0
        %5205 = vmatmul.mubr.bf16.gmra.mrb[0].mxu0 %v5091
        %v5206 = vpop.f32.mrb[0].mxu0
        %v5207 = vadd.f32 0.0, %v5206
        %v5208 = vpop.f32.mrb[0].mxu0
        %v5209 = vpop.f32.mrb[0].mxu0
        %v5210 = vadd.f32 0.0, %v5209
        %v5211 = vpop.f32.mrb[0].mxu0
        %5212 = vmatprep.mubr.bf16.mxu0 0
        %5213 = vmatmul.mubr.bf16.gmra.mrb[0].mxu0 %v5092
        %v5214 = vpop.f32.mrb[0].mxu0
        %v5215 = vadd.f32 0.0, %v5214
        %v5216 = vpop.f32.mrb[0].mxu0
        %v5217 = vpop.f32.mrb[0].mxu0
        %v5218 = vadd.f32 0.0, %v5217
        %v5219 = vpop.f32.mrb[0].mxu0
        %5220 = vmatprep.mubr.bf16.mxu0 0
        %5221 = vmatmul.mubr.bf16.gmra.mrb[0].mxu0 %v5093
        %v5222 = vpop.f32.mrb[0].mxu0
        %v5223 = vadd.f32 0.0, %v5222
        %v5224 = vpop.f32.mrb[0].mxu0
        %v5225 = vpop.f32.mrb[0].mxu0
        %v5226 = vadd.f32 0.0, %v5225
        %v5227 = vpop.f32.mrb[0].mxu0
        %5228 = vmatprep.mubr.bf16.mxu0 0
        %5229 = vmatmul.mubr.bf16.gmra.mrb[0].mxu0 %v5094
        %v5230 = vpop.f32.mrb[0].mxu0
        %v5231 = vadd.f32 0.0, %v5230
        %v5232 = vpop.f32.mrb[0].mxu0
        %v5233 = vpop.f32.mrb[0].mxu0
        %v5234 = vadd.f32 0.0, %v5233
        %v5235 = vpop.f32.mrb[0].mxu0
        %5236 = vmatprep.mubr.bf16.mxu0 0
        %5237 = vmatmul.mubr.bf16.gmra.mrb[0].mxu0 %v5095
        %v5238 = vpop.f32.mrb[0].mxu0
        %v5239 = vadd.f32 0.0, %v5238
        %v5240 = vpop.f32.mrb[0].mxu0
        %v5241 = vpop.f32.mrb[0].mxu0
        %v5242 = vadd.f32 0.0, %v5241
        %v5243 = vpop.f32.mrb[0].mxu0
        %5244 = vmatprep.mubr.bf16.mxu0 0
        %5245 = vmatmul.mubr.bf16.gmra.mrb[0].mxu0 %v5096
        %v5246 = vpop.f32.mrb[0].mxu0
        %v5247 = vadd.f32 0.0, %v5246
        %v5248 = vpop.f32.mrb[0].mxu0
        %v5249 = vpop.f32.mrb[0].mxu0
        %v5250 = vadd.f32 0.0, %v5249
        %v5251 = vpop.f32.mrb[0].mxu0
        %5252 = vmatprep.mubr.bf16.mxu0 0
        %5253 = vmatmul.mubr.bf16.gmra.mrb[0].mxu0 %v5097
        %v5254 = vpop.f32.mrb[0].mxu0
        %v5255 = vadd.f32 0.0, %v5254
        %v5256 = vpop.f32.mrb[0].mxu0
        %v5257 = vpop.f32.mrb[0].mxu0
        %v5258 = vadd.f32 0.0, %v5257
        %v5259 = vpop.f32.mrb[0].mxu0
        %5260 = vmatprep.mubr.bf16.mxu0 0
        %5261 = vmatmul.mubr.bf16.gmra.mrb[0].mxu0 %v5098
        %v5262 = vpop.f32.mrb[0].mxu0
        %v5263 = vadd.f32 0.0, %v5262
        %v5264 = vpop.f32.mrb[0].mxu0
        %v5265 = vpop.f32.mrb[0].mxu0
        %v5266 = vadd.f32 0.0, %v5265
        %v5267 = vpop.f32.mrb[0].mxu0
        %5268 = vmatprep.mubr.bf16.mxu0 0
        %5269 = vmatmul.mubr.bf16.gmra.mrb[0].mxu0 %v5099
        %v5270 = vpop.f32.mrb[0].mxu0
        %v5271 = vadd.f32 0.0, %v5270
        %v5272 = vpop.f32.mrb[0].mxu0
        %v5273 = vpop.f32.mrb[0].mxu0
        %v5274 = vadd.f32 0.0, %v5273
        %v5275 = vpop.f32.mrb[0].mxu0
        %5276 = vmatprep.mubr.bf16.mxu0 0
        %5277 = vmatmul.mubr.bf16.gmra.mrb[0].mxu0 %v5100
        %v5278 = vpop.f32.mrb[0].mxu0
        %v5279 = vadd.f32 0.0, %v5278
        %v5280 = vpop.f32.mrb[0].mxu0
        %v5281 = vpop.f32.mrb[0].mxu0
        %v5282 = vadd.f32 0.0, %v5281
        %v5283 = vpop.f32.mrb[0].mxu0
        %5284 = vmatprep.mubr.bf16.mxu0 0
        %5285 = vmatmul.mubr.bf16.gmra.mrb[0].mxu0 %v5101
        %v5286 = vpop.f32.mrb[0].mxu0
        %v5287 = vadd.f32 0.0, %v5286
        %v5288 = vpop.f32.mrb[0].mxu0
        %v5289 = vpop.f32.mrb[0].mxu0
        %v5290 = vadd.f32 0.0, %v5289
        %v5291 = vpop.f32.mrb[0].mxu0
        %5292 = vmatprep.mubr.bf16.mxu0 0
        %5293 = vmatmul.mubr.bf16.gmra.mrb[0].mxu0 %v5102
        %v5294 = vpop.f32.mrb[0].mxu0
        %v5295 = vadd.f32 0.0, %v5294
        %v5296 = vpop.f32.mrb[0].mxu0
        %v5297 = vpop.f32.mrb[0].mxu0
        %v5298 = vadd.f32 0.0, %v5297
        %v5299 = vpop.f32.mrb[0].mxu0
        %5300 = vmatprep.mubr.bf16.mxu0 0
        %5301 = vmatmul.mubr.bf16.gmra.mrb[0].mxu0 %v5103
        %v5302 = vpop.f32.mrb[0].mxu0
        %v5303 = vadd.f32 0.0, %v5302
        %v5304 = vpop.f32.mrb[0].mxu0
        %v5305 = vpop.f32.mrb[0].mxu0
        %v5306 = vadd.f32 0.0, %v5305
        %v5307 = vpop.f32.mrb[0].mxu0
        %5308 = vmatprep.mubr.bf16.mxu0 0
        %5309 = vmatmul.mubr.bf16.gmra.mrb[0].mxu0 %v5104
        %v5310 = vpop.f32.mrb[0].mxu0
        %v5311 = vadd.f32 0.0, %v5310
        %v5312 = vpop.f32.mrb[0].mxu0
        %v5313 = vpop.f32.mrb[0].mxu0
        %v5314 = vadd.f32 0.0, %v5313
        %v5315 = vpop.f32.mrb[0].mxu0
        %5316 = vmatprep.mubr.bf16.mxu0 0
        %5317 = vmatmul.mubr.bf16.gmra.mrb[0].mxu0 %v5105
        %v5318 = vpop.f32.mrb[0].mxu0
        %v5319 = vadd.f32 0.0, %v5318
        %v5320 = vpop.f32.mrb[0].mxu0
        %v5321 = vpop.f32.mrb[0].mxu0
        %v5322 = vadd.f32 0.0, %v5321
        %v5323 = vpop.f32.mrb[0].mxu0
        %5324 = vmatprep.mubr.bf16.mxu0 0
        %5325 = vmatmul.mubr.bf16.gmra.mrb[0].mxu0 %v5106
        %v5326 = vpop.f32.mrb[0].mxu0
        %v5327 = vadd.f32 0.0, %v5326
        %v5328 = vpop.f32.mrb[0].mxu0
        %v5329 = vpop.f32.mrb[0].mxu0
        %v5330 = vadd.f32 0.0, %v5329
        %v5331 = vpop.f32.mrb[0].mxu0
        %5332 = vdwg.mxu0
        %v5333 = vadd.f32 %v4933, %v5207
        %v5334 = vadd.f32 %v4936, %v5210
        %v5335 = vadd.f32 %v4941, %v5215
        %v5336 = vadd.f32 %v4944, %v5218
        %v5337 = vadd.f32 %v4949, %v5223
        %v5338 = vadd.f32 %v4952, %v5226
        %v5339 = vadd.f32 %v4957, %v5231
        %v5340 = vadd.f32 %v4960, %v5234
        %v5341 = vadd.f32 %v4965, %v5239
        %v5342 = vadd.f32 %v4968, %v5242
        %v5343 = vadd.f32 %v4973, %v5247
        %v5344 = vadd.f32 %v4976, %v5250
        %v5345 = vadd.f32 %v4981, %v5255
        %v5346 = vadd.f32 %v4984, %v5258
        %v5347 = vadd.f32 %v4989, %v5263
        %v5348 = vadd.f32 %v4992, %v5266
        %v5349 = vadd.f32 %v4997, %v5271
        %v5350 = vadd.f32 %v5000, %v5274
        %v5351 = vadd.f32 %v5005, %v5279
        %v5352 = vadd.f32 %v5008, %v5282
        %v5353 = vadd.f32 %v5013, %v5287
        %v5354 = vadd.f32 %v5016, %v5290
        %v5355 = vadd.f32 %v5021, %v5295
        %v5356 = vadd.f32 %v5024, %v5298
        %v5357 = vadd.f32 %v5029, %v5303
        %v5358 = vadd.f32 %v5032, %v5306
        %v5359 = vadd.f32 %v5037, %v5311
        %v5360 = vadd.f32 %v5040, %v5314
        %v5361 = vadd.f32 %v5045, %v5319
        %v5362 = vadd.f32 %v5048, %v5322
        %v5363 = vadd.f32 %v5053, %v5327
        %v5364 = vadd.f32 %v5056, %v5330
        %v5365 = vld [vmem:[%s1168] sm:$0xff]
        %v5366 = vld [vmem:[%s1168 + $0x8] sm:$0xff]
        %v5367 = vld [vmem:[%s1168 + $0x18] sm:$0xff]
        %v5368 = vld [vmem:[%s1168 + $0x20] sm:$0xff]
        %v5369 = vld [vmem:[%s1168 + $0x30] sm:$0xff]
        %v5370 = vld [vmem:[%s1168 + $0x38] sm:$0xff]
        %v5371 = vld [vmem:[%s1168 + $0x48] sm:$0xff]
        %v5372 = vld [vmem:[%s1168 + $0x50] sm:$0xff]
        %v5373 = vld [vmem:[%s1168 + $0x60] sm:$0xff]
        %v5374 = vld [vmem:[%s1168 + $0x68] sm:$0xff]
        %v5375 = vld [vmem:[%s1168 + $0x78] sm:$0xff]
        %v5376 = vld [vmem:[%s1168 + $0x80] sm:$0xff]
        %v5377 = vld [vmem:[%s1168 + $0x90] sm:$0xff]
        %v5378 = vld [vmem:[%s1168 + $0x98] sm:$0xff]
        %v5379 = vld [vmem:[%s1168 + $0xa8] sm:$0xff]
        %v5380 = vld [vmem:[%s1168 + $0xb0] sm:$0xff]
        %v5381 = vld [vmem:[%s1168 + $0xc0] sm:$0xff]
        %v5382 = vld [vmem:[%s1168 + $0xc8] sm:$0xff]
        %v5383 = vld [vmem:[%s1168 + $0xd8] sm:$0xff]
        %v5384 = vld [vmem:[%s1168 + $0xe0] sm:$0xff]
        %v5385 = vld [vmem:[%s1168 + $0xf0] sm:$0xff]
        %v5386 = vld [vmem:[%s1168 + $0xf8] sm:$0xff]
        %v5387 = vld [vmem:[%s1168 + $0x108] sm:$0xff]
        %v5388 = vld [vmem:[%s1168 + $0x110] sm:$0xff]
        %v5389 = vld [vmem:[%s1168 + $0x120] sm:$0xff]
        %v5390 = vld [vmem:[%s1168 + $0x128] sm:$0xff]
        %v5391 = vld [vmem:[%s1168 + $0x138] sm:$0xff]
        %v5392 = vld [vmem:[%s1168 + $0x140] sm:$0xff]
        %v5393 = vld [vmem:[%s1168 + $0x150] sm:$0xff]
        %v5394 = vld [vmem:[%s1168 + $0x158] sm:$0xff]
        %v5395 = vld [vmem:[%s1168 + $0x168] sm:$0xff]
        %v5396 = vld [vmem:[%s1168 + $0x170] sm:$0xff]
        %v5397 = vpack.c.bf16 %v5366, %v5365
        %v5398 = vpack.c.bf16 %v5368, %v5367
        %v5399 = vpack.c.bf16 %v5370, %v5369
        %v5400 = vpack.c.bf16 %v5372, %v5371
        %v5401 = vpack.c.bf16 %v5374, %v5373
        %v5402 = vpack.c.bf16 %v5376, %v5375
        %v5403 = vpack.c.bf16 %v5378, %v5377
        %v5404 = vpack.c.bf16 %v5380, %v5379
        %v5405 = vpack.c.bf16 %v5382, %v5381
        %v5406 = vpack.c.bf16 %v5384, %v5383
        %v5407 = vpack.c.bf16 %v5386, %v5385
        %v5408 = vpack.c.bf16 %v5388, %v5387
        %v5409 = vpack.c.bf16 %v5390, %v5389
        %v5410 = vpack.c.bf16 %v5392, %v5391
        %v5411 = vpack.c.bf16 %v5394, %v5393
        %v5412 = vpack.c.bf16 %v5396, %v5395
        %s5413 = scalar_lea.vmem [#allocation11], 192
        %v5414 = vld [vmem:[%s5413] sm:$0xf]
        %v5415 = vld [vmem:[%s5413 + $0x4] sm:$0xf]
        %v5416 = vld [vmem:[%s5413 + $0x8] sm:$0xf]
        %v5417 = vld [vmem:[%s5413 + $0xc] sm:$0xf]
        %v5418 = vld [vmem:[%s5413 + $0x10] sm:$0xf]
        %v5419 = vld [vmem:[%s5413 + $0x14] sm:$0xf]
        %v5420 = vld [vmem:[%s5413 + $0x18] sm:$0xf]
        %v5421 = vld [vmem:[%s5413 + $0x1c] sm:$0xf]
        %v5422 = vld [vmem:[%s5413 + $0x20] sm:$0xf]
        %v5423 = vld [vmem:[%s5413 + $0x24] sm:$0xf]
        %v5424 = vld [vmem:[%s5413 + $0x28] sm:$0xf]
        %v5425 = vld [vmem:[%s5413 + $0x2c] sm:$0xf]
        %v5426 = vld [vmem:[%s5413 + $0x30] sm:$0xf]
        %v5427 = vld [vmem:[%s5413 + $0x34] sm:$0xf]
        %v5428 = vld [vmem:[%s5413 + $0x38] sm:$0xf]
        %v5429 = vld [vmem:[%s5413 + $0x3c] sm:$0xf]
        %v5446 = vunpack.c.l.b16 %v5414
        %v5447 = vunpack.c.l.b16 %v5415
        %v5448 = vunpack.c.l.b16 %v5416
        %v5449 = vunpack.c.l.b16 %v5417
        %v5450 = vunpack.c.l.b16 %v5418
        %v5451 = vunpack.c.l.b16 %v5419
        %v5452 = vunpack.c.l.b16 %v5420
        %v5453 = vunpack.c.l.b16 %v5421
        %v5454 = vunpack.c.l.b16 %v5422
        %v5455 = vunpack.c.l.b16 %v5423
        %v5456 = vunpack.c.l.b16 %v5424
        %v5457 = vunpack.c.l.b16 %v5425
        %v5458 = vunpack.c.l.b16 %v5426
        %v5459 = vunpack.c.l.b16 %v5427
        %v5460 = vunpack.c.l.b16 %v5428
        %v5461 = vunpack.c.l.b16 %v5429
        %v5462 = vpack.c.b16 %v5447, %v5446
        %v5463 = vpack.c.b16 %v5449, %v5448
        %v5464 = vpack.c.b16 %v5451, %v5450
        %v5465 = vpack.c.b16 %v5453, %v5452
        %v5466 = vpack.c.b16 %v5455, %v5454
        %v5467 = vpack.c.b16 %v5457, %v5456
        %v5468 = vpack.c.b16 %v5459, %v5458
        %v5469 = vpack.c.b16 %v5461, %v5460
        %5478 = vmatprep.subr.bf16.mxu0 0
        %5479 = vmatpush1.bf16.msra.mxu0 %v5462
        %5480 = vmatprep.subr.bf16.mxu0 0
        %5481 = vmatpush1.bf16.msra.mxu0 %v5463
        %5482 = vmatprep.subr.bf16.mxu0 0
        %5483 = vmatpush1.bf16.msra.mxu0 %v5464
        %5484 = vmatprep.subr.bf16.mxu0 0
        %5485 = vmatpush1.bf16.msra.mxu0 %v5465
        %5486 = vmatprep.subr.bf16.mxu0 0
        %5487 = vmatpush1.bf16.msra.mxu0 %v5466
        %5488 = vmatprep.subr.bf16.mxu0 0
        %5489 = vmatpush1.bf16.msra.mxu0 %v5467
        %5490 = vmatprep.subr.bf16.mxu0 0
        %5491 = vmatpush1.bf16.msra.mxu0 %v5468
        %5492 = vmatprep.subr.bf16.mxu0 0
        %5493 = vmatpush1.bf16.msra.mxu0 %v5469
        %5494 = vmatprep.subr.bf16.mxu0 0
        %5495 = vmatpush1.bf16.msra.mxu0 0
        %5496 = vmatprep.subr.bf16.mxu0 0
        %5497 = vmatpush1.bf16.msra.mxu0 0
        %5498 = vmatprep.subr.bf16.mxu0 0
        %5499 = vmatpush1.bf16.msra.mxu0 0
        %5500 = vmatprep.subr.bf16.mxu0 0
        %5501 = vmatpush1.bf16.msra.mxu0 0
        %5502 = vmatprep.subr.bf16.mxu0 0
        %5503 = vmatpush1.bf16.msra.mxu0 0
        %5504 = vmatprep.subr.bf16.mxu0 0
        %5505 = vmatpush1.bf16.msra.mxu0 0
        %5506 = vmatprep.subr.bf16.mxu0 0
        %5507 = vmatpush1.bf16.msra.mxu0 0
        %5508 = vmatprep.subr.bf16.mxu0 0
        %5509 = vmatpush1.bf16.msra.mxu0 0
        %5510 = vmatprep.mubr.bf16.mxu0 0
        %5511 = vmatmul.mubr.bf16.gmra.mrb[0].mxu0 %v5397
        %v5512 = vpop.f32.mrb[0].mxu0
        %v5513 = vadd.f32 0.0, %v5512
        %v5514 = vpop.f32.mrb[0].mxu0
        %v5515 = vpop.f32.mrb[0].mxu0
        %v5516 = vadd.f32 0.0, %v5515
        %v5517 = vpop.f32.mrb[0].mxu0
        %5518 = vmatprep.mubr.bf16.mxu0 0
        %5519 = vmatmul.mubr.bf16.gmra.mrb[0].mxu0 %v5398
        %v5520 = vpop.f32.mrb[0].mxu0
        %v5521 = vadd.f32 0.0, %v5520
        %v5522 = vpop.f32.mrb[0].mxu0
        %v5523 = vpop.f32.mrb[0].mxu0
        %v5524 = vadd.f32 0.0, %v5523
        %v5525 = vpop.f32.mrb[0].mxu0
        %5526 = vmatprep.mubr.bf16.mxu0 0
        %5527 = vmatmul.mubr.bf16.gmra.mrb[0].mxu0 %v5399
        %v5528 = vpop.f32.mrb[0].mxu0
        %v5529 = vadd.f32 0.0, %v5528
        %v5530 = vpop.f32.mrb[0].mxu0
        %v5531 = vpop.f32.mrb[0].mxu0
        %v5532 = vadd.f32 0.0, %v5531
        %v5533 = vpop.f32.mrb[0].mxu0
        %5534 = vmatprep.mubr.bf16.mxu0 0
        %5535 = vmatmul.mubr.bf16.gmra.mrb[0].mxu0 %v5400
        %v5536 = vpop.f32.mrb[0].mxu0
        %v5537 = vadd.f32 0.0, %v5536
        %v5538 = vpop.f32.mrb[0].mxu0
        %v5539 = vpop.f32.mrb[0].mxu0
        %v5540 = vadd.f32 0.0, %v5539
        %v5541 = vpop.f32.mrb[0].mxu0
        %5542 = vmatprep.mubr.bf16.mxu0 0
        %5543 = vmatmul.mubr.bf16.gmra.mrb[0].mxu0 %v5401
        %v5544 = vpop.f32.mrb[0].mxu0
        %v5545 = vadd.f32 0.0, %v5544
        %v5546 = vpop.f32.mrb[0].mxu0
        %v5547 = vpop.f32.mrb[0].mxu0
        %v5548 = vadd.f32 0.0, %v5547
        %v5549 = vpop.f32.mrb[0].mxu0
        %5550 = vmatprep.mubr.bf16.mxu0 0
        %5551 = vmatmul.mubr.bf16.gmra.mrb[0].mxu0 %v5402
        %v5552 = vpop.f32.mrb[0].mxu0
        %v5553 = vadd.f32 0.0, %v5552
        %v5554 = vpop.f32.mrb[0].mxu0
        %v5555 = vpop.f32.mrb[0].mxu0
        %v5556 = vadd.f32 0.0, %v5555
        %v5557 = vpop.f32.mrb[0].mxu0
        %5558 = vmatprep.mubr.bf16.mxu0 0
        %5559 = vmatmul.mubr.bf16.gmra.mrb[0].mxu0 %v5403
        %v5560 = vpop.f32.mrb[0].mxu0
        %v5561 = vadd.f32 0.0, %v5560
        %v5562 = vpop.f32.mrb[0].mxu0
        %v5563 = vpop.f32.mrb[0].mxu0
        %v5564 = vadd.f32 0.0, %v5563
        %v5565 = vpop.f32.mrb[0].mxu0
        %5566 = vmatprep.mubr.bf16.mxu0 0
        %5567 = vmatmul.mubr.bf16.gmra.mrb[0].mxu0 %v5404
        %v5568 = vpop.f32.mrb[0].mxu0
        %v5569 = vadd.f32 0.0, %v5568
        %v5570 = vpop.f32.mrb[0].mxu0
        %v5571 = vpop.f32.mrb[0].mxu0
        %v5572 = vadd.f32 0.0, %v5571
        %v5573 = vpop.f32.mrb[0].mxu0
        %5574 = vmatprep.mubr.bf16.mxu0 0
        %5575 = vmatmul.mubr.bf16.gmra.mrb[0].mxu0 %v5405
        %v5576 = vpop.f32.mrb[0].mxu0
        %v5577 = vadd.f32 0.0, %v5576
        %v5578 = vpop.f32.mrb[0].mxu0
        %v5579 = vpop.f32.mrb[0].mxu0
        %v5580 = vadd.f32 0.0, %v5579
        %v5581 = vpop.f32.mrb[0].mxu0
        %5582 = vmatprep.mubr.bf16.mxu0 0
        %5583 = vmatmul.mubr.bf16.gmra.mrb[0].mxu0 %v5406
        %v5584 = vpop.f32.mrb[0].mxu0
        %v5585 = vadd.f32 0.0, %v5584
        %v5586 = vpop.f32.mrb[0].mxu0
        %v5587 = vpop.f32.mrb[0].mxu0
        %v5588 = vadd.f32 0.0, %v5587
        %v5589 = vpop.f32.mrb[0].mxu0
        %5590 = vmatprep.mubr.bf16.mxu0 0
        %5591 = vmatmul.mubr.bf16.gmra.mrb[0].mxu0 %v5407
        %v5592 = vpop.f32.mrb[0].mxu0
        %v5593 = vadd.f32 0.0, %v5592
        %v5594 = vpop.f32.mrb[0].mxu0
        %v5595 = vpop.f32.mrb[0].mxu0
        %v5596 = vadd.f32 0.0, %v5595
        %v5597 = vpop.f32.mrb[0].mxu0
        %5598 = vmatprep.mubr.bf16.mxu0 0
        %5599 = vmatmul.mubr.bf16.gmra.mrb[0].mxu0 %v5408
        %v5600 = vpop.f32.mrb[0].mxu0
        %v5601 = vadd.f32 0.0, %v5600
        %v5602 = vpop.f32.mrb[0].mxu0
        %v5603 = vpop.f32.mrb[0].mxu0
        %v5604 = vadd.f32 0.0, %v5603
        %v5605 = vpop.f32.mrb[0].mxu0
        %5606 = vmatprep.mubr.bf16.mxu0 0
        %5607 = vmatmul.mubr.bf16.gmra.mrb[0].mxu0 %v5409
        %v5608 = vpop.f32.mrb[0].mxu0
        %v5609 = vadd.f32 0.0, %v5608
        %v5610 = vpop.f32.mrb[0].mxu0
        %v5611 = vpop.f32.mrb[0].mxu0
        %v5612 = vadd.f32 0.0, %v5611
        %v5613 = vpop.f32.mrb[0].mxu0
        %5614 = vmatprep.mubr.bf16.mxu0 0
        %5615 = vmatmul.mubr.bf16.gmra.mrb[0].mxu0 %v5410
        %v5616 = vpop.f32.mrb[0].mxu0
        %v5617 = vadd.f32 0.0, %v5616
        %v5618 = vpop.f32.mrb[0].mxu0
        %v5619 = vpop.f32.mrb[0].mxu0
        %v5620 = vadd.f32 0.0, %v5619
        %v5621 = vpop.f32.mrb[0].mxu0
        %5622 = vmatprep.mubr.bf16.mxu0 0
        %5623 = vmatmul.mubr.bf16.gmra.mrb[0].mxu0 %v5411
        %v5624 = vpop.f32.mrb[0].mxu0
        %v5625 = vadd.f32 0.0, %v5624
        %v5626 = vpop.f32.mrb[0].mxu0
        %v5627 = vpop.f32.mrb[0].mxu0
        %v5628 = vadd.f32 0.0, %v5627
        %v5629 = vpop.f32.mrb[0].mxu0
        %5630 = vmatprep.mubr.bf16.mxu0 0
        %5631 = vmatmul.mubr.bf16.gmra.mrb[0].mxu0 %v5412
        %v5632 = vpop.f32.mrb[0].mxu0
        %v5633 = vadd.f32 0.0, %v5632
        %v5634 = vpop.f32.mrb[0].mxu0
        %v5635 = vpop.f32.mrb[0].mxu0
        %v5636 = vadd.f32 0.0, %v5635
        %v5637 = vpop.f32.mrb[0].mxu0
        %5638 = vdwg.mxu0
        %v5639 = vadd.f32 %v5333, %v5513
        %v5640 = vadd.f32 %v5334, %v5516
        %v5641 = vadd.f32 %v5335, %v5521
        %v5642 = vadd.f32 %v5336, %v5524
        %v5643 = vadd.f32 %v5337, %v5529
        %v5644 = vadd.f32 %v5338, %v5532
        %v5645 = vadd.f32 %v5339, %v5537
        %v5646 = vadd.f32 %v5340, %v5540
        %v5647 = vadd.f32 %v5341, %v5545
        %v5648 = vadd.f32 %v5342, %v5548
        %v5649 = vadd.f32 %v5343, %v5553
        %v5650 = vadd.f32 %v5344, %v5556
        %v5651 = vadd.f32 %v5345, %v5561
        %v5652 = vadd.f32 %v5346, %v5564
        %v5653 = vadd.f32 %v5347, %v5569
        %v5654 = vadd.f32 %v5348, %v5572
        %v5655 = vadd.f32 %v5349, %v5577
        %v5656 = vadd.f32 %v5350, %v5580
        %v5657 = vadd.f32 %v5351, %v5585
        %v5658 = vadd.f32 %v5352, %v5588
        %v5659 = vadd.f32 %v5353, %v5593
        %v5660 = vadd.f32 %v5354, %v5596
        %v5661 = vadd.f32 %v5355, %v5601
        %v5662 = vadd.f32 %v5356, %v5604
        %v5663 = vadd.f32 %v5357, %v5609
        %v5664 = vadd.f32 %v5358, %v5612
        %v5665 = vadd.f32 %v5359, %v5617
        %v5666 = vadd.f32 %v5360, %v5620
        %v5667 = vadd.f32 %v5361, %v5625
        %v5668 = vadd.f32 %v5362, %v5628
        %v5669 = vadd.f32 %v5363, %v5633
        %v5670 = vadd.f32 %v5364, %v5636
        %v5671 = vld [vmem:[%s1168 + $0x1] sm:$0xff]
        %v5672 = vld [vmem:[%s1168 + $0x9] sm:$0xff]
        %v5673 = vld [vmem:[%s1168 + $0x19] sm:$0xff]
        %v5674 = vld [vmem:[%s1168 + $0x21] sm:$0xff]
        %v5675 = vld [vmem:[%s1168 + $0x31] sm:$0xff]
        %v5676 = vld [vmem:[%s1168 + $0x39] sm:$0xff]
        %v5677 = vld [vmem:[%s1168 + $0x49] sm:$0xff]
        %v5678 = vld [vmem:[%s1168 + $0x51] sm:$0xff]
        %v5679 = vld [vmem:[%s1168 + $0x61] sm:$0xff]
        %v5680 = vld [vmem:[%s1168 + $0x69] sm:$0xff]
        %v5681 = vld [vmem:[%s1168 + $0x79] sm:$0xff]
        %v5682 = vld [vmem:[%s1168 + $0x81] sm:$0xff]
        %v5683 = vld [vmem:[%s1168 + $0x91] sm:$0xff]
        %v5684 = vld [vmem:[%s1168 + $0x99] sm:$0xff]
        %v5685 = vld [vmem:[%s1168 + $0xa9] sm:$0xff]
        %v5686 = vld [vmem:[%s1168 + $0xb1] sm:$0xff]
        %v5687 = vld [vmem:[%s1168 + $0xc1] sm:$0xff]
        %v5688 = vld [vmem:[%s1168 + $0xc9] sm:$0xff]
        %v5689 = vld [vmem:[%s1168 + $0xd9] sm:$0xff]
        %v5690 = vld [vmem:[%s1168 + $0xe1] sm:$0xff]
        %v5691 = vld [vmem:[%s1168 + $0xf1] sm:$0xff]
        %v5692 = vld [vmem:[%s1168 + $0xf9] sm:$0xff]
        %v5693 = vld [vmem:[%s1168 + $0x109] sm:$0xff]
        %v5694 = vld [vmem:[%s1168 + $0x111] sm:$0xff]
        %v5695 = vld [vmem:[%s1168 + $0x121] sm:$0xff]
        %v5696 = vld [vmem:[%s1168 + $0x129] sm:$0xff]
        %v5697 = vld [vmem:[%s1168 + $0x139] sm:$0xff]
        %v5698 = vld [vmem:[%s1168 + $0x141] sm:$0xff]
        %v5699 = vld [vmem:[%s1168 + $0x151] sm:$0xff]
        %v5700 = vld [vmem:[%s1168 + $0x159] sm:$0xff]
        %v5701 = vld [vmem:[%s1168 + $0x169] sm:$0xff]
        %v5702 = vld [vmem:[%s1168 + $0x171] sm:$0xff]
        %v5703 = vpack.c.bf16 %v5672, %v5671
        %v5704 = vpack.c.bf16 %v5674, %v5673
        %v5705 = vpack.c.bf16 %v5676, %v5675
        %v5706 = vpack.c.bf16 %v5678, %v5677
        %v5707 = vpack.c.bf16 %v5680, %v5679
        %v5708 = vpack.c.bf16 %v5682, %v5681
        %v5709 = vpack.c.bf16 %v5684, %v5683
        %v5710 = vpack.c.bf16 %v5686, %v5685
        %v5711 = vpack.c.bf16 %v5688, %v5687
        %v5712 = vpack.c.bf16 %v5690, %v5689
        %v5713 = vpack.c.bf16 %v5692, %v5691
        %v5714 = vpack.c.bf16 %v5694, %v5693
        %v5715 = vpack.c.bf16 %v5696, %v5695
        %v5716 = vpack.c.bf16 %v5698, %v5697
        %v5717 = vpack.c.bf16 %v5700, %v5699
        %v5718 = vpack.c.bf16 %v5702, %v5701
        %s5719 = scalar_lea.vmem [#allocation11], 256
        %v5720 = vld [vmem:[%s5719] sm:$0xf]
        %v5721 = vld [vmem:[%s5719 + $0x4] sm:$0xf]
        %v5722 = vld [vmem:[%s5719 + $0x8] sm:$0xf]
        %v5723 = vld [vmem:[%s5719 + $0xc] sm:$0xf]
        %v5724 = vld [vmem:[%s5719 + $0x10] sm:$0xf]
        %v5725 = vld [vmem:[%s5719 + $0x14] sm:$0xf]
        %v5726 = vld [vmem:[%s5719 + $0x18] sm:$0xf]
        %v5727 = vld [vmem:[%s5719 + $0x1c] sm:$0xf]
        %v5728 = vld [vmem:[%s5719 + $0x20] sm:$0xf]
        %v5729 = vld [vmem:[%s5719 + $0x24] sm:$0xf]
        %v5730 = vld [vmem:[%s5719 + $0x28] sm:$0xf]
        %v5731 = vld [vmem:[%s5719 + $0x2c] sm:$0xf]
        %v5732 = vld [vmem:[%s5719 + $0x30] sm:$0xf]
        %v5733 = vld [vmem:[%s5719 + $0x34] sm:$0xf]
        %v5734 = vld [vmem:[%s5719 + $0x38] sm:$0xf]
        %v5735 = vld [vmem:[%s5719 + $0x3c] sm:$0xf]
        %v5752 = vunpack.c.l.b16 %v5720
        %v5753 = vunpack.c.l.b16 %v5721
        %v5754 = vunpack.c.l.b16 %v5722
        %v5755 = vunpack.c.l.b16 %v5723
        %v5756 = vunpack.c.l.b16 %v5724
        %v5757 = vunpack.c.l.b16 %v5725
        %v5758 = vunpack.c.l.b16 %v5726
        %v5759 = vunpack.c.l.b16 %v5727
        %v5760 = vunpack.c.l.b16 %v5728
        %v5761 = vunpack.c.l.b16 %v5729
        %v5762 = vunpack.c.l.b16 %v5730
        %v5763 = vunpack.c.l.b16 %v5731
        %v5764 = vunpack.c.l.b16 %v5732
        %v5765 = vunpack.c.l.b16 %v5733
        %v5766 = vunpack.c.l.b16 %v5734
        %v5767 = vunpack.c.l.b16 %v5735
        %v5768 = vpack.c.b16 %v5753, %v5752
        %v5769 = vpack.c.b16 %v5755, %v5754
        %v5770 = vpack.c.b16 %v5757, %v5756
        %v5771 = vpack.c.b16 %v5759, %v5758
        %v5772 = vpack.c.b16 %v5761, %v5760
        %v5773 = vpack.c.b16 %v5763, %v5762
        %v5774 = vpack.c.b16 %v5765, %v5764
        %v5775 = vpack.c.b16 %v5767, %v5766
        %5784 = vmatprep.subr.bf16.mxu0 0
        %5785 = vmatpush1.bf16.msra.mxu0 %v5768
        %5786 = vmatprep.subr.bf16.mxu0 0
        %5787 = vmatpush1.bf16.msra.mxu0 %v5769
        %5788 = vmatprep.subr.bf16.mxu0 0
        %5789 = vmatpush1.bf16.msra.mxu0 %v5770
        %5790 = vmatprep.subr.bf16.mxu0 0
        %5791 = vmatpush1.bf16.msra.mxu0 %v5771
        %5792 = vmatprep.subr.bf16.mxu0 0
        %5793 = vmatpush1.bf16.msra.mxu0 %v5772
        %5794 = vmatprep.subr.bf16.mxu0 0
        %5795 = vmatpush1.bf16.msra.mxu0 %v5773
        %5796 = vmatprep.subr.bf16.mxu0 0
        %5797 = vmatpush1.bf16.msra.mxu0 %v5774
        %5798 = vmatprep.subr.bf16.mxu0 0
        %5799 = vmatpush1.bf16.msra.mxu0 %v5775
        %5800 = vmatprep.subr.bf16.mxu0 0
        %5801 = vmatpush1.bf16.msra.mxu0 0
        %5802 = vmatprep.subr.bf16.mxu0 0
        %5803 = vmatpush1.bf16.msra.mxu0 0
        %5804 = vmatprep.subr.bf16.mxu0 0
        %5805 = vmatpush1.bf16.msra.mxu0 0
        %5806 = vmatprep.subr.bf16.mxu0 0
        %5807 = vmatpush1.bf16.msra.mxu0 0
        %5808 = vmatprep.subr.bf16.mxu0 0
        %5809 = vmatpush1.bf16.msra.mxu0 0
        %5810 = vmatprep.subr.bf16.mxu0 0
        %5811 = vmatpush1.bf16.msra.mxu0 0
        %5812 = vmatprep.subr.bf16.mxu0 0
        %5813 = vmatpush1.bf16.msra.mxu0 0
        %5814 = vmatprep.subr.bf16.mxu0 0
        %5815 = vmatpush1.bf16.msra.mxu0 0
        %5816 = vmatprep.mubr.bf16.mxu0 0
        %5817 = vmatmul.mubr.bf16.gmra.mrb[0].mxu0 %v5703
        %v5818 = vpop.f32.mrb[0].mxu0
        %v5819 = vadd.f32 0.0, %v5818
        %v5820 = vpop.f32.mrb[0].mxu0
        %v5821 = vpop.f32.mrb[0].mxu0
        %v5822 = vadd.f32 0.0, %v5821
        %v5823 = vpop.f32.mrb[0].mxu0
        %5824 = vmatprep.mubr.bf16.mxu0 0
        %5825 = vmatmul.mubr.bf16.gmra.mrb[0].mxu0 %v5704
        %v5826 = vpop.f32.mrb[0].mxu0
        %v5827 = vadd.f32 0.0, %v5826
        %v5828 = vpop.f32.mrb[0].mxu0
        %v5829 = vpop.f32.mrb[0].mxu0
        %v5830 = vadd.f32 0.0, %v5829
        %v5831 = vpop.f32.mrb[0].mxu0
        %5832 = vmatprep.mubr.bf16.mxu0 0
        %5833 = vmatmul.mubr.bf16.gmra.mrb[0].mxu0 %v5705
        %v5834 = vpop.f32.mrb[0].mxu0
        %v5835 = vadd.f32 0.0, %v5834
        %v5836 = vpop.f32.mrb[0].mxu0
        %v5837 = vpop.f32.mrb[0].mxu0
        %v5838 = vadd.f32 0.0, %v5837
        %v5839 = vpop.f32.mrb[0].mxu0
        %5840 = vmatprep.mubr.bf16.mxu0 0
        %5841 = vmatmul.mubr.bf16.gmra.mrb[0].mxu0 %v5706
        %v5842 = vpop.f32.mrb[0].mxu0
        %v5843 = vadd.f32 0.0, %v5842
        %v5844 = vpop.f32.mrb[0].mxu0
        %v5845 = vpop.f32.mrb[0].mxu0
        %v5846 = vadd.f32 0.0, %v5845
        %v5847 = vpop.f32.mrb[0].mxu0
        %5848 = vmatprep.mubr.bf16.mxu0 0
        %5849 = vmatmul.mubr.bf16.gmra.mrb[0].mxu0 %v5707
        %v5850 = vpop.f32.mrb[0].mxu0
        %v5851 = vadd.f32 0.0, %v5850
        %v5852 = vpop.f32.mrb[0].mxu0
        %v5853 = vpop.f32.mrb[0].mxu0
        %v5854 = vadd.f32 0.0, %v5853
        %v5855 = vpop.f32.mrb[0].mxu0
        %5856 = vmatprep.mubr.bf16.mxu0 0
        %5857 = vmatmul.mubr.bf16.gmra.mrb[0].mxu0 %v5708
        %v5858 = vpop.f32.mrb[0].mxu0
        %v5859 = vadd.f32 0.0, %v5858
        %v5860 = vpop.f32.mrb[0].mxu0
        %v5861 = vpop.f32.mrb[0].mxu0
        %v5862 = vadd.f32 0.0, %v5861
        %v5863 = vpop.f32.mrb[0].mxu0
        %5864 = vmatprep.mubr.bf16.mxu0 0
        %5865 = vmatmul.mubr.bf16.gmra.mrb[0].mxu0 %v5709
        %v5866 = vpop.f32.mrb[0].mxu0
        %v5867 = vadd.f32 0.0, %v5866
        %v5868 = vpop.f32.mrb[0].mxu0
        %v5869 = vpop.f32.mrb[0].mxu0
        %v5870 = vadd.f32 0.0, %v5869
        %v5871 = vpop.f32.mrb[0].mxu0
        %5872 = vmatprep.mubr.bf16.mxu0 0
        %5873 = vmatmul.mubr.bf16.gmra.mrb[0].mxu0 %v5710
        %v5874 = vpop.f32.mrb[0].mxu0
        %v5875 = vadd.f32 0.0, %v5874
        %v5876 = vpop.f32.mrb[0].mxu0
        %v5877 = vpop.f32.mrb[0].mxu0
        %v5878 = vadd.f32 0.0, %v5877
        %v5879 = vpop.f32.mrb[0].mxu0
        %5880 = vmatprep.mubr.bf16.mxu0 0
        %5881 = vmatmul.mubr.bf16.gmra.mrb[0].mxu0 %v5711
        %v5882 = vpop.f32.mrb[0].mxu0
        %v5883 = vadd.f32 0.0, %v5882
        %v5884 = vpop.f32.mrb[0].mxu0
        %v5885 = vpop.f32.mrb[0].mxu0
        %v5886 = vadd.f32 0.0, %v5885
        %v5887 = vpop.f32.mrb[0].mxu0
        %5888 = vmatprep.mubr.bf16.mxu0 0
        %5889 = vmatmul.mubr.bf16.gmra.mrb[0].mxu0 %v5712
        %v5890 = vpop.f32.mrb[0].mxu0
        %v5891 = vadd.f32 0.0, %v5890
        %v5892 = vpop.f32.mrb[0].mxu0
        %v5893 = vpop.f32.mrb[0].mxu0
        %v5894 = vadd.f32 0.0, %v5893
        %v5895 = vpop.f32.mrb[0].mxu0
        %5896 = vmatprep.mubr.bf16.mxu0 0
        %5897 = vmatmul.mubr.bf16.gmra.mrb[0].mxu0 %v5713
        %v5898 = vpop.f32.mrb[0].mxu0
        %v5899 = vadd.f32 0.0, %v5898
        %v5900 = vpop.f32.mrb[0].mxu0
        %v5901 = vpop.f32.mrb[0].mxu0
        %v5902 = vadd.f32 0.0, %v5901
        %v5903 = vpop.f32.mrb[0].mxu0
        %5904 = vmatprep.mubr.bf16.mxu0 0
        %5905 = vmatmul.mubr.bf16.gmra.mrb[0].mxu0 %v5714
        %v5906 = vpop.f32.mrb[0].mxu0
        %v5907 = vadd.f32 0.0, %v5906
        %v5908 = vpop.f32.mrb[0].mxu0
        %v5909 = vpop.f32.mrb[0].mxu0
        %v5910 = vadd.f32 0.0, %v5909
        %v5911 = vpop.f32.mrb[0].mxu0
        %5912 = vmatprep.mubr.bf16.mxu0 0
        %5913 = vmatmul.mubr.bf16.gmra.mrb[0].mxu0 %v5715
        %v5914 = vpop.f32.mrb[0].mxu0
        %v5915 = vadd.f32 0.0, %v5914
        %v5916 = vpop.f32.mrb[0].mxu0
        %v5917 = vpop.f32.mrb[0].mxu0
        %v5918 = vadd.f32 0.0, %v5917
        %v5919 = vpop.f32.mrb[0].mxu0
        %5920 = vmatprep.mubr.bf16.mxu0 0
        %5921 = vmatmul.mubr.bf16.gmra.mrb[0].mxu0 %v5716
        %v5922 = vpop.f32.mrb[0].mxu0
        %v5923 = vadd.f32 0.0, %v5922
        %v5924 = vpop.f32.mrb[0].mxu0
        %v5925 = vpop.f32.mrb[0].mxu0
        %v5926 = vadd.f32 0.0, %v5925
        %v5927 = vpop.f32.mrb[0].mxu0
        %5928 = vmatprep.mubr.bf16.mxu0 0
        %5929 = vmatmul.mubr.bf16.gmra.mrb[0].mxu0 %v5717
        %v5930 = vpop.f32.mrb[0].mxu0
        %v5931 = vadd.f32 0.0, %v5930
        %v5932 = vpop.f32.mrb[0].mxu0
        %v5933 = vpop.f32.mrb[0].mxu0
        %v5934 = vadd.f32 0.0, %v5933
        %v5935 = vpop.f32.mrb[0].mxu0
        %5936 = vmatprep.mubr.bf16.mxu0 0
        %5937 = vmatmul.mubr.bf16.gmra.mrb[0].mxu0 %v5718
        %v5938 = vpop.f32.mrb[0].mxu0
        %v5939 = vadd.f32 0.0, %v5938
        %v5940 = vpop.f32.mrb[0].mxu0
        %v5941 = vpop.f32.mrb[0].mxu0
        %v5942 = vadd.f32 0.0, %v5941
        %v5943 = vpop.f32.mrb[0].mxu0
        %5944 = vdwg.mxu0
        %v5945 = vadd.f32 %v5639, %v5819
        %v5946 = vadd.f32 %v5640, %v5822
        %v5947 = vadd.f32 %v5641, %v5827
        %v5948 = vadd.f32 %v5642, %v5830
        %v5949 = vadd.f32 %v5643, %v5835
        %v5950 = vadd.f32 %v5644, %v5838
        %v5951 = vadd.f32 %v5645, %v5843
        %v5952 = vadd.f32 %v5646, %v5846
        %v5953 = vadd.f32 %v5647, %v5851
        %v5954 = vadd.f32 %v5648, %v5854
        %v5955 = vadd.f32 %v5649, %v5859
        %v5956 = vadd.f32 %v5650, %v5862
        %v5957 = vadd.f32 %v5651, %v5867
        %v5958 = vadd.f32 %v5652, %v5870
        %v5959 = vadd.f32 %v5653, %v5875
        %v5960 = vadd.f32 %v5654, %v5878
        %v5961 = vadd.f32 %v5655, %v5883
        %v5962 = vadd.f32 %v5656, %v5886
        %v5963 = vadd.f32 %v5657, %v5891
        %v5964 = vadd.f32 %v5658, %v5894
        %v5965 = vadd.f32 %v5659, %v5899
        %v5966 = vadd.f32 %v5660, %v5902
        %v5967 = vadd.f32 %v5661, %v5907
        %v5968 = vadd.f32 %v5662, %v5910
        %v5969 = vadd.f32 %v5663, %v5915
        %v5970 = vadd.f32 %v5664, %v5918
        %v5971 = vadd.f32 %v5665, %v5923
        %v5972 = vadd.f32 %v5666, %v5926
        %v5973 = vadd.f32 %v5667, %v5931
        %v5974 = vadd.f32 %v5668, %v5934
        %v5975 = vadd.f32 %v5669, %v5939
        %v5976 = vadd.f32 %v5670, %v5942
        %v5977 = vld [vmem:[%s1168 + $0x2] sm:$0xff]
        %v5978 = vld [vmem:[%s1168 + $0xa] sm:$0xff]
        %v5979 = vld [vmem:[%s1168 + $0x1a] sm:$0xff]
        %v5980 = vld [vmem:[%s1168 + $0x22] sm:$0xff]
        %v5981 = vld [vmem:[%s1168 + $0x32] sm:$0xff]
        %v5982 = vld [vmem:[%s1168 + $0x3a] sm:$0xff]
        %v5983 = vld [vmem:[%s1168 + $0x4a] sm:$0xff]
        %v5984 = vld [vmem:[%s1168 + $0x52] sm:$0xff]
        %v5985 = vld [vmem:[%s1168 + $0x62] sm:$0xff]
        %v5986 = vld [vmem:[%s1168 + $0x6a] sm:$0xff]
        %v5987 = vld [vmem:[%s1168 + $0x7a] sm:$0xff]
        %v5988 = vld [vmem:[%s1168 + $0x82] sm:$0xff]
        %v5989 = vld [vmem:[%s1168 + $0x92] sm:$0xff]
        %v5990 = vld [vmem:[%s1168 + $0x9a] sm:$0xff]
        %v5991 = vld [vmem:[%s1168 + $0xaa] sm:$0xff]
        %v5992 = vld [vmem:[%s1168 + $0xb2] sm:$0xff]
        %v5993 = vld [vmem:[%s1168 + $0xc2] sm:$0xff]
        %v5994 = vld [vmem:[%s1168 + $0xca] sm:$0xff]
        %v5995 = vld [vmem:[%s1168 + $0xda] sm:$0xff]
        %v5996 = vld [vmem:[%s1168 + $0xe2] sm:$0xff]
        %v5997 = vld [vmem:[%s1168 + $0xf2] sm:$0xff]
        %v5998 = vld [vmem:[%s1168 + $0xfa] sm:$0xff]
        %v5999 = vld [vmem:[%s1168 + $0x10a] sm:$0xff]
        %v6000 = vld [vmem:[%s1168 + $0x112] sm:$0xff]
        %v6001 = vld [vmem:[%s1168 + $0x122] sm:$0xff]
        %v6002 = vld [vmem:[%s1168 + $0x12a] sm:$0xff]
        %v6003 = vld [vmem:[%s1168 + $0x13a] sm:$0xff]
        %v6004 = vld [vmem:[%s1168 + $0x142] sm:$0xff]
        %v6005 = vld [vmem:[%s1168 + $0x152] sm:$0xff]
        %v6006 = vld [vmem:[%s1168 + $0x15a] sm:$0xff]
        %v6007 = vld [vmem:[%s1168 + $0x16a] sm:$0xff]
        %v6008 = vld [vmem:[%s1168 + $0x172] sm:$0xff]
        %v6009 = vpack.c.bf16 %v5978, %v5977
        %v6010 = vpack.c.bf16 %v5980, %v5979
        %v6011 = vpack.c.bf16 %v5982, %v5981
        %v6012 = vpack.c.bf16 %v5984, %v5983
        %v6013 = vpack.c.bf16 %v5986, %v5985
        %v6014 = vpack.c.bf16 %v5988, %v5987
        %v6015 = vpack.c.bf16 %v5990, %v5989
        %v6016 = vpack.c.bf16 %v5992, %v5991
        %v6017 = vpack.c.bf16 %v5994, %v5993
        %v6018 = vpack.c.bf16 %v5996, %v5995
        %v6019 = vpack.c.bf16 %v5998, %v5997
        %v6020 = vpack.c.bf16 %v6000, %v5999
        %v6021 = vpack.c.bf16 %v6002, %v6001
        %v6022 = vpack.c.bf16 %v6004, %v6003
        %v6023 = vpack.c.bf16 %v6006, %v6005
        %v6024 = vpack.c.bf16 %v6008, %v6007
        %s6025 = scalar_lea.vmem [#allocation11], 320
        %v6026 = vld [vmem:[%s6025] sm:$0xf]
        %v6027 = vld [vmem:[%s6025 + $0x4] sm:$0xf]
        %v6028 = vld [vmem:[%s6025 + $0x8] sm:$0xf]
        %v6029 = vld [vmem:[%s6025 + $0xc] sm:$0xf]
        %v6030 = vld [vmem:[%s6025 + $0x10] sm:$0xf]
        %v6031 = vld [vmem:[%s6025 + $0x14] sm:$0xf]
        %v6032 = vld [vmem:[%s6025 + $0x18] sm:$0xf]
        %v6033 = vld [vmem:[%s6025 + $0x1c] sm:$0xf]
        %v6034 = vld [vmem:[%s6025 + $0x20] sm:$0xf]
        %v6035 = vld [vmem:[%s6025 + $0x24] sm:$0xf]
        %v6036 = vld [vmem:[%s6025 + $0x28] sm:$0xf]
        %v6037 = vld [vmem:[%s6025 + $0x2c] sm:$0xf]
        %v6038 = vld [vmem:[%s6025 + $0x30] sm:$0xf]
        %v6039 = vld [vmem:[%s6025 + $0x34] sm:$0xf]
        %v6040 = vld [vmem:[%s6025 + $0x38] sm:$0xf]
        %v6041 = vld [vmem:[%s6025 + $0x3c] sm:$0xf]
        %v6058 = vunpack.c.l.b16 %v6026
        %v6059 = vunpack.c.l.b16 %v6027
        %v6060 = vunpack.c.l.b16 %v6028
        %v6061 = vunpack.c.l.b16 %v6029
        %v6062 = vunpack.c.l.b16 %v6030
        %v6063 = vunpack.c.l.b16 %v6031
        %v6064 = vunpack.c.l.b16 %v6032
        %v6065 = vunpack.c.l.b16 %v6033
        %v6066 = vunpack.c.l.b16 %v6034
        %v6067 = vunpack.c.l.b16 %v6035
        %v6068 = vunpack.c.l.b16 %v6036
        %v6069 = vunpack.c.l.b16 %v6037
        %v6070 = vunpack.c.l.b16 %v6038
        %v6071 = vunpack.c.l.b16 %v6039
        %v6072 = vunpack.c.l.b16 %v6040
        %v6073 = vunpack.c.l.b16 %v6041
        %v6074 = vpack.c.b16 %v6059, %v6058
        %v6075 = vpack.c.b16 %v6061, %v6060
        %v6076 = vpack.c.b16 %v6063, %v6062
        %v6077 = vpack.c.b16 %v6065, %v6064
        %v6078 = vpack.c.b16 %v6067, %v6066
        %v6079 = vpack.c.b16 %v6069, %v6068
        %v6080 = vpack.c.b16 %v6071, %v6070
        %v6081 = vpack.c.b16 %v6073, %v6072
        %6090 = vmatprep.subr.bf16.mxu0 0
        %6091 = vmatpush1.bf16.msra.mxu0 %v6074
        %6092 = vmatprep.subr.bf16.mxu0 0
        %6093 = vmatpush1.bf16.msra.mxu0 %v6075
        %6094 = vmatprep.subr.bf16.mxu0 0
        %6095 = vmatpush1.bf16.msra.mxu0 %v6076
        %6096 = vmatprep.subr.bf16.mxu0 0
        %6097 = vmatpush1.bf16.msra.mxu0 %v6077
        %6098 = vmatprep.subr.bf16.mxu0 0
        %6099 = vmatpush1.bf16.msra.mxu0 %v6078
        %6100 = vmatprep.subr.bf16.mxu0 0
        %6101 = vmatpush1.bf16.msra.mxu0 %v6079
        %6102 = vmatprep.subr.bf16.mxu0 0
        %6103 = vmatpush1.bf16.msra.mxu0 %v6080
        %6104 = vmatprep.subr.bf16.mxu0 0
        %6105 = vmatpush1.bf16.msra.mxu0 %v6081
        %6106 = vmatprep.subr.bf16.mxu0 0
        %6107 = vmatpush1.bf16.msra.mxu0 0
        %6108 = vmatprep.subr.bf16.mxu0 0
        %6109 = vmatpush1.bf16.msra.mxu0 0
        %6110 = vmatprep.subr.bf16.mxu0 0
        %6111 = vmatpush1.bf16.msra.mxu0 0
        %6112 = vmatprep.subr.bf16.mxu0 0
        %6113 = vmatpush1.bf16.msra.mxu0 0
        %6114 = vmatprep.subr.bf16.mxu0 0
        %6115 = vmatpush1.bf16.msra.mxu0 0
        %6116 = vmatprep.subr.bf16.mxu0 0
        %6117 = vmatpush1.bf16.msra.mxu0 0
        %6118 = vmatprep.subr.bf16.mxu0 0
        %6119 = vmatpush1.bf16.msra.mxu0 0
        %6120 = vmatprep.subr.bf16.mxu0 0
        %6121 = vmatpush1.bf16.msra.mxu0 0
        %6122 = vmatprep.mubr.bf16.mxu0 0
        %6123 = vmatmul.mubr.bf16.gmra.mrb[0].mxu0 %v6009
        %v6124 = vpop.f32.mrb[0].mxu0
        %v6125 = vadd.f32 0.0, %v6124
        %v6126 = vpop.f32.mrb[0].mxu0
        %v6127 = vpop.f32.mrb[0].mxu0
        %v6128 = vadd.f32 0.0, %v6127
        %v6129 = vpop.f32.mrb[0].mxu0
        %6130 = vmatprep.mubr.bf16.mxu0 0
        %6131 = vmatmul.mubr.bf16.gmra.mrb[0].mxu0 %v6010
        %v6132 = vpop.f32.mrb[0].mxu0
        %v6133 = vadd.f32 0.0, %v6132
        %v6134 = vpop.f32.mrb[0].mxu0
        %v6135 = vpop.f32.mrb[0].mxu0
        %v6136 = vadd.f32 0.0, %v6135
        %v6137 = vpop.f32.mrb[0].mxu0
        %6138 = vmatprep.mubr.bf16.mxu0 0
        %6139 = vmatmul.mubr.bf16.gmra.mrb[0].mxu0 %v6011
        %v6140 = vpop.f32.mrb[0].mxu0
        %v6141 = vadd.f32 0.0, %v6140
        %v6142 = vpop.f32.mrb[0].mxu0
        %v6143 = vpop.f32.mrb[0].mxu0
        %v6144 = vadd.f32 0.0, %v6143
        %v6145 = vpop.f32.mrb[0].mxu0
        %6146 = vmatprep.mubr.bf16.mxu0 0
        %6147 = vmatmul.mubr.bf16.gmra.mrb[0].mxu0 %v6012
        %v6148 = vpop.f32.mrb[0].mxu0
        %v6149 = vadd.f32 0.0, %v6148
        %v6150 = vpop.f32.mrb[0].mxu0
        %v6151 = vpop.f32.mrb[0].mxu0
        %v6152 = vadd.f32 0.0, %v6151
        %v6153 = vpop.f32.mrb[0].mxu0
        %6154 = vmatprep.mubr.bf16.mxu0 0
        %6155 = vmatmul.mubr.bf16.gmra.mrb[0].mxu0 %v6013
        %v6156 = vpop.f32.mrb[0].mxu0
        %v6157 = vadd.f32 0.0, %v6156
        %v6158 = vpop.f32.mrb[0].mxu0
        %v6159 = vpop.f32.mrb[0].mxu0
        %v6160 = vadd.f32 0.0, %v6159
        %v6161 = vpop.f32.mrb[0].mxu0
        %6162 = vmatprep.mubr.bf16.mxu0 0
        %6163 = vmatmul.mubr.bf16.gmra.mrb[0].mxu0 %v6014
        %v6164 = vpop.f32.mrb[0].mxu0
        %v6165 = vadd.f32 0.0, %v6164
        %v6166 = vpop.f32.mrb[0].mxu0
        %v6167 = vpop.f32.mrb[0].mxu0
        %v6168 = vadd.f32 0.0, %v6167
        %v6169 = vpop.f32.mrb[0].mxu0
        %6170 = vmatprep.mubr.bf16.mxu0 0
        %6171 = vmatmul.mubr.bf16.gmra.mrb[0].mxu0 %v6015
        %v6172 = vpop.f32.mrb[0].mxu0
        %v6173 = vadd.f32 0.0, %v6172
        %v6174 = vpop.f32.mrb[0].mxu0
        %v6175 = vpop.f32.mrb[0].mxu0
        %v6176 = vadd.f32 0.0, %v6175
        %v6177 = vpop.f32.mrb[0].mxu0
        %6178 = vmatprep.mubr.bf16.mxu0 0
        %6179 = vmatmul.mubr.bf16.gmra.mrb[0].mxu0 %v6016
        %v6180 = vpop.f32.mrb[0].mxu0
        %v6181 = vadd.f32 0.0, %v6180
        %v6182 = vpop.f32.mrb[0].mxu0
        %v6183 = vpop.f32.mrb[0].mxu0
        %v6184 = vadd.f32 0.0, %v6183
        %v6185 = vpop.f32.mrb[0].mxu0
        %6186 = vmatprep.mubr.bf16.mxu0 0
        %6187 = vmatmul.mubr.bf16.gmra.mrb[0].mxu0 %v6017
        %v6188 = vpop.f32.mrb[0].mxu0
        %v6189 = vadd.f32 0.0, %v6188
        %v6190 = vpop.f32.mrb[0].mxu0
        %v6191 = vpop.f32.mrb[0].mxu0
        %v6192 = vadd.f32 0.0, %v6191
        %v6193 = vpop.f32.mrb[0].mxu0
        %6194 = vmatprep.mubr.bf16.mxu0 0
        %6195 = vmatmul.mubr.bf16.gmra.mrb[0].mxu0 %v6018
        %v6196 = vpop.f32.mrb[0].mxu0
        %v6197 = vadd.f32 0.0, %v6196
        %v6198 = vpop.f32.mrb[0].mxu0
        %v6199 = vpop.f32.mrb[0].mxu0
        %v6200 = vadd.f32 0.0, %v6199
        %v6201 = vpop.f32.mrb[0].mxu0
        %6202 = vmatprep.mubr.bf16.mxu0 0
        %6203 = vmatmul.mubr.bf16.gmra.mrb[0].mxu0 %v6019
        %v6204 = vpop.f32.mrb[0].mxu0
        %v6205 = vadd.f32 0.0, %v6204
        %v6206 = vpop.f32.mrb[0].mxu0
        %v6207 = vpop.f32.mrb[0].mxu0
        %v6208 = vadd.f32 0.0, %v6207
        %v6209 = vpop.f32.mrb[0].mxu0
        %6210 = vmatprep.mubr.bf16.mxu0 0
        %6211 = vmatmul.mubr.bf16.gmra.mrb[0].mxu0 %v6020
        %v6212 = vpop.f32.mrb[0].mxu0
        %v6213 = vadd.f32 0.0, %v6212
        %v6214 = vpop.f32.mrb[0].mxu0
        %v6215 = vpop.f32.mrb[0].mxu0
        %v6216 = vadd.f32 0.0, %v6215
        %v6217 = vpop.f32.mrb[0].mxu0
        %6218 = vmatprep.mubr.bf16.mxu0 0
        %6219 = vmatmul.mubr.bf16.gmra.mrb[0].mxu0 %v6021
        %v6220 = vpop.f32.mrb[0].mxu0
        %v6221 = vadd.f32 0.0, %v6220
        %v6222 = vpop.f32.mrb[0].mxu0
        %v6223 = vpop.f32.mrb[0].mxu0
        %v6224 = vadd.f32 0.0, %v6223
        %v6225 = vpop.f32.mrb[0].mxu0
        %6226 = vmatprep.mubr.bf16.mxu0 0
        %6227 = vmatmul.mubr.bf16.gmra.mrb[0].mxu0 %v6022
        %v6228 = vpop.f32.mrb[0].mxu0
        %v6229 = vadd.f32 0.0, %v6228
        %v6230 = vpop.f32.mrb[0].mxu0
        %v6231 = vpop.f32.mrb[0].mxu0
        %v6232 = vadd.f32 0.0, %v6231
        %v6233 = vpop.f32.mrb[0].mxu0
        %6234 = vmatprep.mubr.bf16.mxu0 0
        %6235 = vmatmul.mubr.bf16.gmra.mrb[0].mxu0 %v6023
        %v6236 = vpop.f32.mrb[0].mxu0
        %v6237 = vadd.f32 0.0, %v6236
        %v6238 = vpop.f32.mrb[0].mxu0
        %v6239 = vpop.f32.mrb[0].mxu0
        %v6240 = vadd.f32 0.0, %v6239
        %v6241 = vpop.f32.mrb[0].mxu0
        %6242 = vmatprep.mubr.bf16.mxu0 0
        %6243 = vmatmul.mubr.bf16.gmra.mrb[0].mxu0 %v6024
        %v6244 = vpop.f32.mrb[0].mxu0
        %v6245 = vadd.f32 0.0, %v6244
        %v6246 = vpop.f32.mrb[0].mxu0
        %v6247 = vpop.f32.mrb[0].mxu0
        %v6248 = vadd.f32 0.0, %v6247
        %v6249 = vpop.f32.mrb[0].mxu0
        %6250 = vdwg.mxu0
        %v6251 = vadd.f32 %v5945, %v6125
        %v6252 = vadd.f32 %v5946, %v6128
        %v6253 = vadd.f32 %v5947, %v6133
        %v6254 = vadd.f32 %v5948, %v6136
        %v6255 = vadd.f32 %v5949, %v6141
        %v6256 = vadd.f32 %v5950, %v6144
        %v6257 = vadd.f32 %v5951, %v6149
        %v6258 = vadd.f32 %v5952, %v6152
        %v6259 = vadd.f32 %v5953, %v6157
        %v6260 = vadd.f32 %v5954, %v6160
        %v6261 = vadd.f32 %v5955, %v6165
        %v6262 = vadd.f32 %v5956, %v6168
        %v6263 = vadd.f32 %v5957, %v6173
        %v6264 = vadd.f32 %v5958, %v6176
        %v6265 = vadd.f32 %v5959, %v6181
        %v6266 = vadd.f32 %v5960, %v6184
        %v6267 = vadd.f32 %v5961, %v6189
        %v6268 = vadd.f32 %v5962, %v6192
        %v6269 = vadd.f32 %v5963, %v6197
        %v6270 = vadd.f32 %v5964, %v6200
        %v6271 = vadd.f32 %v5965, %v6205
        %v6272 = vadd.f32 %v5966, %v6208
        %v6273 = vadd.f32 %v5967, %v6213
        %v6274 = vadd.f32 %v5968, %v6216
        %v6275 = vadd.f32 %v5969, %v6221
        %v6276 = vadd.f32 %v5970, %v6224
        %v6277 = vadd.f32 %v5971, %v6229
        %v6278 = vadd.f32 %v5972, %v6232
        %v6279 = vadd.f32 %v5973, %v6237
        %v6280 = vadd.f32 %v5974, %v6240
        %v6281 = vadd.f32 %v5975, %v6245
        %v6282 = vadd.f32 %v5976, %v6248
        %v6283 = vld [vmem:[%s2972] sm:$0xff]
        %v6284 = vld [vmem:[%s2972 + $0x8] sm:$0xff]
        %v6285 = vld [vmem:[%s2972 + $0x18] sm:$0xff]
        %v6286 = vld [vmem:[%s2972 + $0x20] sm:$0xff]
        %v6287 = vld [vmem:[%s2972 + $0x30] sm:$0xff]
        %v6288 = vld [vmem:[%s2972 + $0x38] sm:$0xff]
        %v6289 = vld [vmem:[%s2972 + $0x48] sm:$0xff]
        %v6290 = vld [vmem:[%s2972 + $0x50] sm:$0xff]
        %v6291 = vld [vmem:[%s2972 + $0x60] sm:$0xff]
        %v6292 = vld [vmem:[%s2972 + $0x68] sm:$0xff]
        %v6293 = vld [vmem:[%s2972 + $0x78] sm:$0xff]
        %v6294 = vld [vmem:[%s2972 + $0x80] sm:$0xff]
        %v6295 = vld [vmem:[%s2972 + $0x90] sm:$0xff]
        %v6296 = vld [vmem:[%s2972 + $0x98] sm:$0xff]
        %v6297 = vld [vmem:[%s2972 + $0xa8] sm:$0xff]
        %v6298 = vld [vmem:[%s2972 + $0xb0] sm:$0xff]
        %v6299 = vld [vmem:[%s2972 + $0xc0] sm:$0xff]
        %v6300 = vld [vmem:[%s2972 + $0xc8] sm:$0xff]
        %v6301 = vld [vmem:[%s2972 + $0xd8] sm:$0xff]
        %v6302 = vld [vmem:[%s2972 + $0xe0] sm:$0xff]
        %v6303 = vld [vmem:[%s2972 + $0xf0] sm:$0xff]
        %v6304 = vld [vmem:[%s2972 + $0xf8] sm:$0xff]
        %v6305 = vld [vmem:[%s2972 + $0x108] sm:$0xff]
        %v6306 = vld [vmem:[%s2972 + $0x110] sm:$0xff]
        %v6307 = vld [vmem:[%s2972 + $0x120] sm:$0xff]
        %v6308 = vld [vmem:[%s2972 + $0x128] sm:$0xff]
        %v6309 = vld [vmem:[%s2972 + $0x138] sm:$0xff]
        %v6310 = vld [vmem:[%s2972 + $0x140] sm:$0xff]
        %v6311 = vld [vmem:[%s2972 + $0x150] sm:$0xff]
        %v6312 = vld [vmem:[%s2972 + $0x158] sm:$0xff]
        %v6313 = vld [vmem:[%s2972 + $0x168] sm:$0xff]
        %v6314 = vld [vmem:[%s2972 + $0x170] sm:$0xff]
        %v6315 = vpack.c.bf16 %v6284, %v6283
        %v6316 = vpack.c.bf16 %v6286, %v6285
        %v6317 = vpack.c.bf16 %v6288, %v6287
        %v6318 = vpack.c.bf16 %v6290, %v6289
        %v6319 = vpack.c.bf16 %v6292, %v6291
        %v6320 = vpack.c.bf16 %v6294, %v6293
        %v6321 = vpack.c.bf16 %v6296, %v6295
        %v6322 = vpack.c.bf16 %v6298, %v6297
        %v6323 = vpack.c.bf16 %v6300, %v6299
        %v6324 = vpack.c.bf16 %v6302, %v6301
        %v6325 = vpack.c.bf16 %v6304, %v6303
        %v6326 = vpack.c.bf16 %v6306, %v6305
        %v6327 = vpack.c.bf16 %v6308, %v6307
        %v6328 = vpack.c.bf16 %v6310, %v6309
        %v6329 = vpack.c.bf16 %v6312, %v6311
        %v6330 = vpack.c.bf16 %v6314, %v6313
        %s6331 = scalar_lea.vmem [#allocation11], 384
        %v6332 = vld [vmem:[%s6331] sm:$0xf]
        %v6333 = vld [vmem:[%s6331 + $0x4] sm:$0xf]
        %v6334 = vld [vmem:[%s6331 + $0x8] sm:$0xf]
        %v6335 = vld [vmem:[%s6331 + $0xc] sm:$0xf]
        %v6336 = vld [vmem:[%s6331 + $0x10] sm:$0xf]
        %v6337 = vld [vmem:[%s6331 + $0x14] sm:$0xf]
        %v6338 = vld [vmem:[%s6331 + $0x18] sm:$0xf]
        %v6339 = vld [vmem:[%s6331 + $0x1c] sm:$0xf]
        %v6340 = vld [vmem:[%s6331 + $0x20] sm:$0xf]
        %v6341 = vld [vmem:[%s6331 + $0x24] sm:$0xf]
        %v6342 = vld [vmem:[%s6331 + $0x28] sm:$0xf]
        %v6343 = vld [vmem:[%s6331 + $0x2c] sm:$0xf]
        %v6344 = vld [vmem:[%s6331 + $0x30] sm:$0xf]
        %v6345 = vld [vmem:[%s6331 + $0x34] sm:$0xf]
        %v6346 = vld [vmem:[%s6331 + $0x38] sm:$0xf]
        %v6347 = vld [vmem:[%s6331 + $0x3c] sm:$0xf]
        %v6364 = vunpack.c.l.b16 %v6332
        %v6365 = vunpack.c.l.b16 %v6333
        %v6366 = vunpack.c.l.b16 %v6334
        %v6367 = vunpack.c.l.b16 %v6335
        %v6368 = vunpack.c.l.b16 %v6336
        %v6369 = vunpack.c.l.b16 %v6337
        %v6370 = vunpack.c.l.b16 %v6338
        %v6371 = vunpack.c.l.b16 %v6339
        %v6372 = vunpack.c.l.b16 %v6340
        %v6373 = vunpack.c.l.b16 %v6341
        %v6374 = vunpack.c.l.b16 %v6342
        %v6375 = vunpack.c.l.b16 %v6343
        %v6376 = vunpack.c.l.b16 %v6344
        %v6377 = vunpack.c.l.b16 %v6345
        %v6378 = vunpack.c.l.b16 %v6346
        %v6379 = vunpack.c.l.b16 %v6347
        %v6380 = vpack.c.b16 %v6365, %v6364
        %v6381 = vpack.c.b16 %v6367, %v6366
        %v6382 = vpack.c.b16 %v6369, %v6368
        %v6383 = vpack.c.b16 %v6371, %v6370
        %v6384 = vpack.c.b16 %v6373, %v6372
        %v6385 = vpack.c.b16 %v6375, %v6374
        %v6386 = vpack.c.b16 %v6377, %v6376
        %v6387 = vpack.c.b16 %v6379, %v6378
        %6396 = vmatprep.subr.bf16.mxu0 0
        %6397 = vmatpush1.bf16.msra.mxu0 %v6380
        %6398 = vmatprep.subr.bf16.mxu0 0
        %6399 = vmatpush1.bf16.msra.mxu0 %v6381
        %6400 = vmatprep.subr.bf16.mxu0 0
        %6401 = vmatpush1.bf16.msra.mxu0 %v6382
        %6402 = vmatprep.subr.bf16.mxu0 0
        %6403 = vmatpush1.bf16.msra.mxu0 %v6383
        %6404 = vmatprep.subr.bf16.mxu0 0
        %6405 = vmatpush1.bf16.msra.mxu0 %v6384
        %6406 = vmatprep.subr.bf16.mxu0 0
        %6407 = vmatpush1.bf16.msra.mxu0 %v6385
        %6408 = vmatprep.subr.bf16.mxu0 0
        %6409 = vmatpush1.bf16.msra.mxu0 %v6386
        %6410 = vmatprep.subr.bf16.mxu0 0
        %6411 = vmatpush1.bf16.msra.mxu0 %v6387
        %6412 = vmatprep.subr.bf16.mxu0 0
        %6413 = vmatpush1.bf16.msra.mxu0 0
        %6414 = vmatprep.subr.bf16.mxu0 0
        %6415 = vmatpush1.bf16.msra.mxu0 0
        %6416 = vmatprep.subr.bf16.mxu0 0
        %6417 = vmatpush1.bf16.msra.mxu0 0
        %6418 = vmatprep.subr.bf16.mxu0 0
        %6419 = vmatpush1.bf16.msra.mxu0 0
        %6420 = vmatprep.subr.bf16.mxu0 0
        %6421 = vmatpush1.bf16.msra.mxu0 0
        %6422 = vmatprep.subr.bf16.mxu0 0
        %6423 = vmatpush1.bf16.msra.mxu0 0
        %6424 = vmatprep.subr.bf16.mxu0 0
        %6425 = vmatpush1.bf16.msra.mxu0 0
        %6426 = vmatprep.subr.bf16.mxu0 0
        %6427 = vmatpush1.bf16.msra.mxu0 0
        %6428 = vmatprep.mubr.bf16.mxu0 0
        %6429 = vmatmul.mubr.bf16.gmra.mrb[0].mxu0 %v6315
        %v6430 = vpop.f32.mrb[0].mxu0
        %v6431 = vadd.f32 0.0, %v6430
        %v6432 = vpop.f32.mrb[0].mxu0
        %v6433 = vpop.f32.mrb[0].mxu0
        %v6434 = vadd.f32 0.0, %v6433
        %v6435 = vpop.f32.mrb[0].mxu0
        %6436 = vmatprep.mubr.bf16.mxu0 0
        %6437 = vmatmul.mubr.bf16.gmra.mrb[0].mxu0 %v6316
        %v6438 = vpop.f32.mrb[0].mxu0
        %v6439 = vadd.f32 0.0, %v6438
        %v6440 = vpop.f32.mrb[0].mxu0
        %v6441 = vpop.f32.mrb[0].mxu0
        %v6442 = vadd.f32 0.0, %v6441
        %v6443 = vpop.f32.mrb[0].mxu0
        %6444 = vmatprep.mubr.bf16.mxu0 0
        %6445 = vmatmul.mubr.bf16.gmra.mrb[0].mxu0 %v6317
        %v6446 = vpop.f32.mrb[0].mxu0
        %v6447 = vadd.f32 0.0, %v6446
        %v6448 = vpop.f32.mrb[0].mxu0
        %v6449 = vpop.f32.mrb[0].mxu0
        %v6450 = vadd.f32 0.0, %v6449
        %v6451 = vpop.f32.mrb[0].mxu0
        %6452 = vmatprep.mubr.bf16.mxu0 0
        %6453 = vmatmul.mubr.bf16.gmra.mrb[0].mxu0 %v6318
        %v6454 = vpop.f32.mrb[0].mxu0
        %v6455 = vadd.f32 0.0, %v6454
        %v6456 = vpop.f32.mrb[0].mxu0
        %v6457 = vpop.f32.mrb[0].mxu0
        %v6458 = vadd.f32 0.0, %v6457
        %v6459 = vpop.f32.mrb[0].mxu0
        %6460 = vmatprep.mubr.bf16.mxu0 0
        %6461 = vmatmul.mubr.bf16.gmra.mrb[0].mxu0 %v6319
        %v6462 = vpop.f32.mrb[0].mxu0
        %v6463 = vadd.f32 0.0, %v6462
        %v6464 = vpop.f32.mrb[0].mxu0
        %v6465 = vpop.f32.mrb[0].mxu0
        %v6466 = vadd.f32 0.0, %v6465
        %v6467 = vpop.f32.mrb[0].mxu0
        %6468 = vmatprep.mubr.bf16.mxu0 0
        %6469 = vmatmul.mubr.bf16.gmra.mrb[0].mxu0 %v6320
        %v6470 = vpop.f32.mrb[0].mxu0
        %v6471 = vadd.f32 0.0, %v6470
        %v6472 = vpop.f32.mrb[0].mxu0
        %v6473 = vpop.f32.mrb[0].mxu0
        %v6474 = vadd.f32 0.0, %v6473
        %v6475 = vpop.f32.mrb[0].mxu0
        %6476 = vmatprep.mubr.bf16.mxu0 0
        %6477 = vmatmul.mubr.bf16.gmra.mrb[0].mxu0 %v6321
        %v6478 = vpop.f32.mrb[0].mxu0
        %v6479 = vadd.f32 0.0, %v6478
        %v6480 = vpop.f32.mrb[0].mxu0
        %v6481 = vpop.f32.mrb[0].mxu0
        %v6482 = vadd.f32 0.0, %v6481
        %v6483 = vpop.f32.mrb[0].mxu0
        %6484 = vmatprep.mubr.bf16.mxu0 0
        %6485 = vmatmul.mubr.bf16.gmra.mrb[0].mxu0 %v6322
        %v6486 = vpop.f32.mrb[0].mxu0
        %v6487 = vadd.f32 0.0, %v6486
        %v6488 = vpop.f32.mrb[0].mxu0
        %v6489 = vpop.f32.mrb[0].mxu0
        %v6490 = vadd.f32 0.0, %v6489
        %v6491 = vpop.f32.mrb[0].mxu0
        %6492 = vmatprep.mubr.bf16.mxu0 0
        %6493 = vmatmul.mubr.bf16.gmra.mrb[0].mxu0 %v6323
        %v6494 = vpop.f32.mrb[0].mxu0
        %v6495 = vadd.f32 0.0, %v6494
        %v6496 = vpop.f32.mrb[0].mxu0
        %v6497 = vpop.f32.mrb[0].mxu0
        %v6498 = vadd.f32 0.0, %v6497
        %v6499 = vpop.f32.mrb[0].mxu0
        %6500 = vmatprep.mubr.bf16.mxu0 0
        %6501 = vmatmul.mubr.bf16.gmra.mrb[0].mxu0 %v6324
        %v6502 = vpop.f32.mrb[0].mxu0
        %v6503 = vadd.f32 0.0, %v6502
        %v6504 = vpop.f32.mrb[0].mxu0
        %v6505 = vpop.f32.mrb[0].mxu0
        %v6506 = vadd.f32 0.0, %v6505
        %v6507 = vpop.f32.mrb[0].mxu0
        %6508 = vmatprep.mubr.bf16.mxu0 0
        %6509 = vmatmul.mubr.bf16.gmra.mrb[0].mxu0 %v6325
        %v6510 = vpop.f32.mrb[0].mxu0
        %v6511 = vadd.f32 0.0, %v6510
        %v6512 = vpop.f32.mrb[0].mxu0
        %v6513 = vpop.f32.mrb[0].mxu0
        %v6514 = vadd.f32 0.0, %v6513
        %v6515 = vpop.f32.mrb[0].mxu0
        %6516 = vmatprep.mubr.bf16.mxu0 0
        %6517 = vmatmul.mubr.bf16.gmra.mrb[0].mxu0 %v6326
        %v6518 = vpop.f32.mrb[0].mxu0
        %v6519 = vadd.f32 0.0, %v6518
        %v6520 = vpop.f32.mrb[0].mxu0
        %v6521 = vpop.f32.mrb[0].mxu0
        %v6522 = vadd.f32 0.0, %v6521
        %v6523 = vpop.f32.mrb[0].mxu0
        %6524 = vmatprep.mubr.bf16.mxu0 0
        %6525 = vmatmul.mubr.bf16.gmra.mrb[0].mxu0 %v6327
        %v6526 = vpop.f32.mrb[0].mxu0
        %v6527 = vadd.f32 0.0, %v6526
        %v6528 = vpop.f32.mrb[0].mxu0
        %v6529 = vpop.f32.mrb[0].mxu0
        %v6530 = vadd.f32 0.0, %v6529
        %v6531 = vpop.f32.mrb[0].mxu0
        %6532 = vmatprep.mubr.bf16.mxu0 0
        %6533 = vmatmul.mubr.bf16.gmra.mrb[0].mxu0 %v6328
        %v6534 = vpop.f32.mrb[0].mxu0
        %v6535 = vadd.f32 0.0, %v6534
        %v6536 = vpop.f32.mrb[0].mxu0
        %v6537 = vpop.f32.mrb[0].mxu0
        %v6538 = vadd.f32 0.0, %v6537
        %v6539 = vpop.f32.mrb[0].mxu0
        %6540 = vmatprep.mubr.bf16.mxu0 0
        %6541 = vmatmul.mubr.bf16.gmra.mrb[0].mxu0 %v6329
        %v6542 = vpop.f32.mrb[0].mxu0
        %v6543 = vadd.f32 0.0, %v6542
        %v6544 = vpop.f32.mrb[0].mxu0
        %v6545 = vpop.f32.mrb[0].mxu0
        %v6546 = vadd.f32 0.0, %v6545
        %v6547 = vpop.f32.mrb[0].mxu0
        %6548 = vmatprep.mubr.bf16.mxu0 0
        %6549 = vmatmul.mubr.bf16.gmra.mrb[0].mxu0 %v6330
        %v6550 = vpop.f32.mrb[0].mxu0
        %v6551 = vadd.f32 0.0, %v6550
        %v6552 = vpop.f32.mrb[0].mxu0
        %v6553 = vpop.f32.mrb[0].mxu0
        %v6554 = vadd.f32 0.0, %v6553
        %v6555 = vpop.f32.mrb[0].mxu0
        %6556 = vdwg.mxu0
        %v6557 = vadd.f32 %v6251, %v6431
        %v6558 = vadd.f32 %v6252, %v6434
        %v6559 = vadd.f32 %v6253, %v6439
        %v6560 = vadd.f32 %v6254, %v6442
        %v6561 = vadd.f32 %v6255, %v6447
        %v6562 = vadd.f32 %v6256, %v6450
        %v6563 = vadd.f32 %v6257, %v6455
        %v6564 = vadd.f32 %v6258, %v6458
        %v6565 = vadd.f32 %v6259, %v6463
        %v6566 = vadd.f32 %v6260, %v6466
        %v6567 = vadd.f32 %v6261, %v6471
        %v6568 = vadd.f32 %v6262, %v6474
        %v6569 = vadd.f32 %v6263, %v6479
        %v6570 = vadd.f32 %v6264, %v6482
        %v6571 = vadd.f32 %v6265, %v6487
        %v6572 = vadd.f32 %v6266, %v6490
        %v6573 = vadd.f32 %v6267, %v6495
        %v6574 = vadd.f32 %v6268, %v6498
        %v6575 = vadd.f32 %v6269, %v6503
        %v6576 = vadd.f32 %v6270, %v6506
        %v6577 = vadd.f32 %v6271, %v6511
        %v6578 = vadd.f32 %v6272, %v6514
        %v6579 = vadd.f32 %v6273, %v6519
        %v6580 = vadd.f32 %v6274, %v6522
        %v6581 = vadd.f32 %v6275, %v6527
        %v6582 = vadd.f32 %v6276, %v6530
        %v6583 = vadd.f32 %v6277, %v6535
        %v6584 = vadd.f32 %v6278, %v6538
        %v6585 = vadd.f32 %v6279, %v6543
        %v6586 = vadd.f32 %v6280, %v6546
        %v6587 = vadd.f32 %v6281, %v6551
        %v6588 = vadd.f32 %v6282, %v6554
        %v6589 = vld [vmem:[%s2972 + $0x1] sm:$0xff]
        %v6590 = vld [vmem:[%s2972 + $0x9] sm:$0xff]
        %v6591 = vld [vmem:[%s2972 + $0x19] sm:$0xff]
        %v6592 = vld [vmem:[%s2972 + $0x21] sm:$0xff]
        %v6593 = vld [vmem:[%s2972 + $0x31] sm:$0xff]
        %v6594 = vld [vmem:[%s2972 + $0x39] sm:$0xff]
        %v6595 = vld [vmem:[%s2972 + $0x49] sm:$0xff]
        %v6596 = vld [vmem:[%s2972 + $0x51] sm:$0xff]
        %v6597 = vld [vmem:[%s2972 + $0x61] sm:$0xff]
        %v6598 = vld [vmem:[%s2972 + $0x69] sm:$0xff]
        %v6599 = vld [vmem:[%s2972 + $0x79] sm:$0xff]
        %v6600 = vld [vmem:[%s2972 + $0x81] sm:$0xff]
        %v6601 = vld [vmem:[%s2972 + $0x91] sm:$0xff]
        %v6602 = vld [vmem:[%s2972 + $0x99] sm:$0xff]
        %v6603 = vld [vmem:[%s2972 + $0xa9] sm:$0xff]
        %v6604 = vld [vmem:[%s2972 + $0xb1] sm:$0xff]
        %v6605 = vld [vmem:[%s2972 + $0xc1] sm:$0xff]
        %v6606 = vld [vmem:[%s2972 + $0xc9] sm:$0xff]
        %v6607 = vld [vmem:[%s2972 + $0xd9] sm:$0xff]
        %v6608 = vld [vmem:[%s2972 + $0xe1] sm:$0xff]
        %v6609 = vld [vmem:[%s2972 + $0xf1] sm:$0xff]
        %v6610 = vld [vmem:[%s2972 + $0xf9] sm:$0xff]
        %v6611 = vld [vmem:[%s2972 + $0x109] sm:$0xff]
        %v6612 = vld [vmem:[%s2972 + $0x111] sm:$0xff]
        %v6613 = vld [vmem:[%s2972 + $0x121] sm:$0xff]
        %v6614 = vld [vmem:[%s2972 + $0x129] sm:$0xff]
        %v6615 = vld [vmem:[%s2972 + $0x139] sm:$0xff]
        %v6616 = vld [vmem:[%s2972 + $0x141] sm:$0xff]
        %v6617 = vld [vmem:[%s2972 + $0x151] sm:$0xff]
        %v6618 = vld [vmem:[%s2972 + $0x159] sm:$0xff]
        %v6619 = vld [vmem:[%s2972 + $0x169] sm:$0xff]
        %v6620 = vld [vmem:[%s2972 + $0x171] sm:$0xff]
        %v6621 = vpack.c.bf16 %v6590, %v6589
        %v6622 = vpack.c.bf16 %v6592, %v6591
        %v6623 = vpack.c.bf16 %v6594, %v6593
        %v6624 = vpack.c.bf16 %v6596, %v6595
        %v6625 = vpack.c.bf16 %v6598, %v6597
        %v6626 = vpack.c.bf16 %v6600, %v6599
        %v6627 = vpack.c.bf16 %v6602, %v6601
        %v6628 = vpack.c.bf16 %v6604, %v6603
        %v6629 = vpack.c.bf16 %v6606, %v6605
        %v6630 = vpack.c.bf16 %v6608, %v6607
        %v6631 = vpack.c.bf16 %v6610, %v6609
        %v6632 = vpack.c.bf16 %v6612, %v6611
        %v6633 = vpack.c.bf16 %v6614, %v6613
        %v6634 = vpack.c.bf16 %v6616, %v6615
        %v6635 = vpack.c.bf16 %v6618, %v6617
        %v6636 = vpack.c.bf16 %v6620, %v6619
        %s6637 = scalar_lea.vmem [#allocation11], 448
        %v6638 = vld [vmem:[%s6637] sm:$0xf]
        %v6639 = vld [vmem:[%s6637 + $0x4] sm:$0xf]
        %v6640 = vld [vmem:[%s6637 + $0x8] sm:$0xf]
        %v6641 = vld [vmem:[%s6637 + $0xc] sm:$0xf]
        %v6642 = vld [vmem:[%s6637 + $0x10] sm:$0xf]
        %v6643 = vld [vmem:[%s6637 + $0x14] sm:$0xf]
        %v6644 = vld [vmem:[%s6637 + $0x18] sm:$0xf]
        %v6645 = vld [vmem:[%s6637 + $0x1c] sm:$0xf]
        %v6646 = vld [vmem:[%s6637 + $0x20] sm:$0xf]
        %v6647 = vld [vmem:[%s6637 + $0x24] sm:$0xf]
        %v6648 = vld [vmem:[%s6637 + $0x28] sm:$0xf]
        %v6649 = vld [vmem:[%s6637 + $0x2c] sm:$0xf]
        %v6650 = vld [vmem:[%s6637 + $0x30] sm:$0xf]
        %v6651 = vld [vmem:[%s6637 + $0x34] sm:$0xf]
        %v6652 = vld [vmem:[%s6637 + $0x38] sm:$0xf]
        %v6653 = vld [vmem:[%s6637 + $0x3c] sm:$0xf]
        %v6670 = vunpack.c.l.b16 %v6638
        %v6671 = vunpack.c.l.b16 %v6639
        %v6672 = vunpack.c.l.b16 %v6640
        %v6673 = vunpack.c.l.b16 %v6641
        %v6674 = vunpack.c.l.b16 %v6642
        %v6675 = vunpack.c.l.b16 %v6643
        %v6676 = vunpack.c.l.b16 %v6644
        %v6677 = vunpack.c.l.b16 %v6645
        %v6678 = vunpack.c.l.b16 %v6646
        %v6679 = vunpack.c.l.b16 %v6647
        %v6680 = vunpack.c.l.b16 %v6648
        %v6681 = vunpack.c.l.b16 %v6649
        %v6682 = vunpack.c.l.b16 %v6650
        %v6683 = vunpack.c.l.b16 %v6651
        %v6684 = vunpack.c.l.b16 %v6652
        %v6685 = vunpack.c.l.b16 %v6653
        %v6686 = vpack.c.b16 %v6671, %v6670
        %v6687 = vpack.c.b16 %v6673, %v6672
        %v6688 = vpack.c.b16 %v6675, %v6674
        %v6689 = vpack.c.b16 %v6677, %v6676
        %v6690 = vpack.c.b16 %v6679, %v6678
        %v6691 = vpack.c.b16 %v6681, %v6680
        %v6692 = vpack.c.b16 %v6683, %v6682
        %v6693 = vpack.c.b16 %v6685, %v6684
        %6702 = vmatprep.subr.bf16.mxu0 0
        %6703 = vmatpush1.bf16.msra.mxu0 %v6686
        %6704 = vmatprep.subr.bf16.mxu0 0
        %6705 = vmatpush1.bf16.msra.mxu0 %v6687
        %6706 = vmatprep.subr.bf16.mxu0 0
        %6707 = vmatpush1.bf16.msra.mxu0 %v6688
        %6708 = vmatprep.subr.bf16.mxu0 0
        %6709 = vmatpush1.bf16.msra.mxu0 %v6689
        %6710 = vmatprep.subr.bf16.mxu0 0
        %6711 = vmatpush1.bf16.msra.mxu0 %v6690
        %6712 = vmatprep.subr.bf16.mxu0 0
        %6713 = vmatpush1.bf16.msra.mxu0 %v6691
        %6714 = vmatprep.subr.bf16.mxu0 0
        %6715 = vmatpush1.bf16.msra.mxu0 %v6692
        %6716 = vmatprep.subr.bf16.mxu0 0
        %6717 = vmatpush1.bf16.msra.mxu0 %v6693
        %6718 = vmatprep.subr.bf16.mxu0 0
        %6719 = vmatpush1.bf16.msra.mxu0 0
        %6720 = vmatprep.subr.bf16.mxu0 0
        %6721 = vmatpush1.bf16.msra.mxu0 0
        %6722 = vmatprep.subr.bf16.mxu0 0
        %6723 = vmatpush1.bf16.msra.mxu0 0
        %6724 = vmatprep.subr.bf16.mxu0 0
        %6725 = vmatpush1.bf16.msra.mxu0 0
        %6726 = vmatprep.subr.bf16.mxu0 0
        %6727 = vmatpush1.bf16.msra.mxu0 0
        %6728 = vmatprep.subr.bf16.mxu0 0
        %6729 = vmatpush1.bf16.msra.mxu0 0
        %6730 = vmatprep.subr.bf16.mxu0 0
        %6731 = vmatpush1.bf16.msra.mxu0 0
        %6732 = vmatprep.subr.bf16.mxu0 0
        %6733 = vmatpush1.bf16.msra.mxu0 0
        %6734 = vmatprep.mubr.bf16.mxu0 0
        %6735 = vmatmul.mubr.bf16.gmra.mrb[0].mxu0 %v6621
        %v6736 = vpop.f32.mrb[0].mxu0
        %v6737 = vadd.f32 0.0, %v6736
        %v6738 = vpop.f32.mrb[0].mxu0
        %v6739 = vpop.f32.mrb[0].mxu0
        %v6740 = vadd.f32 0.0, %v6739
        %v6741 = vpop.f32.mrb[0].mxu0
        %6742 = vmatprep.mubr.bf16.mxu0 0
        %6743 = vmatmul.mubr.bf16.gmra.mrb[0].mxu0 %v6622
        %v6744 = vpop.f32.mrb[0].mxu0
        %v6745 = vadd.f32 0.0, %v6744
        %v6746 = vpop.f32.mrb[0].mxu0
        %v6747 = vpop.f32.mrb[0].mxu0
        %v6748 = vadd.f32 0.0, %v6747
        %v6749 = vpop.f32.mrb[0].mxu0
        %6750 = vmatprep.mubr.bf16.mxu0 0
        %6751 = vmatmul.mubr.bf16.gmra.mrb[0].mxu0 %v6623
        %v6752 = vpop.f32.mrb[0].mxu0
        %v6753 = vadd.f32 0.0, %v6752
        %v6754 = vpop.f32.mrb[0].mxu0
        %v6755 = vpop.f32.mrb[0].mxu0
        %v6756 = vadd.f32 0.0, %v6755
        %v6757 = vpop.f32.mrb[0].mxu0
        %6758 = vmatprep.mubr.bf16.mxu0 0
        %6759 = vmatmul.mubr.bf16.gmra.mrb[0].mxu0 %v6624
        %v6760 = vpop.f32.mrb[0].mxu0
        %v6761 = vadd.f32 0.0, %v6760
        %v6762 = vpop.f32.mrb[0].mxu0
        %v6763 = vpop.f32.mrb[0].mxu0
        %v6764 = vadd.f32 0.0, %v6763
        %v6765 = vpop.f32.mrb[0].mxu0
        %6766 = vmatprep.mubr.bf16.mxu0 0
        %6767 = vmatmul.mubr.bf16.gmra.mrb[0].mxu0 %v6625
        %v6768 = vpop.f32.mrb[0].mxu0
        %v6769 = vadd.f32 0.0, %v6768
        %v6770 = vpop.f32.mrb[0].mxu0
        %v6771 = vpop.f32.mrb[0].mxu0
        %v6772 = vadd.f32 0.0, %v6771
        %v6773 = vpop.f32.mrb[0].mxu0
        %6774 = vmatprep.mubr.bf16.mxu0 0
        %6775 = vmatmul.mubr.bf16.gmra.mrb[0].mxu0 %v6626
        %v6776 = vpop.f32.mrb[0].mxu0
        %v6777 = vadd.f32 0.0, %v6776
        %v6778 = vpop.f32.mrb[0].mxu0
        %v6779 = vpop.f32.mrb[0].mxu0
        %v6780 = vadd.f32 0.0, %v6779
        %v6781 = vpop.f32.mrb[0].mxu0
        %6782 = vmatprep.mubr.bf16.mxu0 0
        %6783 = vmatmul.mubr.bf16.gmra.mrb[0].mxu0 %v6627
        %v6784 = vpop.f32.mrb[0].mxu0
        %v6785 = vadd.f32 0.0, %v6784
        %v6786 = vpop.f32.mrb[0].mxu0
        %v6787 = vpop.f32.mrb[0].mxu0
        %v6788 = vadd.f32 0.0, %v6787
        %v6789 = vpop.f32.mrb[0].mxu0
        %6790 = vmatprep.mubr.bf16.mxu0 0
        %6791 = vmatmul.mubr.bf16.gmra.mrb[0].mxu0 %v6628
        %v6792 = vpop.f32.mrb[0].mxu0
        %v6793 = vadd.f32 0.0, %v6792
        %v6794 = vpop.f32.mrb[0].mxu0
        %v6795 = vpop.f32.mrb[0].mxu0
        %v6796 = vadd.f32 0.0, %v6795
        %v6797 = vpop.f32.mrb[0].mxu0
        %6798 = vmatprep.mubr.bf16.mxu0 0
        %6799 = vmatmul.mubr.bf16.gmra.mrb[0].mxu0 %v6629
        %v6800 = vpop.f32.mrb[0].mxu0
        %v6801 = vadd.f32 0.0, %v6800
        %v6802 = vpop.f32.mrb[0].mxu0
        %v6803 = vpop.f32.mrb[0].mxu0
        %v6804 = vadd.f32 0.0, %v6803
        %v6805 = vpop.f32.mrb[0].mxu0
        %6806 = vmatprep.mubr.bf16.mxu0 0
        %6807 = vmatmul.mubr.bf16.gmra.mrb[0].mxu0 %v6630
        %v6808 = vpop.f32.mrb[0].mxu0
        %v6809 = vadd.f32 0.0, %v6808
        %v6810 = vpop.f32.mrb[0].mxu0
        %v6811 = vpop.f32.mrb[0].mxu0
        %v6812 = vadd.f32 0.0, %v6811
        %v6813 = vpop.f32.mrb[0].mxu0
        %6814 = vmatprep.mubr.bf16.mxu0 0
        %6815 = vmatmul.mubr.bf16.gmra.mrb[0].mxu0 %v6631
        %v6816 = vpop.f32.mrb[0].mxu0
        %v6817 = vadd.f32 0.0, %v6816
        %v6818 = vpop.f32.mrb[0].mxu0
        %v6819 = vpop.f32.mrb[0].mxu0
        %v6820 = vadd.f32 0.0, %v6819
        %v6821 = vpop.f32.mrb[0].mxu0
        %6822 = vmatprep.mubr.bf16.mxu0 0
        %6823 = vmatmul.mubr.bf16.gmra.mrb[0].mxu0 %v6632
        %v6824 = vpop.f32.mrb[0].mxu0
        %v6825 = vadd.f32 0.0, %v6824
        %v6826 = vpop.f32.mrb[0].mxu0
        %v6827 = vpop.f32.mrb[0].mxu0
        %v6828 = vadd.f32 0.0, %v6827
        %v6829 = vpop.f32.mrb[0].mxu0
        %6830 = vmatprep.mubr.bf16.mxu0 0
        %6831 = vmatmul.mubr.bf16.gmra.mrb[0].mxu0 %v6633
        %v6832 = vpop.f32.mrb[0].mxu0
        %v6833 = vadd.f32 0.0, %v6832
        %v6834 = vpop.f32.mrb[0].mxu0
        %v6835 = vpop.f32.mrb[0].mxu0
        %v6836 = vadd.f32 0.0, %v6835
        %v6837 = vpop.f32.mrb[0].mxu0
        %6838 = vmatprep.mubr.bf16.mxu0 0
        %6839 = vmatmul.mubr.bf16.gmra.mrb[0].mxu0 %v6634
        %v6840 = vpop.f32.mrb[0].mxu0
        %v6841 = vadd.f32 0.0, %v6840
        %v6842 = vpop.f32.mrb[0].mxu0
        %v6843 = vpop.f32.mrb[0].mxu0
        %v6844 = vadd.f32 0.0, %v6843
        %v6845 = vpop.f32.mrb[0].mxu0
        %6846 = vmatprep.mubr.bf16.mxu0 0
        %6847 = vmatmul.mubr.bf16.gmra.mrb[0].mxu0 %v6635
        %v6848 = vpop.f32.mrb[0].mxu0
        %v6849 = vadd.f32 0.0, %v6848
        %v6850 = vpop.f32.mrb[0].mxu0
        %v6851 = vpop.f32.mrb[0].mxu0
        %v6852 = vadd.f32 0.0, %v6851
        %v6853 = vpop.f32.mrb[0].mxu0
        %6854 = vmatprep.mubr.bf16.mxu0 0
        %6855 = vmatmul.mubr.bf16.gmra.mrb[0].mxu0 %v6636
        %v6856 = vpop.f32.mrb[0].mxu0
        %v6857 = vadd.f32 0.0, %v6856
        %v6858 = vpop.f32.mrb[0].mxu0
        %v6859 = vpop.f32.mrb[0].mxu0
        %v6860 = vadd.f32 0.0, %v6859
        %v6861 = vpop.f32.mrb[0].mxu0
        %6862 = vdwg.mxu0
        %v6863 = vadd.f32 %v6557, %v6737
        %v6864 = vadd.f32 %v6558, %v6740
        %v6865 = vadd.f32 %v6559, %v6745
        %v6866 = vadd.f32 %v6560, %v6748
        %v6867 = vadd.f32 %v6561, %v6753
        %v6868 = vadd.f32 %v6562, %v6756
        %v6869 = vadd.f32 %v6563, %v6761
        %v6870 = vadd.f32 %v6564, %v6764
        %v6871 = vadd.f32 %v6565, %v6769
        %v6872 = vadd.f32 %v6566, %v6772
        %v6873 = vadd.f32 %v6567, %v6777
        %v6874 = vadd.f32 %v6568, %v6780
        %v6875 = vadd.f32 %v6569, %v6785
        %v6876 = vadd.f32 %v6570, %v6788
        %v6877 = vadd.f32 %v6571, %v6793
        %v6878 = vadd.f32 %v6572, %v6796
        %v6879 = vadd.f32 %v6573, %v6801
        %v6880 = vadd.f32 %v6574, %v6804
        %v6881 = vadd.f32 %v6575, %v6809
        %v6882 = vadd.f32 %v6576, %v6812
        %v6883 = vadd.f32 %v6577, %v6817
        %v6884 = vadd.f32 %v6578, %v6820
        %v6885 = vadd.f32 %v6579, %v6825
        %v6886 = vadd.f32 %v6580, %v6828
        %v6887 = vadd.f32 %v6581, %v6833
        %v6888 = vadd.f32 %v6582, %v6836
        %v6889 = vadd.f32 %v6583, %v6841
        %v6890 = vadd.f32 %v6584, %v6844
        %v6891 = vadd.f32 %v6585, %v6849
        %v6892 = vadd.f32 %v6586, %v6852
        %v6893 = vadd.f32 %v6587, %v6857
        %v6894 = vadd.f32 %v6588, %v6860
        %v6895 = vld [vmem:[%s2972 + $0x2] sm:$0xff]
        %v6896 = vld [vmem:[%s2972 + $0xa] sm:$0xff]
        %v6897 = vld [vmem:[%s2972 + $0x1a] sm:$0xff]
        %v6898 = vld [vmem:[%s2972 + $0x22] sm:$0xff]
        %v6899 = vld [vmem:[%s2972 + $0x32] sm:$0xff]
        %v6900 = vld [vmem:[%s2972 + $0x3a] sm:$0xff]
        %v6901 = vld [vmem:[%s2972 + $0x4a] sm:$0xff]
        %v6902 = vld [vmem:[%s2972 + $0x52] sm:$0xff]
        %v6903 = vld [vmem:[%s2972 + $0x62] sm:$0xff]
        %v6904 = vld [vmem:[%s2972 + $0x6a] sm:$0xff]
        %v6905 = vld [vmem:[%s2972 + $0x7a] sm:$0xff]
        %v6906 = vld [vmem:[%s2972 + $0x82] sm:$0xff]
        %v6907 = vld [vmem:[%s2972 + $0x92] sm:$0xff]
        %v6908 = vld [vmem:[%s2972 + $0x9a] sm:$0xff]
        %v6909 = vld [vmem:[%s2972 + $0xaa] sm:$0xff]
        %v6910 = vld [vmem:[%s2972 + $0xb2] sm:$0xff]
        %v6911 = vld [vmem:[%s2972 + $0xc2] sm:$0xff]
        %v6912 = vld [vmem:[%s2972 + $0xca] sm:$0xff]
        %v6913 = vld [vmem:[%s2972 + $0xda] sm:$0xff]
        %v6914 = vld [vmem:[%s2972 + $0xe2] sm:$0xff]
        %v6915 = vld [vmem:[%s2972 + $0xf2] sm:$0xff]
        %v6916 = vld [vmem:[%s2972 + $0xfa] sm:$0xff]
        %v6917 = vld [vmem:[%s2972 + $0x10a] sm:$0xff]
        %v6918 = vld [vmem:[%s2972 + $0x112] sm:$0xff]
        %v6919 = vld [vmem:[%s2972 + $0x122] sm:$0xff]
        %v6920 = vld [vmem:[%s2972 + $0x12a] sm:$0xff]
        %v6921 = vld [vmem:[%s2972 + $0x13a] sm:$0xff]
        %v6922 = vld [vmem:[%s2972 + $0x142] sm:$0xff]
        %v6923 = vld [vmem:[%s2972 + $0x152] sm:$0xff]
        %v6924 = vld [vmem:[%s2972 + $0x15a] sm:$0xff]
        %v6925 = vld [vmem:[%s2972 + $0x16a] sm:$0xff]
        %v6926 = vld [vmem:[%s2972 + $0x172] sm:$0xff]
        %v6927 = vpack.c.bf16 %v6896, %v6895
        %v6928 = vpack.c.bf16 %v6898, %v6897
        %v6929 = vpack.c.bf16 %v6900, %v6899
        %v6930 = vpack.c.bf16 %v6902, %v6901
        %v6931 = vpack.c.bf16 %v6904, %v6903
        %v6932 = vpack.c.bf16 %v6906, %v6905
        %v6933 = vpack.c.bf16 %v6908, %v6907
        %v6934 = vpack.c.bf16 %v6910, %v6909
        %v6935 = vpack.c.bf16 %v6912, %v6911
        %v6936 = vpack.c.bf16 %v6914, %v6913
        %v6937 = vpack.c.bf16 %v6916, %v6915
        %v6938 = vpack.c.bf16 %v6918, %v6917
        %v6939 = vpack.c.bf16 %v6920, %v6919
        %v6940 = vpack.c.bf16 %v6922, %v6921
        %v6941 = vpack.c.bf16 %v6924, %v6923
        %v6942 = vpack.c.bf16 %v6926, %v6925
        %s6943 = scalar_lea.vmem [#allocation11], 512
        %v6944 = vld [vmem:[%s6943] sm:$0xf]
        %v6945 = vld [vmem:[%s6943 + $0x4] sm:$0xf]
        %v6946 = vld [vmem:[%s6943 + $0x8] sm:$0xf]
        %v6947 = vld [vmem:[%s6943 + $0xc] sm:$0xf]
        %v6948 = vld [vmem:[%s6943 + $0x10] sm:$0xf]
        %v6949 = vld [vmem:[%s6943 + $0x14] sm:$0xf]
        %v6950 = vld [vmem:[%s6943 + $0x18] sm:$0xf]
        %v6951 = vld [vmem:[%s6943 + $0x1c] sm:$0xf]
        %v6952 = vld [vmem:[%s6943 + $0x20] sm:$0xf]
        %v6953 = vld [vmem:[%s6943 + $0x24] sm:$0xf]
        %v6954 = vld [vmem:[%s6943 + $0x28] sm:$0xf]
        %v6955 = vld [vmem:[%s6943 + $0x2c] sm:$0xf]
        %v6956 = vld [vmem:[%s6943 + $0x30] sm:$0xf]
        %v6957 = vld [vmem:[%s6943 + $0x34] sm:$0xf]
        %v6958 = vld [vmem:[%s6943 + $0x38] sm:$0xf]
        %v6959 = vld [vmem:[%s6943 + $0x3c] sm:$0xf]
        %v6976 = vunpack.c.l.b16 %v6944
        %v6977 = vunpack.c.l.b16 %v6945
        %v6978 = vunpack.c.l.b16 %v6946
        %v6979 = vunpack.c.l.b16 %v6947
        %v6980 = vunpack.c.l.b16 %v6948
        %v6981 = vunpack.c.l.b16 %v6949
        %v6982 = vunpack.c.l.b16 %v6950
        %v6983 = vunpack.c.l.b16 %v6951
        %v6984 = vunpack.c.l.b16 %v6952
        %v6985 = vunpack.c.l.b16 %v6953
        %v6986 = vunpack.c.l.b16 %v6954
        %v6987 = vunpack.c.l.b16 %v6955
        %v6988 = vunpack.c.l.b16 %v6956
        %v6989 = vunpack.c.l.b16 %v6957
        %v6990 = vunpack.c.l.b16 %v6958
        %v6991 = vunpack.c.l.b16 %v6959
        %v6992 = vpack.c.b16 %v6977, %v6976
        %v6993 = vpack.c.b16 %v6979, %v6978
        %v6994 = vpack.c.b16 %v6981, %v6980
        %v6995 = vpack.c.b16 %v6983, %v6982
        %v6996 = vpack.c.b16 %v6985, %v6984
        %v6997 = vpack.c.b16 %v6987, %v6986
        %v6998 = vpack.c.b16 %v6989, %v6988
        %v6999 = vpack.c.b16 %v6991, %v6990
        %7008 = vmatprep.subr.bf16.mxu0 0
        %7009 = vmatpush1.bf16.msra.mxu0 %v6992
        %7010 = vmatprep.subr.bf16.mxu0 0
        %7011 = vmatpush1.bf16.msra.mxu0 %v6993
        %7012 = vmatprep.subr.bf16.mxu0 0
        %7013 = vmatpush1.bf16.msra.mxu0 %v6994
        %7014 = vmatprep.subr.bf16.mxu0 0
        %7015 = vmatpush1.bf16.msra.mxu0 %v6995
        %7016 = vmatprep.subr.bf16.mxu0 0
        %7017 = vmatpush1.bf16.msra.mxu0 %v6996
        %7018 = vmatprep.subr.bf16.mxu0 0
        %7019 = vmatpush1.bf16.msra.mxu0 %v6997
        %7020 = vmatprep.subr.bf16.mxu0 0
        %7021 = vmatpush1.bf16.msra.mxu0 %v6998
        %7022 = vmatprep.subr.bf16.mxu0 0
        %7023 = vmatpush1.bf16.msra.mxu0 %v6999
        %7024 = vmatprep.subr.bf16.mxu0 0
        %7025 = vmatpush1.bf16.msra.mxu0 0
        %7026 = vmatprep.subr.bf16.mxu0 0
        %7027 = vmatpush1.bf16.msra.mxu0 0
        %7028 = vmatprep.subr.bf16.mxu0 0
        %7029 = vmatpush1.bf16.msra.mxu0 0
        %7030 = vmatprep.subr.bf16.mxu0 0
        %7031 = vmatpush1.bf16.msra.mxu0 0
        %7032 = vmatprep.subr.bf16.mxu0 0
        %7033 = vmatpush1.bf16.msra.mxu0 0
        %7034 = vmatprep.subr.bf16.mxu0 0
        %7035 = vmatpush1.bf16.msra.mxu0 0
        %7036 = vmatprep.subr.bf16.mxu0 0
        %7037 = vmatpush1.bf16.msra.mxu0 0
        %7038 = vmatprep.subr.bf16.mxu0 0
        %7039 = vmatpush1.bf16.msra.mxu0 0
        %7040 = vmatprep.mubr.bf16.mxu0 0
        %7041 = vmatmul.mubr.bf16.gmra.mrb[0].mxu0 %v6927
        %v7042 = vpop.f32.mrb[0].mxu0
        %v7043 = vadd.f32 0.0, %v7042
        %v7044 = vpop.f32.mrb[0].mxu0
        %v7045 = vpop.f32.mrb[0].mxu0
        %v7046 = vadd.f32 0.0, %v7045
        %v7047 = vpop.f32.mrb[0].mxu0
        %7048 = vmatprep.mubr.bf16.mxu0 0
        %7049 = vmatmul.mubr.bf16.gmra.mrb[0].mxu0 %v6928
        %v7050 = vpop.f32.mrb[0].mxu0
        %v7051 = vadd.f32 0.0, %v7050
        %v7052 = vpop.f32.mrb[0].mxu0
        %v7053 = vpop.f32.mrb[0].mxu0
        %v7054 = vadd.f32 0.0, %v7053
        %v7055 = vpop.f32.mrb[0].mxu0
        %7056 = vmatprep.mubr.bf16.mxu0 0
        %7057 = vmatmul.mubr.bf16.gmra.mrb[0].mxu0 %v6929
        %v7058 = vpop.f32.mrb[0].mxu0
        %v7059 = vadd.f32 0.0, %v7058
        %v7060 = vpop.f32.mrb[0].mxu0
        %v7061 = vpop.f32.mrb[0].mxu0
        %v7062 = vadd.f32 0.0, %v7061
        %v7063 = vpop.f32.mrb[0].mxu0
        %7064 = vmatprep.mubr.bf16.mxu0 0
        %7065 = vmatmul.mubr.bf16.gmra.mrb[0].mxu0 %v6930
        %v7066 = vpop.f32.mrb[0].mxu0
        %v7067 = vadd.f32 0.0, %v7066
        %v7068 = vpop.f32.mrb[0].mxu0
        %v7069 = vpop.f32.mrb[0].mxu0
        %v7070 = vadd.f32 0.0, %v7069
        %v7071 = vpop.f32.mrb[0].mxu0
        %7072 = vmatprep.mubr.bf16.mxu0 0
        %7073 = vmatmul.mubr.bf16.gmra.mrb[0].mxu0 %v6931
        %v7074 = vpop.f32.mrb[0].mxu0
        %v7075 = vadd.f32 0.0, %v7074
        %v7076 = vpop.f32.mrb[0].mxu0
        %v7077 = vpop.f32.mrb[0].mxu0
        %v7078 = vadd.f32 0.0, %v7077
        %v7079 = vpop.f32.mrb[0].mxu0
        %7080 = vmatprep.mubr.bf16.mxu0 0
        %7081 = vmatmul.mubr.bf16.gmra.mrb[0].mxu0 %v6932
        %v7082 = vpop.f32.mrb[0].mxu0
        %v7083 = vadd.f32 0.0, %v7082
        %v7084 = vpop.f32.mrb[0].mxu0
        %v7085 = vpop.f32.mrb[0].mxu0
        %v7086 = vadd.f32 0.0, %v7085
        %v7087 = vpop.f32.mrb[0].mxu0
        %7088 = vmatprep.mubr.bf16.mxu0 0
        %7089 = vmatmul.mubr.bf16.gmra.mrb[0].mxu0 %v6933
        %v7090 = vpop.f32.mrb[0].mxu0
        %v7091 = vadd.f32 0.0, %v7090
        %v7092 = vpop.f32.mrb[0].mxu0
        %v7093 = vpop.f32.mrb[0].mxu0
        %v7094 = vadd.f32 0.0, %v7093
        %v7095 = vpop.f32.mrb[0].mxu0
        %7096 = vmatprep.mubr.bf16.mxu0 0
        %7097 = vmatmul.mubr.bf16.gmra.mrb[0].mxu0 %v6934
        %v7098 = vpop.f32.mrb[0].mxu0
        %v7099 = vadd.f32 0.0, %v7098
        %v7100 = vpop.f32.mrb[0].mxu0
        %v7101 = vpop.f32.mrb[0].mxu0
        %v7102 = vadd.f32 0.0, %v7101
        %v7103 = vpop.f32.mrb[0].mxu0
        %7104 = vmatprep.mubr.bf16.mxu0 0
        %7105 = vmatmul.mubr.bf16.gmra.mrb[0].mxu0 %v6935
        %v7106 = vpop.f32.mrb[0].mxu0
        %v7107 = vadd.f32 0.0, %v7106
        %v7108 = vpop.f32.mrb[0].mxu0
        %v7109 = vpop.f32.mrb[0].mxu0
        %v7110 = vadd.f32 0.0, %v7109
        %v7111 = vpop.f32.mrb[0].mxu0
        %7112 = vmatprep.mubr.bf16.mxu0 0
        %7113 = vmatmul.mubr.bf16.gmra.mrb[0].mxu0 %v6936
        %v7114 = vpop.f32.mrb[0].mxu0
        %v7115 = vadd.f32 0.0, %v7114
        %v7116 = vpop.f32.mrb[0].mxu0
        %v7117 = vpop.f32.mrb[0].mxu0
        %v7118 = vadd.f32 0.0, %v7117
        %v7119 = vpop.f32.mrb[0].mxu0
        %7120 = vmatprep.mubr.bf16.mxu0 0
        %7121 = vmatmul.mubr.bf16.gmra.mrb[0].mxu0 %v6937
        %v7122 = vpop.f32.mrb[0].mxu0
        %v7123 = vadd.f32 0.0, %v7122
        %v7124 = vpop.f32.mrb[0].mxu0
        %v7125 = vpop.f32.mrb[0].mxu0
        %v7126 = vadd.f32 0.0, %v7125
        %v7127 = vpop.f32.mrb[0].mxu0
        %7128 = vmatprep.mubr.bf16.mxu0 0
        %7129 = vmatmul.mubr.bf16.gmra.mrb[0].mxu0 %v6938
        %v7130 = vpop.f32.mrb[0].mxu0
        %v7131 = vadd.f32 0.0, %v7130
        %v7132 = vpop.f32.mrb[0].mxu0
        %v7133 = vpop.f32.mrb[0].mxu0
        %v7134 = vadd.f32 0.0, %v7133
        %v7135 = vpop.f32.mrb[0].mxu0
        %7136 = vmatprep.mubr.bf16.mxu0 0
        %7137 = vmatmul.mubr.bf16.gmra.mrb[0].mxu0 %v6939
        %v7138 = vpop.f32.mrb[0].mxu0
        %v7139 = vadd.f32 0.0, %v7138
        %v7140 = vpop.f32.mrb[0].mxu0
        %v7141 = vpop.f32.mrb[0].mxu0
        %v7142 = vadd.f32 0.0, %v7141
        %v7143 = vpop.f32.mrb[0].mxu0
        %7144 = vmatprep.mubr.bf16.mxu0 0
        %7145 = vmatmul.mubr.bf16.gmra.mrb[0].mxu0 %v6940
        %v7146 = vpop.f32.mrb[0].mxu0
        %v7147 = vadd.f32 0.0, %v7146
        %v7148 = vpop.f32.mrb[0].mxu0
        %v7149 = vpop.f32.mrb[0].mxu0
        %v7150 = vadd.f32 0.0, %v7149
        %v7151 = vpop.f32.mrb[0].mxu0
        %7152 = vmatprep.mubr.bf16.mxu0 0
        %7153 = vmatmul.mubr.bf16.gmra.mrb[0].mxu0 %v6941
        %v7154 = vpop.f32.mrb[0].mxu0
        %v7155 = vadd.f32 0.0, %v7154
        %v7156 = vpop.f32.mrb[0].mxu0
        %v7157 = vpop.f32.mrb[0].mxu0
        %v7158 = vadd.f32 0.0, %v7157
        %v7159 = vpop.f32.mrb[0].mxu0
        %7160 = vmatprep.mubr.bf16.mxu0 0
        %7161 = vmatmul.mubr.bf16.gmra.mrb[0].mxu0 %v6942
        %v7162 = vpop.f32.mrb[0].mxu0
        %v7163 = vadd.f32 0.0, %v7162
        %v7164 = vpop.f32.mrb[0].mxu0
        %v7165 = vpop.f32.mrb[0].mxu0
        %v7166 = vadd.f32 0.0, %v7165
        %v7167 = vpop.f32.mrb[0].mxu0
        %7168 = vdwg.mxu0
        %v7169 = vadd.f32 %v6863, %v7043
        %v7170 = vadd.f32 %v6864, %v7046
        %v7171 = vadd.f32 %v6865, %v7051
        %v7172 = vadd.f32 %v6866, %v7054
        %v7173 = vadd.f32 %v6867, %v7059
        %v7174 = vadd.f32 %v6868, %v7062
        %v7175 = vadd.f32 %v6869, %v7067
        %v7176 = vadd.f32 %v6870, %v7070
        %v7177 = vadd.f32 %v6871, %v7075
        %v7178 = vadd.f32 %v6872, %v7078
        %v7179 = vadd.f32 %v6873, %v7083
        %v7180 = vadd.f32 %v6874, %v7086
        %v7181 = vadd.f32 %v6875, %v7091
        %v7182 = vadd.f32 %v6876, %v7094
        %v7183 = vadd.f32 %v6877, %v7099
        %v7184 = vadd.f32 %v6878, %v7102
        %v7185 = vadd.f32 %v6879, %v7107
        %v7186 = vadd.f32 %v6880, %v7110
        %v7187 = vadd.f32 %v6881, %v7115
        %v7188 = vadd.f32 %v6882, %v7118
        %v7189 = vadd.f32 %v6883, %v7123
        %v7190 = vadd.f32 %v6884, %v7126
        %v7191 = vadd.f32 %v6885, %v7131
        %v7192 = vadd.f32 %v6886, %v7134
        %v7193 = vadd.f32 %v6887, %v7139
        %v7194 = vadd.f32 %v6888, %v7142
        %v7195 = vadd.f32 %v6889, %v7147
        %v7196 = vadd.f32 %v6890, %v7150
        %v7197 = vadd.f32 %v6891, %v7155
        %v7198 = vadd.f32 %v6892, %v7158
        %v7199 = vadd.f32 %v6893, %v7163
        %v7200 = vadd.f32 %v6894, %v7166
        %v7201 = vld [vmem:[%s11] sm:$0x1]
        %v7203 = vlaneseq
        %v7204 = vshrl.u32 %v7203, 7
        %v7205 = vsub.s32 0, %v7204
        %v7206 = vrot.slane %v7201, %v7205
        %v7208 = vmul.f32 %v7169, %v7206
        %v7209 = vmul.f32 %v7170, %v7206
        %v7210 = vmul.f32 %v7171, %v7206
        %v7211 = vmul.f32 %v7172, %v7206
        %v7212 = vmul.f32 %v7173, %v7206
        %v7213 = vmul.f32 %v7174, %v7206
        %v7214 = vmul.f32 %v7175, %v7206
        %v7215 = vmul.f32 %v7176, %v7206
        %v7216 = vmul.f32 %v7177, %v7206
        %v7217 = vmul.f32 %v7178, %v7206
        %v7218 = vmul.f32 %v7179, %v7206
        %v7219 = vmul.f32 %v7180, %v7206
        %v7220 = vmul.f32 %v7181, %v7206
        %v7221 = vmul.f32 %v7182, %v7206
        %v7222 = vmul.f32 %v7183, %v7206
        %v7223 = vmul.f32 %v7184, %v7206
        %v7224 = vmul.f32 %v7185, %v7206
        %v7225 = vmul.f32 %v7186, %v7206
        %v7226 = vmul.f32 %v7187, %v7206
        %v7227 = vmul.f32 %v7188, %v7206
        %v7228 = vmul.f32 %v7189, %v7206
        %v7229 = vmul.f32 %v7190, %v7206
        %v7230 = vmul.f32 %v7191, %v7206
        %v7231 = vmul.f32 %v7192, %v7206
        %v7232 = vmul.f32 %v7193, %v7206
        %v7233 = vmul.f32 %v7194, %v7206
        %v7234 = vmul.f32 %v7195, %v7206
        %v7235 = vmul.f32 %v7196, %v7206
        %v7236 = vmul.f32 %v7197, %v7206
        %v7237 = vmul.f32 %v7198, %v7206
        %v7238 = vmul.f32 %v7199, %v7206
        %v7239 = vmul.f32 %v7200, %v7206
        %v7240 = vld [vmem:[%s12] sm:$0x1]
        %v7242 = vlaneseq
        %v7243 = vshrl.u32 %v7242, 7
        %v7244 = vsub.s32 0, %v7243
        %v7245 = vrot.slane %v7240, %v7244
        %v7247 = vadd.f32 %v7208, %v7245
        %v7248 = vadd.f32 %v7209, %v7245
        %v7249 = vadd.f32 %v7210, %v7245
        %v7250 = vadd.f32 %v7211, %v7245
        %v7251 = vadd.f32 %v7212, %v7245
        %v7252 = vadd.f32 %v7213, %v7245
        %v7253 = vadd.f32 %v7214, %v7245
        %v7254 = vadd.f32 %v7215, %v7245
        %v7255 = vadd.f32 %v7216, %v7245
        %v7256 = vadd.f32 %v7217, %v7245
        %v7257 = vadd.f32 %v7218, %v7245
        %v7258 = vadd.f32 %v7219, %v7245
        %v7259 = vadd.f32 %v7220, %v7245
        %v7260 = vadd.f32 %v7221, %v7245
        %v7261 = vadd.f32 %v7222, %v7245
        %v7262 = vadd.f32 %v7223, %v7245
        %v7263 = vadd.f32 %v7224, %v7245
        %v7264 = vadd.f32 %v7225, %v7245
        %v7265 = vadd.f32 %v7226, %v7245
        %v7266 = vadd.f32 %v7227, %v7245
        %v7267 = vadd.f32 %v7228, %v7245
        %v7268 = vadd.f32 %v7229, %v7245
        %v7269 = vadd.f32 %v7230, %v7245
        %v7270 = vadd.f32 %v7231, %v7245
        %v7271 = vadd.f32 %v7232, %v7245
        %v7272 = vadd.f32 %v7233, %v7245
        %v7273 = vadd.f32 %v7234, %v7245
        %v7274 = vadd.f32 %v7235, %v7245
        %v7275 = vadd.f32 %v7236, %v7245
        %v7276 = vadd.f32 %v7237, %v7245
        %v7277 = vadd.f32 %v7238, %v7245
        %v7278 = vadd.f32 %v7239, %v7245
        %vm7279 = vcmp.gt.f32.partialorder %v7247, 0.0
        %vm7280 = vcmp.gt.f32.partialorder %v7248, 0.0
        %vm7281 = vcmp.gt.f32.partialorder %v7249, 0.0
        %vm7282 = vcmp.gt.f32.partialorder %v7250, 0.0
        %vm7283 = vcmp.gt.f32.partialorder %v7251, 0.0
        %vm7284 = vcmp.gt.f32.partialorder %v7252, 0.0
        %vm7285 = vcmp.gt.f32.partialorder %v7253, 0.0
        %vm7286 = vcmp.gt.f32.partialorder %v7254, 0.0
        %vm7287 = vcmp.gt.f32.partialorder %v7255, 0.0
        %vm7288 = vcmp.gt.f32.partialorder %v7256, 0.0
        %vm7289 = vcmp.gt.f32.partialorder %v7257, 0.0
        %vm7290 = vcmp.gt.f32.partialorder %v7258, 0.0
        %vm7291 = vcmp.gt.f32.partialorder %v7259, 0.0
        %vm7292 = vcmp.gt.f32.partialorder %v7260, 0.0
        %vm7293 = vcmp.gt.f32.partialorder %v7261, 0.0
        %vm7294 = vcmp.gt.f32.partialorder %v7262, 0.0
        %vm7295 = vcmp.gt.f32.partialorder %v7263, 0.0
        %vm7296 = vcmp.gt.f32.partialorder %v7264, 0.0
        %vm7297 = vcmp.gt.f32.partialorder %v7265, 0.0
        %vm7298 = vcmp.gt.f32.partialorder %v7266, 0.0
        %vm7299 = vcmp.gt.f32.partialorder %v7267, 0.0
        %vm7300 = vcmp.gt.f32.partialorder %v7268, 0.0
        %vm7301 = vcmp.gt.f32.partialorder %v7269, 0.0
        %vm7302 = vcmp.gt.f32.partialorder %v7270, 0.0
        %vm7303 = vcmp.gt.f32.partialorder %v7271, 0.0
        %vm7304 = vcmp.gt.f32.partialorder %v7272, 0.0
        %vm7305 = vcmp.gt.f32.partialorder %v7273, 0.0
        %vm7306 = vcmp.gt.f32.partialorder %v7274, 0.0
        %vm7307 = vcmp.gt.f32.partialorder %v7275, 0.0
        %vm7308 = vcmp.gt.f32.partialorder %v7276, 0.0
        %vm7309 = vcmp.gt.f32.partialorder %v7277, 0.0
        %vm7310 = vcmp.gt.f32.partialorder %v7278, 0.0
        %v7311 = vmul.f32 %v7247, 0.1
        %v7312 = vmul.f32 %v7248, 0.1
        %v7313 = vmul.f32 %v7249, 0.1
        %v7314 = vmul.f32 %v7250, 0.1
        %v7315 = vmul.f32 %v7251, 0.1
        %v7316 = vmul.f32 %v7252, 0.1
        %v7317 = vmul.f32 %v7253, 0.1
        %v7318 = vmul.f32 %v7254, 0.1
        %v7319 = vmul.f32 %v7255, 0.1
        %v7320 = vmul.f32 %v7256, 0.1
        %v7321 = vmul.f32 %v7257, 0.1
        %v7322 = vmul.f32 %v7258, 0.1
        %v7323 = vmul.f32 %v7259, 0.1
        %v7324 = vmul.f32 %v7260, 0.1
        %v7325 = vmul.f32 %v7261, 0.1
        %v7326 = vmul.f32 %v7262, 0.1
        %v7327 = vmul.f32 %v7263, 0.1
        %v7328 = vmul.f32 %v7264, 0.1
        %v7329 = vmul.f32 %v7265, 0.1
        %v7330 = vmul.f32 %v7266, 0.1
        %v7331 = vmul.f32 %v7267, 0.1
        %v7332 = vmul.f32 %v7268, 0.1
        %v7333 = vmul.f32 %v7269, 0.1
        %v7334 = vmul.f32 %v7270, 0.1
        %v7335 = vmul.f32 %v7271, 0.1
        %v7336 = vmul.f32 %v7272, 0.1
        %v7337 = vmul.f32 %v7273, 0.1
        %v7338 = vmul.f32 %v7274, 0.1
        %v7339 = vmul.f32 %v7275, 0.1
        %v7340 = vmul.f32 %v7276, 0.1
        %v7341 = vmul.f32 %v7277, 0.1
        %v7342 = vmul.f32 %v7278, 0.1
        %v7343 = vsel %vm7279, %v7247, %v7311
        %v7344 = vsel %vm7280, %v7248, %v7312
        %v7345 = vsel %vm7281, %v7249, %v7313
        %v7346 = vsel %vm7282, %v7250, %v7314
        %v7347 = vsel %vm7283, %v7251, %v7315
        %v7348 = vsel %vm7284, %v7252, %v7316
        %v7349 = vsel %vm7285, %v7253, %v7317
        %v7350 = vsel %vm7286, %v7254, %v7318
        %v7351 = vsel %vm7287, %v7255, %v7319
        %v7352 = vsel %vm7288, %v7256, %v7320
        %v7353 = vsel %vm7289, %v7257, %v7321
        %v7354 = vsel %vm7290, %v7258, %v7322
        %v7355 = vsel %vm7291, %v7259, %v7323
        %v7356 = vsel %vm7292, %v7260, %v7324
        %v7357 = vsel %vm7293, %v7261, %v7325
        %v7358 = vsel %vm7294, %v7262, %v7326
        %v7359 = vsel %vm7295, %v7263, %v7327
        %v7360 = vsel %vm7296, %v7264, %v7328
        %v7361 = vsel %vm7297, %v7265, %v7329
        %v7362 = vsel %vm7298, %v7266, %v7330
        %v7363 = vsel %vm7299, %v7267, %v7331
        %v7364 = vsel %vm7300, %v7268, %v7332
        %v7365 = vsel %vm7301, %v7269, %v7333
        %v7366 = vsel %vm7302, %v7270, %v7334
        %v7367 = vsel %vm7303, %v7271, %v7335
        %v7368 = vsel %vm7304, %v7272, %v7336
        %v7369 = vsel %vm7305, %v7273, %v7337
        %v7370 = vsel %vm7306, %v7274, %v7338
        %v7371 = vsel %vm7307, %v7275, %v7339
        %v7372 = vsel %vm7308, %v7276, %v7340
        %v7373 = vsel %vm7309, %v7277, %v7341
        %v7374 = vsel %vm7310, %v7278, %v7342
        %v7375 = vpack.c.bf16 %v7344, %v7343
        %v7376 = vpack.c.bf16 %v7346, %v7345
        %v7377 = vpack.c.bf16 %v7348, %v7347
        %v7378 = vpack.c.bf16 %v7350, %v7349
        %v7379 = vpack.c.bf16 %v7352, %v7351
        %v7380 = vpack.c.bf16 %v7354, %v7353
        %v7381 = vpack.c.bf16 %v7356, %v7355
        %v7382 = vpack.c.bf16 %v7358, %v7357
        %v7383 = vpack.c.bf16 %v7360, %v7359
        %v7384 = vpack.c.bf16 %v7362, %v7361
        %v7385 = vpack.c.bf16 %v7364, %v7363
        %v7386 = vpack.c.bf16 %v7366, %v7365
        %v7387 = vpack.c.bf16 %v7368, %v7367
        %v7388 = vpack.c.bf16 %v7370, %v7369
        %v7389 = vpack.c.bf16 %v7372, %v7371
        %v7390 = vpack.c.bf16 %v7374, %v7373
        %v7391 = vld [vmem:[#allocation12] sm:$0xf]
        %v7392 = vld [vmem:[#allocation12 + $0x4] sm:$0xf]
        %v7393 = vld [vmem:[#allocation12 + $0x8] sm:$0xf]
        %v7394 = vld [vmem:[#allocation12 + $0xc] sm:$0xf]
        %v7395 = vld [vmem:[#allocation12 + $0x10] sm:$0xf]
        %v7396 = vld [vmem:[#allocation12 + $0x14] sm:$0xf]
        %v7397 = vld [vmem:[#allocation12 + $0x18] sm:$0xf]
        %v7398 = vld [vmem:[#allocation12 + $0x1c] sm:$0xf]
        %v7399 = vld [vmem:[#allocation12 + $0x20] sm:$0xf]
        %v7400 = vld [vmem:[#allocation12 + $0x24] sm:$0xf]
        %v7401 = vld [vmem:[#allocation12 + $0x28] sm:$0xf]
        %v7402 = vld [vmem:[#allocation12 + $0x2c] sm:$0xf]
        %v7403 = vld [vmem:[#allocation12 + $0x30] sm:$0xf]
        %v7404 = vld [vmem:[#allocation12 + $0x34] sm:$0xf]
        %v7405 = vld [vmem:[#allocation12 + $0x38] sm:$0xf]
        %v7406 = vld [vmem:[#allocation12 + $0x3c] sm:$0xf]
        %v7407 = vld [vmem:[%s14] sm:$0x1]
        %v7409 = vlaneseq
        %v7410 = vshrl.u32 %v7409, 7
        %v7411 = vsub.s32 0, %v7410
        %v7412 = vrot.slane %v7407, %v7411
        %v7430 = vunpack.c.l.b16 %v7391
        %v7431 = vunpack.c.l.b16 %v7392
        %v7432 = vunpack.c.l.b16 %v7393
        %v7433 = vunpack.c.l.b16 %v7394
        %v7434 = vunpack.c.l.b16 %v7395
        %v7435 = vunpack.c.l.b16 %v7396
        %v7436 = vunpack.c.l.b16 %v7397
        %v7437 = vunpack.c.l.b16 %v7398
        %v7438 = vunpack.c.l.b16 %v7399
        %v7439 = vunpack.c.l.b16 %v7400
        %v7440 = vunpack.c.l.b16 %v7401
        %v7441 = vunpack.c.l.b16 %v7402
        %v7442 = vunpack.c.l.b16 %v7403
        %v7443 = vunpack.c.l.b16 %v7404
        %v7444 = vunpack.c.l.b16 %v7405
        %v7445 = vunpack.c.l.b16 %v7406
        %v7446 = vpack.c.b16 %v7431, %v7430
        %v7447 = vpack.c.b16 %v7433, %v7432
        %v7448 = vpack.c.b16 %v7435, %v7434
        %v7449 = vpack.c.b16 %v7437, %v7436
        %v7450 = vpack.c.b16 %v7439, %v7438
        %v7451 = vpack.c.b16 %v7441, %v7440
        %v7452 = vpack.c.b16 %v7443, %v7442
        %v7453 = vpack.c.b16 %v7445, %v7444
        %7462 = vmatprep.subr.bf16.mxu0 0
        %7463 = vmatpush1.bf16.msra.mxu0 %v7446
        %7464 = vmatprep.subr.bf16.mxu0 0
        %7465 = vmatpush1.bf16.msra.mxu0 %v7447
        %7466 = vmatprep.subr.bf16.mxu0 0
        %7467 = vmatpush1.bf16.msra.mxu0 %v7448
        %7468 = vmatprep.subr.bf16.mxu0 0
        %7469 = vmatpush1.bf16.msra.mxu0 %v7449
        %7470 = vmatprep.subr.bf16.mxu0 0
        %7471 = vmatpush1.bf16.msra.mxu0 %v7450
        %7472 = vmatprep.subr.bf16.mxu0 0
        %7473 = vmatpush1.bf16.msra.mxu0 %v7451
        %7474 = vmatprep.subr.bf16.mxu0 0
        %7475 = vmatpush1.bf16.msra.mxu0 %v7452
        %7476 = vmatprep.subr.bf16.mxu0 0
        %7477 = vmatpush1.bf16.msra.mxu0 %v7453
        %7478 = vmatprep.subr.bf16.mxu0 0
        %7479 = vmatpush1.bf16.msra.mxu0 0
        %7480 = vmatprep.subr.bf16.mxu0 0
        %7481 = vmatpush1.bf16.msra.mxu0 0
        %7482 = vmatprep.subr.bf16.mxu0 0
        %7483 = vmatpush1.bf16.msra.mxu0 0
        %7484 = vmatprep.subr.bf16.mxu0 0
        %7485 = vmatpush1.bf16.msra.mxu0 0
        %7486 = vmatprep.subr.bf16.mxu0 0
        %7487 = vmatpush1.bf16.msra.mxu0 0
        %7488 = vmatprep.subr.bf16.mxu0 0
        %7489 = vmatpush1.bf16.msra.mxu0 0
        %7490 = vmatprep.subr.bf16.mxu0 0
        %7491 = vmatpush1.bf16.msra.mxu0 0
        %7492 = vmatprep.subr.bf16.mxu0 0
        %7493 = vmatpush1.bf16.msra.mxu0 0
        %7494 = vmatprep.mubr.bf16.mxu0 0
        %7495 = vmatmul.mubr.bf16.gmra.mrb[0].mxu0 %v7375
        %v7496 = vpop.f32.mrb[0].mxu0
        %v7497 = vadd.f32 %v7412, %v7496
        %v7498 = vpop.f32.mrb[0].mxu0
        %v7499 = vpop.f32.mrb[0].mxu0
        %v7500 = vadd.f32 %v7412, %v7499
        %v7501 = vpop.f32.mrb[0].mxu0
        %7502 = vmatprep.mubr.bf16.mxu0 0
        %7503 = vmatmul.mubr.bf16.gmra.mrb[0].mxu0 %v7376
        %v7504 = vpop.f32.mrb[0].mxu0
        %v7505 = vadd.f32 %v7412, %v7504
        %v7506 = vpop.f32.mrb[0].mxu0
        %v7507 = vpop.f32.mrb[0].mxu0
        %v7508 = vadd.f32 %v7412, %v7507
        %v7509 = vpop.f32.mrb[0].mxu0
        %7510 = vmatprep.mubr.bf16.mxu0 0
        %7511 = vmatmul.mubr.bf16.gmra.mrb[0].mxu0 %v7377
        %v7512 = vpop.f32.mrb[0].mxu0
        %v7513 = vadd.f32 %v7412, %v7512
        %v7514 = vpop.f32.mrb[0].mxu0
        %v7515 = vpop.f32.mrb[0].mxu0
        %v7516 = vadd.f32 %v7412, %v7515
        %v7517 = vpop.f32.mrb[0].mxu0
        %7518 = vmatprep.mubr.bf16.mxu0 0
        %7519 = vmatmul.mubr.bf16.gmra.mrb[0].mxu0 %v7378
        %v7520 = vpop.f32.mrb[0].mxu0
        %v7521 = vadd.f32 %v7412, %v7520
        %v7522 = vpop.f32.mrb[0].mxu0
        %v7523 = vpop.f32.mrb[0].mxu0
        %v7524 = vadd.f32 %v7412, %v7523
        %v7525 = vpop.f32.mrb[0].mxu0
        %7526 = vmatprep.mubr.bf16.mxu0 0
        %7527 = vmatmul.mubr.bf16.gmra.mrb[0].mxu0 %v7379
        %v7528 = vpop.f32.mrb[0].mxu0
        %v7529 = vadd.f32 %v7412, %v7528
        %v7530 = vpop.f32.mrb[0].mxu0
        %v7531 = vpop.f32.mrb[0].mxu0
        %v7532 = vadd.f32 %v7412, %v7531
        %v7533 = vpop.f32.mrb[0].mxu0
        %7534 = vmatprep.mubr.bf16.mxu0 0
        %7535 = vmatmul.mubr.bf16.gmra.mrb[0].mxu0 %v7380
        %v7536 = vpop.f32.mrb[0].mxu0
        %v7537 = vadd.f32 %v7412, %v7536
        %v7538 = vpop.f32.mrb[0].mxu0
        %v7539 = vpop.f32.mrb[0].mxu0
        %v7540 = vadd.f32 %v7412, %v7539
        %v7541 = vpop.f32.mrb[0].mxu0
        %7542 = vmatprep.mubr.bf16.mxu0 0
        %7543 = vmatmul.mubr.bf16.gmra.mrb[0].mxu0 %v7381
        %v7544 = vpop.f32.mrb[0].mxu0
        %v7545 = vadd.f32 %v7412, %v7544
        %v7546 = vpop.f32.mrb[0].mxu0
        %v7547 = vpop.f32.mrb[0].mxu0
        %v7548 = vadd.f32 %v7412, %v7547
        %v7549 = vpop.f32.mrb[0].mxu0
        %7550 = vmatprep.mubr.bf16.mxu0 0
        %7551 = vmatmul.mubr.bf16.gmra.mrb[0].mxu0 %v7382
        %v7552 = vpop.f32.mrb[0].mxu0
        %v7553 = vadd.f32 %v7412, %v7552
        %v7554 = vpop.f32.mrb[0].mxu0
        %v7555 = vpop.f32.mrb[0].mxu0
        %v7556 = vadd.f32 %v7412, %v7555
        %v7557 = vpop.f32.mrb[0].mxu0
        %7558 = vmatprep.mubr.bf16.mxu0 0
        %7559 = vmatmul.mubr.bf16.gmra.mrb[0].mxu0 %v7383
        %v7560 = vpop.f32.mrb[0].mxu0
        %v7561 = vadd.f32 %v7412, %v7560
        %v7562 = vpop.f32.mrb[0].mxu0
        %v7563 = vpop.f32.mrb[0].mxu0
        %v7564 = vadd.f32 %v7412, %v7563
        %v7565 = vpop.f32.mrb[0].mxu0
        %7566 = vmatprep.mubr.bf16.mxu0 0
        %7567 = vmatmul.mubr.bf16.gmra.mrb[0].mxu0 %v7384
        %v7568 = vpop.f32.mrb[0].mxu0
        %v7569 = vadd.f32 %v7412, %v7568
        %v7570 = vpop.f32.mrb[0].mxu0
        %v7571 = vpop.f32.mrb[0].mxu0
        %v7572 = vadd.f32 %v7412, %v7571
        %v7573 = vpop.f32.mrb[0].mxu0
        %7574 = vmatprep.mubr.bf16.mxu0 0
        %7575 = vmatmul.mubr.bf16.gmra.mrb[0].mxu0 %v7385
        %v7576 = vpop.f32.mrb[0].mxu0
        %v7577 = vadd.f32 %v7412, %v7576
        %v7578 = vpop.f32.mrb[0].mxu0
        %v7579 = vpop.f32.mrb[0].mxu0
        %v7580 = vadd.f32 %v7412, %v7579
        %v7581 = vpop.f32.mrb[0].mxu0
        %7582 = vmatprep.mubr.bf16.mxu0 0
        %7583 = vmatmul.mubr.bf16.gmra.mrb[0].mxu0 %v7386
        %v7584 = vpop.f32.mrb[0].mxu0
        %v7585 = vadd.f32 %v7412, %v7584
        %v7586 = vpop.f32.mrb[0].mxu0
        %v7587 = vpop.f32.mrb[0].mxu0
        %v7588 = vadd.f32 %v7412, %v7587
        %v7589 = vpop.f32.mrb[0].mxu0
        %7590 = vmatprep.mubr.bf16.mxu0 0
        %7591 = vmatmul.mubr.bf16.gmra.mrb[0].mxu0 %v7387
        %v7592 = vpop.f32.mrb[0].mxu0
        %v7593 = vadd.f32 %v7412, %v7592
        %v7594 = vpop.f32.mrb[0].mxu0
        %v7595 = vpop.f32.mrb[0].mxu0
        %v7596 = vadd.f32 %v7412, %v7595
        %v7597 = vpop.f32.mrb[0].mxu0
        %7598 = vmatprep.mubr.bf16.mxu0 0
        %7599 = vmatmul.mubr.bf16.gmra.mrb[0].mxu0 %v7388
        %v7600 = vpop.f32.mrb[0].mxu0
        %v7601 = vadd.f32 %v7412, %v7600
        %v7602 = vpop.f32.mrb[0].mxu0
        %v7603 = vpop.f32.mrb[0].mxu0
        %v7604 = vadd.f32 %v7412, %v7603
        %v7605 = vpop.f32.mrb[0].mxu0
        %7606 = vmatprep.mubr.bf16.mxu0 0
        %7607 = vmatmul.mubr.bf16.gmra.mrb[0].mxu0 %v7389
        %v7608 = vpop.f32.mrb[0].mxu0
        %v7609 = vadd.f32 %v7412, %v7608
        %v7610 = vpop.f32.mrb[0].mxu0
        %v7611 = vpop.f32.mrb[0].mxu0
        %v7612 = vadd.f32 %v7412, %v7611
        %v7613 = vpop.f32.mrb[0].mxu0
        %7614 = vmatprep.mubr.bf16.mxu0 0
        %7615 = vmatmul.mubr.bf16.gmra.mrb[0].mxu0 %v7390
        %v7616 = vpop.f32.mrb[0].mxu0
        %v7617 = vadd.f32 %v7412, %v7616
        %v7618 = vpop.f32.mrb[0].mxu0
        %v7619 = vpop.f32.mrb[0].mxu0
        %v7620 = vadd.f32 %v7412, %v7619
        %v7621 = vpop.f32.mrb[0].mxu0
        %7622 = vdwg.mxu0
        %7623 = vst [vmem:[%s585] sm:$0xff] %v7497
        %7624 = vst [vmem:[%s585 + $0x8] sm:$0xff] %v7500
        %7625 = vst [vmem:[%s585 + $0x10] sm:$0xff] %v7505
        %7626 = vst [vmem:[%s585 + $0x18] sm:$0xff] %v7508
        %7627 = vst [vmem:[%s585 + $0x20] sm:$0xff] %v7513
        %7628 = vst [vmem:[%s585 + $0x28] sm:$0xff] %v7516
        %7629 = vst [vmem:[%s585 + $0x30] sm:$0xff] %v7521
        %7630 = vst [vmem:[%s585 + $0x38] sm:$0xff] %v7524
        %7631 = vst [vmem:[%s585 + $0x40] sm:$0xff] %v7529
        %7632 = vst [vmem:[%s585 + $0x48] sm:$0xff] %v7532
        %7633 = vst [vmem:[%s585 + $0x50] sm:$0xff] %v7537
        %7634 = vst [vmem:[%s585 + $0x58] sm:$0xff] %v7540
        %7635 = vst [vmem:[%s585 + $0x60] sm:$0xff] %v7545
        %7636 = vst [vmem:[%s585 + $0x68] sm:$0xff] %v7548
        %7637 = vst [vmem:[%s585 + $0x70] sm:$0xff] %v7553
        %7638 = vst [vmem:[%s585 + $0x78] sm:$0xff] %v7556
        %7639 = vst [vmem:[%s585 + $0x80] sm:$0xff] %v7561
        %7640 = vst [vmem:[%s585 + $0x88] sm:$0xff] %v7564
        %7641 = vst [vmem:[%s585 + $0x90] sm:$0xff] %v7569
        %7642 = vst [vmem:[%s585 + $0x98] sm:$0xff] %v7572
        %7643 = vst [vmem:[%s585 + $0xa0] sm:$0xff] %v7577
        %7644 = vst [vmem:[%s585 + $0xa8] sm:$0xff] %v7580
        %7645 = vst [vmem:[%s585 + $0xb0] sm:$0xff] %v7585
        %7646 = vst [vmem:[%s585 + $0xb8] sm:$0xff] %v7588
        %7647 = vst [vmem:[%s585 + $0xc0] sm:$0xff] %v7593
        %7648 = vst [vmem:[%s585 + $0xc8] sm:$0xff] %v7596
        %7649 = vst [vmem:[%s585 + $0xd0] sm:$0xff] %v7601
        %7650 = vst [vmem:[%s585 + $0xd8] sm:$0xff] %v7604
        %7651 = vst [vmem:[%s585 + $0xe0] sm:$0xff] %v7609
        %7652 = vst [vmem:[%s585 + $0xe8] sm:$0xff] %v7612
        %7653 = vst [vmem:[%s585 + $0xf0] sm:$0xff] %v7617
        %7654 = vst [vmem:[%s585 + $0xf8] sm:$0xff] %v7620
        %s7655 = sand.u32 %s363, 1
        %s7656 = scalar_lea.sflag [#allocation5], %s7655
        %s7657 = sand.u32 %s363, 1
        %s7658 = smul.addr %s7657, 256
        %s7659 = scalar_lea.vmem [#allocation14], %s7658
        // Predicated region
        $region105: #{tpu_custom_call.1} parent=79 // pred_check
          %p7660 = pneg %p373
        $region106: #{tpu_custom_call.1} parent=79 // pred_check_branch
          %7662 = sbr.rel (%p7660) target = $region108
        $region107: #{tpu_custom_call.1} parent=79 // pred_region
          %s7664 = ssub.s32 4096, 4096
          %7665 = vsyncadd %s7656, %s7664
          %s7666 = smul.addr %s35, 32
          %s7667 = smul.addr %s7666, 128
          %s7668 = scalar_lea.hbm %s15, %s7667
          %s7669 = sshll.u32 %s7659, 4
          %s7670 = int_to_ptr.vmem [resolvable:$true] %s7669
          %7675 = dma.vmem_to_hbm [thread:$0]  %s7670, 4096, %s7668, %s7656, 128, 128, 8
        $region108: #{tpu_custom_call.1} parent=79 // pred_fallthru
          _
      $region80: #{tpu_custom_call.1} parent=5 // pred_fallthru
        _
      %p7676 = scmp.le.s32.totalorder 2, %s30
      // Predicated region
      $region109: #{tpu_custom_call.1} parent=5 // pred_check
        %p7677 = pneg %p7676
      $region110: #{tpu_custom_call.1} parent=5 // pred_check_branch
        %7679 = sbr.rel (%p7677) target = $region112
      $region111: #{tpu_custom_call.1} parent=5 // pred_region
        %s7680 = ssub.s32 %s30, 2
        // Predicated region
        $region113: #{tpu_custom_call.1} parent=111 // pred_check
          %p7681 = pneg %p379
        $region114: #{tpu_custom_call.1} parent=111 // pred_check_branch
          %7683 = sbr.rel (%p7681) target = $region116
        $region115: #{tpu_custom_call.1} parent=111 // pred_region
          %s7684 = sand.u32 %s364, 1
          %s7685 = scalar_lea.sflag [#allocation5], %s7684
          %s7686 = sand.u32 %s364, 1
          %s7687 = smul.addr %s7686, 256
          %s7688 = scalar_lea.vmem [#allocation14], %s7687
          %7689 = dma.done %s7685, 4096
        $region116: #{tpu_custom_call.1} parent=111 // pred_fallthru
          _
      $region112: #{tpu_custom_call.1} parent=5 // pred_fallthru
        _
    $region6: #{tpu_custom_call.1} parent=1 // loop_footer
      %s34 = sadd.s32 1, %s30
    $region7: #{tpu_custom_call.1} parent=1 // loop_footer_branch
      %29 = sbr.rel target = $region3
    $region8: #{tpu_custom_call.1} parent=1 // loop_exit
      _
    %7690 = vsyncpa [#allocation4], 1
    %s7691 = scalar_lea.sflag [#allocation4], 1
    %7692 = vsyncpa %s7691, 1
    %7693 = vsyncpa [#allocation7], 1
    %7694 = vsyncpa [#allocation10], 1
    %7695 = vsyncpa [#allocation13], 1
    %7696 = vsyncpa [#allocation5], 1
    %s7697 = scalar_lea.sflag [#allocation5], 1
    %7698 = vsyncpa %s7697, 1

</llo_original>
